<compile_context>
chip_gen: v7x
topology: tpu7x:2x2x1
jax: 0.10.0
libtpu: 0.0.40
codegen_flags: <defaults>
</compile_context>

<pallas_src>
import functools
import math

import jax
import jax.numpy as jnp
from jax.experimental import pallas as pl
from jax.experimental.pallas import tpu as pltpu


# ----------------------------- in-kernel helpers ------------------------------

def _mm(a, b):
    """Matmul with bf16 operands and f32 accumulation (native MXU rate on v6e/v7x)."""
    return jnp.dot(a.astype(jnp.bfloat16), b.astype(jnp.bfloat16),
                   preferred_element_type=jnp.float32)


def _add_ln(x, res, g, b, eps=1e-5):
    """y = LayerNorm(x + residual) * gamma + beta   (post-norm, eps=1e-5, f32)."""
    y = x + res
    mu = jnp.mean(y, axis=-1, keepdims=True)
    var = jnp.mean(jnp.square(y - mu), axis=-1, keepdims=True)
    return (y - mu) * jax.lax.rsqrt(var + eps) * g + b


def _dyt(x, alpha_ref, w_ref, b_ref):
    return jnp.tanh(alpha_ref[0, 0] * x) * w_ref[...] + b_ref[...]


def _attend(q, k, v, *, B, Sq, Sk, H, Dh):
    """Softmax attention on fused q/k/v of shape (B*S, H*Dh).

    The 1/sqrt(Dh) scale is already folded into Wq/bq at init.  Batch/head splits are
    static slices (sublane-aligned batch rows, contiguous head lane slices); the
    concatenated result feeds a single full-K output projection outside this function.
    """
    q = q.astype(jnp.bfloat16)
    k = k.astype(jnp.bfloat16)
    v = v.astype(jnp.bfloat16)
    rows = []
    for b in range(B):
        qb = q[b * Sq:(b + 1) * Sq]
        kb = k[b * Sk:(b + 1) * Sk]
        vb = v[b * Sk:(b + 1) * Sk]
        heads = []
        for h in range(H):
            sl = slice(h * Dh, (h + 1) * Dh)
            s = jnp.einsum("qd,kd->qk", qb[:, sl], kb[:, sl],
                           preferred_element_type=jnp.float32)
            p = jnp.exp(s - jnp.max(s, axis=-1, keepdims=True))
            p = p / jnp.sum(p, axis=-1, keepdims=True)          # exact softmax (f32)
            heads.append(jnp.dot(p.astype(jnp.bfloat16), vb[:, sl],
                                 preferred_element_type=jnp.float32))
        rows.append(jnp.concatenate(heads, axis=-1))
    return jnp.concatenate(rows, axis=0)                        # (B*Sq, D) f32


# ----------------------------- fused stack kernels ------------------------------

def _encoder_stack_kernel(alpha_ref, dytw_ref, dytb_ref, x_ref,
                          wq_ref, bq_ref, wk_ref, bk_ref, wv_ref, bv_ref,
                          wo_ref, bo_ref, ln1g_ref, ln1b_ref,
                          w1_ref, b1_ref, w2_ref, b2_ref, ln2g_ref, ln2b_ref,
                          o_ref, *, B, S, H, Dh):
    # o_ref has a constant block index across the layer grid -> it is the VMEM-resident
    # activation carrier for the whole stack (written back to HBM only at the end).
    @pl.when(pl.program_id(0) == 0)
    def _():
        o_ref[...] = _dyt(x_ref[...].astype(jnp.float32),
                          alpha_ref, dytw_ref, dytb_ref).astype(o_ref.dtype)

    x = o_ref[...].astype(jnp.float32)

    # fused lane-dense projections (one full-K matmul each)
    q = _mm(x, wq_ref[...]) + bq_ref[...]
    k = _mm(x, wk_ref[...]) + bk_ref[...]
    v = _mm(x, wv_ref[...]) + bv_ref[...]
    a = _attend(q, k, v, B=B, Sq=S, Sk=S, H=H, Dh=Dh)
    a = _mm(a, wo_ref[...]) + bo_ref[...]              # single full-K output projection
    h1 = _add_ln(a, x, ln1g_ref[...], ln1b_ref[...])

    f = jnp.maximum(_mm(h1, w1_ref[...]) + b1_ref[...], 0.0)
    f = _mm(f, w2_ref[...]) + b2_ref[...]
    o_ref[...] = _add_ln(f, h1, ln2g_ref[...], ln2b_ref[...]).astype(o_ref.dtype)


def _decoder_stack_kernel(alpha_ref, dytw_ref, dytb_ref, x_ref, mem_ref,
                          sqw_ref, sqb_ref, skw_ref, skb_ref, svw_ref, svb_ref,
                          sow_ref, sob_ref, ln1g_ref, ln1b_ref,
                          cqw_ref, cqb_ref, ckw_ref, ckb_ref, cvw_ref, cvb_ref,
                          cow_ref, cob_ref, ln2g_ref, ln2b_ref,
                          w1_ref, b1_ref, w2_ref, b2_ref, ln3g_ref, ln3b_ref,
                          o_ref, *, B, St, Sm, H, Dh):
    @pl.when(pl.program_id(0) == 0)
    def _():
        o_ref[...] = _dyt(x_ref[...].astype(jnp.float32),
                          alpha_ref, dytw_ref, dytb_ref).astype(o_ref.dtype)

    x = o_ref[...].astype(jnp.float32)
    mem = mem_ref[...].astype(jnp.float32)

    # self-attention (unmasked; reference calls the decoder without tgt_mask) + add&norm
    q = _mm(x, sqw_ref[...]) + sqb_ref[...]
    k = _mm(x, skw_ref[...]) + skb_ref[...]
    v = _mm(x, svw_ref[...]) + svb_ref[...]
    a = _attend(q, k, v, B=B, Sq=St, Sk=St, H=H, Dh=Dh)
    a = _mm(a, sow_ref[...]) + sob_ref[...]
    x = _add_ln(a, x, ln1g_ref[...], ln1b_ref[...])

    # cross-attention over encoder memory + add&norm
    q = _mm(x, cqw_ref[...]) + cqb_ref[...]
    k = _mm(mem, ckw_ref[...]) + ckb_ref[...]
    v = _mm(mem, cvw_ref[...]) + cvb_ref[...]
    a = _attend(q, k, v, B=B, Sq=St, Sk=Sm, H=H, Dh=Dh)
    a = _mm(a, cow_ref[...]) + cob_ref[...]
    x = _add_ln(a, x, ln2g_ref[...], ln2b_ref[...])

    # feed-forward + add&norm
    f = jnp.maximum(_mm(x, w1_ref[...]) + b1_ref[...], 0.0)
    f = _mm(f, w2_ref[...]) + b2_ref[...]
    o_ref[...] = _add_ln(f, x, ln3g_ref[...], ln3b_ref[...]).astype(o_ref.dtype)


# ----------------------------- wrappers ------------------------------

def _rep_spec(shape):
    """Full-array block, constant index across the layer grid (fetched once, resident)."""
    nd = len(shape)
    return pl.BlockSpec(shape, lambda l: (0,) * nd)


def _layer_spec(stacked_shape):
    """Stacked (L, ...) weight: one layer per grid step, layer dim squeezed in-kernel."""
    nd = len(stacked_shape)
    block = (None,) + tuple(stacked_shape[1:])
    return pl.BlockSpec(block, lambda l: (l,) + (0,) * (nd - 1))


_COMPILER_PARAMS = pltpu.CompilerParams(
    dimension_semantics=("arbitrary",),          # sequential layer dependency
    vmem_limit_bytes=64 * 1024 * 1024,           # explicit VMEM budget (only weights stream)
)


def run_encoder(src, params, nhead):
    B, S, D = src.shape
    enc, dyt = params["enc"], params["dyt"]
    sa = enc["sa"]
    L = sa["wq"].shape[0]

    args = [dyt["alpha"], dyt["weight"], dyt["bias"], src.reshape(B * S, D),
            sa["wq"], sa["bq"], sa["wk"], sa["bk"], sa["wv"], sa["bv"], sa["wo"], sa["bo"],
            enc["ln1_g"], enc["ln1_b"],
            enc["w1"], enc["b1"], enc["w2"], enc["b2"],
            enc["ln2_g"], enc["ln2_b"]]
    in_specs = [pl.BlockSpec(memory_space=pltpu.MemorySpace.SMEM),   # alpha (1,1)
                _rep_spec((1, D)), _rep_spec((1, D)),                # DyT weight / bias
                _rep_spec((B * S, D))]                               # src (resident)
    in_specs += [_layer_spec(a.shape) for a in args[4:]]             # streamed per layer

    out = pl.pallas_call(
        functools.partial(_encoder_stack_kernel, B=B, S=S, H=nhead, Dh=D // nhead),
        out_shape=jax.ShapeDtypeStruct((B * S, D), jnp.float32),
        grid=(L,),
        in_specs=in_specs,
        out_specs=pl.BlockSpec((B * S, D), lambda l: (0, 0)),
        compiler_params=_COMPILER_PARAMS,
    )(*args)
    return out.reshape(B, S, D)


def run_decoder(tgt, memory, params, nhead):
    B, St, D = tgt.shape
    Sm = memory.shape[1]
    dec, dyt = params["dec"], params["dyt"]
    sa, ca = dec["sa"], dec["ca"]
    L = sa["wq"].shape[0]

    args = [dyt["alpha"], dyt["weight"], dyt["bias"],
            tgt.reshape(B * St, D), memory.reshape(B * Sm, D),
            sa["wq"], sa["bq"], sa["wk"], sa["bk"], sa["wv"], sa["bv"], sa["wo"], sa["bo"],
            dec["ln1_g"], dec["ln1_b"],
            ca["wq"], ca["bq"], ca["wk"], ca["bk"], ca["wv"], ca["bv"], ca["wo"], ca["bo"],
            dec["ln2_g"], dec["ln2_b"],
            dec["w1"], dec["b1"], dec["w2"], dec["b2"],
            dec["ln3_g"], dec["ln3_b"]]
    in_specs = [pl.BlockSpec(memory_space=pltpu.MemorySpace.SMEM),
                _rep_spec((1, D)), _rep_spec((1, D)),
                _rep_spec((B * St, D)),
                _rep_spec((B * Sm, D))]
    in_specs += [_layer_spec(a.shape) for a in args[5:]]

    out = pl.pallas_call(
        functools.partial(_decoder_stack_kernel, B=B, St=St, Sm=Sm, H=nhead, Dh=D // nhead),
        out_shape=jax.ShapeDtypeStruct((B * St, D), jnp.float32),
        grid=(L,),
        in_specs=in_specs,
        out_specs=pl.BlockSpec((B * St, D), lambda l: (0, 0)),
        compiler_params=_COMPILER_PARAMS,
    )(*args)
    return out.reshape(B, St, D)


def dyt_transformer_forward(src, tgt, params, nhead):
    # DyT(src)/DyT(tgt) are fused as prologues of the encoder / decoder stack kernels.
    memory = run_encoder(src, params, nhead)
    return run_decoder(tgt, memory, params, nhead)


# ----------------------------- deterministic params ------------------------------

def init_params(key, d_model, nhead, num_layers, dff):
    D, F, L = d_model, dff, num_layers
    att_scale = 1.0 / math.sqrt(D // nhead)
    keys = iter(jax.random.split(key, 64))

    def w(shape, scale=0.02):
        return scale * jax.random.normal(next(keys), shape, jnp.float32)

    def mha_stack():
        # (in, out)-layout (D, D) projections stacked over layers; 1/sqrt(Dh) folded into
        # Wq/bq; matmul weights stored bf16 (halves weight DMA / resident VMEM).
        return dict(
            wq=(w((L, D, D)) * att_scale).astype(jnp.bfloat16),
            bq=jnp.zeros((L, 1, D), jnp.float32) * att_scale,
            wk=w((L, D, D)).astype(jnp.bfloat16),
            bk=jnp.zeros((L, 1, D), jnp.float32),
            wv=w((L, D, D)).astype(jnp.bfloat16),
            bv=jnp.zeros((L, 1, D), jnp.float32),
            wo=w((L, D, D)).astype(jnp.bfloat16),
            bo=jnp.zeros((L, 1, D), jnp.float32),
        )

    def common_stack():
        return dict(
            ln1_g=jnp.ones((L, 1, D), jnp.float32), ln1_b=jnp.zeros((L, 1, D), jnp.float32),
            ln2_g=jnp.ones((L, 1, D), jnp.float32), ln2_b=jnp.zeros((L, 1, D), jnp.float32),
            w1=w((L, D, F)).astype(jnp.bfloat16), b1=jnp.zeros((L, 1, F), jnp.float32),
            w2=w((L, F, D)).astype(jnp.bfloat16), b2=jnp.zeros((L, 1, D), jnp.float32),
        )

    enc = dict(sa=mha_stack(), **common_stack())
    dec = dict(sa=mha_stack(), ca=mha_stack(), **common_stack())
    dec["ln3_g"] = jnp.ones((L, 1, D), jnp.float32)
    dec["ln3_b"] = jnp.zeros((L, 1, D), jnp.float32)

    dyt = dict(alpha=jnp.full((1, 1), 0.5, jnp.float32),
               weight=jnp.ones((1, D), jnp.float32),
               bias=jnp.zeros((1, D), jnp.float32))
    return dict(dyt=dyt, enc=enc, dec=dec)


# ----------------------------- main ------------------------------

if __name__ == "__main__":
    # small, module-consistent shapes
    D_MODEL, NHEAD, NUM_LAYERS, DFF = 32, 4, 2, 64
    B, S_SRC, S_TGT = 2, 8, 8

    key = jax.random.PRNGKey(0)
    k_src, k_tgt, k_par = jax.random.split(key, 3)
    src = jax.random.normal(k_src, (B, S_SRC, D_MODEL), jnp.float32)
    tgt = jax.random.normal(k_tgt, (B, S_TGT, D_MODEL), jnp.float32)
    params = init_params(k_par, D_MODEL, NHEAD, NUM_LAYERS, DFF)

    fwd = jax.jit(functools.partial(dyt_transformer_forward, nhead=NHEAD))
    out = jax.block_until_ready(fwd(src, tgt, params))
    assert out.shape == (B, S_TGT, D_MODEL) and bool(jnp.all(jnp.isfinite(out)))
    print("KERNEL_OK")
</pallas_src>

<mosaic_0001>
module attributes {stable_mosaic.version = 11 : i64} {
  func.func @_decoder_stack_kernel(%arg0: i32, %arg1: memref<1x1xf32, #tpu.memory_space<smem>>, %arg2: memref<1x32xf32, #tpu.memory_space<vmem>>, %arg3: memref<1x32xf32, #tpu.memory_space<vmem>>, %arg4: memref<16x32xf32, #tpu.memory_space<vmem>>, %arg5: memref<16x32xf32, #tpu.memory_space<vmem>>, %arg6: memref<1x32x32xbf16, #tpu.memory_space<vmem>>, %arg7: memref<1x1x32xf32, #tpu.memory_space<vmem>>, %arg8: memref<1x32x32xbf16, #tpu.memory_space<vmem>>, %arg9: memref<1x1x32xf32, #tpu.memory_space<vmem>>, %arg10: memref<1x32x32xbf16, #tpu.memory_space<vmem>>, %arg11: memref<1x1x32xf32, #tpu.memory_space<vmem>>, %arg12: memref<1x32x32xbf16, #tpu.memory_space<vmem>>, %arg13: memref<1x1x32xf32, #tpu.memory_space<vmem>>, %arg14: memref<1x1x32xf32, #tpu.memory_space<vmem>>, %arg15: memref<1x1x32xf32, #tpu.memory_space<vmem>>, %arg16: memref<1x32x32xbf16, #tpu.memory_space<vmem>>, %arg17: memref<1x1x32xf32, #tpu.memory_space<vmem>>, %arg18: memref<1x32x32xbf16, #tpu.memory_space<vmem>>, %arg19: memref<1x1x32xf32, #tpu.memory_space<vmem>>, %arg20: memref<1x32x32xbf16, #tpu.memory_space<vmem>>, %arg21: memref<1x1x32xf32, #tpu.memory_space<vmem>>, %arg22: memref<1x32x32xbf16, #tpu.memory_space<vmem>>, %arg23: memref<1x1x32xf32, #tpu.memory_space<vmem>>, %arg24: memref<1x1x32xf32, #tpu.memory_space<vmem>>, %arg25: memref<1x1x32xf32, #tpu.memory_space<vmem>>, %arg26: memref<1x32x64xbf16, #tpu.memory_space<vmem>>, %arg27: memref<1x1x64xf32, #tpu.memory_space<vmem>>, %arg28: memref<1x64x32xbf16, #tpu.memory_space<vmem>>, %arg29: memref<1x1x32xf32, #tpu.memory_space<vmem>>, %arg30: memref<1x1x32xf32, #tpu.memory_space<vmem>>, %arg31: memref<1x1x32xf32, #tpu.memory_space<vmem>>, %arg32: memref<16x32xf32, #tpu.memory_space<vmem>>) attributes {dimension_semantics = [#tpu.dimension_semantics<arbitrary>], iteration_bounds = array<i64: 2>, scalar_prefetch = 0 : i64, scratch_operands = 0 : i64, tpu.core_type = #tpu.core_type<tc>, window_params = [{transform_indices = @transform_0, window_bounds = array<i64: 1, 1>}, {pipeline_mode = #tpu.pipeline_mode<synchronous>, transform_indices = @transform_1, window_bounds = array<i64: 1, 32>}, {pipeline_mode = #tpu.pipeline_mode<synchronous>, transform_indices = @transform_2, window_bounds = array<i64: 1, 32>}, {pipeline_mode = #tpu.pipeline_mode<synchronous>, transform_indices = @transform_3, window_bounds = array<i64: 16, 32>}, {pipeline_mode = #tpu.pipeline_mode<synchronous>, transform_indices = @transform_4, window_bounds = array<i64: 16, 32>}, {transform_indices = @transform_5, window_bounds = array<i64: 1, 32, 32>}, {transform_indices = @transform_6, window_bounds = array<i64: 1, 1, 32>}, {transform_indices = @transform_7, window_bounds = array<i64: 1, 32, 32>}, {transform_indices = @transform_8, window_bounds = array<i64: 1, 1, 32>}, {transform_indices = @transform_9, window_bounds = array<i64: 1, 32, 32>}, {transform_indices = @transform_10, window_bounds = array<i64: 1, 1, 32>}, {transform_indices = @transform_11, window_bounds = array<i64: 1, 32, 32>}, {transform_indices = @transform_12, window_bounds = array<i64: 1, 1, 32>}, {transform_indices = @transform_13, window_bounds = array<i64: 1, 1, 32>}, {transform_indices = @transform_14, window_bounds = array<i64: 1, 1, 32>}, {transform_indices = @transform_15, window_bounds = array<i64: 1, 32, 32>}, {transform_indices = @transform_16, window_bounds = array<i64: 1, 1, 32>}, {transform_indices = @transform_17, window_bounds = array<i64: 1, 32, 32>}, {transform_indices = @transform_18, window_bounds = array<i64: 1, 1, 32>}, {transform_indices = @transform_19, window_bounds = array<i64: 1, 32, 32>}, {transform_indices = @transform_20, window_bounds = array<i64: 1, 1, 32>}, {transform_indices = @transform_21, window_bounds = array<i64: 1, 32, 32>}, {transform_indices = @transform_22, window_bounds = array<i64: 1, 1, 32>}, {transform_indices = @transform_23, window_bounds = array<i64: 1, 1, 32>}, {transform_indices = @transform_24, window_bounds = array<i64: 1, 1, 32>}, {transform_indices = @transform_25, window_bounds = array<i64: 1, 32, 64>}, {transform_indices = @transform_26, window_bounds = array<i64: 1, 1, 64>}, {transform_indices = @transform_27, window_bounds = array<i64: 1, 64, 32>}, {transform_indices = @transform_28, window_bounds = array<i64: 1, 1, 32>}, {transform_indices = @transform_29, window_bounds = array<i64: 1, 1, 32>}, {transform_indices = @transform_30, window_bounds = array<i64: 1, 1, 32>}, {pipeline_mode = #tpu.pipeline_mode<synchronous>, transform_indices = @transform_31, window_bounds = array<i64: 16, 32>}]} {
    %c0_i32 = arith.constant 0 : i32
    %0 = arith.cmpi eq, %arg0, %c0_i32 : i32
    %1 = arith.extui %0 : i1 to i32
    %c0_i32_0 = arith.constant 0 : i32
    %2 = arith.cmpi ne, %1, %c0_i32_0 : i32
    scf.if %2 {
      %c0_173 = arith.constant 0 : index
      %c0_174 = arith.constant 0 : index
      %433 = vector.load %arg4[%c0_173, %c0_174] : memref<16x32xf32, #tpu.memory_space<vmem>>, vector<16x32xf32>
      %c0_175 = arith.constant 0 : index
      %c0_176 = arith.constant 0 : index
      %434 = memref.load %arg1[%c0_175, %c0_176] : memref<1x1xf32, #tpu.memory_space<smem>>
      %435 = vector.broadcast %434 : f32 to vector<16x32xf32>
      %436 = arith.mulf %435, %433 : vector<16x32xf32>
      %437 = math.tanh %436 : vector<16x32xf32>
      %c0_177 = arith.constant 0 : index
      %c0_178 = arith.constant 0 : index
      %438 = vector.load %arg2[%c0_177, %c0_178] : memref<1x32xf32, #tpu.memory_space<vmem>>, vector<1x32xf32>
      %439 = vector.broadcast %438 : vector<1x32xf32> to vector<16x32xf32>
      %440 = arith.mulf %437, %439 : vector<16x32xf32>
      %c0_179 = arith.constant 0 : index
      %c0_180 = arith.constant 0 : index
      %441 = vector.load %arg3[%c0_179, %c0_180] : memref<1x32xf32, #tpu.memory_space<vmem>>, vector<1x32xf32>
      %442 = vector.broadcast %441 : vector<1x32xf32> to vector<16x32xf32>
      %443 = arith.addf %440, %442 : vector<16x32xf32>
      %c0_181 = arith.constant 0 : index
      %c0_182 = arith.constant 0 : index
      %444 = vector.load %arg32[%c0_181, %c0_182] : memref<16x32xf32, #tpu.memory_space<vmem>>, vector<16x32xf32>
      tpu.vector_store %arg32[%c0_181, %c0_182], %443 {strides = array<i32>} : memref<16x32xf32, #tpu.memory_space<vmem>>, vector<16x32xf32>,
    } else {
    }
    %c0 = arith.constant 0 : index
    %c0_1 = arith.constant 0 : index
    %3 = vector.load %arg32[%c0, %c0_1] : memref<16x32xf32, #tpu.memory_space<vmem>>, vector<16x32xf32>
    %c0_2 = arith.constant 0 : index
    %c0_3 = arith.constant 0 : index
    %4 = vector.load %arg5[%c0_2, %c0_3] : memref<16x32xf32, #tpu.memory_space<vmem>>, vector<16x32xf32>
    %c0_4 = arith.constant 0 : index
    %c0_5 = arith.constant 0 : index
    %c0_6 = arith.constant 0 : index
    %5 = vector.load %arg6[%c0_4, %c0_5, %c0_6] : memref<1x32x32xbf16, #tpu.memory_space<vmem>>, vector<1x32x32xbf16>
    %6 = vector.shape_cast %5 : vector<1x32x32xbf16> to vector<32x32xbf16>
    %7 = arith.truncf %3 : vector<16x32xf32> to vector<16x32xbf16>
    %cst = arith.constant dense<0.000000e+00> : vector<16x32xf32>
    %8 = tpu.matmul %7, %6, %cst {dimension_numbers = #tpu.dot_dimension_numbers<[1], [0], [0], [1], [0, 0, 1, 1], [], []>} : vector<16x32xbf16>, vector<32x32xbf16>, vector<16x32xf32> -> vector<16x32xf32>
    %c0_7 = arith.constant 0 : index
    %c0_8 = arith.constant 0 : index
    %c0_9 = arith.constant 0 : index
    %9 = vector.load %arg7[%c0_7, %c0_8, %c0_9] : memref<1x1x32xf32, #tpu.memory_space<vmem>>, vector<1x1x32xf32>
    %10 = vector.shape_cast %9 : vector<1x1x32xf32> to vector<1x32xf32>
    %11 = vector.broadcast %10 : vector<1x32xf32> to vector<16x32xf32>
    %12 = arith.addf %8, %11 : vector<16x32xf32>
    %c0_10 = arith.constant 0 : index
    %c0_11 = arith.constant 0 : index
    %c0_12 = arith.constant 0 : index
    %13 = vector.load %arg8[%c0_10, %c0_11, %c0_12] : memref<1x32x32xbf16, #tpu.memory_space<vmem>>, vector<1x32x32xbf16>
    %14 = vector.shape_cast %13 : vector<1x32x32xbf16> to vector<32x32xbf16>
    %15 = arith.truncf %3 : vector<16x32xf32> to vector<16x32xbf16>
    %cst_13 = arith.constant dense<0.000000e+00> : vector<16x32xf32>
    %16 = tpu.matmul %15, %14, %cst_13 {dimension_numbers = #tpu.dot_dimension_numbers<[1], [0], [0], [1], [0, 0, 1, 1], [], []>} : vector<16x32xbf16>, vector<32x32xbf16>, vector<16x32xf32> -> vector<16x32xf32>
    %c0_14 = arith.constant 0 : index
    %c0_15 = arith.constant 0 : index
    %c0_16 = arith.constant 0 : index
    %17 = vector.load %arg9[%c0_14, %c0_15, %c0_16] : memref<1x1x32xf32, #tpu.memory_space<vmem>>, vector<1x1x32xf32>
    %18 = vector.shape_cast %17 : vector<1x1x32xf32> to vector<1x32xf32>
    %19 = vector.broadcast %18 : vector<1x32xf32> to vector<16x32xf32>
    %20 = arith.addf %16, %19 : vector<16x32xf32>
    %c0_17 = arith.constant 0 : index
    %c0_18 = arith.constant 0 : index
    %c0_19 = arith.constant 0 : index
    %21 = vector.load %arg10[%c0_17, %c0_18, %c0_19] : memref<1x32x32xbf16, #tpu.memory_space<vmem>>, vector<1x32x32xbf16>
    %22 = vector.shape_cast %21 : vector<1x32x32xbf16> to vector<32x32xbf16>
    %23 = arith.truncf %3 : vector<16x32xf32> to vector<16x32xbf16>
    %cst_20 = arith.constant dense<0.000000e+00> : vector<16x32xf32>
    %24 = tpu.matmul %23, %22, %cst_20 {dimension_numbers = #tpu.dot_dimension_numbers<[1], [0], [0], [1], [0, 0, 1, 1], [], []>} : vector<16x32xbf16>, vector<32x32xbf16>, vector<16x32xf32> -> vector<16x32xf32>
    %c0_21 = arith.constant 0 : index
    %c0_22 = arith.constant 0 : index
    %c0_23 = arith.constant 0 : index
    %25 = vector.load %arg11[%c0_21, %c0_22, %c0_23] : memref<1x1x32xf32, #tpu.memory_space<vmem>>, vector<1x1x32xf32>
    %26 = vector.shape_cast %25 : vector<1x1x32xf32> to vector<1x32xf32>
    %27 = vector.broadcast %26 : vector<1x32xf32> to vector<16x32xf32>
    %28 = arith.addf %24, %27 : vector<16x32xf32>
    %29 = arith.truncf %12 : vector<16x32xf32> to vector<16x32xbf16>
    %30 = arith.truncf %20 : vector<16x32xf32> to vector<16x32xbf16>
    %31 = arith.truncf %28 : vector<16x32xf32> to vector<16x32xbf16>
    %32 = vector.extract_strided_slice %29 {offsets = [0, 0], sizes = [8, 32], strides = [1, 1]} : vector<16x32xbf16> to vector<8x32xbf16>
    %33 = vector.extract_strided_slice %30 {offsets = [0, 0], sizes = [8, 32], strides = [1, 1]} : vector<16x32xbf16> to vector<8x32xbf16>
    %34 = vector.extract_strided_slice %31 {offsets = [0, 0], sizes = [8, 32], strides = [1, 1]} : vector<16x32xbf16> to vector<8x32xbf16>
    %35 = vector.extract_strided_slice %32 {offsets = [0, 0], sizes = [8, 8], strides = [1, 1]} : vector<8x32xbf16> to vector<8x8xbf16>
    %36 = vector.extract_strided_slice %33 {offsets = [0, 0], sizes = [8, 8], strides = [1, 1]} : vector<8x32xbf16> to vector<8x8xbf16>
    "tpu.trace_start"() <{level = 10 : i32, message = "qd,kd->qk"}> : () -> ()
    %cst_24 = arith.constant dense<0.000000e+00> : vector<8x8xf32>
    %37 = tpu.matmul %35, %36, %cst_24 {dimension_numbers = #tpu.dot_dimension_numbers<[1], [1], [0], [0], [0, 0, 1, 0], [], []>} : vector<8x8xbf16>, vector<8x8xbf16>, vector<8x8xf32> -> vector<8x8xf32>
    "tpu.trace_stop"() : () -> ()
    %cst_25 = arith.constant dense<0xFF800000> : vector<8xf32>
    %38 = vector.multi_reduction <maximumf>, %37, %cst_25 [1] : vector<8x8xf32> to vector<8xf32>
    %39 = vector.shape_cast %38 : vector<8xf32> to vector<8x1xf32>
    %40 = vector.broadcast %39 : vector<8x1xf32> to vector<8x8xf32>
    %41 = arith.subf %37, %40 : vector<8x8xf32>
    %42 = math.exp %41 : vector<8x8xf32>
    %cst_26 = arith.constant dense<0.000000e+00> : vector<8xf32>
    %43 = vector.multi_reduction <add>, %42, %cst_26 [1] : vector<8x8xf32> to vector<8xf32>
    %44 = vector.shape_cast %43 : vector<8xf32> to vector<8x1xf32>
    %45 = vector.broadcast %44 : vector<8x1xf32> to vector<8x8xf32>
    %46 = arith.divf %42, %45 : vector<8x8xf32>
    %47 = arith.truncf %46 : vector<8x8xf32> to vector<8x8xbf16>
    %48 = vector.extract_strided_slice %34 {offsets = [0, 0], sizes = [8, 8], strides = [1, 1]} : vector<8x32xbf16> to vector<8x8xbf16>
    %cst_27 = arith.constant dense<0.000000e+00> : vector<8x8xf32>
    %49 = tpu.matmul %47, %48, %cst_27 {dimension_numbers = #tpu.dot_dimension_numbers<[1], [0], [0], [1], [0, 0, 1, 1], [], []>} : vector<8x8xbf16>, vector<8x8xbf16>, vector<8x8xf32> -> vector<8x8xf32>
    %50 = vector.extract_strided_slice %32 {offsets = [0, 8], sizes = [8, 8], strides = [1, 1]} : vector<8x32xbf16> to vector<8x8xbf16>
    %51 = vector.extract_strided_slice %33 {offsets = [0, 8], sizes = [8, 8], strides = [1, 1]} : vector<8x32xbf16> to vector<8x8xbf16>
    "tpu.trace_start"() <{level = 10 : i32, message = "qd,kd->qk"}> : () -> ()
    %cst_28 = arith.constant dense<0.000000e+00> : vector<8x8xf32>
    %52 = tpu.matmul %50, %51, %cst_28 {dimension_numbers = #tpu.dot_dimension_numbers<[1], [1], [0], [0], [0, 0, 1, 0], [], []>} : vector<8x8xbf16>, vector<8x8xbf16>, vector<8x8xf32> -> vector<8x8xf32>
    "tpu.trace_stop"() : () -> ()
    %cst_29 = arith.constant dense<0xFF800000> : vector<8xf32>
    %53 = vector.multi_reduction <maximumf>, %52, %cst_29 [1] : vector<8x8xf32> to vector<8xf32>
    %54 = vector.shape_cast %53 : vector<8xf32> to vector<8x1xf32>
    %55 = vector.broadcast %54 : vector<8x1xf32> to vector<8x8xf32>
    %56 = arith.subf %52, %55 : vector<8x8xf32>
    %57 = math.exp %56 : vector<8x8xf32>
    %cst_30 = arith.constant dense<0.000000e+00> : vector<8xf32>
    %58 = vector.multi_reduction <add>, %57, %cst_30 [1] : vector<8x8xf32> to vector<8xf32>
    %59 = vector.shape_cast %58 : vector<8xf32> to vector<8x1xf32>
    %60 = vector.broadcast %59 : vector<8x1xf32> to vector<8x8xf32>
    %61 = arith.divf %57, %60 : vector<8x8xf32>
    %62 = arith.truncf %61 : vector<8x8xf32> to vector<8x8xbf16>
    %63 = vector.extract_strided_slice %34 {offsets = [0, 8], sizes = [8, 8], strides = [1, 1]} : vector<8x32xbf16> to vector<8x8xbf16>
    %cst_31 = arith.constant dense<0.000000e+00> : vector<8x8xf32>
    %64 = tpu.matmul %62, %63, %cst_31 {dimension_numbers = #tpu.dot_dimension_numbers<[1], [0], [0], [1], [0, 0, 1, 1], [], []>} : vector<8x8xbf16>, vector<8x8xbf16>, vector<8x8xf32> -> vector<8x8xf32>
    %65 = vector.extract_strided_slice %32 {offsets = [0, 16], sizes = [8, 8], strides = [1, 1]} : vector<8x32xbf16> to vector<8x8xbf16>
    %66 = vector.extract_strided_slice %33 {offsets = [0, 16], sizes = [8, 8], strides = [1, 1]} : vector<8x32xbf16> to vector<8x8xbf16>
    "tpu.trace_start"() <{level = 10 : i32, message = "qd,kd->qk"}> : () -> ()
    %cst_32 = arith.constant dense<0.000000e+00> : vector<8x8xf32>
    %67 = tpu.matmul %65, %66, %cst_32 {dimension_numbers = #tpu.dot_dimension_numbers<[1], [1], [0], [0], [0, 0, 1, 0], [], []>} : vector<8x8xbf16>, vector<8x8xbf16>, vector<8x8xf32> -> vector<8x8xf32>
    "tpu.trace_stop"() : () -> ()
    %cst_33 = arith.constant dense<0xFF800000> : vector<8xf32>
    %68 = vector.multi_reduction <maximumf>, %67, %cst_33 [1] : vector<8x8xf32> to vector<8xf32>
    %69 = vector.shape_cast %68 : vector<8xf32> to vector<8x1xf32>
    %70 = vector.broadcast %69 : vector<8x1xf32> to vector<8x8xf32>
    %71 = arith.subf %67, %70 : vector<8x8xf32>
    %72 = math.exp %71 : vector<8x8xf32>
    %cst_34 = arith.constant dense<0.000000e+00> : vector<8xf32>
    %73 = vector.multi_reduction <add>, %72, %cst_34 [1] : vector<8x8xf32> to vector<8xf32>
    %74 = vector.shape_cast %73 : vector<8xf32> to vector<8x1xf32>
    %75 = vector.broadcast %74 : vector<8x1xf32> to vector<8x8xf32>
    %76 = arith.divf %72, %75 : vector<8x8xf32>
    %77 = arith.truncf %76 : vector<8x8xf32> to vector<8x8xbf16>
    %78 = vector.extract_strided_slice %34 {offsets = [0, 16], sizes = [8, 8], strides = [1, 1]} : vector<8x32xbf16> to vector<8x8xbf16>
    %cst_35 = arith.constant dense<0.000000e+00> : vector<8x8xf32>
    %79 = tpu.matmul %77, %78, %cst_35 {dimension_numbers = #tpu.dot_dimension_numbers<[1], [0], [0], [1], [0, 0, 1, 1], [], []>} : vector<8x8xbf16>, vector<8x8xbf16>, vector<8x8xf32> -> vector<8x8xf32>
    %80 = vector.extract_strided_slice %32 {offsets = [0, 24], sizes = [8, 8], strides = [1, 1]} : vector<8x32xbf16> to vector<8x8xbf16>
    %81 = vector.extract_strided_slice %33 {offsets = [0, 24], sizes = [8, 8], strides = [1, 1]} : vector<8x32xbf16> to vector<8x8xbf16>
    "tpu.trace_start"() <{level = 10 : i32, message = "qd,kd->qk"}> : () -> ()
    %cst_36 = arith.constant dense<0.000000e+00> : vector<8x8xf32>
    %82 = tpu.matmul %80, %81, %cst_36 {dimension_numbers = #tpu.dot_dimension_numbers<[1], [1], [0], [0], [0, 0, 1, 0], [], []>} : vector<8x8xbf16>, vector<8x8xbf16>, vector<8x8xf32> -> vector<8x8xf32>
    "tpu.trace_stop"() : () -> ()
    %cst_37 = arith.constant dense<0xFF800000> : vector<8xf32>
    %83 = vector.multi_reduction <maximumf>, %82, %cst_37 [1] : vector<8x8xf32> to vector<8xf32>
    %84 = vector.shape_cast %83 : vector<8xf32> to vector<8x1xf32>
    %85 = vector.broadcast %84 : vector<8x1xf32> to vector<8x8xf32>
    %86 = arith.subf %82, %85 : vector<8x8xf32>
    %87 = math.exp %86 : vector<8x8xf32>
    %cst_38 = arith.constant dense<0.000000e+00> : vector<8xf32>
    %88 = vector.multi_reduction <add>, %87, %cst_38 [1] : vector<8x8xf32> to vector<8xf32>
    %89 = vector.shape_cast %88 : vector<8xf32> to vector<8x1xf32>
    %90 = vector.broadcast %89 : vector<8x1xf32> to vector<8x8xf32>
    %91 = arith.divf %87, %90 : vector<8x8xf32>
    %92 = arith.truncf %91 : vector<8x8xf32> to vector<8x8xbf16>
    %93 = vector.extract_strided_slice %34 {offsets = [0, 24], sizes = [8, 8], strides = [1, 1]} : vector<8x32xbf16> to vector<8x8xbf16>
    %cst_39 = arith.constant dense<0.000000e+00> : vector<8x8xf32>
    %94 = tpu.matmul %92, %93, %cst_39 {dimension_numbers = #tpu.dot_dimension_numbers<[1], [0], [0], [1], [0, 0, 1, 1], [], []>} : vector<8x8xbf16>, vector<8x8xbf16>, vector<8x8xf32> -> vector<8x8xf32>
    %95 = tpu.concatenate %49, %64, %79, %94 in 1 : vector<8x8xf32>, vector<8x8xf32>, vector<8x8xf32>, vector<8x8xf32> -> vector<8x32xf32>
    %96 = vector.extract_strided_slice %29 {offsets = [8, 0], sizes = [8, 32], strides = [1, 1]} : vector<16x32xbf16> to vector<8x32xbf16>
    %97 = vector.extract_strided_slice %30 {offsets = [8, 0], sizes = [8, 32], strides = [1, 1]} : vector<16x32xbf16> to vector<8x32xbf16>
    %98 = vector.extract_strided_slice %31 {offsets = [8, 0], sizes = [8, 32], strides = [1, 1]} : vector<16x32xbf16> to vector<8x32xbf16>
    %99 = vector.extract_strided_slice %96 {offsets = [0, 0], sizes = [8, 8], strides = [1, 1]} : vector<8x32xbf16> to vector<8x8xbf16>
    %100 = vector.extract_strided_slice %97 {offsets = [0, 0], sizes = [8, 8], strides = [1, 1]} : vector<8x32xbf16> to vector<8x8xbf16>
    "tpu.trace_start"() <{level = 10 : i32, message = "qd,kd->qk"}> : () -> ()
    %cst_40 = arith.constant dense<0.000000e+00> : vector<8x8xf32>
    %101 = tpu.matmul %99, %100, %cst_40 {dimension_numbers = #tpu.dot_dimension_numbers<[1], [1], [0], [0], [0, 0, 1, 0], [], []>} : vector<8x8xbf16>, vector<8x8xbf16>, vector<8x8xf32> -> vector<8x8xf32>
    "tpu.trace_stop"() : () -> ()
    %cst_41 = arith.constant dense<0xFF800000> : vector<8xf32>
    %102 = vector.multi_reduction <maximumf>, %101, %cst_41 [1] : vector<8x8xf32> to vector<8xf32>
    %103 = vector.shape_cast %102 : vector<8xf32> to vector<8x1xf32>
    %104 = vector.broadcast %103 : vector<8x1xf32> to vector<8x8xf32>
    %105 = arith.subf %101, %104 : vector<8x8xf32>
    %106 = math.exp %105 : vector<8x8xf32>
    %cst_42 = arith.constant dense<0.000000e+00> : vector<8xf32>
    %107 = vector.multi_reduction <add>, %106, %cst_42 [1] : vector<8x8xf32> to vector<8xf32>
    %108 = vector.shape_cast %107 : vector<8xf32> to vector<8x1xf32>
    %109 = vector.broadcast %108 : vector<8x1xf32> to vector<8x8xf32>
    %110 = arith.divf %106, %109 : vector<8x8xf32>
    %111 = arith.truncf %110 : vector<8x8xf32> to vector<8x8xbf16>
    %112 = vector.extract_strided_slice %98 {offsets = [0, 0], sizes = [8, 8], strides = [1, 1]} : vector<8x32xbf16> to vector<8x8xbf16>
    %cst_43 = arith.constant dense<0.000000e+00> : vector<8x8xf32>
    %113 = tpu.matmul %111, %112, %cst_43 {dimension_numbers = #tpu.dot_dimension_numbers<[1], [0], [0], [1], [0, 0, 1, 1], [], []>} : vector<8x8xbf16>, vector<8x8xbf16>, vector<8x8xf32> -> vector<8x8xf32>
    %114 = vector.extract_strided_slice %96 {offsets = [0, 8], sizes = [8, 8], strides = [1, 1]} : vector<8x32xbf16> to vector<8x8xbf16>
    %115 = vector.extract_strided_slice %97 {offsets = [0, 8], sizes = [8, 8], strides = [1, 1]} : vector<8x32xbf16> to vector<8x8xbf16>
    "tpu.trace_start"() <{level = 10 : i32, message = "qd,kd->qk"}> : () -> ()
    %cst_44 = arith.constant dense<0.000000e+00> : vector<8x8xf32>
    %116 = tpu.matmul %114, %115, %cst_44 {dimension_numbers = #tpu.dot_dimension_numbers<[1], [1], [0], [0], [0, 0, 1, 0], [], []>} : vector<8x8xbf16>, vector<8x8xbf16>, vector<8x8xf32> -> vector<8x8xf32>
    "tpu.trace_stop"() : () -> ()
    %cst_45 = arith.constant dense<0xFF800000> : vector<8xf32>
    %117 = vector.multi_reduction <maximumf>, %116, %cst_45 [1] : vector<8x8xf32> to vector<8xf32>
    %118 = vector.shape_cast %117 : vector<8xf32> to vector<8x1xf32>
    %119 = vector.broadcast %118 : vector<8x1xf32> to vector<8x8xf32>
    %120 = arith.subf %116, %119 : vector<8x8xf32>
    %121 = math.exp %120 : vector<8x8xf32>
    %cst_46 = arith.constant dense<0.000000e+00> : vector<8xf32>
    %122 = vector.multi_reduction <add>, %121, %cst_46 [1] : vector<8x8xf32> to vector<8xf32>
    %123 = vector.shape_cast %122 : vector<8xf32> to vector<8x1xf32>
    %124 = vector.broadcast %123 : vector<8x1xf32> to vector<8x8xf32>
    %125 = arith.divf %121, %124 : vector<8x8xf32>
    %126 = arith.truncf %125 : vector<8x8xf32> to vector<8x8xbf16>
    %127 = vector.extract_strided_slice %98 {offsets = [0, 8], sizes = [8, 8], strides = [1, 1]} : vector<8x32xbf16> to vector<8x8xbf16>
    %cst_47 = arith.constant dense<0.000000e+00> : vector<8x8xf32>
    %128 = tpu.matmul %126, %127, %cst_47 {dimension_numbers = #tpu.dot_dimension_numbers<[1], [0], [0], [1], [0, 0, 1, 1], [], []>} : vector<8x8xbf16>, vector<8x8xbf16>, vector<8x8xf32> -> vector<8x8xf32>
    %129 = vector.extract_strided_slice %96 {offsets = [0, 16], sizes = [8, 8], strides = [1, 1]} : vector<8x32xbf16> to vector<8x8xbf16>
    %130 = vector.extract_strided_slice %97 {offsets = [0, 16], sizes = [8, 8], strides = [1, 1]} : vector<8x32xbf16> to vector<8x8xbf16>
    "tpu.trace_start"() <{level = 10 : i32, message = "qd,kd->qk"}> : () -> ()
    %cst_48 = arith.constant dense<0.000000e+00> : vector<8x8xf32>
    %131 = tpu.matmul %129, %130, %cst_48 {dimension_numbers = #tpu.dot_dimension_numbers<[1], [1], [0], [0], [0, 0, 1, 0], [], []>} : vector<8x8xbf16>, vector<8x8xbf16>, vector<8x8xf32> -> vector<8x8xf32>
    "tpu.trace_stop"() : () -> ()
    %cst_49 = arith.constant dense<0xFF800000> : vector<8xf32>
    %132 = vector.multi_reduction <maximumf>, %131, %cst_49 [1] : vector<8x8xf32> to vector<8xf32>
    %133 = vector.shape_cast %132 : vector<8xf32> to vector<8x1xf32>
    %134 = vector.broadcast %133 : vector<8x1xf32> to vector<8x8xf32>
    %135 = arith.subf %131, %134 : vector<8x8xf32>
    %136 = math.exp %135 : vector<8x8xf32>
    %cst_50 = arith.constant dense<0.000000e+00> : vector<8xf32>
    %137 = vector.multi_reduction <add>, %136, %cst_50 [1] : vector<8x8xf32> to vector<8xf32>
    %138 = vector.shape_cast %137 : vector<8xf32> to vector<8x1xf32>
    %139 = vector.broadcast %138 : vector<8x1xf32> to vector<8x8xf32>
    %140 = arith.divf %136, %139 : vector<8x8xf32>
    %141 = arith.truncf %140 : vector<8x8xf32> to vector<8x8xbf16>
    %142 = vector.extract_strided_slice %98 {offsets = [0, 16], sizes = [8, 8], strides = [1, 1]} : vector<8x32xbf16> to vector<8x8xbf16>
    %cst_51 = arith.constant dense<0.000000e+00> : vector<8x8xf32>
    %143 = tpu.matmul %141, %142, %cst_51 {dimension_numbers = #tpu.dot_dimension_numbers<[1], [0], [0], [1], [0, 0, 1, 1], [], []>} : vector<8x8xbf16>, vector<8x8xbf16>, vector<8x8xf32> -> vector<8x8xf32>
    %144 = vector.extract_strided_slice %96 {offsets = [0, 24], sizes = [8, 8], strides = [1, 1]} : vector<8x32xbf16> to vector<8x8xbf16>
    %145 = vector.extract_strided_slice %97 {offsets = [0, 24], sizes = [8, 8], strides = [1, 1]} : vector<8x32xbf16> to vector<8x8xbf16>
    "tpu.trace_start"() <{level = 10 : i32, message = "qd,kd->qk"}> : () -> ()
    %cst_52 = arith.constant dense<0.000000e+00> : vector<8x8xf32>
    %146 = tpu.matmul %144, %145, %cst_52 {dimension_numbers = #tpu.dot_dimension_numbers<[1], [1], [0], [0], [0, 0, 1, 0], [], []>} : vector<8x8xbf16>, vector<8x8xbf16>, vector<8x8xf32> -> vector<8x8xf32>
    "tpu.trace_stop"() : () -> ()
    %cst_53 = arith.constant dense<0xFF800000> : vector<8xf32>
    %147 = vector.multi_reduction <maximumf>, %146, %cst_53 [1] : vector<8x8xf32> to vector<8xf32>
    %148 = vector.shape_cast %147 : vector<8xf32> to vector<8x1xf32>
    %149 = vector.broadcast %148 : vector<8x1xf32> to vector<8x8xf32>
    %150 = arith.subf %146, %149 : vector<8x8xf32>
    %151 = math.exp %150 : vector<8x8xf32>
    %cst_54 = arith.constant dense<0.000000e+00> : vector<8xf32>
    %152 = vector.multi_reduction <add>, %151, %cst_54 [1] : vector<8x8xf32> to vector<8xf32>
    %153 = vector.shape_cast %152 : vector<8xf32> to vector<8x1xf32>
    %154 = vector.broadcast %153 : vector<8x1xf32> to vector<8x8xf32>
    %155 = arith.divf %151, %154 : vector<8x8xf32>
    %156 = arith.truncf %155 : vector<8x8xf32> to vector<8x8xbf16>
    %157 = vector.extract_strided_slice %98 {offsets = [0, 24], sizes = [8, 8], strides = [1, 1]} : vector<8x32xbf16> to vector<8x8xbf16>
    %cst_55 = arith.constant dense<0.000000e+00> : vector<8x8xf32>
    %158 = tpu.matmul %156, %157, %cst_55 {dimension_numbers = #tpu.dot_dimension_numbers<[1], [0], [0], [1], [0, 0, 1, 1], [], []>} : vector<8x8xbf16>, vector<8x8xbf16>, vector<8x8xf32> -> vector<8x8xf32>
    %159 = tpu.concatenate %113, %128, %143, %158 in 1 : vector<8x8xf32>, vector<8x8xf32>, vector<8x8xf32>, vector<8x8xf32> -> vector<8x32xf32>
    %160 = tpu.concatenate %95, %159 in 0 : vector<8x32xf32>, vector<8x32xf32> -> vector<16x32xf32>
    %c0_56 = arith.constant 0 : index
    %c0_57 = arith.constant 0 : index
    %c0_58 = arith.constant 0 : index
    %161 = vector.load %arg12[%c0_56, %c0_57, %c0_58] : memref<1x32x32xbf16, #tpu.memory_space<vmem>>, vector<1x32x32xbf16>
    %162 = vector.shape_cast %161 : vector<1x32x32xbf16> to vector<32x32xbf16>
    %163 = arith.truncf %160 : vector<16x32xf32> to vector<16x32xbf16>
    %cst_59 = arith.constant dense<0.000000e+00> : vector<16x32xf32>
    %164 = tpu.matmul %163, %162, %cst_59 {dimension_numbers = #tpu.dot_dimension_numbers<[1], [0], [0], [1], [0, 0, 1, 1], [], []>} : vector<16x32xbf16>, vector<32x32xbf16>, vector<16x32xf32> -> vector<16x32xf32>
    %c0_60 = arith.constant 0 : index
    %c0_61 = arith.constant 0 : index
    %c0_62 = arith.constant 0 : index
    %165 = vector.load %arg13[%c0_60, %c0_61, %c0_62] : memref<1x1x32xf32, #tpu.memory_space<vmem>>, vector<1x1x32xf32>
    %166 = vector.shape_cast %165 : vector<1x1x32xf32> to vector<1x32xf32>
    %167 = vector.broadcast %166 : vector<1x32xf32> to vector<16x32xf32>
    %168 = arith.addf %164, %167 : vector<16x32xf32>
    %c0_63 = arith.constant 0 : index
    %c0_64 = arith.constant 0 : index
    %c0_65 = arith.constant 0 : index
    %169 = vector.load %arg14[%c0_63, %c0_64, %c0_65] : memref<1x1x32xf32, #tpu.memory_space<vmem>>, vector<1x1x32xf32>
    %170 = vector.shape_cast %169 : vector<1x1x32xf32> to vector<1x32xf32>
    %c0_66 = arith.constant 0 : index
    %c0_67 = arith.constant 0 : index
    %c0_68 = arith.constant 0 : index
    %171 = vector.load %arg15[%c0_66, %c0_67, %c0_68] : memref<1x1x32xf32, #tpu.memory_space<vmem>>, vector<1x1x32xf32>
    %172 = vector.shape_cast %171 : vector<1x1x32xf32> to vector<1x32xf32>
    %173 = arith.addf %168, %3 : vector<16x32xf32>
    %cst_69 = arith.constant dense<0.000000e+00> : vector<16xf32>
    %174 = vector.multi_reduction <add>, %173, %cst_69 [1] : vector<16x32xf32> to vector<16xf32>
    %175 = vector.shape_cast %174 : vector<16xf32> to vector<16x1xf32>
    %cst_70 = arith.constant 3.200000e+01 : f32
    %176 = vector.broadcast %cst_70 : f32 to vector<16x1xf32>
    %177 = arith.divf %175, %176 : vector<16x1xf32>
    %178 = vector.broadcast %177 : vector<16x1xf32> to vector<16x32xf32>
    %179 = arith.subf %173, %178 : vector<16x32xf32>
    %180 = arith.mulf %179, %179 : vector<16x32xf32>
    %cst_71 = arith.constant dense<0.000000e+00> : vector<16xf32>
    %181 = vector.multi_reduction <add>, %180, %cst_71 [1] : vector<16x32xf32> to vector<16xf32>
    %182 = vector.shape_cast %181 : vector<16xf32> to vector<16x1xf32>
    %cst_72 = arith.constant 3.200000e+01 : f32
    %183 = vector.broadcast %cst_72 : f32 to vector<16x1xf32>
    %184 = arith.divf %182, %183 : vector<16x1xf32>
    %185 = vector.broadcast %177 : vector<16x1xf32> to vector<16x32xf32>
    %186 = arith.subf %173, %185 : vector<16x32xf32>
    %cst_73 = arith.constant 9.99999974E-6 : f32
    %187 = vector.broadcast %cst_73 : f32 to vector<16x1xf32>
    %188 = arith.addf %184, %187 : vector<16x1xf32>
    %189 = math.rsqrt %188 : vector<16x1xf32>
    %190 = vector.broadcast %189 : vector<16x1xf32> to vector<16x32xf32>
    %191 = arith.mulf %186, %190 : vector<16x32xf32>
    %192 = vector.broadcast %170 : vector<1x32xf32> to vector<16x32xf32>
    %193 = arith.mulf %191, %192 : vector<16x32xf32>
    %194 = vector.broadcast %172 : vector<1x32xf32> to vector<16x32xf32>
    %195 = arith.addf %193, %194 : vector<16x32xf32>
    %c0_74 = arith.constant 0 : index
    %c0_75 = arith.constant 0 : index
    %c0_76 = arith.constant 0 : index
    %196 = vector.load %arg16[%c0_74, %c0_75, %c0_76] : memref<1x32x32xbf16, #tpu.memory_space<vmem>>, vector<1x32x32xbf16>
    %197 = vector.shape_cast %196 : vector<1x32x32xbf16> to vector<32x32xbf16>
    %198 = arith.truncf %195 : vector<16x32xf32> to vector<16x32xbf16>
    %cst_77 = arith.constant dense<0.000000e+00> : vector<16x32xf32>
    %199 = tpu.matmul %198, %197, %cst_77 {dimension_numbers = #tpu.dot_dimension_numbers<[1], [0], [0], [1], [0, 0, 1, 1], [], []>} : vector<16x32xbf16>, vector<32x32xbf16>, vector<16x32xf32> -> vector<16x32xf32>
    %c0_78 = arith.constant 0 : index
    %c0_79 = arith.constant 0 : index
    %c0_80 = arith.constant 0 : index
    %200 = vector.load %arg17[%c0_78, %c0_79, %c0_80] : memref<1x1x32xf32, #tpu.memory_space<vmem>>, vector<1x1x32xf32>
    %201 = vector.shape_cast %200 : vector<1x1x32xf32> to vector<1x32xf32>
    %202 = vector.broadcast %201 : vector<1x32xf32> to vector<16x32xf32>
    %203 = arith.addf %199, %202 : vector<16x32xf32>
    %c0_81 = arith.constant 0 : index
    %c0_82 = arith.constant 0 : index
    %c0_83 = arith.constant 0 : index
    %204 = vector.load %arg18[%c0_81, %c0_82, %c0_83] : memref<1x32x32xbf16, #tpu.memory_space<vmem>>, vector<1x32x32xbf16>
    %205 = vector.shape_cast %204 : vector<1x32x32xbf16> to vector<32x32xbf16>
    %206 = arith.truncf %4 : vector<16x32xf32> to vector<16x32xbf16>
    %cst_84 = arith.constant dense<0.000000e+00> : vector<16x32xf32>
    %207 = tpu.matmul %206, %205, %cst_84 {dimension_numbers = #tpu.dot_dimension_numbers<[1], [0], [0], [1], [0, 0, 1, 1], [], []>} : vector<16x32xbf16>, vector<32x32xbf16>, vector<16x32xf32> -> vector<16x32xf32>
    %c0_85 = arith.constant 0 : index
    %c0_86 = arith.constant 0 : index
    %c0_87 = arith.constant 0 : index
    %208 = vector.load %arg19[%c0_85, %c0_86, %c0_87] : memref<1x1x32xf32, #tpu.memory_space<vmem>>, vector<1x1x32xf32>
    %209 = vector.shape_cast %208 : vector<1x1x32xf32> to vector<1x32xf32>
    %210 = vector.broadcast %209 : vector<1x32xf32> to vector<16x32xf32>
    %211 = arith.addf %207, %210 : vector<16x32xf32>
    %c0_88 = arith.constant 0 : index
    %c0_89 = arith.constant 0 : index
    %c0_90 = arith.constant 0 : index
    %212 = vector.load %arg20[%c0_88, %c0_89, %c0_90] : memref<1x32x32xbf16, #tpu.memory_space<vmem>>, vector<1x32x32xbf16>
    %213 = vector.shape_cast %212 : vector<1x32x32xbf16> to vector<32x32xbf16>
    %214 = arith.truncf %4 : vector<16x32xf32> to vector<16x32xbf16>
    %cst_91 = arith.constant dense<0.000000e+00> : vector<16x32xf32>
    %215 = tpu.matmul %214, %213, %cst_91 {dimension_numbers = #tpu.dot_dimension_numbers<[1], [0], [0], [1], [0, 0, 1, 1], [], []>} : vector<16x32xbf16>, vector<32x32xbf16>, vector<16x32xf32> -> vector<16x32xf32>
    %c0_92 = arith.constant 0 : index
    %c0_93 = arith.constant 0 : index
    %c0_94 = arith.constant 0 : index
    %216 = vector.load %arg21[%c0_92, %c0_93, %c0_94] : memref<1x1x32xf32, #tpu.memory_space<vmem>>, vector<1x1x32xf32>
    %217 = vector.shape_cast %216 : vector<1x1x32xf32> to vector<1x32xf32>
    %218 = vector.broadcast %217 : vector<1x32xf32> to vector<16x32xf32>
    %219 = arith.addf %215, %218 : vector<16x32xf32>
    %220 = arith.truncf %203 : vector<16x32xf32> to vector<16x32xbf16>
    %221 = arith.truncf %211 : vector<16x32xf32> to vector<16x32xbf16>
    %222 = arith.truncf %219 : vector<16x32xf32> to vector<16x32xbf16>
    %223 = vector.extract_strided_slice %220 {offsets = [0, 0], sizes = [8, 32], strides = [1, 1]} : vector<16x32xbf16> to vector<8x32xbf16>
    %224 = vector.extract_strided_slice %221 {offsets = [0, 0], sizes = [8, 32], strides = [1, 1]} : vector<16x32xbf16> to vector<8x32xbf16>
    %225 = vector.extract_strided_slice %222 {offsets = [0, 0], sizes = [8, 32], strides = [1, 1]} : vector<16x32xbf16> to vector<8x32xbf16>
    %226 = vector.extract_strided_slice %223 {offsets = [0, 0], sizes = [8, 8], strides = [1, 1]} : vector<8x32xbf16> to vector<8x8xbf16>
    %227 = vector.extract_strided_slice %224 {offsets = [0, 0], sizes = [8, 8], strides = [1, 1]} : vector<8x32xbf16> to vector<8x8xbf16>
    "tpu.trace_start"() <{level = 10 : i32, message = "qd,kd->qk"}> : () -> ()
    %cst_95 = arith.constant dense<0.000000e+00> : vector<8x8xf32>
    %228 = tpu.matmul %226, %227, %cst_95 {dimension_numbers = #tpu.dot_dimension_numbers<[1], [1], [0], [0], [0, 0, 1, 0], [], []>} : vector<8x8xbf16>, vector<8x8xbf16>, vector<8x8xf32> -> vector<8x8xf32>
    "tpu.trace_stop"() : () -> ()
    %cst_96 = arith.constant dense<0xFF800000> : vector<8xf32>
    %229 = vector.multi_reduction <maximumf>, %228, %cst_96 [1] : vector<8x8xf32> to vector<8xf32>
    %230 = vector.shape_cast %229 : vector<8xf32> to vector<8x1xf32>
    %231 = vector.broadcast %230 : vector<8x1xf32> to vector<8x8xf32>
    %232 = arith.subf %228, %231 : vector<8x8xf32>
    %233 = math.exp %232 : vector<8x8xf32>
    %cst_97 = arith.constant dense<0.000000e+00> : vector<8xf32>
    %234 = vector.multi_reduction <add>, %233, %cst_97 [1] : vector<8x8xf32> to vector<8xf32>
    %235 = vector.shape_cast %234 : vector<8xf32> to vector<8x1xf32>
    %236 = vector.broadcast %235 : vector<8x1xf32> to vector<8x8xf32>
    %237 = arith.divf %233, %236 : vector<8x8xf32>
    %238 = arith.truncf %237 : vector<8x8xf32> to vector<8x8xbf16>
    %239 = vector.extract_strided_slice %225 {offsets = [0, 0], sizes = [8, 8], strides = [1, 1]} : vector<8x32xbf16> to vector<8x8xbf16>
    %cst_98 = arith.constant dense<0.000000e+00> : vector<8x8xf32>
    %240 = tpu.matmul %238, %239, %cst_98 {dimension_numbers = #tpu.dot_dimension_numbers<[1], [0], [0], [1], [0, 0, 1, 1], [], []>} : vector<8x8xbf16>, vector<8x8xbf16>, vector<8x8xf32> -> vector<8x8xf32>
    %241 = vector.extract_strided_slice %223 {offsets = [0, 8], sizes = [8, 8], strides = [1, 1]} : vector<8x32xbf16> to vector<8x8xbf16>
    %242 = vector.extract_strided_slice %224 {offsets = [0, 8], sizes = [8, 8], strides = [1, 1]} : vector<8x32xbf16> to vector<8x8xbf16>
    "tpu.trace_start"() <{level = 10 : i32, message = "qd,kd->qk"}> : () -> ()
    %cst_99 = arith.constant dense<0.000000e+00> : vector<8x8xf32>
    %243 = tpu.matmul %241, %242, %cst_99 {dimension_numbers = #tpu.dot_dimension_numbers<[1], [1], [0], [0], [0, 0, 1, 0], [], []>} : vector<8x8xbf16>, vector<8x8xbf16>, vector<8x8xf32> -> vector<8x8xf32>
    "tpu.trace_stop"() : () -> ()
    %cst_100 = arith.constant dense<0xFF800000> : vector<8xf32>
    %244 = vector.multi_reduction <maximumf>, %243, %cst_100 [1] : vector<8x8xf32> to vector<8xf32>
    %245 = vector.shape_cast %244 : vector<8xf32> to vector<8x1xf32>
    %246 = vector.broadcast %245 : vector<8x1xf32> to vector<8x8xf32>
    %247 = arith.subf %243, %246 : vector<8x8xf32>
    %248 = math.exp %247 : vector<8x8xf32>
    %cst_101 = arith.constant dense<0.000000e+00> : vector<8xf32>
    %249 = vector.multi_reduction <add>, %248, %cst_101 [1] : vector<8x8xf32> to vector<8xf32>
    %250 = vector.shape_cast %249 : vector<8xf32> to vector<8x1xf32>
    %251 = vector.broadcast %250 : vector<8x1xf32> to vector<8x8xf32>
    %252 = arith.divf %248, %251 : vector<8x8xf32>
    %253 = arith.truncf %252 : vector<8x8xf32> to vector<8x8xbf16>
    %254 = vector.extract_strided_slice %225 {offsets = [0, 8], sizes = [8, 8], strides = [1, 1]} : vector<8x32xbf16> to vector<8x8xbf16>
    %cst_102 = arith.constant dense<0.000000e+00> : vector<8x8xf32>
    %255 = tpu.matmul %253, %254, %cst_102 {dimension_numbers = #tpu.dot_dimension_numbers<[1], [0], [0], [1], [0, 0, 1, 1], [], []>} : vector<8x8xbf16>, vector<8x8xbf16>, vector<8x8xf32> -> vector<8x8xf32>
    %256 = vector.extract_strided_slice %223 {offsets = [0, 16], sizes = [8, 8], strides = [1, 1]} : vector<8x32xbf16> to vector<8x8xbf16>
    %257 = vector.extract_strided_slice %224 {offsets = [0, 16], sizes = [8, 8], strides = [1, 1]} : vector<8x32xbf16> to vector<8x8xbf16>
    "tpu.trace_start"() <{level = 10 : i32, message = "qd,kd->qk"}> : () -> ()
    %cst_103 = arith.constant dense<0.000000e+00> : vector<8x8xf32>
    %258 = tpu.matmul %256, %257, %cst_103 {dimension_numbers = #tpu.dot_dimension_numbers<[1], [1], [0], [0], [0, 0, 1, 0], [], []>} : vector<8x8xbf16>, vector<8x8xbf16>, vector<8x8xf32> -> vector<8x8xf32>
    "tpu.trace_stop"() : () -> ()
    %cst_104 = arith.constant dense<0xFF800000> : vector<8xf32>
    %259 = vector.multi_reduction <maximumf>, %258, %cst_104 [1] : vector<8x8xf32> to vector<8xf32>
    %260 = vector.shape_cast %259 : vector<8xf32> to vector<8x1xf32>
    %261 = vector.broadcast %260 : vector<8x1xf32> to vector<8x8xf32>
    %262 = arith.subf %258, %261 : vector<8x8xf32>
    %263 = math.exp %262 : vector<8x8xf32>
    %cst_105 = arith.constant dense<0.000000e+00> : vector<8xf32>
    %264 = vector.multi_reduction <add>, %263, %cst_105 [1] : vector<8x8xf32> to vector<8xf32>
    %265 = vector.shape_cast %264 : vector<8xf32> to vector<8x1xf32>
    %266 = vector.broadcast %265 : vector<8x1xf32> to vector<8x8xf32>
    %267 = arith.divf %263, %266 : vector<8x8xf32>
    %268 = arith.truncf %267 : vector<8x8xf32> to vector<8x8xbf16>
    %269 = vector.extract_strided_slice %225 {offsets = [0, 16], sizes = [8, 8], strides = [1, 1]} : vector<8x32xbf16> to vector<8x8xbf16>
    %cst_106 = arith.constant dense<0.000000e+00> : vector<8x8xf32>
    %270 = tpu.matmul %268, %269, %cst_106 {dimension_numbers = #tpu.dot_dimension_numbers<[1], [0], [0], [1], [0, 0, 1, 1], [], []>} : vector<8x8xbf16>, vector<8x8xbf16>, vector<8x8xf32> -> vector<8x8xf32>
    %271 = vector.extract_strided_slice %223 {offsets = [0, 24], sizes = [8, 8], strides = [1, 1]} : vector<8x32xbf16> to vector<8x8xbf16>
    %272 = vector.extract_strided_slice %224 {offsets = [0, 24], sizes = [8, 8], strides = [1, 1]} : vector<8x32xbf16> to vector<8x8xbf16>
    "tpu.trace_start"() <{level = 10 : i32, message = "qd,kd->qk"}> : () -> ()
    %cst_107 = arith.constant dense<0.000000e+00> : vector<8x8xf32>
    %273 = tpu.matmul %271, %272, %cst_107 {dimension_numbers = #tpu.dot_dimension_numbers<[1], [1], [0], [0], [0, 0, 1, 0], [], []>} : vector<8x8xbf16>, vector<8x8xbf16>, vector<8x8xf32> -> vector<8x8xf32>
    "tpu.trace_stop"() : () -> ()
    %cst_108 = arith.constant dense<0xFF800000> : vector<8xf32>
    %274 = vector.multi_reduction <maximumf>, %273, %cst_108 [1] : vector<8x8xf32> to vector<8xf32>
    %275 = vector.shape_cast %274 : vector<8xf32> to vector<8x1xf32>
    %276 = vector.broadcast %275 : vector<8x1xf32> to vector<8x8xf32>
    %277 = arith.subf %273, %276 : vector<8x8xf32>
    %278 = math.exp %277 : vector<8x8xf32>
    %cst_109 = arith.constant dense<0.000000e+00> : vector<8xf32>
    %279 = vector.multi_reduction <add>, %278, %cst_109 [1] : vector<8x8xf32> to vector<8xf32>
    %280 = vector.shape_cast %279 : vector<8xf32> to vector<8x1xf32>
    %281 = vector.broadcast %280 : vector<8x1xf32> to vector<8x8xf32>
    %282 = arith.divf %278, %281 : vector<8x8xf32>
    %283 = arith.truncf %282 : vector<8x8xf32> to vector<8x8xbf16>
    %284 = vector.extract_strided_slice %225 {offsets = [0, 24], sizes = [8, 8], strides = [1, 1]} : vector<8x32xbf16> to vector<8x8xbf16>
    %cst_110 = arith.constant dense<0.000000e+00> : vector<8x8xf32>
    %285 = tpu.matmul %283, %284, %cst_110 {dimension_numbers = #tpu.dot_dimension_numbers<[1], [0], [0], [1], [0, 0, 1, 1], [], []>} : vector<8x8xbf16>, vector<8x8xbf16>, vector<8x8xf32> -> vector<8x8xf32>
    %286 = tpu.concatenate %240, %255, %270, %285 in 1 : vector<8x8xf32>, vector<8x8xf32>, vector<8x8xf32>, vector<8x8xf32> -> vector<8x32xf32>
    %287 = vector.extract_strided_slice %220 {offsets = [8, 0], sizes = [8, 32], strides = [1, 1]} : vector<16x32xbf16> to vector<8x32xbf16>
    %288 = vector.extract_strided_slice %221 {offsets = [8, 0], sizes = [8, 32], strides = [1, 1]} : vector<16x32xbf16> to vector<8x32xbf16>
    %289 = vector.extract_strided_slice %222 {offsets = [8, 0], sizes = [8, 32], strides = [1, 1]} : vector<16x32xbf16> to vector<8x32xbf16>
    %290 = vector.extract_strided_slice %287 {offsets = [0, 0], sizes = [8, 8], strides = [1, 1]} : vector<8x32xbf16> to vector<8x8xbf16>
    %291 = vector.extract_strided_slice %288 {offsets = [0, 0], sizes = [8, 8], strides = [1, 1]} : vector<8x32xbf16> to vector<8x8xbf16>
    "tpu.trace_start"() <{level = 10 : i32, message = "qd,kd->qk"}> : () -> ()
    %cst_111 = arith.constant dense<0.000000e+00> : vector<8x8xf32>
    %292 = tpu.matmul %290, %291, %cst_111 {dimension_numbers = #tpu.dot_dimension_numbers<[1], [1], [0], [0], [0, 0, 1, 0], [], []>} : vector<8x8xbf16>, vector<8x8xbf16>, vector<8x8xf32> -> vector<8x8xf32>
    "tpu.trace_stop"() : () -> ()
    %cst_112 = arith.constant dense<0xFF800000> : vector<8xf32>
    %293 = vector.multi_reduction <maximumf>, %292, %cst_112 [1] : vector<8x8xf32> to vector<8xf32>
    %294 = vector.shape_cast %293 : vector<8xf32> to vector<8x1xf32>
    %295 = vector.broadcast %294 : vector<8x1xf32> to vector<8x8xf32>
    %296 = arith.subf %292, %295 : vector<8x8xf32>
    %297 = math.exp %296 : vector<8x8xf32>
    %cst_113 = arith.constant dense<0.000000e+00> : vector<8xf32>
    %298 = vector.multi_reduction <add>, %297, %cst_113 [1] : vector<8x8xf32> to vector<8xf32>
    %299 = vector.shape_cast %298 : vector<8xf32> to vector<8x1xf32>
    %300 = vector.broadcast %299 : vector<8x1xf32> to vector<8x8xf32>
    %301 = arith.divf %297, %300 : vector<8x8xf32>
    %302 = arith.truncf %301 : vector<8x8xf32> to vector<8x8xbf16>
    %303 = vector.extract_strided_slice %289 {offsets = [0, 0], sizes = [8, 8], strides = [1, 1]} : vector<8x32xbf16> to vector<8x8xbf16>
    %cst_114 = arith.constant dense<0.000000e+00> : vector<8x8xf32>
    %304 = tpu.matmul %302, %303, %cst_114 {dimension_numbers = #tpu.dot_dimension_numbers<[1], [0], [0], [1], [0, 0, 1, 1], [], []>} : vector<8x8xbf16>, vector<8x8xbf16>, vector<8x8xf32> -> vector<8x8xf32>
    %305 = vector.extract_strided_slice %287 {offsets = [0, 8], sizes = [8, 8], strides = [1, 1]} : vector<8x32xbf16> to vector<8x8xbf16>
    %306 = vector.extract_strided_slice %288 {offsets = [0, 8], sizes = [8, 8], strides = [1, 1]} : vector<8x32xbf16> to vector<8x8xbf16>
    "tpu.trace_start"() <{level = 10 : i32, message = "qd,kd->qk"}> : () -> ()
    %cst_115 = arith.constant dense<0.000000e+00> : vector<8x8xf32>
    %307 = tpu.matmul %305, %306, %cst_115 {dimension_numbers = #tpu.dot_dimension_numbers<[1], [1], [0], [0], [0, 0, 1, 0], [], []>} : vector<8x8xbf16>, vector<8x8xbf16>, vector<8x8xf32> -> vector<8x8xf32>
    "tpu.trace_stop"() : () -> ()
    %cst_116 = arith.constant dense<0xFF800000> : vector<8xf32>
    %308 = vector.multi_reduction <maximumf>, %307, %cst_116 [1] : vector<8x8xf32> to vector<8xf32>
    %309 = vector.shape_cast %308 : vector<8xf32> to vector<8x1xf32>
    %310 = vector.broadcast %309 : vector<8x1xf32> to vector<8x8xf32>
    %311 = arith.subf %307, %310 : vector<8x8xf32>
    %312 = math.exp %311 : vector<8x8xf32>
    %cst_117 = arith.constant dense<0.000000e+00> : vector<8xf32>
    %313 = vector.multi_reduction <add>, %312, %cst_117 [1] : vector<8x8xf32> to vector<8xf32>
    %314 = vector.shape_cast %313 : vector<8xf32> to vector<8x1xf32>
    %315 = vector.broadcast %314 : vector<8x1xf32> to vector<8x8xf32>
    %316 = arith.divf %312, %315 : vector<8x8xf32>
    %317 = arith.truncf %316 : vector<8x8xf32> to vector<8x8xbf16>
    %318 = vector.extract_strided_slice %289 {offsets = [0, 8], sizes = [8, 8], strides = [1, 1]} : vector<8x32xbf16> to vector<8x8xbf16>
    %cst_118 = arith.constant dense<0.000000e+00> : vector<8x8xf32>
    %319 = tpu.matmul %317, %318, %cst_118 {dimension_numbers = #tpu.dot_dimension_numbers<[1], [0], [0], [1], [0, 0, 1, 1], [], []>} : vector<8x8xbf16>, vector<8x8xbf16>, vector<8x8xf32> -> vector<8x8xf32>
    %320 = vector.extract_strided_slice %287 {offsets = [0, 16], sizes = [8, 8], strides = [1, 1]} : vector<8x32xbf16> to vector<8x8xbf16>
    %321 = vector.extract_strided_slice %288 {offsets = [0, 16], sizes = [8, 8], strides = [1, 1]} : vector<8x32xbf16> to vector<8x8xbf16>
    "tpu.trace_start"() <{level = 10 : i32, message = "qd,kd->qk"}> : () -> ()
    %cst_119 = arith.constant dense<0.000000e+00> : vector<8x8xf32>
    %322 = tpu.matmul %320, %321, %cst_119 {dimension_numbers = #tpu.dot_dimension_numbers<[1], [1], [0], [0], [0, 0, 1, 0], [], []>} : vector<8x8xbf16>, vector<8x8xbf16>, vector<8x8xf32> -> vector<8x8xf32>
    "tpu.trace_stop"() : () -> ()
    %cst_120 = arith.constant dense<0xFF800000> : vector<8xf32>
    %323 = vector.multi_reduction <maximumf>, %322, %cst_120 [1] : vector<8x8xf32> to vector<8xf32>
    %324 = vector.shape_cast %323 : vector<8xf32> to vector<8x1xf32>
    %325 = vector.broadcast %324 : vector<8x1xf32> to vector<8x8xf32>
    %326 = arith.subf %322, %325 : vector<8x8xf32>
    %327 = math.exp %326 : vector<8x8xf32>
    %cst_121 = arith.constant dense<0.000000e+00> : vector<8xf32>
    %328 = vector.multi_reduction <add>, %327, %cst_121 [1] : vector<8x8xf32> to vector<8xf32>
    %329 = vector.shape_cast %328 : vector<8xf32> to vector<8x1xf32>
    %330 = vector.broadcast %329 : vector<8x1xf32> to vector<8x8xf32>
    %331 = arith.divf %327, %330 : vector<8x8xf32>
    %332 = arith.truncf %331 : vector<8x8xf32> to vector<8x8xbf16>
    %333 = vector.extract_strided_slice %289 {offsets = [0, 16], sizes = [8, 8], strides = [1, 1]} : vector<8x32xbf16> to vector<8x8xbf16>
    %cst_122 = arith.constant dense<0.000000e+00> : vector<8x8xf32>
    %334 = tpu.matmul %332, %333, %cst_122 {dimension_numbers = #tpu.dot_dimension_numbers<[1], [0], [0], [1], [0, 0, 1, 1], [], []>} : vector<8x8xbf16>, vector<8x8xbf16>, vector<8x8xf32> -> vector<8x8xf32>
    %335 = vector.extract_strided_slice %287 {offsets = [0, 24], sizes = [8, 8], strides = [1, 1]} : vector<8x32xbf16> to vector<8x8xbf16>
    %336 = vector.extract_strided_slice %288 {offsets = [0, 24], sizes = [8, 8], strides = [1, 1]} : vector<8x32xbf16> to vector<8x8xbf16>
    "tpu.trace_start"() <{level = 10 : i32, message = "qd,kd->qk"}> : () -> ()
    %cst_123 = arith.constant dense<0.000000e+00> : vector<8x8xf32>
    %337 = tpu.matmul %335, %336, %cst_123 {dimension_numbers = #tpu.dot_dimension_numbers<[1], [1], [0], [0], [0, 0, 1, 0], [], []>} : vector<8x8xbf16>, vector<8x8xbf16>, vector<8x8xf32> -> vector<8x8xf32>
    "tpu.trace_stop"() : () -> ()
    %cst_124 = arith.constant dense<0xFF800000> : vector<8xf32>
    %338 = vector.multi_reduction <maximumf>, %337, %cst_124 [1] : vector<8x8xf32> to vector<8xf32>
    %339 = vector.shape_cast %338 : vector<8xf32> to vector<8x1xf32>
    %340 = vector.broadcast %339 : vector<8x1xf32> to vector<8x8xf32>
    %341 = arith.subf %337, %340 : vector<8x8xf32>
    %342 = math.exp %341 : vector<8x8xf32>
    %cst_125 = arith.constant dense<0.000000e+00> : vector<8xf32>
    %343 = vector.multi_reduction <add>, %342, %cst_125 [1] : vector<8x8xf32> to vector<8xf32>
    %344 = vector.shape_cast %343 : vector<8xf32> to vector<8x1xf32>
    %345 = vector.broadcast %344 : vector<8x1xf32> to vector<8x8xf32>
    %346 = arith.divf %342, %345 : vector<8x8xf32>
    %347 = arith.truncf %346 : vector<8x8xf32> to vector<8x8xbf16>
    %348 = vector.extract_strided_slice %289 {offsets = [0, 24], sizes = [8, 8], strides = [1, 1]} : vector<8x32xbf16> to vector<8x8xbf16>
    %cst_126 = arith.constant dense<0.000000e+00> : vector<8x8xf32>
    %349 = tpu.matmul %347, %348, %cst_126 {dimension_numbers = #tpu.dot_dimension_numbers<[1], [0], [0], [1], [0, 0, 1, 1], [], []>} : vector<8x8xbf16>, vector<8x8xbf16>, vector<8x8xf32> -> vector<8x8xf32>
    %350 = tpu.concatenate %304, %319, %334, %349 in 1 : vector<8x8xf32>, vector<8x8xf32>, vector<8x8xf32>, vector<8x8xf32> -> vector<8x32xf32>
    %351 = tpu.concatenate %286, %350 in 0 : vector<8x32xf32>, vector<8x32xf32> -> vector<16x32xf32>
    %c0_127 = arith.constant 0 : index
    %c0_128 = arith.constant 0 : index
    %c0_129 = arith.constant 0 : index
    %352 = vector.load %arg22[%c0_127, %c0_128, %c0_129] : memref<1x32x32xbf16, #tpu.memory_space<vmem>>, vector<1x32x32xbf16>
    %353 = vector.shape_cast %352 : vector<1x32x32xbf16> to vector<32x32xbf16>
    %354 = arith.truncf %351 : vector<16x32xf32> to vector<16x32xbf16>
    %cst_130 = arith.constant dense<0.000000e+00> : vector<16x32xf32>
    %355 = tpu.matmul %354, %353, %cst_130 {dimension_numbers = #tpu.dot_dimension_numbers<[1], [0], [0], [1], [0, 0, 1, 1], [], []>} : vector<16x32xbf16>, vector<32x32xbf16>, vector<16x32xf32> -> vector<16x32xf32>
    %c0_131 = arith.constant 0 : index
    %c0_132 = arith.constant 0 : index
    %c0_133 = arith.constant 0 : index
    %356 = vector.load %arg23[%c0_131, %c0_132, %c0_133] : memref<1x1x32xf32, #tpu.memory_space<vmem>>, vector<1x1x32xf32>
    %357 = vector.shape_cast %356 : vector<1x1x32xf32> to vector<1x32xf32>
    %358 = vector.broadcast %357 : vector<1x32xf32> to vector<16x32xf32>
    %359 = arith.addf %355, %358 : vector<16x32xf32>
    %c0_134 = arith.constant 0 : index
    %c0_135 = arith.constant 0 : index
    %c0_136 = arith.constant 0 : index
    %360 = vector.load %arg24[%c0_134, %c0_135, %c0_136] : memref<1x1x32xf32, #tpu.memory_space<vmem>>, vector<1x1x32xf32>
    %361 = vector.shape_cast %360 : vector<1x1x32xf32> to vector<1x32xf32>
    %c0_137 = arith.constant 0 : index
    %c0_138 = arith.constant 0 : index
    %c0_139 = arith.constant 0 : index
    %362 = vector.load %arg25[%c0_137, %c0_138, %c0_139] : memref<1x1x32xf32, #tpu.memory_space<vmem>>, vector<1x1x32xf32>
    %363 = vector.shape_cast %362 : vector<1x1x32xf32> to vector<1x32xf32>
    %364 = arith.addf %359, %195 : vector<16x32xf32>
    %cst_140 = arith.constant dense<0.000000e+00> : vector<16xf32>
    %365 = vector.multi_reduction <add>, %364, %cst_140 [1] : vector<16x32xf32> to vector<16xf32>
    %366 = vector.shape_cast %365 : vector<16xf32> to vector<16x1xf32>
    %cst_141 = arith.constant 3.200000e+01 : f32
    %367 = vector.broadcast %cst_141 : f32 to vector<16x1xf32>
    %368 = arith.divf %366, %367 : vector<16x1xf32>
    %369 = vector.broadcast %368 : vector<16x1xf32> to vector<16x32xf32>
    %370 = arith.subf %364, %369 : vector<16x32xf32>
    %371 = arith.mulf %370, %370 : vector<16x32xf32>
    %cst_142 = arith.constant dense<0.000000e+00> : vector<16xf32>
    %372 = vector.multi_reduction <add>, %371, %cst_142 [1] : vector<16x32xf32> to vector<16xf32>
    %373 = vector.shape_cast %372 : vector<16xf32> to vector<16x1xf32>
    %cst_143 = arith.constant 3.200000e+01 : f32
    %374 = vector.broadcast %cst_143 : f32 to vector<16x1xf32>
    %375 = arith.divf %373, %374 : vector<16x1xf32>
    %376 = vector.broadcast %368 : vector<16x1xf32> to vector<16x32xf32>
    %377 = arith.subf %364, %376 : vector<16x32xf32>
    %cst_144 = arith.constant 9.99999974E-6 : f32
    %378 = vector.broadcast %cst_144 : f32 to vector<16x1xf32>
    %379 = arith.addf %375, %378 : vector<16x1xf32>
    %380 = math.rsqrt %379 : vector<16x1xf32>
    %381 = vector.broadcast %380 : vector<16x1xf32> to vector<16x32xf32>
    %382 = arith.mulf %377, %381 : vector<16x32xf32>
    %383 = vector.broadcast %361 : vector<1x32xf32> to vector<16x32xf32>
    %384 = arith.mulf %382, %383 : vector<16x32xf32>
    %385 = vector.broadcast %363 : vector<1x32xf32> to vector<16x32xf32>
    %386 = arith.addf %384, %385 : vector<16x32xf32>
    %c0_145 = arith.constant 0 : index
    %c0_146 = arith.constant 0 : index
    %c0_147 = arith.constant 0 : index
    %387 = vector.load %arg26[%c0_145, %c0_146, %c0_147] : memref<1x32x64xbf16, #tpu.memory_space<vmem>>, vector<1x32x64xbf16>
    %388 = vector.shape_cast %387 : vector<1x32x64xbf16> to vector<32x64xbf16>
    %389 = arith.truncf %386 : vector<16x32xf32> to vector<16x32xbf16>
    %cst_148 = arith.constant dense<0.000000e+00> : vector<16x64xf32>
    %390 = tpu.matmul %389, %388, %cst_148 {dimension_numbers = #tpu.dot_dimension_numbers<[1], [0], [0], [1], [0, 0, 1, 1], [], []>} : vector<16x32xbf16>, vector<32x64xbf16>, vector<16x64xf32> -> vector<16x64xf32>
    %c0_149 = arith.constant 0 : index
    %c0_150 = arith.constant 0 : index
    %c0_151 = arith.constant 0 : index
    %391 = vector.load %arg27[%c0_149, %c0_150, %c0_151] : memref<1x1x64xf32, #tpu.memory_space<vmem>>, vector<1x1x64xf32>
    %392 = vector.shape_cast %391 : vector<1x1x64xf32> to vector<1x64xf32>
    %393 = vector.broadcast %392 : vector<1x64xf32> to vector<16x64xf32>
    %394 = arith.addf %390, %393 : vector<16x64xf32>
    %cst_152 = arith.constant 0.000000e+00 : f32
    %395 = vector.broadcast %cst_152 : f32 to vector<16x64xf32>
    %396 = arith.maximumf %394, %395 : vector<16x64xf32>
    %c0_153 = arith.constant 0 : index
    %c0_154 = arith.constant 0 : index
    %c0_155 = arith.constant 0 : index
    %397 = vector.load %arg28[%c0_153, %c0_154, %c0_155] : memref<1x64x32xbf16, #tpu.memory_space<vmem>>, vector<1x64x32xbf16>
    %398 = vector.shape_cast %397 : vector<1x64x32xbf16> to vector<64x32xbf16>
    %399 = arith.truncf %396 : vector<16x64xf32> to vector<16x64xbf16>
    %cst_156 = arith.constant dense<0.000000e+00> : vector<16x32xf32>
    %400 = tpu.matmul %399, %398, %cst_156 {dimension_numbers = #tpu.dot_dimension_numbers<[1], [0], [0], [1], [0, 0, 1, 1], [], []>} : vector<16x64xbf16>, vector<64x32xbf16>, vector<16x32xf32> -> vector<16x32xf32>
    %c0_157 = arith.constant 0 : index
    %c0_158 = arith.constant 0 : index
    %c0_159 = arith.constant 0 : index
    %401 = vector.load %arg29[%c0_157, %c0_158, %c0_159] : memref<1x1x32xf32, #tpu.memory_space<vmem>>, vector<1x1x32xf32>
    %402 = vector.shape_cast %401 : vector<1x1x32xf32> to vector<1x32xf32>
    %403 = vector.broadcast %402 : vector<1x32xf32> to vector<16x32xf32>
    %404 = arith.addf %400, %403 : vector<16x32xf32>
    %c0_160 = arith.constant 0 : index
    %c0_161 = arith.constant 0 : index
    %c0_162 = arith.constant 0 : index
    %405 = vector.load %arg30[%c0_160, %c0_161, %c0_162] : memref<1x1x32xf32, #tpu.memory_space<vmem>>, vector<1x1x32xf32>
    %406 = vector.shape_cast %405 : vector<1x1x32xf32> to vector<1x32xf32>
    %c0_163 = arith.constant 0 : index
    %c0_164 = arith.constant 0 : index
    %c0_165 = arith.constant 0 : index
    %407 = vector.load %arg31[%c0_163, %c0_164, %c0_165] : memref<1x1x32xf32, #tpu.memory_space<vmem>>, vector<1x1x32xf32>
    %408 = vector.shape_cast %407 : vector<1x1x32xf32> to vector<1x32xf32>
    %409 = arith.addf %404, %386 : vector<16x32xf32>
    %cst_166 = arith.constant dense<0.000000e+00> : vector<16xf32>
    %410 = vector.multi_reduction <add>, %409, %cst_166 [1] : vector<16x32xf32> to vector<16xf32>
    %411 = vector.shape_cast %410 : vector<16xf32> to vector<16x1xf32>
    %cst_167 = arith.constant 3.200000e+01 : f32
    %412 = vector.broadcast %cst_167 : f32 to vector<16x1xf32>
    %413 = arith.divf %411, %412 : vector<16x1xf32>
    %414 = vector.broadcast %413 : vector<16x1xf32> to vector<16x32xf32>
    %415 = arith.subf %409, %414 : vector<16x32xf32>
    %416 = arith.mulf %415, %415 : vector<16x32xf32>
    %cst_168 = arith.constant dense<0.000000e+00> : vector<16xf32>
    %417 = vector.multi_reduction <add>, %416, %cst_168 [1] : vector<16x32xf32> to vector<16xf32>
    %418 = vector.shape_cast %417 : vector<16xf32> to vector<16x1xf32>
    %cst_169 = arith.constant 3.200000e+01 : f32
    %419 = vector.broadcast %cst_169 : f32 to vector<16x1xf32>
    %420 = arith.divf %418, %419 : vector<16x1xf32>
    %421 = vector.broadcast %413 : vector<16x1xf32> to vector<16x32xf32>
    %422 = arith.subf %409, %421 : vector<16x32xf32>
    %cst_170 = arith.constant 9.99999974E-6 : f32
    %423 = vector.broadcast %cst_170 : f32 to vector<16x1xf32>
    %424 = arith.addf %420, %423 : vector<16x1xf32>
    %425 = math.rsqrt %424 : vector<16x1xf32>
    %426 = vector.broadcast %425 : vector<16x1xf32> to vector<16x32xf32>
    %427 = arith.mulf %422, %426 : vector<16x32xf32>
    %428 = vector.broadcast %406 : vector<1x32xf32> to vector<16x32xf32>
    %429 = arith.mulf %427, %428 : vector<16x32xf32>
    %430 = vector.broadcast %408 : vector<1x32xf32> to vector<16x32xf32>
    %431 = arith.addf %429, %430 : vector<16x32xf32>
    %c0_171 = arith.constant 0 : index
    %c0_172 = arith.constant 0 : index
    %432 = vector.load %arg32[%c0_171, %c0_172] : memref<16x32xf32, #tpu.memory_space<vmem>>, vector<16x32xf32>
    tpu.vector_store %arg32[%c0_171, %c0_172], %431 {strides = array<i32>} : memref<16x32xf32, #tpu.memory_space<vmem>>, vector<16x32xf32>,
    return
  }
  func.func @transform_0(%arg0: i32) -> (i32, i32) {
    %c0_i32 = arith.constant 0 : i32
    %c0_i32_0 = arith.constant 0 : i32
    %c0_i32_1 = arith.constant 0 : i32
    return %c0_i32, %c0_i32_0 : i32, i32
  }
  func.func @transform_1(%arg0: i32) -> (i32, i32) {
    %c0_i32 = arith.constant 0 : i32
    %c0_i32_0 = arith.constant 0 : i32
    %c0_i32_1 = arith.constant 0 : i32
    return %c0_i32, %c0_i32_0 : i32, i32
  }
  func.func @transform_2(%arg0: i32) -> (i32, i32) {
    %c0_i32 = arith.constant 0 : i32
    %c0_i32_0 = arith.constant 0 : i32
    %c0_i32_1 = arith.constant 0 : i32
    return %c0_i32, %c0_i32_0 : i32, i32
  }
  func.func @transform_3(%arg0: i32) -> (i32, i32) {
    %c0_i32 = arith.constant 0 : i32
    %c0_i32_0 = arith.constant 0 : i32
    %c0_i32_1 = arith.constant 0 : i32
    return %c0_i32, %c0_i32_0 : i32, i32
  }
  func.func @transform_4(%arg0: i32) -> (i32, i32) {
    %c0_i32 = arith.constant 0 : i32
    %c0_i32_0 = arith.constant 0 : i32
    %c0_i32_1 = arith.constant 0 : i32
    return %c0_i32, %c0_i32_0 : i32, i32
  }
  func.func @transform_5(%arg0: i32) -> (i32, i32, i32) {
    %c0_i32 = arith.constant 0 : i32
    %c0_i32_0 = arith.constant 0 : i32
    %c0_i32_1 = arith.constant 0 : i32
    return %arg0, %c0_i32, %c0_i32_0 : i32, i32, i32
  }
  func.func @transform_6(%arg0: i32) -> (i32, i32, i32) {
    %c0_i32 = arith.constant 0 : i32
    %c0_i32_0 = arith.constant 0 : i32
    %c0_i32_1 = arith.constant 0 : i32
    return %arg0, %c0_i32, %c0_i32_0 : i32, i32, i32
  }
  func.func @transform_7(%arg0: i32) -> (i32, i32, i32) {
    %c0_i32 = arith.constant 0 : i32
    %c0_i32_0 = arith.constant 0 : i32
    %c0_i32_1 = arith.constant 0 : i32
    return %arg0, %c0_i32, %c0_i32_0 : i32, i32, i32
  }
  func.func @transform_8(%arg0: i32) -> (i32, i32, i32) {
    %c0_i32 = arith.constant 0 : i32
    %c0_i32_0 = arith.constant 0 : i32
    %c0_i32_1 = arith.constant 0 : i32
    return %arg0, %c0_i32, %c0_i32_0 : i32, i32, i32
  }
  func.func @transform_9(%arg0: i32) -> (i32, i32, i32) {
    %c0_i32 = arith.constant 0 : i32
    %c0_i32_0 = arith.constant 0 : i32
    %c0_i32_1 = arith.constant 0 : i32
    return %arg0, %c0_i32, %c0_i32_0 : i32, i32, i32
  }
  func.func @transform_10(%arg0: i32) -> (i32, i32, i32) {
    %c0_i32 = arith.constant 0 : i32
    %c0_i32_0 = arith.constant 0 : i32
    %c0_i32_1 = arith.constant 0 : i32
    return %arg0, %c0_i32, %c0_i32_0 : i32, i32, i32
  }
  func.func @transform_11(%arg0: i32) -> (i32, i32, i32) {
    %c0_i32 = arith.constant 0 : i32
    %c0_i32_0 = arith.constant 0 : i32
    %c0_i32_1 = arith.constant 0 : i32
    return %arg0, %c0_i32, %c0_i32_0 : i32, i32, i32
  }
  func.func @transform_12(%arg0: i32) -> (i32, i32, i32) {
    %c0_i32 = arith.constant 0 : i32
    %c0_i32_0 = arith.constant 0 : i32
    %c0_i32_1 = arith.constant 0 : i32
    return %arg0, %c0_i32, %c0_i32_0 : i32, i32, i32
  }
  func.func @transform_13(%arg0: i32) -> (i32, i32, i32) {
    %c0_i32 = arith.constant 0 : i32
    %c0_i32_0 = arith.constant 0 : i32
    %c0_i32_1 = arith.constant 0 : i32
    return %arg0, %c0_i32, %c0_i32_0 : i32, i32, i32
  }
  func.func @transform_14(%arg0: i32) -> (i32, i32, i32) {
    %c0_i32 = arith.constant 0 : i32
    %c0_i32_0 = arith.constant 0 : i32
    %c0_i32_1 = arith.constant 0 : i32
    return %arg0, %c0_i32, %c0_i32_0 : i32, i32, i32
  }
  func.func @transform_15(%arg0: i32) -> (i32, i32, i32) {
    %c0_i32 = arith.constant 0 : i32
    %c0_i32_0 = arith.constant 0 : i32
    %c0_i32_1 = arith.constant 0 : i32
    return %arg0, %c0_i32, %c0_i32_0 : i32, i32, i32
  }
  func.func @transform_16(%arg0: i32) -> (i32, i32, i32) {
    %c0_i32 = arith.constant 0 : i32
    %c0_i32_0 = arith.constant 0 : i32
    %c0_i32_1 = arith.constant 0 : i32
    return %arg0, %c0_i32, %c0_i32_0 : i32, i32, i32
  }
  func.func @transform_17(%arg0: i32) -> (i32, i32, i32) {
    %c0_i32 = arith.constant 0 : i32
    %c0_i32_0 = arith.constant 0 : i32
    %c0_i32_1 = arith.constant 0 : i32
    return %arg0, %c0_i32, %c0_i32_0 : i32, i32, i32
  }
  func.func @transform_18(%arg0: i32) -> (i32, i32, i32) {
    %c0_i32 = arith.constant 0 : i32
    %c0_i32_0 = arith.constant 0 : i32
    %c0_i32_1 = arith.constant 0 : i32
    return %arg0, %c0_i32, %c0_i32_0 : i32, i32, i32
  }
  func.func @transform_19(%arg0: i32) -> (i32, i32, i32) {
    %c0_i32 = arith.constant 0 : i32
    %c0_i32_0 = arith.constant 0 : i32
    %c0_i32_1 = arith.constant 0 : i32
    return %arg0, %c0_i32, %c0_i32_0 : i32, i32, i32
  }
  func.func @transform_20(%arg0: i32) -> (i32, i32, i32) {
    %c0_i32 = arith.constant 0 : i32
    %c0_i32_0 = arith.constant 0 : i32
    %c0_i32_1 = arith.constant 0 : i32
    return %arg0, %c0_i32, %c0_i32_0 : i32, i32, i32
  }
  func.func @transform_21(%arg0: i32) -> (i32, i32, i32) {
    %c0_i32 = arith.constant 0 : i32
    %c0_i32_0 = arith.constant 0 : i32
    %c0_i32_1 = arith.constant 0 : i32
    return %arg0, %c0_i32, %c0_i32_0 : i32, i32, i32
  }
  func.func @transform_22(%arg0: i32) -> (i32, i32, i32) {
    %c0_i32 = arith.constant 0 : i32
    %c0_i32_0 = arith.constant 0 : i32
    %c0_i32_1 = arith.constant 0 : i32
    return %arg0, %c0_i32, %c0_i32_0 : i32, i32, i32
  }
  func.func @transform_23(%arg0: i32) -> (i32, i32, i32) {
    %c0_i32 = arith.constant 0 : i32
    %c0_i32_0 = arith.constant 0 : i32
    %c0_i32_1 = arith.constant 0 : i32
    return %arg0, %c0_i32, %c0_i32_0 : i32, i32, i32
  }
  func.func @transform_24(%arg0: i32) -> (i32, i32, i32) {
    %c0_i32 = arith.constant 0 : i32
    %c0_i32_0 = arith.constant 0 : i32
    %c0_i32_1 = arith.constant 0 : i32
    return %arg0, %c0_i32, %c0_i32_0 : i32, i32, i32
  }
  func.func @transform_25(%arg0: i32) -> (i32, i32, i32) {
    %c0_i32 = arith.constant 0 : i32
    %c0_i32_0 = arith.constant 0 : i32
    %c0_i32_1 = arith.constant 0 : i32
    return %arg0, %c0_i32, %c0_i32_0 : i32, i32, i32
  }
  func.func @transform_26(%arg0: i32) -> (i32, i32, i32) {
    %c0_i32 = arith.constant 0 : i32
    %c0_i32_0 = arith.constant 0 : i32
    %c0_i32_1 = arith.constant 0 : i32
    return %arg0, %c0_i32, %c0_i32_0 : i32, i32, i32
  }
  func.func @transform_27(%arg0: i32) -> (i32, i32, i32) {
    %c0_i32 = arith.constant 0 : i32
    %c0_i32_0 = arith.constant 0 : i32
    %c0_i32_1 = arith.constant 0 : i32
    return %arg0, %c0_i32, %c0_i32_0 : i32, i32, i32
  }
  func.func @transform_28(%arg0: i32) -> (i32, i32, i32) {
    %c0_i32 = arith.constant 0 : i32
    %c0_i32_0 = arith.constant 0 : i32
    %c0_i32_1 = arith.constant 0 : i32
    return %arg0, %c0_i32, %c0_i32_0 : i32, i32, i32
  }
  func.func @transform_29(%arg0: i32) -> (i32, i32, i32) {
    %c0_i32 = arith.constant 0 : i32
    %c0_i32_0 = arith.constant 0 : i32
    %c0_i32_1 = arith.constant 0 : i32
    return %arg0, %c0_i32, %c0_i32_0 : i32, i32, i32
  }
  func.func @transform_30(%arg0: i32) -> (i32, i32, i32) {
    %c0_i32 = arith.constant 0 : i32
    %c0_i32_0 = arith.constant 0 : i32
    %c0_i32_1 = arith.constant 0 : i32
    return %arg0, %c0_i32, %c0_i32_0 : i32, i32, i32
  }
  func.func @transform_31(%arg0: i32) -> (i32, i32) {
    %c0_i32 = arith.constant 0 : i32
    %c0_i32_0 = arith.constant 0 : i32
    %c0_i32_1 = arith.constant 0 : i32
    return %c0_i32, %c0_i32_0 : i32, i32
  }
}

module attributes {stable_mosaic.version = 11 : i64} {
  func.func @_encoder_stack_kernel(%arg0: i32, %arg1: memref<1x1xf32, #tpu.memory_space<smem>>, %arg2: memref<1x32xf32, #tpu.memory_space<vmem>>, %arg3: memref<1x32xf32, #tpu.memory_space<vmem>>, %arg4: memref<16x32xf32, #tpu.memory_space<vmem>>, %arg5: memref<1x32x32xbf16, #tpu.memory_space<vmem>>, %arg6: memref<1x1x32xf32, #tpu.memory_space<vmem>>, %arg7: memref<1x32x32xbf16, #tpu.memory_space<vmem>>, %arg8: memref<1x1x32xf32, #tpu.memory_space<vmem>>, %arg9: memref<1x32x32xbf16, #tpu.memory_space<vmem>>, %arg10: memref<1x1x32xf32, #tpu.memory_space<vmem>>, %arg11: memref<1x32x32xbf16, #tpu.memory_space<vmem>>, %arg12: memref<1x1x32xf32, #tpu.memory_space<vmem>>, %arg13: memref<1x1x32xf32, #tpu.memory_space<vmem>>, %arg14: memref<1x1x32xf32, #tpu.memory_space<vmem>>, %arg15: memref<1x32x64xbf16, #tpu.memory_space<vmem>>, %arg16: memref<1x1x64xf32, #tpu.memory_space<vmem>>, %arg17: memref<1x64x32xbf16, #tpu.memory_space<vmem>>, %arg18: memref<1x1x32xf32, #tpu.memory_space<vmem>>, %arg19: memref<1x1x32xf32, #tpu.memory_space<vmem>>, %arg20: memref<1x1x32xf32, #tpu.memory_space<vmem>>, %arg21: memref<16x32xf32, #tpu.memory_space<vmem>>) attributes {dimension_semantics = [#tpu.dimension_semantics<arbitrary>], iteration_bounds = array<i64: 2>, scalar_prefetch = 0 : i64, scratch_operands = 0 : i64, tpu.core_type = #tpu.core_type<tc>, window_params = [{transform_indices = @transform_0, window_bounds = array<i64: 1, 1>}, {pipeline_mode = #tpu.pipeline_mode<synchronous>, transform_indices = @transform_1, window_bounds = array<i64: 1, 32>}, {pipeline_mode = #tpu.pipeline_mode<synchronous>, transform_indices = @transform_2, window_bounds = array<i64: 1, 32>}, {pipeline_mode = #tpu.pipeline_mode<synchronous>, transform_indices = @transform_3, window_bounds = array<i64: 16, 32>}, {transform_indices = @transform_4, window_bounds = array<i64: 1, 32, 32>}, {transform_indices = @transform_5, window_bounds = array<i64: 1, 1, 32>}, {transform_indices = @transform_6, window_bounds = array<i64: 1, 32, 32>}, {transform_indices = @transform_7, window_bounds = array<i64: 1, 1, 32>}, {transform_indices = @transform_8, window_bounds = array<i64: 1, 32, 32>}, {transform_indices = @transform_9, window_bounds = array<i64: 1, 1, 32>}, {transform_indices = @transform_10, window_bounds = array<i64: 1, 32, 32>}, {transform_indices = @transform_11, window_bounds = array<i64: 1, 1, 32>}, {transform_indices = @transform_12, window_bounds = array<i64: 1, 1, 32>}, {transform_indices = @transform_13, window_bounds = array<i64: 1, 1, 32>}, {transform_indices = @transform_14, window_bounds = array<i64: 1, 32, 64>}, {transform_indices = @transform_15, window_bounds = array<i64: 1, 1, 64>}, {transform_indices = @transform_16, window_bounds = array<i64: 1, 64, 32>}, {transform_indices = @transform_17, window_bounds = array<i64: 1, 1, 32>}, {transform_indices = @transform_18, window_bounds = array<i64: 1, 1, 32>}, {transform_indices = @transform_19, window_bounds = array<i64: 1, 1, 32>}, {pipeline_mode = #tpu.pipeline_mode<synchronous>, transform_indices = @transform_20, window_bounds = array<i64: 16, 32>}]} {
    %c0_i32 = arith.constant 0 : i32
    %0 = arith.cmpi eq, %arg0, %c0_i32 : i32
    %1 = arith.extui %0 : i1 to i32
    %c0_i32_0 = arith.constant 0 : i32
    %2 = arith.cmpi ne, %1, %c0_i32_0 : i32
    scf.if %2 {
      %c0_100 = arith.constant 0 : index
      %c0_101 = arith.constant 0 : index
      %241 = vector.load %arg4[%c0_100, %c0_101] : memref<16x32xf32, #tpu.memory_space<vmem>>, vector<16x32xf32>
      %c0_102 = arith.constant 0 : index
      %c0_103 = arith.constant 0 : index
      %242 = memref.load %arg1[%c0_102, %c0_103] : memref<1x1xf32, #tpu.memory_space<smem>>
      %243 = vector.broadcast %242 : f32 to vector<16x32xf32>
      %244 = arith.mulf %243, %241 : vector<16x32xf32>
      %245 = math.tanh %244 : vector<16x32xf32>
      %c0_104 = arith.constant 0 : index
      %c0_105 = arith.constant 0 : index
      %246 = vector.load %arg2[%c0_104, %c0_105] : memref<1x32xf32, #tpu.memory_space<vmem>>, vector<1x32xf32>
      %247 = vector.broadcast %246 : vector<1x32xf32> to vector<16x32xf32>
      %248 = arith.mulf %245, %247 : vector<16x32xf32>
      %c0_106 = arith.constant 0 : index
      %c0_107 = arith.constant 0 : index
      %249 = vector.load %arg3[%c0_106, %c0_107] : memref<1x32xf32, #tpu.memory_space<vmem>>, vector<1x32xf32>
      %250 = vector.broadcast %249 : vector<1x32xf32> to vector<16x32xf32>
      %251 = arith.addf %248, %250 : vector<16x32xf32>
      %c0_108 = arith.constant 0 : index
      %c0_109 = arith.constant 0 : index
      %252 = vector.load %arg21[%c0_108, %c0_109] : memref<16x32xf32, #tpu.memory_space<vmem>>, vector<16x32xf32>
      tpu.vector_store %arg21[%c0_108, %c0_109], %251 {strides = array<i32>} : memref<16x32xf32, #tpu.memory_space<vmem>>, vector<16x32xf32>,
    } else {
    }
    %c0 = arith.constant 0 : index
    %c0_1 = arith.constant 0 : index
    %3 = vector.load %arg21[%c0, %c0_1] : memref<16x32xf32, #tpu.memory_space<vmem>>, vector<16x32xf32>
    %c0_2 = arith.constant 0 : index
    %c0_3 = arith.constant 0 : index
    %c0_4 = arith.constant 0 : index
    %4 = vector.load %arg5[%c0_2, %c0_3, %c0_4] : memref<1x32x32xbf16, #tpu.memory_space<vmem>>, vector<1x32x32xbf16>
    %5 = vector.shape_cast %4 : vector<1x32x32xbf16> to vector<32x32xbf16>
    %6 = arith.truncf %3 : vector<16x32xf32> to vector<16x32xbf16>
    %cst = arith.constant dense<0.000000e+00> : vector<16x32xf32>
    %7 = tpu.matmul %6, %5, %cst {dimension_numbers = #tpu.dot_dimension_numbers<[1], [0], [0], [1], [0, 0, 1, 1], [], []>} : vector<16x32xbf16>, vector<32x32xbf16>, vector<16x32xf32> -> vector<16x32xf32>
    %c0_5 = arith.constant 0 : index
    %c0_6 = arith.constant 0 : index
    %c0_7 = arith.constant 0 : index
    %8 = vector.load %arg6[%c0_5, %c0_6, %c0_7] : memref<1x1x32xf32, #tpu.memory_space<vmem>>, vector<1x1x32xf32>
    %9 = vector.shape_cast %8 : vector<1x1x32xf32> to vector<1x32xf32>
    %10 = vector.broadcast %9 : vector<1x32xf32> to vector<16x32xf32>
    %11 = arith.addf %7, %10 : vector<16x32xf32>
    %c0_8 = arith.constant 0 : index
    %c0_9 = arith.constant 0 : index
    %c0_10 = arith.constant 0 : index
    %12 = vector.load %arg7[%c0_8, %c0_9, %c0_10] : memref<1x32x32xbf16, #tpu.memory_space<vmem>>, vector<1x32x32xbf16>
    %13 = vector.shape_cast %12 : vector<1x32x32xbf16> to vector<32x32xbf16>
    %14 = arith.truncf %3 : vector<16x32xf32> to vector<16x32xbf16>
    %cst_11 = arith.constant dense<0.000000e+00> : vector<16x32xf32>
    %15 = tpu.matmul %14, %13, %cst_11 {dimension_numbers = #tpu.dot_dimension_numbers<[1], [0], [0], [1], [0, 0, 1, 1], [], []>} : vector<16x32xbf16>, vector<32x32xbf16>, vector<16x32xf32> -> vector<16x32xf32>
    %c0_12 = arith.constant 0 : index
    %c0_13 = arith.constant 0 : index
    %c0_14 = arith.constant 0 : index
    %16 = vector.load %arg8[%c0_12, %c0_13, %c0_14] : memref<1x1x32xf32, #tpu.memory_space<vmem>>, vector<1x1x32xf32>
    %17 = vector.shape_cast %16 : vector<1x1x32xf32> to vector<1x32xf32>
    %18 = vector.broadcast %17 : vector<1x32xf32> to vector<16x32xf32>
    %19 = arith.addf %15, %18 : vector<16x32xf32>
    %c0_15 = arith.constant 0 : index
    %c0_16 = arith.constant 0 : index
    %c0_17 = arith.constant 0 : index
    %20 = vector.load %arg9[%c0_15, %c0_16, %c0_17] : memref<1x32x32xbf16, #tpu.memory_space<vmem>>, vector<1x32x32xbf16>
    %21 = vector.shape_cast %20 : vector<1x32x32xbf16> to vector<32x32xbf16>
    %22 = arith.truncf %3 : vector<16x32xf32> to vector<16x32xbf16>
    %cst_18 = arith.constant dense<0.000000e+00> : vector<16x32xf32>
    %23 = tpu.matmul %22, %21, %cst_18 {dimension_numbers = #tpu.dot_dimension_numbers<[1], [0], [0], [1], [0, 0, 1, 1], [], []>} : vector<16x32xbf16>, vector<32x32xbf16>, vector<16x32xf32> -> vector<16x32xf32>
    %c0_19 = arith.constant 0 : index
    %c0_20 = arith.constant 0 : index
    %c0_21 = arith.constant 0 : index
    %24 = vector.load %arg10[%c0_19, %c0_20, %c0_21] : memref<1x1x32xf32, #tpu.memory_space<vmem>>, vector<1x1x32xf32>
    %25 = vector.shape_cast %24 : vector<1x1x32xf32> to vector<1x32xf32>
    %26 = vector.broadcast %25 : vector<1x32xf32> to vector<16x32xf32>
    %27 = arith.addf %23, %26 : vector<16x32xf32>
    %28 = arith.truncf %11 : vector<16x32xf32> to vector<16x32xbf16>
    %29 = arith.truncf %19 : vector<16x32xf32> to vector<16x32xbf16>
    %30 = arith.truncf %27 : vector<16x32xf32> to vector<16x32xbf16>
    %31 = vector.extract_strided_slice %28 {offsets = [0, 0], sizes = [8, 32], strides = [1, 1]} : vector<16x32xbf16> to vector<8x32xbf16>
    %32 = vector.extract_strided_slice %29 {offsets = [0, 0], sizes = [8, 32], strides = [1, 1]} : vector<16x32xbf16> to vector<8x32xbf16>
    %33 = vector.extract_strided_slice %30 {offsets = [0, 0], sizes = [8, 32], strides = [1, 1]} : vector<16x32xbf16> to vector<8x32xbf16>
    %34 = vector.extract_strided_slice %31 {offsets = [0, 0], sizes = [8, 8], strides = [1, 1]} : vector<8x32xbf16> to vector<8x8xbf16>
    %35 = vector.extract_strided_slice %32 {offsets = [0, 0], sizes = [8, 8], strides = [1, 1]} : vector<8x32xbf16> to vector<8x8xbf16>
    "tpu.trace_start"() <{level = 10 : i32, message = "qd,kd->qk"}> : () -> ()
    %cst_22 = arith.constant dense<0.000000e+00> : vector<8x8xf32>
    %36 = tpu.matmul %34, %35, %cst_22 {dimension_numbers = #tpu.dot_dimension_numbers<[1], [1], [0], [0], [0, 0, 1, 0], [], []>} : vector<8x8xbf16>, vector<8x8xbf16>, vector<8x8xf32> -> vector<8x8xf32>
    "tpu.trace_stop"() : () -> ()
    %cst_23 = arith.constant dense<0xFF800000> : vector<8xf32>
    %37 = vector.multi_reduction <maximumf>, %36, %cst_23 [1] : vector<8x8xf32> to vector<8xf32>
    %38 = vector.shape_cast %37 : vector<8xf32> to vector<8x1xf32>
    %39 = vector.broadcast %38 : vector<8x1xf32> to vector<8x8xf32>
    %40 = arith.subf %36, %39 : vector<8x8xf32>
    %41 = math.exp %40 : vector<8x8xf32>
    %cst_24 = arith.constant dense<0.000000e+00> : vector<8xf32>
    %42 = vector.multi_reduction <add>, %41, %cst_24 [1] : vector<8x8xf32> to vector<8xf32>
    %43 = vector.shape_cast %42 : vector<8xf32> to vector<8x1xf32>
    %44 = vector.broadcast %43 : vector<8x1xf32> to vector<8x8xf32>
    %45 = arith.divf %41, %44 : vector<8x8xf32>
    %46 = arith.truncf %45 : vector<8x8xf32> to vector<8x8xbf16>
    %47 = vector.extract_strided_slice %33 {offsets = [0, 0], sizes = [8, 8], strides = [1, 1]} : vector<8x32xbf16> to vector<8x8xbf16>
    %cst_25 = arith.constant dense<0.000000e+00> : vector<8x8xf32>
    %48 = tpu.matmul %46, %47, %cst_25 {dimension_numbers = #tpu.dot_dimension_numbers<[1], [0], [0], [1], [0, 0, 1, 1], [], []>} : vector<8x8xbf16>, vector<8x8xbf16>, vector<8x8xf32> -> vector<8x8xf32>
    %49 = vector.extract_strided_slice %31 {offsets = [0, 8], sizes = [8, 8], strides = [1, 1]} : vector<8x32xbf16> to vector<8x8xbf16>
    %50 = vector.extract_strided_slice %32 {offsets = [0, 8], sizes = [8, 8], strides = [1, 1]} : vector<8x32xbf16> to vector<8x8xbf16>
    "tpu.trace_start"() <{level = 10 : i32, message = "qd,kd->qk"}> : () -> ()
    %cst_26 = arith.constant dense<0.000000e+00> : vector<8x8xf32>
    %51 = tpu.matmul %49, %50, %cst_26 {dimension_numbers = #tpu.dot_dimension_numbers<[1], [1], [0], [0], [0, 0, 1, 0], [], []>} : vector<8x8xbf16>, vector<8x8xbf16>, vector<8x8xf32> -> vector<8x8xf32>
    "tpu.trace_stop"() : () -> ()
    %cst_27 = arith.constant dense<0xFF800000> : vector<8xf32>
    %52 = vector.multi_reduction <maximumf>, %51, %cst_27 [1] : vector<8x8xf32> to vector<8xf32>
    %53 = vector.shape_cast %52 : vector<8xf32> to vector<8x1xf32>
    %54 = vector.broadcast %53 : vector<8x1xf32> to vector<8x8xf32>
    %55 = arith.subf %51, %54 : vector<8x8xf32>
    %56 = math.exp %55 : vector<8x8xf32>
    %cst_28 = arith.constant dense<0.000000e+00> : vector<8xf32>
    %57 = vector.multi_reduction <add>, %56, %cst_28 [1] : vector<8x8xf32> to vector<8xf32>
    %58 = vector.shape_cast %57 : vector<8xf32> to vector<8x1xf32>
    %59 = vector.broadcast %58 : vector<8x1xf32> to vector<8x8xf32>
    %60 = arith.divf %56, %59 : vector<8x8xf32>
    %61 = arith.truncf %60 : vector<8x8xf32> to vector<8x8xbf16>
    %62 = vector.extract_strided_slice %33 {offsets = [0, 8], sizes = [8, 8], strides = [1, 1]} : vector<8x32xbf16> to vector<8x8xbf16>
    %cst_29 = arith.constant dense<0.000000e+00> : vector<8x8xf32>
    %63 = tpu.matmul %61, %62, %cst_29 {dimension_numbers = #tpu.dot_dimension_numbers<[1], [0], [0], [1], [0, 0, 1, 1], [], []>} : vector<8x8xbf16>, vector<8x8xbf16>, vector<8x8xf32> -> vector<8x8xf32>
    %64 = vector.extract_strided_slice %31 {offsets = [0, 16], sizes = [8, 8], strides = [1, 1]} : vector<8x32xbf16> to vector<8x8xbf16>
    %65 = vector.extract_strided_slice %32 {offsets = [0, 16], sizes = [8, 8], strides = [1, 1]} : vector<8x32xbf16> to vector<8x8xbf16>
    "tpu.trace_start"() <{level = 10 : i32, message = "qd,kd->qk"}> : () -> ()
    %cst_30 = arith.constant dense<0.000000e+00> : vector<8x8xf32>
    %66 = tpu.matmul %64, %65, %cst_30 {dimension_numbers = #tpu.dot_dimension_numbers<[1], [1], [0], [0], [0, 0, 1, 0], [], []>} : vector<8x8xbf16>, vector<8x8xbf16>, vector<8x8xf32> -> vector<8x8xf32>
    "tpu.trace_stop"() : () -> ()
    %cst_31 = arith.constant dense<0xFF800000> : vector<8xf32>
    %67 = vector.multi_reduction <maximumf>, %66, %cst_31 [1] : vector<8x8xf32> to vector<8xf32>
    %68 = vector.shape_cast %67 : vector<8xf32> to vector<8x1xf32>
    %69 = vector.broadcast %68 : vector<8x1xf32> to vector<8x8xf32>
    %70 = arith.subf %66, %69 : vector<8x8xf32>
    %71 = math.exp %70 : vector<8x8xf32>
    %cst_32 = arith.constant dense<0.000000e+00> : vector<8xf32>
    %72 = vector.multi_reduction <add>, %71, %cst_32 [1] : vector<8x8xf32> to vector<8xf32>
    %73 = vector.shape_cast %72 : vector<8xf32> to vector<8x1xf32>
    %74 = vector.broadcast %73 : vector<8x1xf32> to vector<8x8xf32>
    %75 = arith.divf %71, %74 : vector<8x8xf32>
    %76 = arith.truncf %75 : vector<8x8xf32> to vector<8x8xbf16>
    %77 = vector.extract_strided_slice %33 {offsets = [0, 16], sizes = [8, 8], strides = [1, 1]} : vector<8x32xbf16> to vector<8x8xbf16>
    %cst_33 = arith.constant dense<0.000000e+00> : vector<8x8xf32>
    %78 = tpu.matmul %76, %77, %cst_33 {dimension_numbers = #tpu.dot_dimension_numbers<[1], [0], [0], [1], [0, 0, 1, 1], [], []>} : vector<8x8xbf16>, vector<8x8xbf16>, vector<8x8xf32> -> vector<8x8xf32>
    %79 = vector.extract_strided_slice %31 {offsets = [0, 24], sizes = [8, 8], strides = [1, 1]} : vector<8x32xbf16> to vector<8x8xbf16>
    %80 = vector.extract_strided_slice %32 {offsets = [0, 24], sizes = [8, 8], strides = [1, 1]} : vector<8x32xbf16> to vector<8x8xbf16>
    "tpu.trace_start"() <{level = 10 : i32, message = "qd,kd->qk"}> : () -> ()
    %cst_34 = arith.constant dense<0.000000e+00> : vector<8x8xf32>
    %81 = tpu.matmul %79, %80, %cst_34 {dimension_numbers = #tpu.dot_dimension_numbers<[1], [1], [0], [0], [0, 0, 1, 0], [], []>} : vector<8x8xbf16>, vector<8x8xbf16>, vector<8x8xf32> -> vector<8x8xf32>
    "tpu.trace_stop"() : () -> ()
    %cst_35 = arith.constant dense<0xFF800000> : vector<8xf32>
    %82 = vector.multi_reduction <maximumf>, %81, %cst_35 [1] : vector<8x8xf32> to vector<8xf32>
    %83 = vector.shape_cast %82 : vector<8xf32> to vector<8x1xf32>
    %84 = vector.broadcast %83 : vector<8x1xf32> to vector<8x8xf32>
    %85 = arith.subf %81, %84 : vector<8x8xf32>
    %86 = math.exp %85 : vector<8x8xf32>
    %cst_36 = arith.constant dense<0.000000e+00> : vector<8xf32>
    %87 = vector.multi_reduction <add>, %86, %cst_36 [1] : vector<8x8xf32> to vector<8xf32>
    %88 = vector.shape_cast %87 : vector<8xf32> to vector<8x1xf32>
    %89 = vector.broadcast %88 : vector<8x1xf32> to vector<8x8xf32>
    %90 = arith.divf %86, %89 : vector<8x8xf32>
    %91 = arith.truncf %90 : vector<8x8xf32> to vector<8x8xbf16>
    %92 = vector.extract_strided_slice %33 {offsets = [0, 24], sizes = [8, 8], strides = [1, 1]} : vector<8x32xbf16> to vector<8x8xbf16>
    %cst_37 = arith.constant dense<0.000000e+00> : vector<8x8xf32>
    %93 = tpu.matmul %91, %92, %cst_37 {dimension_numbers = #tpu.dot_dimension_numbers<[1], [0], [0], [1], [0, 0, 1, 1], [], []>} : vector<8x8xbf16>, vector<8x8xbf16>, vector<8x8xf32> -> vector<8x8xf32>
    %94 = tpu.concatenate %48, %63, %78, %93 in 1 : vector<8x8xf32>, vector<8x8xf32>, vector<8x8xf32>, vector<8x8xf32> -> vector<8x32xf32>
    %95 = vector.extract_strided_slice %28 {offsets = [8, 0], sizes = [8, 32], strides = [1, 1]} : vector<16x32xbf16> to vector<8x32xbf16>
    %96 = vector.extract_strided_slice %29 {offsets = [8, 0], sizes = [8, 32], strides = [1, 1]} : vector<16x32xbf16> to vector<8x32xbf16>
    %97 = vector.extract_strided_slice %30 {offsets = [8, 0], sizes = [8, 32], strides = [1, 1]} : vector<16x32xbf16> to vector<8x32xbf16>
    %98 = vector.extract_strided_slice %95 {offsets = [0, 0], sizes = [8, 8], strides = [1, 1]} : vector<8x32xbf16> to vector<8x8xbf16>
    %99 = vector.extract_strided_slice %96 {offsets = [0, 0], sizes = [8, 8], strides = [1, 1]} : vector<8x32xbf16> to vector<8x8xbf16>
    "tpu.trace_start"() <{level = 10 : i32, message = "qd,kd->qk"}> : () -> ()
    %cst_38 = arith.constant dense<0.000000e+00> : vector<8x8xf32>
    %100 = tpu.matmul %98, %99, %cst_38 {dimension_numbers = #tpu.dot_dimension_numbers<[1], [1], [0], [0], [0, 0, 1, 0], [], []>} : vector<8x8xbf16>, vector<8x8xbf16>, vector<8x8xf32> -> vector<8x8xf32>
    "tpu.trace_stop"() : () -> ()
    %cst_39 = arith.constant dense<0xFF800000> : vector<8xf32>
    %101 = vector.multi_reduction <maximumf>, %100, %cst_39 [1] : vector<8x8xf32> to vector<8xf32>
    %102 = vector.shape_cast %101 : vector<8xf32> to vector<8x1xf32>
    %103 = vector.broadcast %102 : vector<8x1xf32> to vector<8x8xf32>
    %104 = arith.subf %100, %103 : vector<8x8xf32>
    %105 = math.exp %104 : vector<8x8xf32>
    %cst_40 = arith.constant dense<0.000000e+00> : vector<8xf32>
    %106 = vector.multi_reduction <add>, %105, %cst_40 [1] : vector<8x8xf32> to vector<8xf32>
    %107 = vector.shape_cast %106 : vector<8xf32> to vector<8x1xf32>
    %108 = vector.broadcast %107 : vector<8x1xf32> to vector<8x8xf32>
    %109 = arith.divf %105, %108 : vector<8x8xf32>
    %110 = arith.truncf %109 : vector<8x8xf32> to vector<8x8xbf16>
    %111 = vector.extract_strided_slice %97 {offsets = [0, 0], sizes = [8, 8], strides = [1, 1]} : vector<8x32xbf16> to vector<8x8xbf16>
    %cst_41 = arith.constant dense<0.000000e+00> : vector<8x8xf32>
    %112 = tpu.matmul %110, %111, %cst_41 {dimension_numbers = #tpu.dot_dimension_numbers<[1], [0], [0], [1], [0, 0, 1, 1], [], []>} : vector<8x8xbf16>, vector<8x8xbf16>, vector<8x8xf32> -> vector<8x8xf32>
    %113 = vector.extract_strided_slice %95 {offsets = [0, 8], sizes = [8, 8], strides = [1, 1]} : vector<8x32xbf16> to vector<8x8xbf16>
    %114 = vector.extract_strided_slice %96 {offsets = [0, 8], sizes = [8, 8], strides = [1, 1]} : vector<8x32xbf16> to vector<8x8xbf16>
    "tpu.trace_start"() <{level = 10 : i32, message = "qd,kd->qk"}> : () -> ()
    %cst_42 = arith.constant dense<0.000000e+00> : vector<8x8xf32>
    %115 = tpu.matmul %113, %114, %cst_42 {dimension_numbers = #tpu.dot_dimension_numbers<[1], [1], [0], [0], [0, 0, 1, 0], [], []>} : vector<8x8xbf16>, vector<8x8xbf16>, vector<8x8xf32> -> vector<8x8xf32>
    "tpu.trace_stop"() : () -> ()
    %cst_43 = arith.constant dense<0xFF800000> : vector<8xf32>
    %116 = vector.multi_reduction <maximumf>, %115, %cst_43 [1] : vector<8x8xf32> to vector<8xf32>
    %117 = vector.shape_cast %116 : vector<8xf32> to vector<8x1xf32>
    %118 = vector.broadcast %117 : vector<8x1xf32> to vector<8x8xf32>
    %119 = arith.subf %115, %118 : vector<8x8xf32>
    %120 = math.exp %119 : vector<8x8xf32>
    %cst_44 = arith.constant dense<0.000000e+00> : vector<8xf32>
    %121 = vector.multi_reduction <add>, %120, %cst_44 [1] : vector<8x8xf32> to vector<8xf32>
    %122 = vector.shape_cast %121 : vector<8xf32> to vector<8x1xf32>
    %123 = vector.broadcast %122 : vector<8x1xf32> to vector<8x8xf32>
    %124 = arith.divf %120, %123 : vector<8x8xf32>
    %125 = arith.truncf %124 : vector<8x8xf32> to vector<8x8xbf16>
    %126 = vector.extract_strided_slice %97 {offsets = [0, 8], sizes = [8, 8], strides = [1, 1]} : vector<8x32xbf16> to vector<8x8xbf16>
    %cst_45 = arith.constant dense<0.000000e+00> : vector<8x8xf32>
    %127 = tpu.matmul %125, %126, %cst_45 {dimension_numbers = #tpu.dot_dimension_numbers<[1], [0], [0], [1], [0, 0, 1, 1], [], []>} : vector<8x8xbf16>, vector<8x8xbf16>, vector<8x8xf32> -> vector<8x8xf32>
    %128 = vector.extract_strided_slice %95 {offsets = [0, 16], sizes = [8, 8], strides = [1, 1]} : vector<8x32xbf16> to vector<8x8xbf16>
    %129 = vector.extract_strided_slice %96 {offsets = [0, 16], sizes = [8, 8], strides = [1, 1]} : vector<8x32xbf16> to vector<8x8xbf16>
    "tpu.trace_start"() <{level = 10 : i32, message = "qd,kd->qk"}> : () -> ()
    %cst_46 = arith.constant dense<0.000000e+00> : vector<8x8xf32>
    %130 = tpu.matmul %128, %129, %cst_46 {dimension_numbers = #tpu.dot_dimension_numbers<[1], [1], [0], [0], [0, 0, 1, 0], [], []>} : vector<8x8xbf16>, vector<8x8xbf16>, vector<8x8xf32> -> vector<8x8xf32>
    "tpu.trace_stop"() : () -> ()
    %cst_47 = arith.constant dense<0xFF800000> : vector<8xf32>
    %131 = vector.multi_reduction <maximumf>, %130, %cst_47 [1] : vector<8x8xf32> to vector<8xf32>
    %132 = vector.shape_cast %131 : vector<8xf32> to vector<8x1xf32>
    %133 = vector.broadcast %132 : vector<8x1xf32> to vector<8x8xf32>
    %134 = arith.subf %130, %133 : vector<8x8xf32>
    %135 = math.exp %134 : vector<8x8xf32>
    %cst_48 = arith.constant dense<0.000000e+00> : vector<8xf32>
    %136 = vector.multi_reduction <add>, %135, %cst_48 [1] : vector<8x8xf32> to vector<8xf32>
    %137 = vector.shape_cast %136 : vector<8xf32> to vector<8x1xf32>
    %138 = vector.broadcast %137 : vector<8x1xf32> to vector<8x8xf32>
    %139 = arith.divf %135, %138 : vector<8x8xf32>
    %140 = arith.truncf %139 : vector<8x8xf32> to vector<8x8xbf16>
    %141 = vector.extract_strided_slice %97 {offsets = [0, 16], sizes = [8, 8], strides = [1, 1]} : vector<8x32xbf16> to vector<8x8xbf16>
    %cst_49 = arith.constant dense<0.000000e+00> : vector<8x8xf32>
    %142 = tpu.matmul %140, %141, %cst_49 {dimension_numbers = #tpu.dot_dimension_numbers<[1], [0], [0], [1], [0, 0, 1, 1], [], []>} : vector<8x8xbf16>, vector<8x8xbf16>, vector<8x8xf32> -> vector<8x8xf32>
    %143 = vector.extract_strided_slice %95 {offsets = [0, 24], sizes = [8, 8], strides = [1, 1]} : vector<8x32xbf16> to vector<8x8xbf16>
    %144 = vector.extract_strided_slice %96 {offsets = [0, 24], sizes = [8, 8], strides = [1, 1]} : vector<8x32xbf16> to vector<8x8xbf16>
    "tpu.trace_start"() <{level = 10 : i32, message = "qd,kd->qk"}> : () -> ()
    %cst_50 = arith.constant dense<0.000000e+00> : vector<8x8xf32>
    %145 = tpu.matmul %143, %144, %cst_50 {dimension_numbers = #tpu.dot_dimension_numbers<[1], [1], [0], [0], [0, 0, 1, 0], [], []>} : vector<8x8xbf16>, vector<8x8xbf16>, vector<8x8xf32> -> vector<8x8xf32>
    "tpu.trace_stop"() : () -> ()
    %cst_51 = arith.constant dense<0xFF800000> : vector<8xf32>
    %146 = vector.multi_reduction <maximumf>, %145, %cst_51 [1] : vector<8x8xf32> to vector<8xf32>
    %147 = vector.shape_cast %146 : vector<8xf32> to vector<8x1xf32>
    %148 = vector.broadcast %147 : vector<8x1xf32> to vector<8x8xf32>
    %149 = arith.subf %145, %148 : vector<8x8xf32>
    %150 = math.exp %149 : vector<8x8xf32>
    %cst_52 = arith.constant dense<0.000000e+00> : vector<8xf32>
    %151 = vector.multi_reduction <add>, %150, %cst_52 [1] : vector<8x8xf32> to vector<8xf32>
    %152 = vector.shape_cast %151 : vector<8xf32> to vector<8x1xf32>
    %153 = vector.broadcast %152 : vector<8x1xf32> to vector<8x8xf32>
    %154 = arith.divf %150, %153 : vector<8x8xf32>
    %155 = arith.truncf %154 : vector<8x8xf32> to vector<8x8xbf16>
    %156 = vector.extract_strided_slice %97 {offsets = [0, 24], sizes = [8, 8], strides = [1, 1]} : vector<8x32xbf16> to vector<8x8xbf16>
    %cst_53 = arith.constant dense<0.000000e+00> : vector<8x8xf32>
    %157 = tpu.matmul %155, %156, %cst_53 {dimension_numbers = #tpu.dot_dimension_numbers<[1], [0], [0], [1], [0, 0, 1, 1], [], []>} : vector<8x8xbf16>, vector<8x8xbf16>, vector<8x8xf32> -> vector<8x8xf32>
    %158 = tpu.concatenate %112, %127, %142, %157 in 1 : vector<8x8xf32>, vector<8x8xf32>, vector<8x8xf32>, vector<8x8xf32> -> vector<8x32xf32>
    %159 = tpu.concatenate %94, %158 in 0 : vector<8x32xf32>, vector<8x32xf32> -> vector<16x32xf32>
    %c0_54 = arith.constant 0 : index
    %c0_55 = arith.constant 0 : index
    %c0_56 = arith.constant 0 : index
    %160 = vector.load %arg11[%c0_54, %c0_55, %c0_56] : memref<1x32x32xbf16, #tpu.memory_space<vmem>>, vector<1x32x32xbf16>
    %161 = vector.shape_cast %160 : vector<1x32x32xbf16> to vector<32x32xbf16>
    %162 = arith.truncf %159 : vector<16x32xf32> to vector<16x32xbf16>
    %cst_57 = arith.constant dense<0.000000e+00> : vector<16x32xf32>
    %163 = tpu.matmul %162, %161, %cst_57 {dimension_numbers = #tpu.dot_dimension_numbers<[1], [0], [0], [1], [0, 0, 1, 1], [], []>} : vector<16x32xbf16>, vector<32x32xbf16>, vector<16x32xf32> -> vector<16x32xf32>
    %c0_58 = arith.constant 0 : index
    %c0_59 = arith.constant 0 : index
    %c0_60 = arith.constant 0 : index
    %164 = vector.load %arg12[%c0_58, %c0_59, %c0_60] : memref<1x1x32xf32, #tpu.memory_space<vmem>>, vector<1x1x32xf32>
    %165 = vector.shape_cast %164 : vector<1x1x32xf32> to vector<1x32xf32>
    %166 = vector.broadcast %165 : vector<1x32xf32> to vector<16x32xf32>
    %167 = arith.addf %163, %166 : vector<16x32xf32>
    %c0_61 = arith.constant 0 : index
    %c0_62 = arith.constant 0 : index
    %c0_63 = arith.constant 0 : index
    %168 = vector.load %arg13[%c0_61, %c0_62, %c0_63] : memref<1x1x32xf32, #tpu.memory_space<vmem>>, vector<1x1x32xf32>
    %169 = vector.shape_cast %168 : vector<1x1x32xf32> to vector<1x32xf32>
    %c0_64 = arith.constant 0 : index
    %c0_65 = arith.constant 0 : index
    %c0_66 = arith.constant 0 : index
    %170 = vector.load %arg14[%c0_64, %c0_65, %c0_66] : memref<1x1x32xf32, #tpu.memory_space<vmem>>, vector<1x1x32xf32>
    %171 = vector.shape_cast %170 : vector<1x1x32xf32> to vector<1x32xf32>
    %172 = arith.addf %167, %3 : vector<16x32xf32>
    %cst_67 = arith.constant dense<0.000000e+00> : vector<16xf32>
    %173 = vector.multi_reduction <add>, %172, %cst_67 [1] : vector<16x32xf32> to vector<16xf32>
    %174 = vector.shape_cast %173 : vector<16xf32> to vector<16x1xf32>
    %cst_68 = arith.constant 3.200000e+01 : f32
    %175 = vector.broadcast %cst_68 : f32 to vector<16x1xf32>
    %176 = arith.divf %174, %175 : vector<16x1xf32>
    %177 = vector.broadcast %176 : vector<16x1xf32> to vector<16x32xf32>
    %178 = arith.subf %172, %177 : vector<16x32xf32>
    %179 = arith.mulf %178, %178 : vector<16x32xf32>
    %cst_69 = arith.constant dense<0.000000e+00> : vector<16xf32>
    %180 = vector.multi_reduction <add>, %179, %cst_69 [1] : vector<16x32xf32> to vector<16xf32>
    %181 = vector.shape_cast %180 : vector<16xf32> to vector<16x1xf32>
    %cst_70 = arith.constant 3.200000e+01 : f32
    %182 = vector.broadcast %cst_70 : f32 to vector<16x1xf32>
    %183 = arith.divf %181, %182 : vector<16x1xf32>
    %184 = vector.broadcast %176 : vector<16x1xf32> to vector<16x32xf32>
    %185 = arith.subf %172, %184 : vector<16x32xf32>
    %cst_71 = arith.constant 9.99999974E-6 : f32
    %186 = vector.broadcast %cst_71 : f32 to vector<16x1xf32>
    %187 = arith.addf %183, %186 : vector<16x1xf32>
    %188 = math.rsqrt %187 : vector<16x1xf32>
    %189 = vector.broadcast %188 : vector<16x1xf32> to vector<16x32xf32>
    %190 = arith.mulf %185, %189 : vector<16x32xf32>
    %191 = vector.broadcast %169 : vector<1x32xf32> to vector<16x32xf32>
    %192 = arith.mulf %190, %191 : vector<16x32xf32>
    %193 = vector.broadcast %171 : vector<1x32xf32> to vector<16x32xf32>
    %194 = arith.addf %192, %193 : vector<16x32xf32>
    %c0_72 = arith.constant 0 : index
    %c0_73 = arith.constant 0 : index
    %c0_74 = arith.constant 0 : index
    %195 = vector.load %arg15[%c0_72, %c0_73, %c0_74] : memref<1x32x64xbf16, #tpu.memory_space<vmem>>, vector<1x32x64xbf16>
    %196 = vector.shape_cast %195 : vector<1x32x64xbf16> to vector<32x64xbf16>
    %197 = arith.truncf %194 : vector<16x32xf32> to vector<16x32xbf16>
    %cst_75 = arith.constant dense<0.000000e+00> : vector<16x64xf32>
    %198 = tpu.matmul %197, %196, %cst_75 {dimension_numbers = #tpu.dot_dimension_numbers<[1], [0], [0], [1], [0, 0, 1, 1], [], []>} : vector<16x32xbf16>, vector<32x64xbf16>, vector<16x64xf32> -> vector<16x64xf32>
    %c0_76 = arith.constant 0 : index
    %c0_77 = arith.constant 0 : index
    %c0_78 = arith.constant 0 : index
    %199 = vector.load %arg16[%c0_76, %c0_77, %c0_78] : memref<1x1x64xf32, #tpu.memory_space<vmem>>, vector<1x1x64xf32>
    %200 = vector.shape_cast %199 : vector<1x1x64xf32> to vector<1x64xf32>
    %201 = vector.broadcast %200 : vector<1x64xf32> to vector<16x64xf32>
    %202 = arith.addf %198, %201 : vector<16x64xf32>
    %cst_79 = arith.constant 0.000000e+00 : f32
    %203 = vector.broadcast %cst_79 : f32 to vector<16x64xf32>
    %204 = arith.maximumf %202, %203 : vector<16x64xf32>
    %c0_80 = arith.constant 0 : index
    %c0_81 = arith.constant 0 : index
    %c0_82 = arith.constant 0 : index
    %205 = vector.load %arg17[%c0_80, %c0_81, %c0_82] : memref<1x64x32xbf16, #tpu.memory_space<vmem>>, vector<1x64x32xbf16>
    %206 = vector.shape_cast %205 : vector<1x64x32xbf16> to vector<64x32xbf16>
    %207 = arith.truncf %204 : vector<16x64xf32> to vector<16x64xbf16>
    %cst_83 = arith.constant dense<0.000000e+00> : vector<16x32xf32>
    %208 = tpu.matmul %207, %206, %cst_83 {dimension_numbers = #tpu.dot_dimension_numbers<[1], [0], [0], [1], [0, 0, 1, 1], [], []>} : vector<16x64xbf16>, vector<64x32xbf16>, vector<16x32xf32> -> vector<16x32xf32>
    %c0_84 = arith.constant 0 : index
    %c0_85 = arith.constant 0 : index
    %c0_86 = arith.constant 0 : index
    %209 = vector.load %arg18[%c0_84, %c0_85, %c0_86] : memref<1x1x32xf32, #tpu.memory_space<vmem>>, vector<1x1x32xf32>
    %210 = vector.shape_cast %209 : vector<1x1x32xf32> to vector<1x32xf32>
    %211 = vector.broadcast %210 : vector<1x32xf32> to vector<16x32xf32>
    %212 = arith.addf %208, %211 : vector<16x32xf32>
    %c0_87 = arith.constant 0 : index
    %c0_88 = arith.constant 0 : index
    %c0_89 = arith.constant 0 : index
    %213 = vector.load %arg19[%c0_87, %c0_88, %c0_89] : memref<1x1x32xf32, #tpu.memory_space<vmem>>, vector<1x1x32xf32>
    %214 = vector.shape_cast %213 : vector<1x1x32xf32> to vector<1x32xf32>
    %c0_90 = arith.constant 0 : index
    %c0_91 = arith.constant 0 : index
    %c0_92 = arith.constant 0 : index
    %215 = vector.load %arg20[%c0_90, %c0_91, %c0_92] : memref<1x1x32xf32, #tpu.memory_space<vmem>>, vector<1x1x32xf32>
    %216 = vector.shape_cast %215 : vector<1x1x32xf32> to vector<1x32xf32>
    %217 = arith.addf %212, %194 : vector<16x32xf32>
    %cst_93 = arith.constant dense<0.000000e+00> : vector<16xf32>
    %218 = vector.multi_reduction <add>, %217, %cst_93 [1] : vector<16x32xf32> to vector<16xf32>
    %219 = vector.shape_cast %218 : vector<16xf32> to vector<16x1xf32>
    %cst_94 = arith.constant 3.200000e+01 : f32
    %220 = vector.broadcast %cst_94 : f32 to vector<16x1xf32>
    %221 = arith.divf %219, %220 : vector<16x1xf32>
    %222 = vector.broadcast %221 : vector<16x1xf32> to vector<16x32xf32>
    %223 = arith.subf %217, %222 : vector<16x32xf32>
    %224 = arith.mulf %223, %223 : vector<16x32xf32>
    %cst_95 = arith.constant dense<0.000000e+00> : vector<16xf32>
    %225 = vector.multi_reduction <add>, %224, %cst_95 [1] : vector<16x32xf32> to vector<16xf32>
    %226 = vector.shape_cast %225 : vector<16xf32> to vector<16x1xf32>
    %cst_96 = arith.constant 3.200000e+01 : f32
    %227 = vector.broadcast %cst_96 : f32 to vector<16x1xf32>
    %228 = arith.divf %226, %227 : vector<16x1xf32>
    %229 = vector.broadcast %221 : vector<16x1xf32> to vector<16x32xf32>
    %230 = arith.subf %217, %229 : vector<16x32xf32>
    %cst_97 = arith.constant 9.99999974E-6 : f32
    %231 = vector.broadcast %cst_97 : f32 to vector<16x1xf32>
    %232 = arith.addf %228, %231 : vector<16x1xf32>
    %233 = math.rsqrt %232 : vector<16x1xf32>
    %234 = vector.broadcast %233 : vector<16x1xf32> to vector<16x32xf32>
    %235 = arith.mulf %230, %234 : vector<16x32xf32>
    %236 = vector.broadcast %214 : vector<1x32xf32> to vector<16x32xf32>
    %237 = arith.mulf %235, %236 : vector<16x32xf32>
    %238 = vector.broadcast %216 : vector<1x32xf32> to vector<16x32xf32>
    %239 = arith.addf %237, %238 : vector<16x32xf32>
    %c0_98 = arith.constant 0 : index
    %c0_99 = arith.constant 0 : index
    %240 = vector.load %arg21[%c0_98, %c0_99] : memref<16x32xf32, #tpu.memory_space<vmem>>, vector<16x32xf32>
    tpu.vector_store %arg21[%c0_98, %c0_99], %239 {strides = array<i32>} : memref<16x32xf32, #tpu.memory_space<vmem>>, vector<16x32xf32>,
    return
  }
  func.func @transform_0(%arg0: i32) -> (i32, i32) {
    %c0_i32 = arith.constant 0 : i32
    %c0_i32_0 = arith.constant 0 : i32
    %c0_i32_1 = arith.constant 0 : i32
    return %c0_i32, %c0_i32_0 : i32, i32
  }
  func.func @transform_1(%arg0: i32) -> (i32, i32) {
    %c0_i32 = arith.constant 0 : i32
    %c0_i32_0 = arith.constant 0 : i32
    %c0_i32_1 = arith.constant 0 : i32
    return %c0_i32, %c0_i32_0 : i32, i32
  }
  func.func @transform_2(%arg0: i32) -> (i32, i32) {
    %c0_i32 = arith.constant 0 : i32
    %c0_i32_0 = arith.constant 0 : i32
    %c0_i32_1 = arith.constant 0 : i32
    return %c0_i32, %c0_i32_0 : i32, i32
  }
  func.func @transform_3(%arg0: i32) -> (i32, i32) {
    %c0_i32 = arith.constant 0 : i32
    %c0_i32_0 = arith.constant 0 : i32
    %c0_i32_1 = arith.constant 0 : i32
    return %c0_i32, %c0_i32_0 : i32, i32
  }
  func.func @transform_4(%arg0: i32) -> (i32, i32, i32) {
    %c0_i32 = arith.constant 0 : i32
    %c0_i32_0 = arith.constant 0 : i32
    %c0_i32_1 = arith.constant 0 : i32
    return %arg0, %c0_i32, %c0_i32_0 : i32, i32, i32
  }
  func.func @transform_5(%arg0: i32) -> (i32, i32, i32) {
    %c0_i32 = arith.constant 0 : i32
    %c0_i32_0 = arith.constant 0 : i32
    %c0_i32_1 = arith.constant 0 : i32
    return %arg0, %c0_i32, %c0_i32_0 : i32, i32, i32
  }
  func.func @transform_6(%arg0: i32) -> (i32, i32, i32) {
    %c0_i32 = arith.constant 0 : i32
    %c0_i32_0 = arith.constant 0 : i32
    %c0_i32_1 = arith.constant 0 : i32
    return %arg0, %c0_i32, %c0_i32_0 : i32, i32, i32
  }
  func.func @transform_7(%arg0: i32) -> (i32, i32, i32) {
    %c0_i32 = arith.constant 0 : i32
    %c0_i32_0 = arith.constant 0 : i32
    %c0_i32_1 = arith.constant 0 : i32
    return %arg0, %c0_i32, %c0_i32_0 : i32, i32, i32
  }
  func.func @transform_8(%arg0: i32) -> (i32, i32, i32) {
    %c0_i32 = arith.constant 0 : i32
    %c0_i32_0 = arith.constant 0 : i32
    %c0_i32_1 = arith.constant 0 : i32
    return %arg0, %c0_i32, %c0_i32_0 : i32, i32, i32
  }
  func.func @transform_9(%arg0: i32) -> (i32, i32, i32) {
    %c0_i32 = arith.constant 0 : i32
    %c0_i32_0 = arith.constant 0 : i32
    %c0_i32_1 = arith.constant 0 : i32
    return %arg0, %c0_i32, %c0_i32_0 : i32, i32, i32
  }
  func.func @transform_10(%arg0: i32) -> (i32, i32, i32) {
    %c0_i32 = arith.constant 0 : i32
    %c0_i32_0 = arith.constant 0 : i32
    %c0_i32_1 = arith.constant 0 : i32
    return %arg0, %c0_i32, %c0_i32_0 : i32, i32, i32
  }
  func.func @transform_11(%arg0: i32) -> (i32, i32, i32) {
    %c0_i32 = arith.constant 0 : i32
    %c0_i32_0 = arith.constant 0 : i32
    %c0_i32_1 = arith.constant 0 : i32
    return %arg0, %c0_i32, %c0_i32_0 : i32, i32, i32
  }
  func.func @transform_12(%arg0: i32) -> (i32, i32, i32) {
    %c0_i32 = arith.constant 0 : i32
    %c0_i32_0 = arith.constant 0 : i32
    %c0_i32_1 = arith.constant 0 : i32
    return %arg0, %c0_i32, %c0_i32_0 : i32, i32, i32
  }
  func.func @transform_13(%arg0: i32) -> (i32, i32, i32) {
    %c0_i32 = arith.constant 0 : i32
    %c0_i32_0 = arith.constant 0 : i32
    %c0_i32_1 = arith.constant 0 : i32
    return %arg0, %c0_i32, %c0_i32_0 : i32, i32, i32
  }
  func.func @transform_14(%arg0: i32) -> (i32, i32, i32) {
    %c0_i32 = arith.constant 0 : i32
    %c0_i32_0 = arith.constant 0 : i32
    %c0_i32_1 = arith.constant 0 : i32
    return %arg0, %c0_i32, %c0_i32_0 : i32, i32, i32
  }
  func.func @transform_15(%arg0: i32) -> (i32, i32, i32) {
    %c0_i32 = arith.constant 0 : i32
    %c0_i32_0 = arith.constant 0 : i32
    %c0_i32_1 = arith.constant 0 : i32
    return %arg0, %c0_i32, %c0_i32_0 : i32, i32, i32
  }
  func.func @transform_16(%arg0: i32) -> (i32, i32, i32) {
    %c0_i32 = arith.constant 0 : i32
    %c0_i32_0 = arith.constant 0 : i32
    %c0_i32_1 = arith.constant 0 : i32
    return %arg0, %c0_i32, %c0_i32_0 : i32, i32, i32
  }
  func.func @transform_17(%arg0: i32) -> (i32, i32, i32) {
    %c0_i32 = arith.constant 0 : i32
    %c0_i32_0 = arith.constant 0 : i32
    %c0_i32_1 = arith.constant 0 : i32
    return %arg0, %c0_i32, %c0_i32_0 : i32, i32, i32
  }
  func.func @transform_18(%arg0: i32) -> (i32, i32, i32) {
    %c0_i32 = arith.constant 0 : i32
    %c0_i32_0 = arith.constant 0 : i32
    %c0_i32_1 = arith.constant 0 : i32
    return %arg0, %c0_i32, %c0_i32_0 : i32, i32, i32
  }
  func.func @transform_19(%arg0: i32) -> (i32, i32, i32) {
    %c0_i32 = arith.constant 0 : i32
    %c0_i32_0 = arith.constant 0 : i32
    %c0_i32_1 = arith.constant 0 : i32
    return %arg0, %c0_i32, %c0_i32_0 : i32, i32, i32
  }
  func.func @transform_20(%arg0: i32) -> (i32, i32) {
    %c0_i32 = arith.constant 0 : i32
    %c0_i32_0 = arith.constant 0 : i32
    %c0_i32_1 = arith.constant 0 : i32
    return %c0_i32, %c0_i32_0 : i32, i32
  }
}

</mosaic_0001>

<llo_original>
// kernel: dyt_transformer_forward.2
$region0: #{dyt_transformer_forward.2}
  #allocation0 [shape = 'u32[]', space=smem, size = 0x4, offset = 0x4, fixed_abs, tag = 'smem constant byte address 0x4 - core index']
  #allocation1 [shape = 'u32[144,128]{1,0:T(1,128)}', space=vmem, size = 0x12000, scoped, tag = 'internal scratch']
  #allocation2 [shape = 'f32[1,1]{1,0:T(1,128)S(6)}', space=smem, size = 0x200, scoped, tag = 'scoped memory for dyt_transformer_forward.2']
  %s0 = inlined_call_operand.<no memory space> [shape: f32[1,1], index: 0, kind: input, shape index: {}]
  %s1 = inlined_call_operand.hbm [shape: f32[1,32], index: 1, kind: input, shape index: {}]
  %s2 = inlined_call_operand.hbm [shape: f32[1,32], index: 2, kind: input, shape index: {}]
  %s3 = inlined_call_operand.hbm [shape: f32[16,32], index: 3, kind: input, shape index: {}]
  %s4 = inlined_call_operand.hbm [shape: bf16[2,32,32], index: 4, kind: input, shape index: {}]
  %s5 = inlined_call_operand.hbm [shape: f32[2,1,32], index: 5, kind: input, shape index: {}]
  %s6 = inlined_call_operand.hbm [shape: bf16[2,32,32], index: 6, kind: input, shape index: {}]
  %s7 = inlined_call_operand.hbm [shape: f32[2,1,32], index: 7, kind: input, shape index: {}]
  %s8 = inlined_call_operand.hbm [shape: bf16[2,32,32], index: 8, kind: input, shape index: {}]
  %s9 = inlined_call_operand.hbm [shape: f32[2,1,32], index: 9, kind: input, shape index: {}]
  %s10 = inlined_call_operand.hbm [shape: bf16[2,32,32], index: 10, kind: input, shape index: {}]
  %s11 = inlined_call_operand.hbm [shape: f32[2,1,32], index: 11, kind: input, shape index: {}]
  %s12 = inlined_call_operand.hbm [shape: f32[2,1,32], index: 12, kind: input, shape index: {}]
  %s13 = inlined_call_operand.hbm [shape: f32[2,1,32], index: 13, kind: input, shape index: {}]
  %s14 = inlined_call_operand.hbm [shape: bf16[2,32,64], index: 14, kind: input, shape index: {}]
  %s15 = inlined_call_operand.hbm [shape: f32[2,1,64], index: 15, kind: input, shape index: {}]
  %s16 = inlined_call_operand.hbm [shape: bf16[2,64,32], index: 16, kind: input, shape index: {}]
  %s17 = inlined_call_operand.hbm [shape: f32[2,1,32], index: 17, kind: input, shape index: {}]
  %s18 = inlined_call_operand.hbm [shape: f32[2,1,32], index: 18, kind: input, shape index: {}]
  %s19 = inlined_call_operand.hbm [shape: f32[2,1,32], index: 19, kind: input, shape index: {}]
  %s20 = inlined_call_operand.hbm [shape: f32[16,32], index: 20, kind: output, shape index: {}]
  %s21 = sld [smem:[#allocation0]]
  $region193: #{dyt_transformer_forward.2} parent=0
    _
  %s23 = ssub.s32 1, %s21
  %s24 = scalar_select 0, %s23, %s21
  %25 = sst [smem:[#allocation2]] %s0
  $region1: #{dyt_transformer_forward.2} parent=0
    #allocation3 [shape = 'u8[512]{0}', space=vmem, size = 0x400, scoped, tag = 'input window, operand 1, single buffered']
    #allocation4 [shape = 's32[2]{0}', space=sflag, size = 0x8, scoped, tag = 'scoped memory for dyt_transformer_forward.2']
    #allocation5 [shape = 's32[2]{0}', space=sflag, size = 0x8, scoped, tag = 'scoped memory for dyt_transformer_forward.2']
    #allocation6 [shape = 'u8[512]{0}', space=vmem, size = 0x400, scoped, tag = 'input window, operand 2, single buffered']
    #allocation7 [shape = 's32[1]{0}', space=sflag, size = 0x4, scoped, tag = 'scoped memory for dyt_transformer_forward.2']
    #allocation8 [shape = 'u8[8192]{0}', space=vmem, size = 0x2000, scoped, tag = 'input window, operand 3, single buffered']
    #allocation9 [shape = 'u8[16384]{0}', space=vmem, size = 0x4000, scoped, tag = 'input window, operand 4']
    #allocation10 [shape = 's32[2]{0}', space=sflag, size = 0x8, scoped, tag = 'scoped memory for dyt_transformer_forward.2']
    #allocation11 [shape = 'u8[1024]{0}', space=vmem, size = 0x400, scoped, tag = 'input window, operand 5']
    #allocation12 [shape = 'u8[16384]{0}', space=vmem, size = 0x4000, scoped, tag = 'input window, operand 6']
    #allocation13 [shape = 's32[2]{0}', space=sflag, size = 0x8, scoped, tag = 'scoped memory for dyt_transformer_forward.2']
    #allocation14 [shape = 'u8[1024]{0}', space=vmem, size = 0x400, scoped, tag = 'input window, operand 7']
    #allocation15 [shape = 'u8[16384]{0}', space=vmem, size = 0x4000, scoped, tag = 'input window, operand 8']
    #allocation16 [shape = 's32[2]{0}', space=sflag, size = 0x8, scoped, tag = 'scoped memory for dyt_transformer_forward.2']
    #allocation17 [shape = 'u8[1024]{0}', space=vmem, size = 0x400, scoped, tag = 'input window, operand 9']
    #allocation18 [shape = 'u8[16384]{0}', space=vmem, size = 0x4000, scoped, tag = 'input window, operand 10']
    #allocation19 [shape = 's32[2]{0}', space=sflag, size = 0x8, scoped, tag = 'scoped memory for dyt_transformer_forward.2']
    #allocation20 [shape = 'u8[1024]{0}', space=vmem, size = 0x400, scoped, tag = 'input window, operand 11']
    #allocation21 [shape = 'u8[1024]{0}', space=vmem, size = 0x400, scoped, tag = 'input window, operand 12']
    #allocation22 [shape = 's32[2]{0}', space=sflag, size = 0x8, scoped, tag = 'scoped memory for dyt_transformer_forward.2']
    #allocation23 [shape = 'u8[1024]{0}', space=vmem, size = 0x400, scoped, tag = 'input window, operand 13']
    #allocation24 [shape = 'u8[16384]{0}', space=vmem, size = 0x4000, scoped, tag = 'input window, operand 14']
    #allocation25 [shape = 's32[2]{0}', space=sflag, size = 0x8, scoped, tag = 'scoped memory for dyt_transformer_forward.2']
    #allocation26 [shape = 'u8[1024]{0}', space=vmem, size = 0x400, scoped, tag = 'input window, operand 15']
    #allocation27 [shape = 'u8[32768]{0}', space=vmem, size = 0x8000, scoped, tag = 'input window, operand 16']
    #allocation28 [shape = 's32[2]{0}', space=sflag, size = 0x8, scoped, tag = 'scoped memory for dyt_transformer_forward.2']
    #allocation29 [shape = 'u8[1024]{0}', space=vmem, size = 0x400, scoped, tag = 'input window, operand 17']
    #allocation30 [shape = 'u8[1024]{0}', space=vmem, size = 0x400, scoped, tag = 'input window, operand 18']
    #allocation31 [shape = 's32[2]{0}', space=sflag, size = 0x8, scoped, tag = 'scoped memory for dyt_transformer_forward.2']
    #allocation32 [shape = 'u8[1024]{0}', space=vmem, size = 0x400, scoped, tag = 'input window, operand 19']
    #allocation33 [shape = 'u8[8192]{0}', space=vmem, size = 0x2000, scoped, tag = 'output window, operand 0, single buffered']
    %26 = vsyncpa [#allocation4], 0
    %27 = vsyncpa [#allocation7], 0
    %28 = vsyncpa [#allocation10], 0
    %s29 = scalar_lea.sflag [#allocation10], 1
    %30 = vsyncpa %s29, 0
    %31 = vsyncpa [#allocation13], 0
    %s32 = scalar_lea.sflag [#allocation13], 1
    %33 = vsyncpa %s32, 0
    %34 = vsyncpa [#allocation16], 0
    %s35 = scalar_lea.sflag [#allocation16], 1
    %36 = vsyncpa %s35, 0
    %37 = vsyncpa [#allocation19], 0
    %s38 = scalar_lea.sflag [#allocation19], 1
    %39 = vsyncpa %s38, 0
    %40 = vsyncpa [#allocation22], 0
    %s41 = scalar_lea.sflag [#allocation22], 1
    %42 = vsyncpa %s41, 0
    %43 = vsyncpa [#allocation25], 0
    %s44 = scalar_lea.sflag [#allocation25], 1
    %45 = vsyncpa %s44, 0
    %46 = vsyncpa [#allocation28], 0
    %s47 = scalar_lea.sflag [#allocation28], 1
    %48 = vsyncpa %s47, 0
    %49 = vsyncpa [#allocation31], 0
    %s50 = scalar_lea.sflag [#allocation31], 1
    %51 = vsyncpa %s50, 0
    %52 = vsyncpa [#allocation5], 0
    loop: start=0, step=1, limit=4
    $region2: #{dyt_transformer_forward.2} parent=1 // loop_pre_header
      _
    $region3: #{dyt_transformer_forward.2} parent=1 // loop_header
      %s54 = sphi 0, %s58
      %p55 = scmp.ge.s32.totalorder %s54, 4
      %s62 = sphi 0, %s62
      %s64 = sphi 0, %s62
      %s65 = sphi 0, %s64
      %s79 = sphi 0, %s65
      %s83 = sphi 0, %s83
      %s85 = sphi 0, %s83
      %s86 = sphi 0, %s85
      %s100 = sphi 0, %s86
      %s104 = sphi 0, %s104
      %s106 = sphi 0, %s104
      %s107 = sphi 0, %s106
      %s121 = sphi 0, %s107
      %s125 = sphi 0, %s125
      %s127 = sphi 0, %s125
      %s128 = sphi 0, %s127
      %s142 = sphi 0, %s128
      %s148 = sphi 0, %s150
      %s151 = sphi 0, %s148
      %s152 = sphi 0, %s151
      %s168 = sphi 0, %s152
      %s174 = sphi 0, %s176
      %s177 = sphi 0, %s174
      %s178 = sphi 0, %s177
      %s194 = sphi 0, %s178
      %s200 = sphi 0, %s202
      %s203 = sphi 0, %s200
      %s204 = sphi 0, %s203
      %s220 = sphi 0, %s204
      %s226 = sphi 0, %s228
      %s229 = sphi 0, %s226
      %s230 = sphi 0, %s229
      %s246 = sphi 0, %s230
      %s252 = sphi 0, %s254
      %s255 = sphi 0, %s252
      %s256 = sphi 0, %s255
      %s272 = sphi 0, %s256
      %s278 = sphi 0, %s280
      %s281 = sphi 0, %s278
      %s282 = sphi 0, %s281
      %s298 = sphi 0, %s282
      %s304 = sphi 0, %s306
      %s307 = sphi 0, %s304
      %s308 = sphi 0, %s307
      %s324 = sphi 0, %s308
      %s330 = sphi 0, %s332
      %s333 = sphi 0, %s330
      %s334 = sphi 0, %s333
      %s350 = sphi 0, %s334
      %s356 = sphi 0, %s358
      %s359 = sphi 0, %s356
      %s360 = sphi 0, %s359
      %s376 = sphi 0, %s360
      %s382 = sphi 0, %s384
      %s385 = sphi 0, %s382
      %s386 = sphi 0, %s385
      %s402 = sphi 0, %s386
      %s408 = sphi 0, %s410
      %s411 = sphi 0, %s408
      %s412 = sphi 0, %s411
      %s428 = sphi 0, %s412
      %s434 = sphi 0, %s436
      %s437 = sphi 0, %s434
      %s438 = sphi 0, %s437
      %s454 = sphi 0, %s438
      %s460 = sphi 0, %s462
      %s463 = sphi 0, %s460
      %s464 = sphi 0, %s463
      %s480 = sphi 0, %s464
      %s486 = sphi 0, %s488
      %s489 = sphi 0, %s486
      %s490 = sphi 0, %s489
      %s506 = sphi 0, %s490
      %s512 = sphi 0, %s514
      %s515 = sphi 0, %s512
      %s516 = sphi 0, %s515
      %s532 = sphi 0, %s516
      %s538 = sphi 0, %s540
      %s541 = sphi 0, %s538
      %s542 = sphi 0, %s541
      %s558 = sphi 0, %s542
      %s562 = sphi 0, %s562
      %s564 = sphi 0, %s562
      %s565 = sphi 0, %s564
      %s579 = sphi 0, %s565
    $region4: #{dyt_transformer_forward.2} parent=1 // loop_header_branch
      %57 = sbr.rel (%p55) target = $region8
    $region5: #{dyt_transformer_forward.2} parent=1 // loop_body
      %s59 = ssub.s32 %s54, 1
      %s60 = ssub.s32 %s54, 2
      %s61 = sadd.s32 %s54, 1
      %s63 = sadd.s32 %s62, 1
      %p66 = scmp.eq.s32.totalorder %s54, 1
      %p67 = scmp.ne.s32.totalorder %s62, %s64
      %p68 = scmp.eq.s32.totalorder %s54, 0
      %p69 = por %p67, %p68
      %p70 = scmp.ne.s32.totalorder %s62, %s64
      %p71 = scmp.eq.s32.totalorder %s59, 1
      %p72 = por %p70, %p71
      %p73 = scmp.ne.s32.totalorder %s64, %s65
      %p74 = scmp.eq.s32.totalorder %s59, 0
      %p75 = por %p73, %p74
      %p76 = scmp.ne.s32.totalorder %s64, %s65
      %p77 = scmp.eq.s32.totalorder %s60, 1
      %p78 = por %p76, %p77
      %p80 = scmp.ne.s32.totalorder %s65, %s79
      %p81 = scmp.eq.s32.totalorder %s60, 0
      %p82 = por %p80, %p81
      %s84 = sadd.s32 %s83, 1
      %p87 = scmp.eq.s32.totalorder %s54, 1
      %p88 = scmp.ne.s32.totalorder %s83, %s85
      %p89 = scmp.eq.s32.totalorder %s54, 0
      %p90 = por %p88, %p89
      %p91 = scmp.ne.s32.totalorder %s83, %s85
      %p92 = scmp.eq.s32.totalorder %s59, 1
      %p93 = por %p91, %p92
      %p94 = scmp.ne.s32.totalorder %s85, %s86
      %p95 = scmp.eq.s32.totalorder %s59, 0
      %p96 = por %p94, %p95
      %p97 = scmp.ne.s32.totalorder %s85, %s86
      %p98 = scmp.eq.s32.totalorder %s60, 1
      %p99 = por %p97, %p98
      %p101 = scmp.ne.s32.totalorder %s86, %s100
      %p102 = scmp.eq.s32.totalorder %s60, 0
      %p103 = por %p101, %p102
      %s105 = sadd.s32 %s104, 1
      %p108 = scmp.eq.s32.totalorder %s54, 1
      %p109 = scmp.ne.s32.totalorder %s104, %s106
      %p110 = scmp.eq.s32.totalorder %s54, 0
      %p111 = por %p109, %p110
      %p112 = scmp.ne.s32.totalorder %s104, %s106
      %p113 = scmp.eq.s32.totalorder %s59, 1
      %p114 = por %p112, %p113
      %p115 = scmp.ne.s32.totalorder %s106, %s107
      %p116 = scmp.eq.s32.totalorder %s59, 0
      %p117 = por %p115, %p116
      %p118 = scmp.ne.s32.totalorder %s106, %s107
      %p119 = scmp.eq.s32.totalorder %s60, 1
      %p120 = por %p118, %p119
      %p122 = scmp.ne.s32.totalorder %s107, %s121
      %p123 = scmp.eq.s32.totalorder %s60, 0
      %p124 = por %p122, %p123
      %s126 = sadd.s32 %s125, 1
      %p129 = scmp.eq.s32.totalorder %s54, 1
      %p130 = scmp.ne.s32.totalorder %s125, %s127
      %p131 = scmp.eq.s32.totalorder %s54, 0
      %p132 = por %p130, %p131
      %p133 = scmp.ne.s32.totalorder %s125, %s127
      %p134 = scmp.eq.s32.totalorder %s59, 1
      %p135 = por %p133, %p134
      %p136 = scmp.ne.s32.totalorder %s127, %s128
      %p137 = scmp.eq.s32.totalorder %s59, 0
      %p138 = por %p136, %p137
      %p139 = scmp.ne.s32.totalorder %s127, %s128
      %p140 = scmp.eq.s32.totalorder %s60, 1
      %p141 = por %p139, %p140
      %p143 = scmp.ne.s32.totalorder %s128, %s142
      %p144 = scmp.eq.s32.totalorder %s60, 0
      %p145 = por %p143, %p144
      %s146 = ssub.s32 %s54, %s61
      %p147 = scmp.eq.s32.totalorder %s146, 0
      %s149 = sadd.s32 %s148, 1
      %s150 = scalar_select %p147, %s148, %s149
      %p153 = pneg %p147
      %p154 = scmp.eq.s32.totalorder %s54, 1
      %p155 = por %p153, %p154
      %p156 = scmp.ne.s32.totalorder %s148, %s151
      %p157 = scmp.eq.s32.totalorder %s54, 0
      %p158 = por %p156, %p157
      %p159 = scmp.ne.s32.totalorder %s148, %s151
      %p160 = scmp.eq.s32.totalorder %s59, 1
      %p161 = por %p159, %p160
      %p162 = scmp.ne.s32.totalorder %s151, %s152
      %p163 = scmp.eq.s32.totalorder %s59, 0
      %p164 = por %p162, %p163
      %p165 = scmp.ne.s32.totalorder %s151, %s152
      %p166 = scmp.eq.s32.totalorder %s60, 1
      %p167 = por %p165, %p166
      %p169 = scmp.ne.s32.totalorder %s152, %s168
      %p170 = scmp.eq.s32.totalorder %s60, 0
      %p171 = por %p169, %p170
      %s172 = ssub.s32 %s54, %s61
      %p173 = scmp.eq.s32.totalorder %s172, 0
      %s175 = sadd.s32 %s174, 1
      %s176 = scalar_select %p173, %s174, %s175
      %p179 = pneg %p173
      %p180 = scmp.eq.s32.totalorder %s54, 1
      %p181 = por %p179, %p180
      %p182 = scmp.ne.s32.totalorder %s174, %s177
      %p183 = scmp.eq.s32.totalorder %s54, 0
      %p184 = por %p182, %p183
      %p185 = scmp.ne.s32.totalorder %s174, %s177
      %p186 = scmp.eq.s32.totalorder %s59, 1
      %p187 = por %p185, %p186
      %p188 = scmp.ne.s32.totalorder %s177, %s178
      %p189 = scmp.eq.s32.totalorder %s59, 0
      %p190 = por %p188, %p189
      %p191 = scmp.ne.s32.totalorder %s177, %s178
      %p192 = scmp.eq.s32.totalorder %s60, 1
      %p193 = por %p191, %p192
      %p195 = scmp.ne.s32.totalorder %s178, %s194
      %p196 = scmp.eq.s32.totalorder %s60, 0
      %p197 = por %p195, %p196
      %s198 = ssub.s32 %s54, %s61
      %p199 = scmp.eq.s32.totalorder %s198, 0
      %s201 = sadd.s32 %s200, 1
      %s202 = scalar_select %p199, %s200, %s201
      %p205 = pneg %p199
      %p206 = scmp.eq.s32.totalorder %s54, 1
      %p207 = por %p205, %p206
      %p208 = scmp.ne.s32.totalorder %s200, %s203
      %p209 = scmp.eq.s32.totalorder %s54, 0
      %p210 = por %p208, %p209
      %p211 = scmp.ne.s32.totalorder %s200, %s203
      %p212 = scmp.eq.s32.totalorder %s59, 1
      %p213 = por %p211, %p212
      %p214 = scmp.ne.s32.totalorder %s203, %s204
      %p215 = scmp.eq.s32.totalorder %s59, 0
      %p216 = por %p214, %p215
      %p217 = scmp.ne.s32.totalorder %s203, %s204
      %p218 = scmp.eq.s32.totalorder %s60, 1
      %p219 = por %p217, %p218
      %p221 = scmp.ne.s32.totalorder %s204, %s220
      %p222 = scmp.eq.s32.totalorder %s60, 0
      %p223 = por %p221, %p222
      %s224 = ssub.s32 %s54, %s61
      %p225 = scmp.eq.s32.totalorder %s224, 0
      %s227 = sadd.s32 %s226, 1
      %s228 = scalar_select %p225, %s226, %s227
      %p231 = pneg %p225
      %p232 = scmp.eq.s32.totalorder %s54, 1
      %p233 = por %p231, %p232
      %p234 = scmp.ne.s32.totalorder %s226, %s229
      %p235 = scmp.eq.s32.totalorder %s54, 0
      %p236 = por %p234, %p235
      %p237 = scmp.ne.s32.totalorder %s226, %s229
      %p238 = scmp.eq.s32.totalorder %s59, 1
      %p239 = por %p237, %p238
      %p240 = scmp.ne.s32.totalorder %s229, %s230
      %p241 = scmp.eq.s32.totalorder %s59, 0
      %p242 = por %p240, %p241
      %p243 = scmp.ne.s32.totalorder %s229, %s230
      %p244 = scmp.eq.s32.totalorder %s60, 1
      %p245 = por %p243, %p244
      %p247 = scmp.ne.s32.totalorder %s230, %s246
      %p248 = scmp.eq.s32.totalorder %s60, 0
      %p249 = por %p247, %p248
      %s250 = ssub.s32 %s54, %s61
      %p251 = scmp.eq.s32.totalorder %s250, 0
      %s253 = sadd.s32 %s252, 1
      %s254 = scalar_select %p251, %s252, %s253
      %p257 = pneg %p251
      %p258 = scmp.eq.s32.totalorder %s54, 1
      %p259 = por %p257, %p258
      %p260 = scmp.ne.s32.totalorder %s252, %s255
      %p261 = scmp.eq.s32.totalorder %s54, 0
      %p262 = por %p260, %p261
      %p263 = scmp.ne.s32.totalorder %s252, %s255
      %p264 = scmp.eq.s32.totalorder %s59, 1
      %p265 = por %p263, %p264
      %p266 = scmp.ne.s32.totalorder %s255, %s256
      %p267 = scmp.eq.s32.totalorder %s59, 0
      %p268 = por %p266, %p267
      %p269 = scmp.ne.s32.totalorder %s255, %s256
      %p270 = scmp.eq.s32.totalorder %s60, 1
      %p271 = por %p269, %p270
      %p273 = scmp.ne.s32.totalorder %s256, %s272
      %p274 = scmp.eq.s32.totalorder %s60, 0
      %p275 = por %p273, %p274
      %s276 = ssub.s32 %s54, %s61
      %p277 = scmp.eq.s32.totalorder %s276, 0
      %s279 = sadd.s32 %s278, 1
      %s280 = scalar_select %p277, %s278, %s279
      %p283 = pneg %p277
      %p284 = scmp.eq.s32.totalorder %s54, 1
      %p285 = por %p283, %p284
      %p286 = scmp.ne.s32.totalorder %s278, %s281
      %p287 = scmp.eq.s32.totalorder %s54, 0
      %p288 = por %p286, %p287
      %p289 = scmp.ne.s32.totalorder %s278, %s281
      %p290 = scmp.eq.s32.totalorder %s59, 1
      %p291 = por %p289, %p290
      %p292 = scmp.ne.s32.totalorder %s281, %s282
      %p293 = scmp.eq.s32.totalorder %s59, 0
      %p294 = por %p292, %p293
      %p295 = scmp.ne.s32.totalorder %s281, %s282
      %p296 = scmp.eq.s32.totalorder %s60, 1
      %p297 = por %p295, %p296
      %p299 = scmp.ne.s32.totalorder %s282, %s298
      %p300 = scmp.eq.s32.totalorder %s60, 0
      %p301 = por %p299, %p300
      %s302 = ssub.s32 %s54, %s61
      %p303 = scmp.eq.s32.totalorder %s302, 0
      %s305 = sadd.s32 %s304, 1
      %s306 = scalar_select %p303, %s304, %s305
      %p309 = pneg %p303
      %p310 = scmp.eq.s32.totalorder %s54, 1
      %p311 = por %p309, %p310
      %p312 = scmp.ne.s32.totalorder %s304, %s307
      %p313 = scmp.eq.s32.totalorder %s54, 0
      %p314 = por %p312, %p313
      %p315 = scmp.ne.s32.totalorder %s304, %s307
      %p316 = scmp.eq.s32.totalorder %s59, 1
      %p317 = por %p315, %p316
      %p318 = scmp.ne.s32.totalorder %s307, %s308
      %p319 = scmp.eq.s32.totalorder %s59, 0
      %p320 = por %p318, %p319
      %p321 = scmp.ne.s32.totalorder %s307, %s308
      %p322 = scmp.eq.s32.totalorder %s60, 1
      %p323 = por %p321, %p322
      %p325 = scmp.ne.s32.totalorder %s308, %s324
      %p326 = scmp.eq.s32.totalorder %s60, 0
      %p327 = por %p325, %p326
      %s328 = ssub.s32 %s54, %s61
      %p329 = scmp.eq.s32.totalorder %s328, 0
      %s331 = sadd.s32 %s330, 1
      %s332 = scalar_select %p329, %s330, %s331
      %p335 = pneg %p329
      %p336 = scmp.eq.s32.totalorder %s54, 1
      %p337 = por %p335, %p336
      %p338 = scmp.ne.s32.totalorder %s330, %s333
      %p339 = scmp.eq.s32.totalorder %s54, 0
      %p340 = por %p338, %p339
      %p341 = scmp.ne.s32.totalorder %s330, %s333
      %p342 = scmp.eq.s32.totalorder %s59, 1
      %p343 = por %p341, %p342
      %p344 = scmp.ne.s32.totalorder %s333, %s334
      %p345 = scmp.eq.s32.totalorder %s59, 0
      %p346 = por %p344, %p345
      %p347 = scmp.ne.s32.totalorder %s333, %s334
      %p348 = scmp.eq.s32.totalorder %s60, 1
      %p349 = por %p347, %p348
      %p351 = scmp.ne.s32.totalorder %s334, %s350
      %p352 = scmp.eq.s32.totalorder %s60, 0
      %p353 = por %p351, %p352
      %s354 = ssub.s32 %s54, %s61
      %p355 = scmp.eq.s32.totalorder %s354, 0
      %s357 = sadd.s32 %s356, 1
      %s358 = scalar_select %p355, %s356, %s357
      %p361 = pneg %p355
      %p362 = scmp.eq.s32.totalorder %s54, 1
      %p363 = por %p361, %p362
      %p364 = scmp.ne.s32.totalorder %s356, %s359
      %p365 = scmp.eq.s32.totalorder %s54, 0
      %p366 = por %p364, %p365
      %p367 = scmp.ne.s32.totalorder %s356, %s359
      %p368 = scmp.eq.s32.totalorder %s59, 1
      %p369 = por %p367, %p368
      %p370 = scmp.ne.s32.totalorder %s359, %s360
      %p371 = scmp.eq.s32.totalorder %s59, 0
      %p372 = por %p370, %p371
      %p373 = scmp.ne.s32.totalorder %s359, %s360
      %p374 = scmp.eq.s32.totalorder %s60, 1
      %p375 = por %p373, %p374
      %p377 = scmp.ne.s32.totalorder %s360, %s376
      %p378 = scmp.eq.s32.totalorder %s60, 0
      %p379 = por %p377, %p378
      %s380 = ssub.s32 %s54, %s61
      %p381 = scmp.eq.s32.totalorder %s380, 0
      %s383 = sadd.s32 %s382, 1
      %s384 = scalar_select %p381, %s382, %s383
      %p387 = pneg %p381
      %p388 = scmp.eq.s32.totalorder %s54, 1
      %p389 = por %p387, %p388
      %p390 = scmp.ne.s32.totalorder %s382, %s385
      %p391 = scmp.eq.s32.totalorder %s54, 0
      %p392 = por %p390, %p391
      %p393 = scmp.ne.s32.totalorder %s382, %s385
      %p394 = scmp.eq.s32.totalorder %s59, 1
      %p395 = por %p393, %p394
      %p396 = scmp.ne.s32.totalorder %s385, %s386
      %p397 = scmp.eq.s32.totalorder %s59, 0
      %p398 = por %p396, %p397
      %p399 = scmp.ne.s32.totalorder %s385, %s386
      %p400 = scmp.eq.s32.totalorder %s60, 1
      %p401 = por %p399, %p400
      %p403 = scmp.ne.s32.totalorder %s386, %s402
      %p404 = scmp.eq.s32.totalorder %s60, 0
      %p405 = por %p403, %p404
      %s406 = ssub.s32 %s54, %s61
      %p407 = scmp.eq.s32.totalorder %s406, 0
      %s409 = sadd.s32 %s408, 1
      %s410 = scalar_select %p407, %s408, %s409
      %p413 = pneg %p407
      %p414 = scmp.eq.s32.totalorder %s54, 1
      %p415 = por %p413, %p414
      %p416 = scmp.ne.s32.totalorder %s408, %s411
      %p417 = scmp.eq.s32.totalorder %s54, 0
      %p418 = por %p416, %p417
      %p419 = scmp.ne.s32.totalorder %s408, %s411
      %p420 = scmp.eq.s32.totalorder %s59, 1
      %p421 = por %p419, %p420
      %p422 = scmp.ne.s32.totalorder %s411, %s412
      %p423 = scmp.eq.s32.totalorder %s59, 0
      %p424 = por %p422, %p423
      %p425 = scmp.ne.s32.totalorder %s411, %s412
      %p426 = scmp.eq.s32.totalorder %s60, 1
      %p427 = por %p425, %p426
      %p429 = scmp.ne.s32.totalorder %s412, %s428
      %p430 = scmp.eq.s32.totalorder %s60, 0
      %p431 = por %p429, %p430
      %s432 = ssub.s32 %s54, %s61
      %p433 = scmp.eq.s32.totalorder %s432, 0
      %s435 = sadd.s32 %s434, 1
      %s436 = scalar_select %p433, %s434, %s435
      %p439 = pneg %p433
      %p440 = scmp.eq.s32.totalorder %s54, 1
      %p441 = por %p439, %p440
      %p442 = scmp.ne.s32.totalorder %s434, %s437
      %p443 = scmp.eq.s32.totalorder %s54, 0
      %p444 = por %p442, %p443
      %p445 = scmp.ne.s32.totalorder %s434, %s437
      %p446 = scmp.eq.s32.totalorder %s59, 1
      %p447 = por %p445, %p446
      %p448 = scmp.ne.s32.totalorder %s437, %s438
      %p449 = scmp.eq.s32.totalorder %s59, 0
      %p450 = por %p448, %p449
      %p451 = scmp.ne.s32.totalorder %s437, %s438
      %p452 = scmp.eq.s32.totalorder %s60, 1
      %p453 = por %p451, %p452
      %p455 = scmp.ne.s32.totalorder %s438, %s454
      %p456 = scmp.eq.s32.totalorder %s60, 0
      %p457 = por %p455, %p456
      %s458 = ssub.s32 %s54, %s61
      %p459 = scmp.eq.s32.totalorder %s458, 0
      %s461 = sadd.s32 %s460, 1
      %s462 = scalar_select %p459, %s460, %s461
      %p465 = pneg %p459
      %p466 = scmp.eq.s32.totalorder %s54, 1
      %p467 = por %p465, %p466
      %p468 = scmp.ne.s32.totalorder %s460, %s463
      %p469 = scmp.eq.s32.totalorder %s54, 0
      %p470 = por %p468, %p469
      %p471 = scmp.ne.s32.totalorder %s460, %s463
      %p472 = scmp.eq.s32.totalorder %s59, 1
      %p473 = por %p471, %p472
      %p474 = scmp.ne.s32.totalorder %s463, %s464
      %p475 = scmp.eq.s32.totalorder %s59, 0
      %p476 = por %p474, %p475
      %p477 = scmp.ne.s32.totalorder %s463, %s464
      %p478 = scmp.eq.s32.totalorder %s60, 1
      %p479 = por %p477, %p478
      %p481 = scmp.ne.s32.totalorder %s464, %s480
      %p482 = scmp.eq.s32.totalorder %s60, 0
      %p483 = por %p481, %p482
      %s484 = ssub.s32 %s54, %s61
      %p485 = scmp.eq.s32.totalorder %s484, 0
      %s487 = sadd.s32 %s486, 1
      %s488 = scalar_select %p485, %s486, %s487
      %p491 = pneg %p485
      %p492 = scmp.eq.s32.totalorder %s54, 1
      %p493 = por %p491, %p492
      %p494 = scmp.ne.s32.totalorder %s486, %s489
      %p495 = scmp.eq.s32.totalorder %s54, 0
      %p496 = por %p494, %p495
      %p497 = scmp.ne.s32.totalorder %s486, %s489
      %p498 = scmp.eq.s32.totalorder %s59, 1
      %p499 = por %p497, %p498
      %p500 = scmp.ne.s32.totalorder %s489, %s490
      %p501 = scmp.eq.s32.totalorder %s59, 0
      %p502 = por %p500, %p501
      %p503 = scmp.ne.s32.totalorder %s489, %s490
      %p504 = scmp.eq.s32.totalorder %s60, 1
      %p505 = por %p503, %p504
      %p507 = scmp.ne.s32.totalorder %s490, %s506
      %p508 = scmp.eq.s32.totalorder %s60, 0
      %p509 = por %p507, %p508
      %s510 = ssub.s32 %s54, %s61
      %p511 = scmp.eq.s32.totalorder %s510, 0
      %s513 = sadd.s32 %s512, 1
      %s514 = scalar_select %p511, %s512, %s513
      %p517 = pneg %p511
      %p518 = scmp.eq.s32.totalorder %s54, 1
      %p519 = por %p517, %p518
      %p520 = scmp.ne.s32.totalorder %s512, %s515
      %p521 = scmp.eq.s32.totalorder %s54, 0
      %p522 = por %p520, %p521
      %p523 = scmp.ne.s32.totalorder %s512, %s515
      %p524 = scmp.eq.s32.totalorder %s59, 1
      %p525 = por %p523, %p524
      %p526 = scmp.ne.s32.totalorder %s515, %s516
      %p527 = scmp.eq.s32.totalorder %s59, 0
      %p528 = por %p526, %p527
      %p529 = scmp.ne.s32.totalorder %s515, %s516
      %p530 = scmp.eq.s32.totalorder %s60, 1
      %p531 = por %p529, %p530
      %p533 = scmp.ne.s32.totalorder %s516, %s532
      %p534 = scmp.eq.s32.totalorder %s60, 0
      %p535 = por %p533, %p534
      %s536 = ssub.s32 %s54, %s61
      %p537 = scmp.eq.s32.totalorder %s536, 0
      %s539 = sadd.s32 %s538, 1
      %s540 = scalar_select %p537, %s538, %s539
      %p543 = pneg %p537
      %p544 = scmp.eq.s32.totalorder %s54, 1
      %p545 = por %p543, %p544
      %p546 = scmp.ne.s32.totalorder %s538, %s541
      %p547 = scmp.eq.s32.totalorder %s54, 0
      %p548 = por %p546, %p547
      %p549 = scmp.ne.s32.totalorder %s538, %s541
      %p550 = scmp.eq.s32.totalorder %s59, 1
      %p551 = por %p549, %p550
      %p552 = scmp.ne.s32.totalorder %s541, %s542
      %p553 = scmp.eq.s32.totalorder %s59, 0
      %p554 = por %p552, %p553
      %p555 = scmp.ne.s32.totalorder %s541, %s542
      %p556 = scmp.eq.s32.totalorder %s60, 1
      %p557 = por %p555, %p556
      %p559 = scmp.ne.s32.totalorder %s542, %s558
      %p560 = scmp.eq.s32.totalorder %s60, 0
      %p561 = por %p559, %p560
      %s563 = sadd.s32 %s562, 1
      %p566 = scmp.eq.s32.totalorder %s54, 1
      %p567 = scmp.ne.s32.totalorder %s562, %s564
      %p568 = scmp.eq.s32.totalorder %s54, 0
      %p569 = por %p567, %p568
      %p570 = scmp.ne.s32.totalorder %s562, %s564
      %p571 = scmp.eq.s32.totalorder %s59, 1
      %p572 = por %p570, %p571
      %p573 = scmp.ne.s32.totalorder %s564, %s565
      %p574 = scmp.eq.s32.totalorder %s59, 0
      %p575 = por %p573, %p574
      %p576 = scmp.ne.s32.totalorder %s564, %s565
      %p577 = scmp.eq.s32.totalorder %s60, 1
      %p578 = por %p576, %p577
      %p580 = scmp.ne.s32.totalorder %s565, %s579
      %p581 = scmp.eq.s32.totalorder %s60, 0
      %p582 = por %p580, %p581
      %p583 = scmp.le.s32.totalorder 1, %s54
      %p584 = scmp.lt.s32.totalorder %s54, 3
      %p585 = pnand %p583, %p584
      %p586 = pneg %p585
      // Predicated region
      $region9: #{dyt_transformer_forward.2} parent=5 // pred_check
        _
      $region10: #{dyt_transformer_forward.2} parent=5 // pred_check_branch
        %588 = sbr.rel (%p585) target = $region12
      $region11: #{dyt_transformer_forward.2} parent=5 // pred_region
        %s589 = ssub.s32 %s54, 1
        // Predicated region
        $region13: #{dyt_transformer_forward.2} parent=11 // pred_check
          %p590 = pneg %p75
        $region14: #{dyt_transformer_forward.2} parent=11 // pred_check_branch
          %592 = sbr.rel (%p590) target = $region16
        $region15: #{dyt_transformer_forward.2} parent=11 // pred_region
          _
        $region16: #{dyt_transformer_forward.2} parent=11 // pred_fallthru
          _
        // Predicated region
        $region17: #{dyt_transformer_forward.2} parent=11 // pred_check
          %p593 = pneg %p96
        $region18: #{dyt_transformer_forward.2} parent=11 // pred_check_branch
          %595 = sbr.rel (%p593) target = $region20
        $region19: #{dyt_transformer_forward.2} parent=11 // pred_region
          %s597 = ssub.s32 16, 16
          %598 = vsyncadd [#allocation4], %s597
          %s600 = sshll.u32 [#allocation3], 4
          %s601 = int_to_ptr.vmem [resolvable:$true] %s600
          %603 = dma.hbm_to_vmem [thread:$0]  %s1, 16, %s601, [#allocation4]
        $region20: #{dyt_transformer_forward.2} parent=11 // pred_fallthru
          _
        // Predicated region
        $region21: #{dyt_transformer_forward.2} parent=11 // pred_check
          %p604 = pneg %p117
        $region22: #{dyt_transformer_forward.2} parent=11 // pred_check_branch
          %606 = sbr.rel (%p604) target = $region24
        $region23: #{dyt_transformer_forward.2} parent=11 // pred_region
          %s608 = ssub.s32 16, 16
          %609 = vsyncadd [#allocation7], %s608
          %s611 = sshll.u32 [#allocation6], 4
          %s612 = int_to_ptr.vmem [resolvable:$true] %s611
          %614 = dma.hbm_to_vmem [thread:$0]  %s2, 16, %s612, [#allocation7]
        $region24: #{dyt_transformer_forward.2} parent=11 // pred_fallthru
          _
        // Predicated region
        $region25: #{dyt_transformer_forward.2} parent=11 // pred_check
          %p615 = pneg %p138
        $region26: #{dyt_transformer_forward.2} parent=11 // pred_check_branch
          %617 = sbr.rel (%p615) target = $region28
        $region27: #{dyt_transformer_forward.2} parent=11 // pred_region
          %s619 = ssub.s32 256, 256
          %620 = vsyncadd [#allocation7], %s619
          %s621 = sshll.u32 [#allocation8], 4
          %s622 = int_to_ptr.vmem [resolvable:$true] %s621
          %627 = dma.hbm_to_vmem [thread:$0]  %s3, 256, %s622, [#allocation7], 128, 128, 8
        $region28: #{dyt_transformer_forward.2} parent=11 // pred_fallthru
          _
      $region12: #{dyt_transformer_forward.2} parent=5 // pred_fallthru
        _
      %p628 = scmp.lt.s32.totalorder %s54, 2
      // Predicated region
      $region29: #{dyt_transformer_forward.2} parent=5 // pred_check
        %p629 = pneg %p628
      $region30: #{dyt_transformer_forward.2} parent=5 // pred_check_branch
        %631 = sbr.rel (%p629) target = $region32
      $region31: #{dyt_transformer_forward.2} parent=5 // pred_region
        // Predicated region
        $region33: #{dyt_transformer_forward.2} parent=31 // pred_check
          %p632 = pneg %p158
        $region34: #{dyt_transformer_forward.2} parent=31 // pred_check_branch
          %634 = sbr.rel (%p632) target = $region36
        $region35: #{dyt_transformer_forward.2} parent=31 // pred_region
          %s635 = sand.u32 %s54, 1
          %s636 = scalar_lea.sflag [#allocation10], %s635
          %s637 = sand.u32 %s148, 1
          %s638 = smul.addr %s637, 16
          %s639 = scalar_lea.vmem [#allocation9], %s638
          %s641 = ssub.s32 256, 256
          %642 = vsyncadd %s636, %s641
          %s643 = smul.addr %s54, 4
          %s644 = smul.addr %s643, 64
          %s645 = scalar_lea.hbm %s4, %s644
          %s646 = sshll.u32 %s639, 4
          %s647 = int_to_ptr.vmem [resolvable:$true] %s646
          %652 = dma.hbm_to_vmem [thread:$0]  %s645, 256, %s647, %s636, 64, 64, 4
        $region36: #{dyt_transformer_forward.2} parent=31 // pred_fallthru
          _
        // Predicated region
        $region37: #{dyt_transformer_forward.2} parent=31 // pred_check
          %p653 = pneg %p184
        $region38: #{dyt_transformer_forward.2} parent=31 // pred_check_branch
          %655 = sbr.rel (%p653) target = $region40
        $region39: #{dyt_transformer_forward.2} parent=31 // pred_region
          %s656 = sand.u32 %s54, 1
          %s657 = scalar_lea.sflag [#allocation10], %s656
          %s658 = sand.u32 %s174, 1
          %s659 = scalar_lea.vmem [#allocation11], %s658
          %s661 = ssub.s32 16, 16
          %662 = vsyncadd %s657, %s661
          %s663 = smul.addr %s54, 16
          %s664 = scalar_lea.hbm %s5, %s663
          %s666 = sshll.u32 %s659, 4
          %s667 = int_to_ptr.vmem [resolvable:$true] %s666
          %669 = dma.hbm_to_vmem [thread:$0]  %s664, 16, %s667, %s657
        $region40: #{dyt_transformer_forward.2} parent=31 // pred_fallthru
          _
        // Predicated region
        $region41: #{dyt_transformer_forward.2} parent=31 // pred_check
          %p670 = pneg %p210
        $region42: #{dyt_transformer_forward.2} parent=31 // pred_check_branch
          %672 = sbr.rel (%p670) target = $region44
        $region43: #{dyt_transformer_forward.2} parent=31 // pred_region
          %s673 = sand.u32 %s54, 1
          %s674 = scalar_lea.sflag [#allocation13], %s673
          %s675 = sand.u32 %s200, 1
          %s676 = smul.addr %s675, 16
          %s677 = scalar_lea.vmem [#allocation12], %s676
          %s679 = ssub.s32 256, 256
          %680 = vsyncadd %s674, %s679
          %s681 = smul.addr %s54, 4
          %s682 = smul.addr %s681, 64
          %s683 = scalar_lea.hbm %s6, %s682
          %s684 = sshll.u32 %s677, 4
          %s685 = int_to_ptr.vmem [resolvable:$true] %s684
          %690 = dma.hbm_to_vmem [thread:$0]  %s683, 256, %s685, %s674, 64, 64, 4
        $region44: #{dyt_transformer_forward.2} parent=31 // pred_fallthru
          _
        // Predicated region
        $region45: #{dyt_transformer_forward.2} parent=31 // pred_check
          %p691 = pneg %p236
        $region46: #{dyt_transformer_forward.2} parent=31 // pred_check_branch
          %693 = sbr.rel (%p691) target = $region48
        $region47: #{dyt_transformer_forward.2} parent=31 // pred_region
          %s694 = sand.u32 %s54, 1
          %s695 = scalar_lea.sflag [#allocation13], %s694
          %s696 = sand.u32 %s226, 1
          %s697 = scalar_lea.vmem [#allocation14], %s696
          %s699 = ssub.s32 16, 16
          %700 = vsyncadd %s695, %s699
          %s701 = smul.addr %s54, 16
          %s702 = scalar_lea.hbm %s7, %s701
          %s704 = sshll.u32 %s697, 4
          %s705 = int_to_ptr.vmem [resolvable:$true] %s704
          %707 = dma.hbm_to_vmem [thread:$0]  %s702, 16, %s705, %s695
        $region48: #{dyt_transformer_forward.2} parent=31 // pred_fallthru
          _
        // Predicated region
        $region49: #{dyt_transformer_forward.2} parent=31 // pred_check
          %p708 = pneg %p262
        $region50: #{dyt_transformer_forward.2} parent=31 // pred_check_branch
          %710 = sbr.rel (%p708) target = $region52
        $region51: #{dyt_transformer_forward.2} parent=31 // pred_region
          %s711 = sand.u32 %s54, 1
          %s712 = scalar_lea.sflag [#allocation16], %s711
          %s713 = sand.u32 %s252, 1
          %s714 = smul.addr %s713, 16
          %s715 = scalar_lea.vmem [#allocation15], %s714
          %s717 = ssub.s32 256, 256
          %718 = vsyncadd %s712, %s717
          %s719 = smul.addr %s54, 4
          %s720 = smul.addr %s719, 64
          %s721 = scalar_lea.hbm %s8, %s720
          %s722 = sshll.u32 %s715, 4
          %s723 = int_to_ptr.vmem [resolvable:$true] %s722
          %728 = dma.hbm_to_vmem [thread:$0]  %s721, 256, %s723, %s712, 64, 64, 4
        $region52: #{dyt_transformer_forward.2} parent=31 // pred_fallthru
          _
        // Predicated region
        $region53: #{dyt_transformer_forward.2} parent=31 // pred_check
          %p729 = pneg %p288
        $region54: #{dyt_transformer_forward.2} parent=31 // pred_check_branch
          %731 = sbr.rel (%p729) target = $region56
        $region55: #{dyt_transformer_forward.2} parent=31 // pred_region
          %s732 = sand.u32 %s54, 1
          %s733 = scalar_lea.sflag [#allocation16], %s732
          %s734 = sand.u32 %s278, 1
          %s735 = scalar_lea.vmem [#allocation17], %s734
          %s737 = ssub.s32 16, 16
          %738 = vsyncadd %s733, %s737
          %s739 = smul.addr %s54, 16
          %s740 = scalar_lea.hbm %s9, %s739
          %s742 = sshll.u32 %s735, 4
          %s743 = int_to_ptr.vmem [resolvable:$true] %s742
          %745 = dma.hbm_to_vmem [thread:$0]  %s740, 16, %s743, %s733
        $region56: #{dyt_transformer_forward.2} parent=31 // pred_fallthru
          _
        // Predicated region
        $region57: #{dyt_transformer_forward.2} parent=31 // pred_check
          %p746 = pneg %p314
        $region58: #{dyt_transformer_forward.2} parent=31 // pred_check_branch
          %748 = sbr.rel (%p746) target = $region60
        $region59: #{dyt_transformer_forward.2} parent=31 // pred_region
          %s749 = sand.u32 %s54, 1
          %s750 = scalar_lea.sflag [#allocation19], %s749
          %s751 = sand.u32 %s304, 1
          %s752 = smul.addr %s751, 16
          %s753 = scalar_lea.vmem [#allocation18], %s752
          %s755 = ssub.s32 256, 256
          %756 = vsyncadd %s750, %s755
          %s757 = smul.addr %s54, 4
          %s758 = smul.addr %s757, 64
          %s759 = scalar_lea.hbm %s10, %s758
          %s760 = sshll.u32 %s753, 4
          %s761 = int_to_ptr.vmem [resolvable:$true] %s760
          %766 = dma.hbm_to_vmem [thread:$0]  %s759, 256, %s761, %s750, 64, 64, 4
        $region60: #{dyt_transformer_forward.2} parent=31 // pred_fallthru
          _
        // Predicated region
        $region61: #{dyt_transformer_forward.2} parent=31 // pred_check
          %p767 = pneg %p340
        $region62: #{dyt_transformer_forward.2} parent=31 // pred_check_branch
          %769 = sbr.rel (%p767) target = $region64
        $region63: #{dyt_transformer_forward.2} parent=31 // pred_region
          %s770 = sand.u32 %s54, 1
          %s771 = scalar_lea.sflag [#allocation19], %s770
          %s772 = sand.u32 %s330, 1
          %s773 = scalar_lea.vmem [#allocation20], %s772
          %s775 = ssub.s32 16, 16
          %776 = vsyncadd %s771, %s775
          %s777 = smul.addr %s54, 16
          %s778 = scalar_lea.hbm %s11, %s777
          %s780 = sshll.u32 %s773, 4
          %s781 = int_to_ptr.vmem [resolvable:$true] %s780
          %783 = dma.hbm_to_vmem [thread:$0]  %s778, 16, %s781, %s771
        $region64: #{dyt_transformer_forward.2} parent=31 // pred_fallthru
          _
        // Predicated region
        $region65: #{dyt_transformer_forward.2} parent=31 // pred_check
          %p784 = pneg %p366
        $region66: #{dyt_transformer_forward.2} parent=31 // pred_check_branch
          %786 = sbr.rel (%p784) target = $region68
        $region67: #{dyt_transformer_forward.2} parent=31 // pred_region
          %s787 = sand.u32 %s54, 1
          %s788 = scalar_lea.sflag [#allocation22], %s787
          %s789 = sand.u32 %s356, 1
          %s790 = scalar_lea.vmem [#allocation21], %s789
          %s792 = ssub.s32 16, 16
          %793 = vsyncadd %s788, %s792
          %s794 = smul.addr %s54, 16
          %s795 = scalar_lea.hbm %s12, %s794
          %s797 = sshll.u32 %s790, 4
          %s798 = int_to_ptr.vmem [resolvable:$true] %s797
          %800 = dma.hbm_to_vmem [thread:$0]  %s795, 16, %s798, %s788
        $region68: #{dyt_transformer_forward.2} parent=31 // pred_fallthru
          _
        // Predicated region
        $region69: #{dyt_transformer_forward.2} parent=31 // pred_check
          %p801 = pneg %p392
        $region70: #{dyt_transformer_forward.2} parent=31 // pred_check_branch
          %803 = sbr.rel (%p801) target = $region72
        $region71: #{dyt_transformer_forward.2} parent=31 // pred_region
          %s804 = sand.u32 %s54, 1
          %s805 = scalar_lea.sflag [#allocation22], %s804
          %s806 = sand.u32 %s382, 1
          %s807 = scalar_lea.vmem [#allocation23], %s806
          %s809 = ssub.s32 16, 16
          %810 = vsyncadd %s805, %s809
          %s811 = smul.addr %s54, 16
          %s812 = scalar_lea.hbm %s13, %s811
          %s814 = sshll.u32 %s807, 4
          %s815 = int_to_ptr.vmem [resolvable:$true] %s814
          %817 = dma.hbm_to_vmem [thread:$0]  %s812, 16, %s815, %s805
        $region72: #{dyt_transformer_forward.2} parent=31 // pred_fallthru
          _
        // Predicated region
        $region73: #{dyt_transformer_forward.2} parent=31 // pred_check
          %p818 = pneg %p418
        $region74: #{dyt_transformer_forward.2} parent=31 // pred_check_branch
          %820 = sbr.rel (%p818) target = $region76
        $region75: #{dyt_transformer_forward.2} parent=31 // pred_region
          %s821 = sand.u32 %s54, 1
          %s822 = scalar_lea.sflag [#allocation25], %s821
          %s823 = sand.u32 %s408, 1
          %s824 = smul.addr %s823, 16
          %s825 = scalar_lea.vmem [#allocation24], %s824
          %s827 = ssub.s32 256, 256
          %828 = vsyncadd %s822, %s827
          %s829 = smul.addr %s54, 4
          %s830 = smul.addr %s829, 64
          %s831 = scalar_lea.hbm %s14, %s830
          %s832 = sshll.u32 %s825, 4
          %s833 = int_to_ptr.vmem [resolvable:$true] %s832
          %838 = dma.hbm_to_vmem [thread:$0]  %s831, 256, %s833, %s822, 64, 64, 4
        $region76: #{dyt_transformer_forward.2} parent=31 // pred_fallthru
          _
        // Predicated region
        $region77: #{dyt_transformer_forward.2} parent=31 // pred_check
          %p839 = pneg %p444
        $region78: #{dyt_transformer_forward.2} parent=31 // pred_check_branch
          %841 = sbr.rel (%p839) target = $region80
        $region79: #{dyt_transformer_forward.2} parent=31 // pred_region
          %s842 = sand.u32 %s54, 1
          %s843 = scalar_lea.sflag [#allocation25], %s842
          %s844 = sand.u32 %s434, 1
          %s845 = scalar_lea.vmem [#allocation26], %s844
          %s847 = ssub.s32 16, 16
          %848 = vsyncadd %s843, %s847
          %s849 = smul.addr %s54, 16
          %s850 = scalar_lea.hbm %s15, %s849
          %s852 = sshll.u32 %s845, 4
          %s853 = int_to_ptr.vmem [resolvable:$true] %s852
          %855 = dma.hbm_to_vmem [thread:$0]  %s850, 16, %s853, %s843
        $region80: #{dyt_transformer_forward.2} parent=31 // pred_fallthru
          _
        // Predicated region
        $region81: #{dyt_transformer_forward.2} parent=31 // pred_check
          %p856 = pneg %p470
        $region82: #{dyt_transformer_forward.2} parent=31 // pred_check_branch
          %858 = sbr.rel (%p856) target = $region84
        $region83: #{dyt_transformer_forward.2} parent=31 // pred_region
          %s859 = sand.u32 %s54, 1
          %s860 = scalar_lea.sflag [#allocation28], %s859
          %s861 = sand.u32 %s460, 1
          %s862 = smul.addr %s861, 32
          %s863 = scalar_lea.vmem [#allocation27], %s862
          %s865 = ssub.s32 512, 512
          %866 = vsyncadd %s860, %s865
          %s867 = smul.addr %s54, 8
          %s868 = smul.addr %s867, 64
          %s869 = scalar_lea.hbm %s16, %s868
          %s870 = sshll.u32 %s863, 4
          %s871 = int_to_ptr.vmem [resolvable:$true] %s870
          %876 = dma.hbm_to_vmem [thread:$0]  %s869, 512, %s871, %s860, 64, 64, 4
        $region84: #{dyt_transformer_forward.2} parent=31 // pred_fallthru
          _
        // Predicated region
        $region85: #{dyt_transformer_forward.2} parent=31 // pred_check
          %p877 = pneg %p496
        $region86: #{dyt_transformer_forward.2} parent=31 // pred_check_branch
          %879 = sbr.rel (%p877) target = $region88
        $region87: #{dyt_transformer_forward.2} parent=31 // pred_region
          %s880 = sand.u32 %s54, 1
          %s881 = scalar_lea.sflag [#allocation28], %s880
          %s882 = sand.u32 %s486, 1
          %s883 = scalar_lea.vmem [#allocation29], %s882
          %s885 = ssub.s32 16, 16
          %886 = vsyncadd %s881, %s885
          %s887 = smul.addr %s54, 16
          %s888 = scalar_lea.hbm %s17, %s887
          %s890 = sshll.u32 %s883, 4
          %s891 = int_to_ptr.vmem [resolvable:$true] %s890
          %893 = dma.hbm_to_vmem [thread:$0]  %s888, 16, %s891, %s881
        $region88: #{dyt_transformer_forward.2} parent=31 // pred_fallthru
          _
        // Predicated region
        $region89: #{dyt_transformer_forward.2} parent=31 // pred_check
          %p894 = pneg %p522
        $region90: #{dyt_transformer_forward.2} parent=31 // pred_check_branch
          %896 = sbr.rel (%p894) target = $region92
        $region91: #{dyt_transformer_forward.2} parent=31 // pred_region
          %s897 = sand.u32 %s54, 1
          %s898 = scalar_lea.sflag [#allocation31], %s897
          %s899 = sand.u32 %s512, 1
          %s900 = scalar_lea.vmem [#allocation30], %s899
          %s902 = ssub.s32 16, 16
          %903 = vsyncadd %s898, %s902
          %s904 = smul.addr %s54, 16
          %s905 = scalar_lea.hbm %s18, %s904
          %s907 = sshll.u32 %s900, 4
          %s908 = int_to_ptr.vmem [resolvable:$true] %s907
          %910 = dma.hbm_to_vmem [thread:$0]  %s905, 16, %s908, %s898
        $region92: #{dyt_transformer_forward.2} parent=31 // pred_fallthru
          _
        // Predicated region
        $region93: #{dyt_transformer_forward.2} parent=31 // pred_check
          %p911 = pneg %p548
        $region94: #{dyt_transformer_forward.2} parent=31 // pred_check_branch
          %913 = sbr.rel (%p911) target = $region96
        $region95: #{dyt_transformer_forward.2} parent=31 // pred_region
          %s914 = sand.u32 %s54, 1
          %s915 = scalar_lea.sflag [#allocation31], %s914
          %s916 = sand.u32 %s538, 1
          %s917 = scalar_lea.vmem [#allocation32], %s916
          %s919 = ssub.s32 16, 16
          %920 = vsyncadd %s915, %s919
          %s921 = smul.addr %s54, 16
          %s922 = scalar_lea.hbm %s19, %s921
          %s924 = sshll.u32 %s917, 4
          %s925 = int_to_ptr.vmem [resolvable:$true] %s924
          %927 = dma.hbm_to_vmem [thread:$0]  %s922, 16, %s925, %s915
        $region96: #{dyt_transformer_forward.2} parent=31 // pred_fallthru
          _
      $region32: #{dyt_transformer_forward.2} parent=5 // pred_fallthru
        _
      %p928 = scmp.le.s32.totalorder 1, %s54
      %p929 = scmp.lt.s32.totalorder %s54, 3
      %p930 = pnand %p928, %p929
      %p931 = pneg %p930
      // Predicated region
      $region97: #{dyt_transformer_forward.2} parent=5 // pred_check
        _
      $region98: #{dyt_transformer_forward.2} parent=5 // pred_check_branch
        %933 = sbr.rel (%p930) target = $region100
      $region99: #{dyt_transformer_forward.2} parent=5 // pred_region
        %s934 = ssub.s32 %s54, 1
        // Predicated region
        $region101: #{dyt_transformer_forward.2} parent=99 // pred_check
          %p935 = pneg %p96
        $region102: #{dyt_transformer_forward.2} parent=99 // pred_check_branch
          %937 = sbr.rel (%p935) target = $region104
        $region103: #{dyt_transformer_forward.2} parent=99 // pred_region
          %938 = dma.done [#allocation4], 16
        $region104: #{dyt_transformer_forward.2} parent=99 // pred_fallthru
          _
        // Predicated region
        $region105: #{dyt_transformer_forward.2} parent=99 // pred_check
          %p939 = pneg %p117
        $region106: #{dyt_transformer_forward.2} parent=99 // pred_check_branch
          %941 = sbr.rel (%p939) target = $region108
        $region107: #{dyt_transformer_forward.2} parent=99 // pred_region
          %942 = dma.done [#allocation7], 16
        $region108: #{dyt_transformer_forward.2} parent=99 // pred_fallthru
          _
        // Predicated region
        $region109: #{dyt_transformer_forward.2} parent=99 // pred_check
          %p943 = pneg %p138
        $region110: #{dyt_transformer_forward.2} parent=99 // pred_check_branch
          %945 = sbr.rel (%p943) target = $region112
        $region111: #{dyt_transformer_forward.2} parent=99 // pred_region
          %946 = dma.done [#allocation7], 256
        $region112: #{dyt_transformer_forward.2} parent=99 // pred_fallthru
          _
        %s947 = sand.u32 %s59, 1
        %s948 = scalar_lea.sflag [#allocation10], %s947
        %s949 = sand.u32 %s151, 1
        %s950 = smul.addr %s949, 16
        %s951 = scalar_lea.vmem [#allocation9], %s950
        // Predicated region
        $region113: #{dyt_transformer_forward.2} parent=99 // pred_check
          %p952 = pneg %p164
        $region114: #{dyt_transformer_forward.2} parent=99 // pred_check_branch
          %954 = sbr.rel (%p952) target = $region116
        $region115: #{dyt_transformer_forward.2} parent=99 // pred_region
          %955 = dma.done %s948, 256
        $region116: #{dyt_transformer_forward.2} parent=99 // pred_fallthru
          _
        %s956 = sand.u32 %s59, 1
        %s957 = scalar_lea.sflag [#allocation10], %s956
        %s958 = sand.u32 %s177, 1
        %s959 = scalar_lea.vmem [#allocation11], %s958
        // Predicated region
        $region117: #{dyt_transformer_forward.2} parent=99 // pred_check
          %p960 = pneg %p190
        $region118: #{dyt_transformer_forward.2} parent=99 // pred_check_branch
          %962 = sbr.rel (%p960) target = $region120
        $region119: #{dyt_transformer_forward.2} parent=99 // pred_region
          %963 = dma.done %s957, 16
        $region120: #{dyt_transformer_forward.2} parent=99 // pred_fallthru
          _
        %s964 = sand.u32 %s59, 1
        %s965 = scalar_lea.sflag [#allocation13], %s964
        %s966 = sand.u32 %s203, 1
        %s967 = smul.addr %s966, 16
        %s968 = scalar_lea.vmem [#allocation12], %s967
        // Predicated region
        $region121: #{dyt_transformer_forward.2} parent=99 // pred_check
          %p969 = pneg %p216
        $region122: #{dyt_transformer_forward.2} parent=99 // pred_check_branch
          %971 = sbr.rel (%p969) target = $region124
        $region123: #{dyt_transformer_forward.2} parent=99 // pred_region
          %972 = dma.done %s965, 256
        $region124: #{dyt_transformer_forward.2} parent=99 // pred_fallthru
          _
        %s973 = sand.u32 %s59, 1
        %s974 = scalar_lea.sflag [#allocation13], %s973
        %s975 = sand.u32 %s229, 1
        %s976 = scalar_lea.vmem [#allocation14], %s975
        // Predicated region
        $region125: #{dyt_transformer_forward.2} parent=99 // pred_check
          %p977 = pneg %p242
        $region126: #{dyt_transformer_forward.2} parent=99 // pred_check_branch
          %979 = sbr.rel (%p977) target = $region128
        $region127: #{dyt_transformer_forward.2} parent=99 // pred_region
          %980 = dma.done %s974, 16
        $region128: #{dyt_transformer_forward.2} parent=99 // pred_fallthru
          _
        %s981 = sand.u32 %s59, 1
        %s982 = scalar_lea.sflag [#allocation16], %s981
        %s983 = sand.u32 %s255, 1
        %s984 = smul.addr %s983, 16
        %s985 = scalar_lea.vmem [#allocation15], %s984
        // Predicated region
        $region129: #{dyt_transformer_forward.2} parent=99 // pred_check
          %p986 = pneg %p268
        $region130: #{dyt_transformer_forward.2} parent=99 // pred_check_branch
          %988 = sbr.rel (%p986) target = $region132
        $region131: #{dyt_transformer_forward.2} parent=99 // pred_region
          %989 = dma.done %s982, 256
        $region132: #{dyt_transformer_forward.2} parent=99 // pred_fallthru
          _
        %s990 = sand.u32 %s59, 1
        %s991 = scalar_lea.sflag [#allocation16], %s990
        %s992 = sand.u32 %s281, 1
        %s993 = scalar_lea.vmem [#allocation17], %s992
        // Predicated region
        $region133: #{dyt_transformer_forward.2} parent=99 // pred_check
          %p994 = pneg %p294
        $region134: #{dyt_transformer_forward.2} parent=99 // pred_check_branch
          %996 = sbr.rel (%p994) target = $region136
        $region135: #{dyt_transformer_forward.2} parent=99 // pred_region
          %997 = dma.done %s991, 16
        $region136: #{dyt_transformer_forward.2} parent=99 // pred_fallthru
          _
        %s998 = sand.u32 %s59, 1
        %s999 = scalar_lea.sflag [#allocation19], %s998
        %s1000 = sand.u32 %s307, 1
        %s1001 = smul.addr %s1000, 16
        %s1002 = scalar_lea.vmem [#allocation18], %s1001
        // Predicated region
        $region137: #{dyt_transformer_forward.2} parent=99 // pred_check
          %p1003 = pneg %p320
        $region138: #{dyt_transformer_forward.2} parent=99 // pred_check_branch
          %1005 = sbr.rel (%p1003) target = $region140
        $region139: #{dyt_transformer_forward.2} parent=99 // pred_region
          %1006 = dma.done %s999, 256
        $region140: #{dyt_transformer_forward.2} parent=99 // pred_fallthru
          _
        %s1007 = sand.u32 %s59, 1
        %s1008 = scalar_lea.sflag [#allocation19], %s1007
        %s1009 = sand.u32 %s333, 1
        %s1010 = scalar_lea.vmem [#allocation20], %s1009
        // Predicated region
        $region141: #{dyt_transformer_forward.2} parent=99 // pred_check
          %p1011 = pneg %p346
        $region142: #{dyt_transformer_forward.2} parent=99 // pred_check_branch
          %1013 = sbr.rel (%p1011) target = $region144
        $region143: #{dyt_transformer_forward.2} parent=99 // pred_region
          %1014 = dma.done %s1008, 16
        $region144: #{dyt_transformer_forward.2} parent=99 // pred_fallthru
          _
        %s1015 = sand.u32 %s59, 1
        %s1016 = scalar_lea.sflag [#allocation22], %s1015
        %s1017 = sand.u32 %s359, 1
        %s1018 = scalar_lea.vmem [#allocation21], %s1017
        // Predicated region
        $region145: #{dyt_transformer_forward.2} parent=99 // pred_check
          %p1019 = pneg %p372
        $region146: #{dyt_transformer_forward.2} parent=99 // pred_check_branch
          %1021 = sbr.rel (%p1019) target = $region148
        $region147: #{dyt_transformer_forward.2} parent=99 // pred_region
          %1022 = dma.done %s1016, 16
        $region148: #{dyt_transformer_forward.2} parent=99 // pred_fallthru
          _
        %s1023 = sand.u32 %s59, 1
        %s1024 = scalar_lea.sflag [#allocation22], %s1023
        %s1025 = sand.u32 %s385, 1
        %s1026 = scalar_lea.vmem [#allocation23], %s1025
        // Predicated region
        $region149: #{dyt_transformer_forward.2} parent=99 // pred_check
          %p1027 = pneg %p398
        $region150: #{dyt_transformer_forward.2} parent=99 // pred_check_branch
          %1029 = sbr.rel (%p1027) target = $region152
        $region151: #{dyt_transformer_forward.2} parent=99 // pred_region
          %1030 = dma.done %s1024, 16
        $region152: #{dyt_transformer_forward.2} parent=99 // pred_fallthru
          _
        %s1031 = sand.u32 %s59, 1
        %s1032 = scalar_lea.sflag [#allocation25], %s1031
        %s1033 = sand.u32 %s411, 1
        %s1034 = smul.addr %s1033, 16
        %s1035 = scalar_lea.vmem [#allocation24], %s1034
        // Predicated region
        $region153: #{dyt_transformer_forward.2} parent=99 // pred_check
          %p1036 = pneg %p424
        $region154: #{dyt_transformer_forward.2} parent=99 // pred_check_branch
          %1038 = sbr.rel (%p1036) target = $region156
        $region155: #{dyt_transformer_forward.2} parent=99 // pred_region
          %1039 = dma.done %s1032, 256
        $region156: #{dyt_transformer_forward.2} parent=99 // pred_fallthru
          _
        %s1040 = sand.u32 %s59, 1
        %s1041 = scalar_lea.sflag [#allocation25], %s1040
        %s1042 = sand.u32 %s437, 1
        %s1043 = scalar_lea.vmem [#allocation26], %s1042
        // Predicated region
        $region157: #{dyt_transformer_forward.2} parent=99 // pred_check
          %p1044 = pneg %p450
        $region158: #{dyt_transformer_forward.2} parent=99 // pred_check_branch
          %1046 = sbr.rel (%p1044) target = $region160
        $region159: #{dyt_transformer_forward.2} parent=99 // pred_region
          %1047 = dma.done %s1041, 16
        $region160: #{dyt_transformer_forward.2} parent=99 // pred_fallthru
          _
        %s1048 = sand.u32 %s59, 1
        %s1049 = scalar_lea.sflag [#allocation28], %s1048
        %s1050 = sand.u32 %s463, 1
        %s1051 = smul.addr %s1050, 32
        %s1052 = scalar_lea.vmem [#allocation27], %s1051
        // Predicated region
        $region161: #{dyt_transformer_forward.2} parent=99 // pred_check
          %p1053 = pneg %p476
        $region162: #{dyt_transformer_forward.2} parent=99 // pred_check_branch
          %1055 = sbr.rel (%p1053) target = $region164
        $region163: #{dyt_transformer_forward.2} parent=99 // pred_region
          %1056 = dma.done %s1049, 512
        $region164: #{dyt_transformer_forward.2} parent=99 // pred_fallthru
          _
        %s1057 = sand.u32 %s59, 1
        %s1058 = scalar_lea.sflag [#allocation28], %s1057
        %s1059 = sand.u32 %s489, 1
        %s1060 = scalar_lea.vmem [#allocation29], %s1059
        // Predicated region
        $region165: #{dyt_transformer_forward.2} parent=99 // pred_check
          %p1061 = pneg %p502
        $region166: #{dyt_transformer_forward.2} parent=99 // pred_check_branch
          %1063 = sbr.rel (%p1061) target = $region168
        $region167: #{dyt_transformer_forward.2} parent=99 // pred_region
          %1064 = dma.done %s1058, 16
        $region168: #{dyt_transformer_forward.2} parent=99 // pred_fallthru
          _
        %s1065 = sand.u32 %s59, 1
        %s1066 = scalar_lea.sflag [#allocation31], %s1065
        %s1067 = sand.u32 %s515, 1
        %s1068 = scalar_lea.vmem [#allocation30], %s1067
        // Predicated region
        $region169: #{dyt_transformer_forward.2} parent=99 // pred_check
          %p1069 = pneg %p528
        $region170: #{dyt_transformer_forward.2} parent=99 // pred_check_branch
          %1071 = sbr.rel (%p1069) target = $region172
        $region171: #{dyt_transformer_forward.2} parent=99 // pred_region
          %1072 = dma.done %s1066, 16
        $region172: #{dyt_transformer_forward.2} parent=99 // pred_fallthru
          _
        %s1073 = sand.u32 %s59, 1
        %s1074 = scalar_lea.sflag [#allocation31], %s1073
        %s1075 = sand.u32 %s541, 1
        %s1076 = scalar_lea.vmem [#allocation32], %s1075
        // Predicated region
        $region173: #{dyt_transformer_forward.2} parent=99 // pred_check
          %p1077 = pneg %p554
        $region174: #{dyt_transformer_forward.2} parent=99 // pred_check_branch
          %1079 = sbr.rel (%p1077) target = $region176
        $region175: #{dyt_transformer_forward.2} parent=99 // pred_region
          %1080 = dma.done %s1074, 16
        $region176: #{dyt_transformer_forward.2} parent=99 // pred_fallthru
          _
        %p1081 = pneg %p75
        %p1082 = pneg %p72
        %p1083 = pneg %p96
        %p1084 = pneg %p93
        %p1085 = pneg %p117
        %p1086 = pneg %p114
        %p1087 = pneg %p138
        %p1088 = pneg %p135
        %s1089 = sand.u32 %s59, 1
        %s1090 = scalar_lea.sflag [#allocation10], %s1089
        %s1091 = sand.u32 %s151, 1
        %s1092 = smul.addr %s1091, 16
        %s1093 = scalar_lea.vmem [#allocation9], %s1092
        %p1094 = pneg %p164
        %p1095 = pneg %p161
        %s1096 = sand.u32 %s59, 1
        %s1097 = scalar_lea.sflag [#allocation10], %s1096
        %s1098 = sand.u32 %s177, 1
        %s1099 = scalar_lea.vmem [#allocation11], %s1098
        %p1100 = pneg %p190
        %p1101 = pneg %p187
        %s1102 = sand.u32 %s59, 1
        %s1103 = scalar_lea.sflag [#allocation13], %s1102
        %s1104 = sand.u32 %s203, 1
        %s1105 = smul.addr %s1104, 16
        %s1106 = scalar_lea.vmem [#allocation12], %s1105
        %p1107 = pneg %p216
        %p1108 = pneg %p213
        %s1109 = sand.u32 %s59, 1
        %s1110 = scalar_lea.sflag [#allocation13], %s1109
        %s1111 = sand.u32 %s229, 1
        %s1112 = scalar_lea.vmem [#allocation14], %s1111
        %p1113 = pneg %p242
        %p1114 = pneg %p239
        %s1115 = sand.u32 %s59, 1
        %s1116 = scalar_lea.sflag [#allocation16], %s1115
        %s1117 = sand.u32 %s255, 1
        %s1118 = smul.addr %s1117, 16
        %s1119 = scalar_lea.vmem [#allocation15], %s1118
        %p1120 = pneg %p268
        %p1121 = pneg %p265
        %s1122 = sand.u32 %s59, 1
        %s1123 = scalar_lea.sflag [#allocation16], %s1122
        %s1124 = sand.u32 %s281, 1
        %s1125 = scalar_lea.vmem [#allocation17], %s1124
        %p1126 = pneg %p294
        %p1127 = pneg %p291
        %s1128 = sand.u32 %s59, 1
        %s1129 = scalar_lea.sflag [#allocation19], %s1128
        %s1130 = sand.u32 %s307, 1
        %s1131 = smul.addr %s1130, 16
        %s1132 = scalar_lea.vmem [#allocation18], %s1131
        %p1133 = pneg %p320
        %p1134 = pneg %p317
        %s1135 = sand.u32 %s59, 1
        %s1136 = scalar_lea.sflag [#allocation19], %s1135
        %s1137 = sand.u32 %s333, 1
        %s1138 = scalar_lea.vmem [#allocation20], %s1137
        %p1139 = pneg %p346
        %p1140 = pneg %p343
        %s1141 = sand.u32 %s59, 1
        %s1142 = scalar_lea.sflag [#allocation22], %s1141
        %s1143 = sand.u32 %s359, 1
        %s1144 = scalar_lea.vmem [#allocation21], %s1143
        %p1145 = pneg %p372
        %p1146 = pneg %p369
        %s1147 = sand.u32 %s59, 1
        %s1148 = scalar_lea.sflag [#allocation22], %s1147
        %s1149 = sand.u32 %s385, 1
        %s1150 = scalar_lea.vmem [#allocation23], %s1149
        %p1151 = pneg %p398
        %p1152 = pneg %p395
        %s1153 = sand.u32 %s59, 1
        %s1154 = scalar_lea.sflag [#allocation25], %s1153
        %s1155 = sand.u32 %s411, 1
        %s1156 = smul.addr %s1155, 16
        %s1157 = scalar_lea.vmem [#allocation24], %s1156
        %p1158 = pneg %p424
        %p1159 = pneg %p421
        %s1160 = sand.u32 %s59, 1
        %s1161 = scalar_lea.sflag [#allocation25], %s1160
        %s1162 = sand.u32 %s437, 1
        %s1163 = scalar_lea.vmem [#allocation26], %s1162
        %p1164 = pneg %p450
        %p1165 = pneg %p447
        %s1166 = sand.u32 %s59, 1
        %s1167 = scalar_lea.sflag [#allocation28], %s1166
        %s1168 = sand.u32 %s463, 1
        %s1169 = smul.addr %s1168, 32
        %s1170 = scalar_lea.vmem [#allocation27], %s1169
        %p1171 = pneg %p476
        %p1172 = pneg %p473
        %s1173 = sand.u32 %s59, 1
        %s1174 = scalar_lea.sflag [#allocation28], %s1173
        %s1175 = sand.u32 %s489, 1
        %s1176 = scalar_lea.vmem [#allocation29], %s1175
        %p1177 = pneg %p502
        %p1178 = pneg %p499
        %s1179 = sand.u32 %s59, 1
        %s1180 = scalar_lea.sflag [#allocation31], %s1179
        %s1181 = sand.u32 %s515, 1
        %s1182 = scalar_lea.vmem [#allocation30], %s1181
        %p1183 = pneg %p528
        %p1184 = pneg %p525
        %s1185 = sand.u32 %s59, 1
        %s1186 = scalar_lea.sflag [#allocation31], %s1185
        %s1187 = sand.u32 %s541, 1
        %s1188 = scalar_lea.vmem [#allocation32], %s1187
        %p1189 = pneg %p554
        %p1190 = pneg %p551
        %p1191 = pneg %p575
        %p1192 = pneg %p572
        %p1194 = scmp.eq.s32.totalorder %s59, 0
        // Predicated region
        $region177: #{dyt_transformer_forward.2} parent=99 // pred_check
          %p1195 = pneg %p1194
        $region178: #{dyt_transformer_forward.2} parent=99 // pred_check_branch
          %1197 = sbr.rel (%p1195) target = $region180
        $region179: #{dyt_transformer_forward.2} parent=99 // pred_region
          %v1198 = vld [vmem:[#allocation8] sm:$0xff]
          %v1199 = vld [vmem:[#allocation8 + $0x8] sm:$0xff]
          %s1200 = sld [smem:[#allocation2]]
          %v1201 = vstv %s1200
          %v1202 = vmul.f32 %v1201, %v1198
          %v1203 = vmul.f32 %v1201, %v1199
          %v1204 = vtanh.pop %v1202
          %v1205 = vtanh.pop %v1203
          %v1206 = vld [vmem:[#allocation3] sm:$0x1]
          %v1208 = vlaneseq
          %v1209 = vshrl.u32 %v1208, 7
          %v1210 = vsub.s32 0, %v1209
          %v1211 = vrot.slane %v1206, %v1210
          %v1213 = vmul.f32 %v1204, %v1211
          %v1214 = vmul.f32 %v1205, %v1211
          %v1215 = vld [vmem:[#allocation6] sm:$0x1]
          %v1217 = vlaneseq
          %v1218 = vshrl.u32 %v1217, 7
          %v1219 = vsub.s32 0, %v1218
          %v1220 = vrot.slane %v1215, %v1219
          %v1222 = vadd.f32 %v1213, %v1220
          %v1223 = vadd.f32 %v1214, %v1220
          %vm1224 = vcmask 261120
          %1225 = vst.msk [vmem:[#allocation33] sm:$0xff] %vm1224, %v1222
          %1226 = vst.msk [vmem:[#allocation33 + $0x8] sm:$0xff] %vm1224, %v1223
        $region180: #{dyt_transformer_forward.2} parent=99 // pred_fallthru
          _
        %v1227 = vld [vmem:[#allocation33] sm:$0xff]
        %v1228 = vld [vmem:[#allocation33 + $0x8] sm:$0xff]
        %v1229 = vld [vmem:[%s951] sm:$0xf]
        %v1230 = vld [vmem:[%s951 + $0x4] sm:$0xf]
        %v1231 = vld [vmem:[%s951 + $0x8] sm:$0xf]
        %v1232 = vld [vmem:[%s951 + $0xc] sm:$0xf]
        %v1233 = vpack.c.bf16 %v1228, %v1227
        %v1234 = vld [vmem:[%s959] sm:$0x1]
        %v1236 = vlaneseq
        %v1237 = vshrl.u32 %v1236, 7
        %v1238 = vsub.s32 0, %v1237
        %v1239 = vrot.slane %v1234, %v1238
        %v1245 = vunpack.c.l.b16 %v1229
        %v1246 = vunpack.c.l.b16 %v1230
        %v1247 = vunpack.c.l.b16 %v1231
        %v1248 = vunpack.c.l.b16 %v1232
        %v1249 = vpack.c.b16 %v1246, %v1245
        %v1250 = vpack.c.b16 %v1248, %v1247
        %vm1253 = vcmask 261120
        %v1255 = vsel %vm1253, %v1233, 0
        %1257 = vmatprep.subr.bf16.mxu0 0
        %1258 = vmatpush1.bf16.msra.mxu0 %v1249
        %1259 = vmatprep.subr.bf16.mxu0 0
        %1260 = vmatpush1.bf16.msra.mxu0 %v1250
        %1261 = vmatprep.subr.bf16.mxu0 0
        %1262 = vmatpush1.bf16.msra.mxu0 0
        %1263 = vmatprep.subr.bf16.mxu0 0
        %1264 = vmatpush1.bf16.msra.mxu0 0
        %1265 = vmatprep.subr.bf16.mxu0 0
        %1266 = vmatpush1.bf16.msra.mxu0 0
        %1267 = vmatprep.subr.bf16.mxu0 0
        %1268 = vmatpush1.bf16.msra.mxu0 0
        %1269 = vmatprep.subr.bf16.mxu0 0
        %1270 = vmatpush1.bf16.msra.mxu0 0
        %1271 = vmatprep.subr.bf16.mxu0 0
        %1272 = vmatpush1.bf16.msra.mxu0 0
        %1273 = vmatprep.subr.bf16.mxu0 0
        %1274 = vmatpush1.bf16.msra.mxu0 0
        %1275 = vmatprep.subr.bf16.mxu0 0
        %1276 = vmatpush1.bf16.msra.mxu0 0
        %1277 = vmatprep.subr.bf16.mxu0 0
        %1278 = vmatpush1.bf16.msra.mxu0 0
        %1279 = vmatprep.subr.bf16.mxu0 0
        %1280 = vmatpush1.bf16.msra.mxu0 0
        %1281 = vmatprep.subr.bf16.mxu0 0
        %1282 = vmatpush1.bf16.msra.mxu0 0
        %1283 = vmatprep.subr.bf16.mxu0 0
        %1284 = vmatpush1.bf16.msra.mxu0 0
        %1285 = vmatprep.subr.bf16.mxu0 0
        %1286 = vmatpush1.bf16.msra.mxu0 0
        %1287 = vmatprep.subr.bf16.mxu0 0
        %1288 = vmatpush1.bf16.msra.mxu0 0
        %1289 = vmatprep.mubr.bf16.mxu0 0
        %1290 = vmatmul.mubr.bf16.gmra.mrb[0].mxu0 %v1255
        %v1291 = vpop.f32.mrb[0].mxu0
        %v1292 = vadd.f32 %v1239, %v1291
        %v1293 = vpop.f32.mrb[0].mxu0
        %v1294 = vpop.f32.mrb[0].mxu0
        %v1295 = vadd.f32 %v1239, %v1294
        %v1296 = vpop.f32.mrb[0].mxu0
        %1297 = vdwg.mxu0
        %v1298 = vld [vmem:[%s968] sm:$0xf]
        %v1299 = vld [vmem:[%s968 + $0x4] sm:$0xf]
        %v1300 = vld [vmem:[%s968 + $0x8] sm:$0xf]
        %v1301 = vld [vmem:[%s968 + $0xc] sm:$0xf]
        %v1302 = vld [vmem:[%s976] sm:$0x1]
        %v1304 = vlaneseq
        %v1305 = vshrl.u32 %v1304, 7
        %v1306 = vsub.s32 0, %v1305
        %v1307 = vrot.slane %v1302, %v1306
        %v1313 = vunpack.c.l.b16 %v1298
        %v1314 = vunpack.c.l.b16 %v1299
        %v1315 = vunpack.c.l.b16 %v1300
        %v1316 = vunpack.c.l.b16 %v1301
        %v1317 = vpack.c.b16 %v1314, %v1313
        %v1318 = vpack.c.b16 %v1316, %v1315
        %1321 = vmatprep.subr.bf16.mxu0 0
        %1322 = vmatpush1.bf16.msra.mxu0 %v1317
        %1323 = vmatprep.subr.bf16.mxu0 0
        %1324 = vmatpush1.bf16.msra.mxu0 %v1318
        %1325 = vmatprep.subr.bf16.mxu0 0
        %1326 = vmatpush1.bf16.msra.mxu0 0
        %1327 = vmatprep.subr.bf16.mxu0 0
        %1328 = vmatpush1.bf16.msra.mxu0 0
        %1329 = vmatprep.subr.bf16.mxu0 0
        %1330 = vmatpush1.bf16.msra.mxu0 0
        %1331 = vmatprep.subr.bf16.mxu0 0
        %1332 = vmatpush1.bf16.msra.mxu0 0
        %1333 = vmatprep.subr.bf16.mxu0 0
        %1334 = vmatpush1.bf16.msra.mxu0 0
        %1335 = vmatprep.subr.bf16.mxu0 0
        %1336 = vmatpush1.bf16.msra.mxu0 0
        %1337 = vmatprep.subr.bf16.mxu0 0
        %1338 = vmatpush1.bf16.msra.mxu0 0
        %1339 = vmatprep.subr.bf16.mxu0 0
        %1340 = vmatpush1.bf16.msra.mxu0 0
        %1341 = vmatprep.subr.bf16.mxu0 0
        %1342 = vmatpush1.bf16.msra.mxu0 0
        %1343 = vmatprep.subr.bf16.mxu0 0
        %1344 = vmatpush1.bf16.msra.mxu0 0
        %1345 = vmatprep.subr.bf16.mxu0 0
        %1346 = vmatpush1.bf16.msra.mxu0 0
        %1347 = vmatprep.subr.bf16.mxu0 0
        %1348 = vmatpush1.bf16.msra.mxu0 0
        %1349 = vmatprep.subr.bf16.mxu0 0
        %1350 = vmatpush1.bf16.msra.mxu0 0
        %1351 = vmatprep.subr.bf16.mxu0 0
        %1352 = vmatpush1.bf16.msra.mxu0 0
        %1353 = vmatprep.mubr.bf16.mxu0 0
        %1354 = vmatmul.mubr.bf16.gmra.mrb[0].mxu0 %v1255
        %v1355 = vpop.f32.mrb[0].mxu0
        %v1356 = vadd.f32 %v1307, %v1355
        %v1357 = vpop.f32.mrb[0].mxu0
        %v1358 = vpop.f32.mrb[0].mxu0
        %v1359 = vadd.f32 %v1307, %v1358
        %v1360 = vpop.f32.mrb[0].mxu0
        %1361 = vdwg.mxu0
        %v1362 = vld [vmem:[%s985] sm:$0xf]
        %v1363 = vld [vmem:[%s985 + $0x4] sm:$0xf]
        %v1364 = vld [vmem:[%s985 + $0x8] sm:$0xf]
        %v1365 = vld [vmem:[%s985 + $0xc] sm:$0xf]
        %v1366 = vld [vmem:[%s993] sm:$0x1]
        %v1368 = vlaneseq
        %v1369 = vshrl.u32 %v1368, 7
        %v1370 = vsub.s32 0, %v1369
        %v1371 = vrot.slane %v1366, %v1370
        %v1377 = vunpack.c.l.b16 %v1362
        %v1378 = vunpack.c.l.b16 %v1363
        %v1379 = vunpack.c.l.b16 %v1364
        %v1380 = vunpack.c.l.b16 %v1365
        %v1381 = vpack.c.b16 %v1378, %v1377
        %v1382 = vpack.c.b16 %v1380, %v1379
        %1385 = vmatprep.subr.bf16.mxu0 0
        %1386 = vmatpush1.bf16.msra.mxu0 %v1381
        %1387 = vmatprep.subr.bf16.mxu0 0
        %1388 = vmatpush1.bf16.msra.mxu0 %v1382
        %1389 = vmatprep.subr.bf16.mxu0 0
        %1390 = vmatpush1.bf16.msra.mxu0 0
        %1391 = vmatprep.subr.bf16.mxu0 0
        %1392 = vmatpush1.bf16.msra.mxu0 0
        %1393 = vmatprep.subr.bf16.mxu0 0
        %1394 = vmatpush1.bf16.msra.mxu0 0
        %1395 = vmatprep.subr.bf16.mxu0 0
        %1396 = vmatpush1.bf16.msra.mxu0 0
        %1397 = vmatprep.subr.bf16.mxu0 0
        %1398 = vmatpush1.bf16.msra.mxu0 0
        %1399 = vmatprep.subr.bf16.mxu0 0
        %1400 = vmatpush1.bf16.msra.mxu0 0
        %1401 = vmatprep.subr.bf16.mxu0 0
        %1402 = vmatpush1.bf16.msra.mxu0 0
        %1403 = vmatprep.subr.bf16.mxu0 0
        %1404 = vmatpush1.bf16.msra.mxu0 0
        %1405 = vmatprep.subr.bf16.mxu0 0
        %1406 = vmatpush1.bf16.msra.mxu0 0
        %1407 = vmatprep.subr.bf16.mxu0 0
        %1408 = vmatpush1.bf16.msra.mxu0 0
        %1409 = vmatprep.subr.bf16.mxu0 0
        %1410 = vmatpush1.bf16.msra.mxu0 0
        %1411 = vmatprep.subr.bf16.mxu0 0
        %1412 = vmatpush1.bf16.msra.mxu0 0
        %1413 = vmatprep.subr.bf16.mxu0 0
        %1414 = vmatpush1.bf16.msra.mxu0 0
        %1415 = vmatprep.subr.bf16.mxu0 0
        %1416 = vmatpush1.bf16.msra.mxu0 0
        %1417 = vmatprep.mubr.bf16.mxu0 0
        %1418 = vmatmul.mubr.bf16.gmra.mrb[0].mxu0 %v1255
        %v1419 = vpop.f32.mrb[0].mxu0
        %v1420 = vadd.f32 %v1371, %v1419
        %v1421 = vpop.f32.mrb[0].mxu0
        %v1422 = vpop.f32.mrb[0].mxu0
        %v1423 = vadd.f32 %v1371, %v1422
        %v1424 = vpop.f32.mrb[0].mxu0
        %1425 = vdwg.mxu0
        %v1426 = vpack.c.bf16 %v1295, %v1292
        %v1427 = vpack.c.bf16 %v1359, %v1356
        %v1428 = vpack.c.bf16 %v1423, %v1420
        %vm1429 = vcmask 64512
        %v1431 = vsel %vm1429, %v1426, 0
        %v1434 = vsel %vm1429, %v1427, 0
        %1436 = vmatprep.subr.bf16.mxu0 0
        %1437 = vmatpush1.bf16.xpose.msra.mxu0 %v1434
        %1438 = vmatprep.subr.bf16.mxu0 0
        %1439 = vmatpush1.bf16.xpose.msra.mxu0 0
        %1440 = vmatprep.subr.bf16.mxu0 0
        %1441 = vmatpush1.bf16.xpose.msra.mxu0 0
        %1442 = vmatprep.subr.bf16.mxu0 0
        %1443 = vmatpush1.bf16.xpose.msra.mxu0 0
        %1444 = vmatprep.subr.bf16.mxu0 0
        %1445 = vmatpush1.bf16.xpose.msra.mxu0 0
        %1446 = vmatprep.subr.bf16.mxu0 0
        %1447 = vmatpush1.bf16.xpose.msra.mxu0 0
        %1448 = vmatprep.subr.bf16.mxu0 0
        %1449 = vmatpush1.bf16.xpose.msra.mxu0 0
        %1450 = vmatprep.subr.bf16.mxu0 0
        %1451 = vmatpush1.bf16.xpose.msra.mxu0 0
        %1452 = vmatprep.subr.bf16.mxu0 0
        %1453 = vmatpush1.bf16.xpose.msra.mxu0 0
        %1454 = vmatprep.subr.bf16.mxu0 0
        %1455 = vmatpush1.bf16.xpose.msra.mxu0 0
        %1456 = vmatprep.subr.bf16.mxu0 0
        %1457 = vmatpush1.bf16.xpose.msra.mxu0 0
        %1458 = vmatprep.subr.bf16.mxu0 0
        %1459 = vmatpush1.bf16.xpose.msra.mxu0 0
        %1460 = vmatprep.subr.bf16.mxu0 0
        %1461 = vmatpush1.bf16.xpose.msra.mxu0 0
        %1462 = vmatprep.subr.bf16.mxu0 0
        %1463 = vmatpush1.bf16.xpose.msra.mxu0 0
        %1464 = vmatprep.subr.bf16.mxu0 0
        %1465 = vmatpush1.bf16.xpose.msra.mxu0 0
        %1466 = vmatprep.subr.bf16.mxu0 0
        %1467 = vmatpush1.bf16.xpose.msra.mxu0 0
        %1468 = vmatprep.mubr.bf16.mxu0 0
        %1469 = vmatmul.mubr.bf16.gmra.mrb[0].mxu0 %v1431
        %v1470 = vpop.f32.mrb[0].mxu0
        %v1471 = vadd.f32 0.0, %v1470
        %v1472 = vpop.f32.mrb[0].mxu0
        %v1473 = vpop.f32.mrb[0].mxu0
        %v1474 = vpop.f32.mrb[0].mxu0
        %1475 = vdwg.mxu0
        %v1476 = vsel %vm1429, %v1471, -inf
        %1477 = vmax.xlane.f32.xlu0 %v1476
        %v1478 = vpop.xlane.xlu0 %1477
        %v1479 = vsub.f32 %v1471, %v1478
        %v1480 = vmul.f32 %v1479, 1.442695
        %v1481 = vpow.pop %v1480
        %v1482 = vsel %vm1429, %v1481, 0.0
        %1483 = vadd.xlane.f32.xlu0 %v1482
        %v1484 = vpop.xlane.xlu0 %1483
        %v1485 = vrcp.pop %v1484
        %v1486 = vmul.f32 %v1481, %v1485
        %v1487 = vpack.c.bf16 %v1486, %v1486
        %v1489 = vsel %vm1429, %v1487, 0
        %vm1491 = vcmask 1043456
        %v1493 = vsel %vm1491, %v1428, 0
        %1495 = vmatprep.subr.bf16.mxu0 0
        %1496 = vmatpush1.bf16.msra.mxu0 %v1493
        %1497 = vmatprep.subr.bf16.mxu0 0
        %1498 = vmatpush1.bf16.msra.mxu0 0
        %1499 = vmatprep.subr.bf16.mxu0 0
        %1500 = vmatpush1.bf16.msra.mxu0 0
        %1501 = vmatprep.subr.bf16.mxu0 0
        %1502 = vmatpush1.bf16.msra.mxu0 0
        %1503 = vmatprep.subr.bf16.mxu0 0
        %1504 = vmatpush1.bf16.msra.mxu0 0
        %1505 = vmatprep.subr.bf16.mxu0 0
        %1506 = vmatpush1.bf16.msra.mxu0 0
        %1507 = vmatprep.subr.bf16.mxu0 0
        %1508 = vmatpush1.bf16.msra.mxu0 0
        %1509 = vmatprep.subr.bf16.mxu0 0
        %1510 = vmatpush1.bf16.msra.mxu0 0
        %1511 = vmatprep.subr.bf16.mxu0 0
        %1512 = vmatpush1.bf16.msra.mxu0 0
        %1513 = vmatprep.subr.bf16.mxu0 0
        %1514 = vmatpush1.bf16.msra.mxu0 0
        %1515 = vmatprep.subr.bf16.mxu0 0
        %1516 = vmatpush1.bf16.msra.mxu0 0
        %1517 = vmatprep.subr.bf16.mxu0 0
        %1518 = vmatpush1.bf16.msra.mxu0 0
        %1519 = vmatprep.subr.bf16.mxu0 0
        %1520 = vmatpush1.bf16.msra.mxu0 0
        %1521 = vmatprep.subr.bf16.mxu0 0
        %1522 = vmatpush1.bf16.msra.mxu0 0
        %1523 = vmatprep.subr.bf16.mxu0 0
        %1524 = vmatpush1.bf16.msra.mxu0 0
        %1525 = vmatprep.subr.bf16.mxu0 0
        %1526 = vmatpush1.bf16.msra.mxu0 0
        %1527 = vmatprep.mubr.bf16.mxu0 0
        %1528 = vmatmul.mubr.bf16.gmra.mrb[0].mxu0 %v1489
        %v1529 = vpop.f32.mrb[0].mxu0
        %v1530 = vadd.f32 0.0, %v1529
        %v1531 = vpop.f32.mrb[0].mxu0
        %v1532 = vpop.f32.mrb[0].mxu0
        %v1533 = vpop.f32.mrb[0].mxu0
        %1534 = vdwg.mxu0
        %1536 = vrot.lane.b32.xlu0 %v1426, 120
        %v1537 = vpop.permute.xlu0 %1536
        %1539 = vrot.lane.b32.xlu0 %v1427, 120
        %v1540 = vpop.permute.xlu0 %1539
        %v1542 = vsel %vm1429, %v1537, 0
        %v1545 = vsel %vm1429, %v1540, 0
        %1547 = vmatprep.subr.bf16.mxu0 0
        %1548 = vmatpush1.bf16.xpose.msra.mxu0 %v1545
        %1549 = vmatprep.subr.bf16.mxu0 0
        %1550 = vmatpush1.bf16.xpose.msra.mxu0 0
        %1551 = vmatprep.subr.bf16.mxu0 0
        %1552 = vmatpush1.bf16.xpose.msra.mxu0 0
        %1553 = vmatprep.subr.bf16.mxu0 0
        %1554 = vmatpush1.bf16.xpose.msra.mxu0 0
        %1555 = vmatprep.subr.bf16.mxu0 0
        %1556 = vmatpush1.bf16.xpose.msra.mxu0 0
        %1557 = vmatprep.subr.bf16.mxu0 0
        %1558 = vmatpush1.bf16.xpose.msra.mxu0 0
        %1559 = vmatprep.subr.bf16.mxu0 0
        %1560 = vmatpush1.bf16.xpose.msra.mxu0 0
        %1561 = vmatprep.subr.bf16.mxu0 0
        %1562 = vmatpush1.bf16.xpose.msra.mxu0 0
        %1563 = vmatprep.subr.bf16.mxu0 0
        %1564 = vmatpush1.bf16.xpose.msra.mxu0 0
        %1565 = vmatprep.subr.bf16.mxu0 0
        %1566 = vmatpush1.bf16.xpose.msra.mxu0 0
        %1567 = vmatprep.subr.bf16.mxu0 0
        %1568 = vmatpush1.bf16.xpose.msra.mxu0 0
        %1569 = vmatprep.subr.bf16.mxu0 0
        %1570 = vmatpush1.bf16.xpose.msra.mxu0 0
        %1571 = vmatprep.subr.bf16.mxu0 0
        %1572 = vmatpush1.bf16.xpose.msra.mxu0 0
        %1573 = vmatprep.subr.bf16.mxu0 0
        %1574 = vmatpush1.bf16.xpose.msra.mxu0 0
        %1575 = vmatprep.subr.bf16.mxu0 0
        %1576 = vmatpush1.bf16.xpose.msra.mxu0 0
        %1577 = vmatprep.subr.bf16.mxu0 0
        %1578 = vmatpush1.bf16.xpose.msra.mxu0 0
        %1579 = vmatprep.mubr.bf16.mxu0 0
        %1580 = vmatmul.mubr.bf16.gmra.mrb[0].mxu0 %v1542
        %v1581 = vpop.f32.mrb[0].mxu0
        %v1582 = vadd.f32 0.0, %v1581
        %v1583 = vpop.f32.mrb[0].mxu0
        %v1584 = vpop.f32.mrb[0].mxu0
        %v1585 = vpop.f32.mrb[0].mxu0
        %1586 = vdwg.mxu0
        %v1587 = vsel %vm1429, %v1582, -inf
        %1588 = vmax.xlane.f32.xlu0 %v1587
        %v1589 = vpop.xlane.xlu0 %1588
        %v1590 = vsub.f32 %v1582, %v1589
        %v1591 = vmul.f32 %v1590, 1.442695
        %v1592 = vpow.pop %v1591
        %v1593 = vsel %vm1429, %v1592, 0.0
        %1594 = vadd.xlane.f32.xlu0 %v1593
        %v1595 = vpop.xlane.xlu0 %1594
        %v1596 = vrcp.pop %v1595
        %v1597 = vmul.f32 %v1592, %v1596
        %v1598 = vpack.c.bf16 %v1597, %v1597
        %1600 = vrot.lane.b32.xlu0 %v1428, 120
        %v1601 = vpop.permute.xlu0 %1600
        %v1603 = vsel %vm1429, %v1598, 0
        %v1606 = vsel %vm1491, %v1601, 0
        %1608 = vmatprep.subr.bf16.mxu0 0
        %1609 = vmatpush1.bf16.msra.mxu0 %v1606
        %1610 = vmatprep.subr.bf16.mxu0 0
        %1611 = vmatpush1.bf16.msra.mxu0 0
        %1612 = vmatprep.subr.bf16.mxu0 0
        %1613 = vmatpush1.bf16.msra.mxu0 0
        %1614 = vmatprep.subr.bf16.mxu0 0
        %1615 = vmatpush1.bf16.msra.mxu0 0
        %1616 = vmatprep.subr.bf16.mxu0 0
        %1617 = vmatpush1.bf16.msra.mxu0 0
        %1618 = vmatprep.subr.bf16.mxu0 0
        %1619 = vmatpush1.bf16.msra.mxu0 0
        %1620 = vmatprep.subr.bf16.mxu0 0
        %1621 = vmatpush1.bf16.msra.mxu0 0
        %1622 = vmatprep.subr.bf16.mxu0 0
        %1623 = vmatpush1.bf16.msra.mxu0 0
        %1624 = vmatprep.subr.bf16.mxu0 0
        %1625 = vmatpush1.bf16.msra.mxu0 0
        %1626 = vmatprep.subr.bf16.mxu0 0
        %1627 = vmatpush1.bf16.msra.mxu0 0
        %1628 = vmatprep.subr.bf16.mxu0 0
        %1629 = vmatpush1.bf16.msra.mxu0 0
        %1630 = vmatprep.subr.bf16.mxu0 0
        %1631 = vmatpush1.bf16.msra.mxu0 0
        %1632 = vmatprep.subr.bf16.mxu0 0
        %1633 = vmatpush1.bf16.msra.mxu0 0
        %1634 = vmatprep.subr.bf16.mxu0 0
        %1635 = vmatpush1.bf16.msra.mxu0 0
        %1636 = vmatprep.subr.bf16.mxu0 0
        %1637 = vmatpush1.bf16.msra.mxu0 0
        %1638 = vmatprep.subr.bf16.mxu0 0
        %1639 = vmatpush1.bf16.msra.mxu0 0
        %1640 = vmatprep.mubr.bf16.mxu0 0
        %1641 = vmatmul.mubr.bf16.gmra.mrb[0].mxu0 %v1603
        %v1642 = vpop.f32.mrb[0].mxu0
        %v1643 = vadd.f32 0.0, %v1642
        %v1644 = vpop.f32.mrb[0].mxu0
        %v1645 = vpop.f32.mrb[0].mxu0
        %v1646 = vpop.f32.mrb[0].mxu0
        %1647 = vdwg.mxu0
        %1648 = vrot.lane.b32.xlu0 %v1426, 112
        %v1649 = vpop.permute.xlu0 %1648
        %1650 = vrot.lane.b32.xlu0 %v1427, 112
        %v1651 = vpop.permute.xlu0 %1650
        %v1653 = vsel %vm1429, %v1649, 0
        %v1656 = vsel %vm1429, %v1651, 0
        %1658 = vmatprep.subr.bf16.mxu0 0
        %1659 = vmatpush1.bf16.xpose.msra.mxu0 %v1656
        %1660 = vmatprep.subr.bf16.mxu0 0
        %1661 = vmatpush1.bf16.xpose.msra.mxu0 0
        %1662 = vmatprep.subr.bf16.mxu0 0
        %1663 = vmatpush1.bf16.xpose.msra.mxu0 0
        %1664 = vmatprep.subr.bf16.mxu0 0
        %1665 = vmatpush1.bf16.xpose.msra.mxu0 0
        %1666 = vmatprep.subr.bf16.mxu0 0
        %1667 = vmatpush1.bf16.xpose.msra.mxu0 0
        %1668 = vmatprep.subr.bf16.mxu0 0
        %1669 = vmatpush1.bf16.xpose.msra.mxu0 0
        %1670 = vmatprep.subr.bf16.mxu0 0
        %1671 = vmatpush1.bf16.xpose.msra.mxu0 0
        %1672 = vmatprep.subr.bf16.mxu0 0
        %1673 = vmatpush1.bf16.xpose.msra.mxu0 0
        %1674 = vmatprep.subr.bf16.mxu0 0
        %1675 = vmatpush1.bf16.xpose.msra.mxu0 0
        %1676 = vmatprep.subr.bf16.mxu0 0
        %1677 = vmatpush1.bf16.xpose.msra.mxu0 0
        %1678 = vmatprep.subr.bf16.mxu0 0
        %1679 = vmatpush1.bf16.xpose.msra.mxu0 0
        %1680 = vmatprep.subr.bf16.mxu0 0
        %1681 = vmatpush1.bf16.xpose.msra.mxu0 0
        %1682 = vmatprep.subr.bf16.mxu0 0
        %1683 = vmatpush1.bf16.xpose.msra.mxu0 0
        %1684 = vmatprep.subr.bf16.mxu0 0
        %1685 = vmatpush1.bf16.xpose.msra.mxu0 0
        %1686 = vmatprep.subr.bf16.mxu0 0
        %1687 = vmatpush1.bf16.xpose.msra.mxu0 0
        %1688 = vmatprep.subr.bf16.mxu0 0
        %1689 = vmatpush1.bf16.xpose.msra.mxu0 0
        %1690 = vmatprep.mubr.bf16.mxu0 0
        %1691 = vmatmul.mubr.bf16.gmra.mrb[0].mxu0 %v1653
        %v1692 = vpop.f32.mrb[0].mxu0
        %v1693 = vadd.f32 0.0, %v1692
        %v1694 = vpop.f32.mrb[0].mxu0
        %v1695 = vpop.f32.mrb[0].mxu0
        %v1696 = vpop.f32.mrb[0].mxu0
        %1697 = vdwg.mxu0
        %v1698 = vsel %vm1429, %v1693, -inf
        %1699 = vmax.xlane.f32.xlu0 %v1698
        %v1700 = vpop.xlane.xlu0 %1699
        %v1701 = vsub.f32 %v1693, %v1700
        %v1702 = vmul.f32 %v1701, 1.442695
        %v1703 = vpow.pop %v1702
        %v1704 = vsel %vm1429, %v1703, 0.0
        %1705 = vadd.xlane.f32.xlu0 %v1704
        %v1706 = vpop.xlane.xlu0 %1705
        %v1707 = vrcp.pop %v1706
        %v1708 = vmul.f32 %v1703, %v1707
        %v1709 = vpack.c.bf16 %v1708, %v1708
        %1710 = vrot.lane.b32.xlu0 %v1428, 112
        %v1711 = vpop.permute.xlu0 %1710
        %v1713 = vsel %vm1429, %v1709, 0
        %v1716 = vsel %vm1491, %v1711, 0
        %1718 = vmatprep.subr.bf16.mxu0 0
        %1719 = vmatpush1.bf16.msra.mxu0 %v1716
        %1720 = vmatprep.subr.bf16.mxu0 0
        %1721 = vmatpush1.bf16.msra.mxu0 0
        %1722 = vmatprep.subr.bf16.mxu0 0
        %1723 = vmatpush1.bf16.msra.mxu0 0
        %1724 = vmatprep.subr.bf16.mxu0 0
        %1725 = vmatpush1.bf16.msra.mxu0 0
        %1726 = vmatprep.subr.bf16.mxu0 0
        %1727 = vmatpush1.bf16.msra.mxu0 0
        %1728 = vmatprep.subr.bf16.mxu0 0
        %1729 = vmatpush1.bf16.msra.mxu0 0
        %1730 = vmatprep.subr.bf16.mxu0 0
        %1731 = vmatpush1.bf16.msra.mxu0 0
        %1732 = vmatprep.subr.bf16.mxu0 0
        %1733 = vmatpush1.bf16.msra.mxu0 0
        %1734 = vmatprep.subr.bf16.mxu0 0
        %1735 = vmatpush1.bf16.msra.mxu0 0
        %1736 = vmatprep.subr.bf16.mxu0 0
        %1737 = vmatpush1.bf16.msra.mxu0 0
        %1738 = vmatprep.subr.bf16.mxu0 0
        %1739 = vmatpush1.bf16.msra.mxu0 0
        %1740 = vmatprep.subr.bf16.mxu0 0
        %1741 = vmatpush1.bf16.msra.mxu0 0
        %1742 = vmatprep.subr.bf16.mxu0 0
        %1743 = vmatpush1.bf16.msra.mxu0 0
        %1744 = vmatprep.subr.bf16.mxu0 0
        %1745 = vmatpush1.bf16.msra.mxu0 0
        %1746 = vmatprep.subr.bf16.mxu0 0
        %1747 = vmatpush1.bf16.msra.mxu0 0
        %1748 = vmatprep.subr.bf16.mxu0 0
        %1749 = vmatpush1.bf16.msra.mxu0 0
        %1750 = vmatprep.mubr.bf16.mxu0 0
        %1751 = vmatmul.mubr.bf16.gmra.mrb[0].mxu0 %v1713
        %v1752 = vpop.f32.mrb[0].mxu0
        %v1753 = vadd.f32 0.0, %v1752
        %v1754 = vpop.f32.mrb[0].mxu0
        %v1755 = vpop.f32.mrb[0].mxu0
        %v1756 = vpop.f32.mrb[0].mxu0
        %1757 = vdwg.mxu0
        %1758 = vrot.lane.b32.xlu0 %v1426, 104
        %v1759 = vpop.permute.xlu0 %1758
        %1760 = vrot.lane.b32.xlu0 %v1427, 104
        %v1761 = vpop.permute.xlu0 %1760
        %v1763 = vsel %vm1429, %v1759, 0
        %v1766 = vsel %vm1429, %v1761, 0
        %1768 = vmatprep.subr.bf16.mxu0 0
        %1769 = vmatpush1.bf16.xpose.msra.mxu0 %v1766
        %1770 = vmatprep.subr.bf16.mxu0 0
        %1771 = vmatpush1.bf16.xpose.msra.mxu0 0
        %1772 = vmatprep.subr.bf16.mxu0 0
        %1773 = vmatpush1.bf16.xpose.msra.mxu0 0
        %1774 = vmatprep.subr.bf16.mxu0 0
        %1775 = vmatpush1.bf16.xpose.msra.mxu0 0
        %1776 = vmatprep.subr.bf16.mxu0 0
        %1777 = vmatpush1.bf16.xpose.msra.mxu0 0
        %1778 = vmatprep.subr.bf16.mxu0 0
        %1779 = vmatpush1.bf16.xpose.msra.mxu0 0
        %1780 = vmatprep.subr.bf16.mxu0 0
        %1781 = vmatpush1.bf16.xpose.msra.mxu0 0
        %1782 = vmatprep.subr.bf16.mxu0 0
        %1783 = vmatpush1.bf16.xpose.msra.mxu0 0
        %1784 = vmatprep.subr.bf16.mxu0 0
        %1785 = vmatpush1.bf16.xpose.msra.mxu0 0
        %1786 = vmatprep.subr.bf16.mxu0 0
        %1787 = vmatpush1.bf16.xpose.msra.mxu0 0
        %1788 = vmatprep.subr.bf16.mxu0 0
        %1789 = vmatpush1.bf16.xpose.msra.mxu0 0
        %1790 = vmatprep.subr.bf16.mxu0 0
        %1791 = vmatpush1.bf16.xpose.msra.mxu0 0
        %1792 = vmatprep.subr.bf16.mxu0 0
        %1793 = vmatpush1.bf16.xpose.msra.mxu0 0
        %1794 = vmatprep.subr.bf16.mxu0 0
        %1795 = vmatpush1.bf16.xpose.msra.mxu0 0
        %1796 = vmatprep.subr.bf16.mxu0 0
        %1797 = vmatpush1.bf16.xpose.msra.mxu0 0
        %1798 = vmatprep.subr.bf16.mxu0 0
        %1799 = vmatpush1.bf16.xpose.msra.mxu0 0
        %1800 = vmatprep.mubr.bf16.mxu0 0
        %1801 = vmatmul.mubr.bf16.gmra.mrb[0].mxu0 %v1763
        %v1802 = vpop.f32.mrb[0].mxu0
        %v1803 = vadd.f32 0.0, %v1802
        %v1804 = vpop.f32.mrb[0].mxu0
        %v1805 = vpop.f32.mrb[0].mxu0
        %v1806 = vpop.f32.mrb[0].mxu0
        %1807 = vdwg.mxu0
        %v1808 = vsel %vm1429, %v1803, -inf
        %1809 = vmax.xlane.f32.xlu0 %v1808
        %v1810 = vpop.xlane.xlu0 %1809
        %v1811 = vsub.f32 %v1803, %v1810
        %v1812 = vmul.f32 %v1811, 1.442695
        %v1813 = vpow.pop %v1812
        %v1814 = vsel %vm1429, %v1813, 0.0
        %1815 = vadd.xlane.f32.xlu0 %v1814
        %v1816 = vpop.xlane.xlu0 %1815
        %v1817 = vrcp.pop %v1816
        %v1818 = vmul.f32 %v1813, %v1817
        %v1819 = vpack.c.bf16 %v1818, %v1818
        %1820 = vrot.lane.b32.xlu0 %v1428, 104
        %v1821 = vpop.permute.xlu0 %1820
        %v1823 = vsel %vm1429, %v1819, 0
        %v1826 = vsel %vm1491, %v1821, 0
        %1828 = vmatprep.subr.bf16.mxu0 0
        %1829 = vmatpush1.bf16.msra.mxu0 %v1826
        %1830 = vmatprep.subr.bf16.mxu0 0
        %1831 = vmatpush1.bf16.msra.mxu0 0
        %1832 = vmatprep.subr.bf16.mxu0 0
        %1833 = vmatpush1.bf16.msra.mxu0 0
        %1834 = vmatprep.subr.bf16.mxu0 0
        %1835 = vmatpush1.bf16.msra.mxu0 0
        %1836 = vmatprep.subr.bf16.mxu0 0
        %1837 = vmatpush1.bf16.msra.mxu0 0
        %1838 = vmatprep.subr.bf16.mxu0 0
        %1839 = vmatpush1.bf16.msra.mxu0 0
        %1840 = vmatprep.subr.bf16.mxu0 0
        %1841 = vmatpush1.bf16.msra.mxu0 0
        %1842 = vmatprep.subr.bf16.mxu0 0
        %1843 = vmatpush1.bf16.msra.mxu0 0
        %1844 = vmatprep.subr.bf16.mxu0 0
        %1845 = vmatpush1.bf16.msra.mxu0 0
        %1846 = vmatprep.subr.bf16.mxu0 0
        %1847 = vmatpush1.bf16.msra.mxu0 0
        %1848 = vmatprep.subr.bf16.mxu0 0
        %1849 = vmatpush1.bf16.msra.mxu0 0
        %1850 = vmatprep.subr.bf16.mxu0 0
        %1851 = vmatpush1.bf16.msra.mxu0 0
        %1852 = vmatprep.subr.bf16.mxu0 0
        %1853 = vmatpush1.bf16.msra.mxu0 0
        %1854 = vmatprep.subr.bf16.mxu0 0
        %1855 = vmatpush1.bf16.msra.mxu0 0
        %1856 = vmatprep.subr.bf16.mxu0 0
        %1857 = vmatpush1.bf16.msra.mxu0 0
        %1858 = vmatprep.subr.bf16.mxu0 0
        %1859 = vmatpush1.bf16.msra.mxu0 0
        %1860 = vmatprep.mubr.bf16.mxu0 0
        %1861 = vmatmul.mubr.bf16.gmra.mrb[0].mxu0 %v1823
        %v1862 = vpop.f32.mrb[0].mxu0
        %v1863 = vadd.f32 0.0, %v1862
        %v1864 = vpop.f32.mrb[0].mxu0
        %v1865 = vpop.f32.mrb[0].mxu0
        %v1866 = vpop.f32.mrb[0].mxu0
        %1867 = vdwg.mxu0
        %1869 = vrot.lane.b32.xlu0 %v1643, 8
        %v1870 = vpop.permute.xlu0 %1869
        %1873 = vrot.lane.b32.xlu0 %v1753, 16
        %v1874 = vpop.permute.xlu0 %1873
        %1877 = vrot.lane.b32.xlu0 %v1863, 24
        %v1878 = vpop.permute.xlu0 %1877
        %v1880 = vsel %vm1429, %v1530, %v1870
        %vm1881 = vcmask 130048
        %v1882 = vsel %vm1881, %v1880, %v1874
        %vm1883 = vcmask 195584
        %v1884 = vsel %vm1883, %v1882, %v1878
        %v1885 = vrot.slane %v1426, 4
        %v1886 = vrot.slane %v1427, 4
        %v1888 = vsel %vm1429, %v1885, 0
        %v1891 = vsel %vm1429, %v1886, 0
        %1893 = vmatprep.subr.bf16.mxu0 0
        %1894 = vmatpush1.bf16.xpose.msra.mxu0 %v1891
        %1895 = vmatprep.subr.bf16.mxu0 0
        %1896 = vmatpush1.bf16.xpose.msra.mxu0 0
        %1897 = vmatprep.subr.bf16.mxu0 0
        %1898 = vmatpush1.bf16.xpose.msra.mxu0 0
        %1899 = vmatprep.subr.bf16.mxu0 0
        %1900 = vmatpush1.bf16.xpose.msra.mxu0 0
        %1901 = vmatprep.subr.bf16.mxu0 0
        %1902 = vmatpush1.bf16.xpose.msra.mxu0 0
        %1903 = vmatprep.subr.bf16.mxu0 0
        %1904 = vmatpush1.bf16.xpose.msra.mxu0 0
        %1905 = vmatprep.subr.bf16.mxu0 0
        %1906 = vmatpush1.bf16.xpose.msra.mxu0 0
        %1907 = vmatprep.subr.bf16.mxu0 0
        %1908 = vmatpush1.bf16.xpose.msra.mxu0 0
        %1909 = vmatprep.subr.bf16.mxu0 0
        %1910 = vmatpush1.bf16.xpose.msra.mxu0 0
        %1911 = vmatprep.subr.bf16.mxu0 0
        %1912 = vmatpush1.bf16.xpose.msra.mxu0 0
        %1913 = vmatprep.subr.bf16.mxu0 0
        %1914 = vmatpush1.bf16.xpose.msra.mxu0 0
        %1915 = vmatprep.subr.bf16.mxu0 0
        %1916 = vmatpush1.bf16.xpose.msra.mxu0 0
        %1917 = vmatprep.subr.bf16.mxu0 0
        %1918 = vmatpush1.bf16.xpose.msra.mxu0 0
        %1919 = vmatprep.subr.bf16.mxu0 0
        %1920 = vmatpush1.bf16.xpose.msra.mxu0 0
        %1921 = vmatprep.subr.bf16.mxu0 0
        %1922 = vmatpush1.bf16.xpose.msra.mxu0 0
        %1923 = vmatprep.subr.bf16.mxu0 0
        %1924 = vmatpush1.bf16.xpose.msra.mxu0 0
        %1925 = vmatprep.mubr.bf16.mxu0 0
        %1926 = vmatmul.mubr.bf16.gmra.mrb[0].mxu0 %v1888
        %v1927 = vpop.f32.mrb[0].mxu0
        %v1928 = vadd.f32 0.0, %v1927
        %v1929 = vpop.f32.mrb[0].mxu0
        %v1930 = vpop.f32.mrb[0].mxu0
        %v1931 = vpop.f32.mrb[0].mxu0
        %1932 = vdwg.mxu0
        %v1933 = vsel %vm1429, %v1928, -inf
        %1934 = vmax.xlane.f32.xlu0 %v1933
        %v1935 = vpop.xlane.xlu0 %1934
        %v1936 = vsub.f32 %v1928, %v1935
        %v1937 = vmul.f32 %v1936, 1.442695
        %v1938 = vpow.pop %v1937
        %v1939 = vsel %vm1429, %v1938, 0.0
        %1940 = vadd.xlane.f32.xlu0 %v1939
        %v1941 = vpop.xlane.xlu0 %1940
        %v1942 = vrcp.pop %v1941
        %v1943 = vmul.f32 %v1938, %v1942
        %v1944 = vpack.c.bf16 %v1943, %v1943
        %v1945 = vrot.slane %v1428, 4
        %v1947 = vsel %vm1429, %v1944, 0
        %v1950 = vsel %vm1491, %v1945, 0
        %1952 = vmatprep.subr.bf16.mxu0 0
        %1953 = vmatpush1.bf16.msra.mxu0 %v1950
        %1954 = vmatprep.subr.bf16.mxu0 0
        %1955 = vmatpush1.bf16.msra.mxu0 0
        %1956 = vmatprep.subr.bf16.mxu0 0
        %1957 = vmatpush1.bf16.msra.mxu0 0
        %1958 = vmatprep.subr.bf16.mxu0 0
        %1959 = vmatpush1.bf16.msra.mxu0 0
        %1960 = vmatprep.subr.bf16.mxu0 0
        %1961 = vmatpush1.bf16.msra.mxu0 0
        %1962 = vmatprep.subr.bf16.mxu0 0
        %1963 = vmatpush1.bf16.msra.mxu0 0
        %1964 = vmatprep.subr.bf16.mxu0 0
        %1965 = vmatpush1.bf16.msra.mxu0 0
        %1966 = vmatprep.subr.bf16.mxu0 0
        %1967 = vmatpush1.bf16.msra.mxu0 0
        %1968 = vmatprep.subr.bf16.mxu0 0
        %1969 = vmatpush1.bf16.msra.mxu0 0
        %1970 = vmatprep.subr.bf16.mxu0 0
        %1971 = vmatpush1.bf16.msra.mxu0 0
        %1972 = vmatprep.subr.bf16.mxu0 0
        %1973 = vmatpush1.bf16.msra.mxu0 0
        %1974 = vmatprep.subr.bf16.mxu0 0
        %1975 = vmatpush1.bf16.msra.mxu0 0
        %1976 = vmatprep.subr.bf16.mxu0 0
        %1977 = vmatpush1.bf16.msra.mxu0 0
        %1978 = vmatprep.subr.bf16.mxu0 0
        %1979 = vmatpush1.bf16.msra.mxu0 0
        %1980 = vmatprep.subr.bf16.mxu0 0
        %1981 = vmatpush1.bf16.msra.mxu0 0
        %1982 = vmatprep.subr.bf16.mxu0 0
        %1983 = vmatpush1.bf16.msra.mxu0 0
        %1984 = vmatprep.mubr.bf16.mxu0 0
        %1985 = vmatmul.mubr.bf16.gmra.mrb[0].mxu0 %v1947
        %v1986 = vpop.f32.mrb[0].mxu0
        %v1987 = vadd.f32 0.0, %v1986
        %v1988 = vpop.f32.mrb[0].mxu0
        %v1989 = vpop.f32.mrb[0].mxu0
        %v1990 = vpop.f32.mrb[0].mxu0
        %1991 = vdwg.mxu0
        %1992 = vrot.lane.b32.xlu0 %v1885, 120
        %v1993 = vpop.permute.xlu0 %1992
        %1994 = vrot.lane.b32.xlu0 %v1886, 120
        %v1995 = vpop.permute.xlu0 %1994
        %v1997 = vsel %vm1429, %v1993, 0
        %v2000 = vsel %vm1429, %v1995, 0
        %2002 = vmatprep.subr.bf16.mxu0 0
        %2003 = vmatpush1.bf16.xpose.msra.mxu0 %v2000
        %2004 = vmatprep.subr.bf16.mxu0 0
        %2005 = vmatpush1.bf16.xpose.msra.mxu0 0
        %2006 = vmatprep.subr.bf16.mxu0 0
        %2007 = vmatpush1.bf16.xpose.msra.mxu0 0
        %2008 = vmatprep.subr.bf16.mxu0 0
        %2009 = vmatpush1.bf16.xpose.msra.mxu0 0
        %2010 = vmatprep.subr.bf16.mxu0 0
        %2011 = vmatpush1.bf16.xpose.msra.mxu0 0
        %2012 = vmatprep.subr.bf16.mxu0 0
        %2013 = vmatpush1.bf16.xpose.msra.mxu0 0
        %2014 = vmatprep.subr.bf16.mxu0 0
        %2015 = vmatpush1.bf16.xpose.msra.mxu0 0
        %2016 = vmatprep.subr.bf16.mxu0 0
        %2017 = vmatpush1.bf16.xpose.msra.mxu0 0
        %2018 = vmatprep.subr.bf16.mxu0 0
        %2019 = vmatpush1.bf16.xpose.msra.mxu0 0
        %2020 = vmatprep.subr.bf16.mxu0 0
        %2021 = vmatpush1.bf16.xpose.msra.mxu0 0
        %2022 = vmatprep.subr.bf16.mxu0 0
        %2023 = vmatpush1.bf16.xpose.msra.mxu0 0
        %2024 = vmatprep.subr.bf16.mxu0 0
        %2025 = vmatpush1.bf16.xpose.msra.mxu0 0
        %2026 = vmatprep.subr.bf16.mxu0 0
        %2027 = vmatpush1.bf16.xpose.msra.mxu0 0
        %2028 = vmatprep.subr.bf16.mxu0 0
        %2029 = vmatpush1.bf16.xpose.msra.mxu0 0
        %2030 = vmatprep.subr.bf16.mxu0 0
        %2031 = vmatpush1.bf16.xpose.msra.mxu0 0
        %2032 = vmatprep.subr.bf16.mxu0 0
        %2033 = vmatpush1.bf16.xpose.msra.mxu0 0
        %2034 = vmatprep.mubr.bf16.mxu0 0
        %2035 = vmatmul.mubr.bf16.gmra.mrb[0].mxu0 %v1997
        %v2036 = vpop.f32.mrb[0].mxu0
        %v2037 = vadd.f32 0.0, %v2036
        %v2038 = vpop.f32.mrb[0].mxu0
        %v2039 = vpop.f32.mrb[0].mxu0
        %v2040 = vpop.f32.mrb[0].mxu0
        %2041 = vdwg.mxu0
        %v2042 = vsel %vm1429, %v2037, -inf
        %2043 = vmax.xlane.f32.xlu0 %v2042
        %v2044 = vpop.xlane.xlu0 %2043
        %v2045 = vsub.f32 %v2037, %v2044
        %v2046 = vmul.f32 %v2045, 1.442695
        %v2047 = vpow.pop %v2046
        %v2048 = vsel %vm1429, %v2047, 0.0
        %2049 = vadd.xlane.f32.xlu0 %v2048
        %v2050 = vpop.xlane.xlu0 %2049
        %v2051 = vrcp.pop %v2050
        %v2052 = vmul.f32 %v2047, %v2051
        %v2053 = vpack.c.bf16 %v2052, %v2052
        %2054 = vrot.lane.b32.xlu0 %v1945, 120
        %v2055 = vpop.permute.xlu0 %2054
        %v2057 = vsel %vm1429, %v2053, 0
        %v2060 = vsel %vm1491, %v2055, 0
        %2062 = vmatprep.subr.bf16.mxu0 0
        %2063 = vmatpush1.bf16.msra.mxu0 %v2060
        %2064 = vmatprep.subr.bf16.mxu0 0
        %2065 = vmatpush1.bf16.msra.mxu0 0
        %2066 = vmatprep.subr.bf16.mxu0 0
        %2067 = vmatpush1.bf16.msra.mxu0 0
        %2068 = vmatprep.subr.bf16.mxu0 0
        %2069 = vmatpush1.bf16.msra.mxu0 0
        %2070 = vmatprep.subr.bf16.mxu0 0
        %2071 = vmatpush1.bf16.msra.mxu0 0
        %2072 = vmatprep.subr.bf16.mxu0 0
        %2073 = vmatpush1.bf16.msra.mxu0 0
        %2074 = vmatprep.subr.bf16.mxu0 0
        %2075 = vmatpush1.bf16.msra.mxu0 0
        %2076 = vmatprep.subr.bf16.mxu0 0
        %2077 = vmatpush1.bf16.msra.mxu0 0
        %2078 = vmatprep.subr.bf16.mxu0 0
        %2079 = vmatpush1.bf16.msra.mxu0 0
        %2080 = vmatprep.subr.bf16.mxu0 0
        %2081 = vmatpush1.bf16.msra.mxu0 0
        %2082 = vmatprep.subr.bf16.mxu0 0
        %2083 = vmatpush1.bf16.msra.mxu0 0
        %2084 = vmatprep.subr.bf16.mxu0 0
        %2085 = vmatpush1.bf16.msra.mxu0 0
        %2086 = vmatprep.subr.bf16.mxu0 0
        %2087 = vmatpush1.bf16.msra.mxu0 0
        %2088 = vmatprep.subr.bf16.mxu0 0
        %2089 = vmatpush1.bf16.msra.mxu0 0
        %2090 = vmatprep.subr.bf16.mxu0 0
        %2091 = vmatpush1.bf16.msra.mxu0 0
        %2092 = vmatprep.subr.bf16.mxu0 0
        %2093 = vmatpush1.bf16.msra.mxu0 0
        %2094 = vmatprep.mubr.bf16.mxu0 0
        %2095 = vmatmul.mubr.bf16.gmra.mrb[0].mxu0 %v2057
        %v2096 = vpop.f32.mrb[0].mxu0
        %v2097 = vadd.f32 0.0, %v2096
        %v2098 = vpop.f32.mrb[0].mxu0
        %v2099 = vpop.f32.mrb[0].mxu0
        %v2100 = vpop.f32.mrb[0].mxu0
        %2101 = vdwg.mxu0
        %2102 = vrot.lane.b32.xlu0 %v1885, 112
        %v2103 = vpop.permute.xlu0 %2102
        %2104 = vrot.lane.b32.xlu0 %v1886, 112
        %v2105 = vpop.permute.xlu0 %2104
        %v2107 = vsel %vm1429, %v2103, 0
        %v2110 = vsel %vm1429, %v2105, 0
        %2112 = vmatprep.subr.bf16.mxu0 0
        %2113 = vmatpush1.bf16.xpose.msra.mxu0 %v2110
        %2114 = vmatprep.subr.bf16.mxu0 0
        %2115 = vmatpush1.bf16.xpose.msra.mxu0 0
        %2116 = vmatprep.subr.bf16.mxu0 0
        %2117 = vmatpush1.bf16.xpose.msra.mxu0 0
        %2118 = vmatprep.subr.bf16.mxu0 0
        %2119 = vmatpush1.bf16.xpose.msra.mxu0 0
        %2120 = vmatprep.subr.bf16.mxu0 0
        %2121 = vmatpush1.bf16.xpose.msra.mxu0 0
        %2122 = vmatprep.subr.bf16.mxu0 0
        %2123 = vmatpush1.bf16.xpose.msra.mxu0 0
        %2124 = vmatprep.subr.bf16.mxu0 0
        %2125 = vmatpush1.bf16.xpose.msra.mxu0 0
        %2126 = vmatprep.subr.bf16.mxu0 0
        %2127 = vmatpush1.bf16.xpose.msra.mxu0 0
        %2128 = vmatprep.subr.bf16.mxu0 0
        %2129 = vmatpush1.bf16.xpose.msra.mxu0 0
        %2130 = vmatprep.subr.bf16.mxu0 0
        %2131 = vmatpush1.bf16.xpose.msra.mxu0 0
        %2132 = vmatprep.subr.bf16.mxu0 0
        %2133 = vmatpush1.bf16.xpose.msra.mxu0 0
        %2134 = vmatprep.subr.bf16.mxu0 0
        %2135 = vmatpush1.bf16.xpose.msra.mxu0 0
        %2136 = vmatprep.subr.bf16.mxu0 0
        %2137 = vmatpush1.bf16.xpose.msra.mxu0 0
        %2138 = vmatprep.subr.bf16.mxu0 0
        %2139 = vmatpush1.bf16.xpose.msra.mxu0 0
        %2140 = vmatprep.subr.bf16.mxu0 0
        %2141 = vmatpush1.bf16.xpose.msra.mxu0 0
        %2142 = vmatprep.subr.bf16.mxu0 0
        %2143 = vmatpush1.bf16.xpose.msra.mxu0 0
        %2144 = vmatprep.mubr.bf16.mxu0 0
        %2145 = vmatmul.mubr.bf16.gmra.mrb[0].mxu0 %v2107
        %v2146 = vpop.f32.mrb[0].mxu0
        %v2147 = vadd.f32 0.0, %v2146
        %v2148 = vpop.f32.mrb[0].mxu0
        %v2149 = vpop.f32.mrb[0].mxu0
        %v2150 = vpop.f32.mrb[0].mxu0
        %2151 = vdwg.mxu0
        %v2152 = vsel %vm1429, %v2147, -inf
        %2153 = vmax.xlane.f32.xlu0 %v2152
        %v2154 = vpop.xlane.xlu0 %2153
        %v2155 = vsub.f32 %v2147, %v2154
        %v2156 = vmul.f32 %v2155, 1.442695
        %v2157 = vpow.pop %v2156
        %v2158 = vsel %vm1429, %v2157, 0.0
        %2159 = vadd.xlane.f32.xlu0 %v2158
        %v2160 = vpop.xlane.xlu0 %2159
        %v2161 = vrcp.pop %v2160
        %v2162 = vmul.f32 %v2157, %v2161
        %v2163 = vpack.c.bf16 %v2162, %v2162
        %2164 = vrot.lane.b32.xlu0 %v1945, 112
        %v2165 = vpop.permute.xlu0 %2164
        %v2167 = vsel %vm1429, %v2163, 0
        %v2170 = vsel %vm1491, %v2165, 0
        %2172 = vmatprep.subr.bf16.mxu0 0
        %2173 = vmatpush1.bf16.msra.mxu0 %v2170
        %2174 = vmatprep.subr.bf16.mxu0 0
        %2175 = vmatpush1.bf16.msra.mxu0 0
        %2176 = vmatprep.subr.bf16.mxu0 0
        %2177 = vmatpush1.bf16.msra.mxu0 0
        %2178 = vmatprep.subr.bf16.mxu0 0
        %2179 = vmatpush1.bf16.msra.mxu0 0
        %2180 = vmatprep.subr.bf16.mxu0 0
        %2181 = vmatpush1.bf16.msra.mxu0 0
        %2182 = vmatprep.subr.bf16.mxu0 0
        %2183 = vmatpush1.bf16.msra.mxu0 0
        %2184 = vmatprep.subr.bf16.mxu0 0
        %2185 = vmatpush1.bf16.msra.mxu0 0
        %2186 = vmatprep.subr.bf16.mxu0 0
        %2187 = vmatpush1.bf16.msra.mxu0 0
        %2188 = vmatprep.subr.bf16.mxu0 0
        %2189 = vmatpush1.bf16.msra.mxu0 0
        %2190 = vmatprep.subr.bf16.mxu0 0
        %2191 = vmatpush1.bf16.msra.mxu0 0
        %2192 = vmatprep.subr.bf16.mxu0 0
        %2193 = vmatpush1.bf16.msra.mxu0 0
        %2194 = vmatprep.subr.bf16.mxu0 0
        %2195 = vmatpush1.bf16.msra.mxu0 0
        %2196 = vmatprep.subr.bf16.mxu0 0
        %2197 = vmatpush1.bf16.msra.mxu0 0
        %2198 = vmatprep.subr.bf16.mxu0 0
        %2199 = vmatpush1.bf16.msra.mxu0 0
        %2200 = vmatprep.subr.bf16.mxu0 0
        %2201 = vmatpush1.bf16.msra.mxu0 0
        %2202 = vmatprep.subr.bf16.mxu0 0
        %2203 = vmatpush1.bf16.msra.mxu0 0
        %2204 = vmatprep.mubr.bf16.mxu0 0
        %2205 = vmatmul.mubr.bf16.gmra.mrb[0].mxu0 %v2167
        %v2206 = vpop.f32.mrb[0].mxu0
        %v2207 = vadd.f32 0.0, %v2206
        %v2208 = vpop.f32.mrb[0].mxu0
        %v2209 = vpop.f32.mrb[0].mxu0
        %v2210 = vpop.f32.mrb[0].mxu0
        %2211 = vdwg.mxu0
        %2212 = vrot.lane.b32.xlu0 %v1885, 104
        %v2213 = vpop.permute.xlu0 %2212
        %2214 = vrot.lane.b32.xlu0 %v1886, 104
        %v2215 = vpop.permute.xlu0 %2214
        %v2217 = vsel %vm1429, %v2213, 0
        %v2220 = vsel %vm1429, %v2215, 0
        %2222 = vmatprep.subr.bf16.mxu0 0
        %2223 = vmatpush1.bf16.xpose.msra.mxu0 %v2220
        %2224 = vmatprep.subr.bf16.mxu0 0
        %2225 = vmatpush1.bf16.xpose.msra.mxu0 0
        %2226 = vmatprep.subr.bf16.mxu0 0
        %2227 = vmatpush1.bf16.xpose.msra.mxu0 0
        %2228 = vmatprep.subr.bf16.mxu0 0
        %2229 = vmatpush1.bf16.xpose.msra.mxu0 0
        %2230 = vmatprep.subr.bf16.mxu0 0
        %2231 = vmatpush1.bf16.xpose.msra.mxu0 0
        %2232 = vmatprep.subr.bf16.mxu0 0
        %2233 = vmatpush1.bf16.xpose.msra.mxu0 0
        %2234 = vmatprep.subr.bf16.mxu0 0
        %2235 = vmatpush1.bf16.xpose.msra.mxu0 0
        %2236 = vmatprep.subr.bf16.mxu0 0
        %2237 = vmatpush1.bf16.xpose.msra.mxu0 0
        %2238 = vmatprep.subr.bf16.mxu0 0
        %2239 = vmatpush1.bf16.xpose.msra.mxu0 0
        %2240 = vmatprep.subr.bf16.mxu0 0
        %2241 = vmatpush1.bf16.xpose.msra.mxu0 0
        %2242 = vmatprep.subr.bf16.mxu0 0
        %2243 = vmatpush1.bf16.xpose.msra.mxu0 0
        %2244 = vmatprep.subr.bf16.mxu0 0
        %2245 = vmatpush1.bf16.xpose.msra.mxu0 0
        %2246 = vmatprep.subr.bf16.mxu0 0
        %2247 = vmatpush1.bf16.xpose.msra.mxu0 0
        %2248 = vmatprep.subr.bf16.mxu0 0
        %2249 = vmatpush1.bf16.xpose.msra.mxu0 0
        %2250 = vmatprep.subr.bf16.mxu0 0
        %2251 = vmatpush1.bf16.xpose.msra.mxu0 0
        %2252 = vmatprep.subr.bf16.mxu0 0
        %2253 = vmatpush1.bf16.xpose.msra.mxu0 0
        %2254 = vmatprep.mubr.bf16.mxu0 0
        %2255 = vmatmul.mubr.bf16.gmra.mrb[0].mxu0 %v2217
        %v2256 = vpop.f32.mrb[0].mxu0
        %v2257 = vadd.f32 0.0, %v2256
        %v2258 = vpop.f32.mrb[0].mxu0
        %v2259 = vpop.f32.mrb[0].mxu0
        %v2260 = vpop.f32.mrb[0].mxu0
        %2261 = vdwg.mxu0
        %v2262 = vsel %vm1429, %v2257, -inf
        %2263 = vmax.xlane.f32.xlu0 %v2262
        %v2264 = vpop.xlane.xlu0 %2263
        %v2265 = vsub.f32 %v2257, %v2264
        %v2266 = vmul.f32 %v2265, 1.442695
        %v2267 = vpow.pop %v2266
        %v2268 = vsel %vm1429, %v2267, 0.0
        %2269 = vadd.xlane.f32.xlu0 %v2268
        %v2270 = vpop.xlane.xlu0 %2269
        %v2271 = vrcp.pop %v2270
        %v2272 = vmul.f32 %v2267, %v2271
        %v2273 = vpack.c.bf16 %v2272, %v2272
        %2274 = vrot.lane.b32.xlu0 %v1945, 104
        %v2275 = vpop.permute.xlu0 %2274
        %v2277 = vsel %vm1429, %v2273, 0
        %v2280 = vsel %vm1491, %v2275, 0
        %2282 = vmatprep.subr.bf16.mxu0 0
        %2283 = vmatpush1.bf16.msra.mxu0 %v2280
        %2284 = vmatprep.subr.bf16.mxu0 0
        %2285 = vmatpush1.bf16.msra.mxu0 0
        %2286 = vmatprep.subr.bf16.mxu0 0
        %2287 = vmatpush1.bf16.msra.mxu0 0
        %2288 = vmatprep.subr.bf16.mxu0 0
        %2289 = vmatpush1.bf16.msra.mxu0 0
        %2290 = vmatprep.subr.bf16.mxu0 0
        %2291 = vmatpush1.bf16.msra.mxu0 0
        %2292 = vmatprep.subr.bf16.mxu0 0
        %2293 = vmatpush1.bf16.msra.mxu0 0
        %2294 = vmatprep.subr.bf16.mxu0 0
        %2295 = vmatpush1.bf16.msra.mxu0 0
        %2296 = vmatprep.subr.bf16.mxu0 0
        %2297 = vmatpush1.bf16.msra.mxu0 0
        %2298 = vmatprep.subr.bf16.mxu0 0
        %2299 = vmatpush1.bf16.msra.mxu0 0
        %2300 = vmatprep.subr.bf16.mxu0 0
        %2301 = vmatpush1.bf16.msra.mxu0 0
        %2302 = vmatprep.subr.bf16.mxu0 0
        %2303 = vmatpush1.bf16.msra.mxu0 0
        %2304 = vmatprep.subr.bf16.mxu0 0
        %2305 = vmatpush1.bf16.msra.mxu0 0
        %2306 = vmatprep.subr.bf16.mxu0 0
        %2307 = vmatpush1.bf16.msra.mxu0 0
        %2308 = vmatprep.subr.bf16.mxu0 0
        %2309 = vmatpush1.bf16.msra.mxu0 0
        %2310 = vmatprep.subr.bf16.mxu0 0
        %2311 = vmatpush1.bf16.msra.mxu0 0
        %2312 = vmatprep.subr.bf16.mxu0 0
        %2313 = vmatpush1.bf16.msra.mxu0 0
        %2314 = vmatprep.mubr.bf16.mxu0 0
        %2315 = vmatmul.mubr.bf16.gmra.mrb[0].mxu0 %v2277
        %v2316 = vpop.f32.mrb[0].mxu0
        %v2317 = vadd.f32 0.0, %v2316
        %v2318 = vpop.f32.mrb[0].mxu0
        %v2319 = vpop.f32.mrb[0].mxu0
        %v2320 = vpop.f32.mrb[0].mxu0
        %2321 = vdwg.mxu0
        %2323 = vrot.lane.b32.xlu0 %v2097, 8
        %v2324 = vpop.permute.xlu0 %2323
        %2327 = vrot.lane.b32.xlu0 %v2207, 16
        %v2328 = vpop.permute.xlu0 %2327
        %2331 = vrot.lane.b32.xlu0 %v2317, 24
        %v2332 = vpop.permute.xlu0 %2331
        %v2334 = vsel %vm1429, %v1987, %v2324
        %v2335 = vsel %vm1881, %v2334, %v2328
        %v2336 = vsel %vm1883, %v2335, %v2332
        %v2337 = vld [vmem:[%s1002] sm:$0xf]
        %v2338 = vld [vmem:[%s1002 + $0x4] sm:$0xf]
        %v2339 = vld [vmem:[%s1002 + $0x8] sm:$0xf]
        %v2340 = vld [vmem:[%s1002 + $0xc] sm:$0xf]
        %v2341 = vpack.c.bf16 %v2336, %v1884
        %v2342 = vld [vmem:[%s1010] sm:$0x1]
        %v2344 = vlaneseq
        %v2345 = vshrl.u32 %v2344, 7
        %v2346 = vsub.s32 0, %v2345
        %v2347 = vrot.slane %v2342, %v2346
        %v2353 = vunpack.c.l.b16 %v2337
        %v2354 = vunpack.c.l.b16 %v2338
        %v2355 = vunpack.c.l.b16 %v2339
        %v2356 = vunpack.c.l.b16 %v2340
        %v2357 = vpack.c.b16 %v2354, %v2353
        %v2358 = vpack.c.b16 %v2356, %v2355
        %v2362 = vsel %vm1253, %v2341, 0
        %2364 = vmatprep.subr.bf16.mxu0 0
        %2365 = vmatpush1.bf16.msra.mxu0 %v2357
        %2366 = vmatprep.subr.bf16.mxu0 0
        %2367 = vmatpush1.bf16.msra.mxu0 %v2358
        %2368 = vmatprep.subr.bf16.mxu0 0
        %2369 = vmatpush1.bf16.msra.mxu0 0
        %2370 = vmatprep.subr.bf16.mxu0 0
        %2371 = vmatpush1.bf16.msra.mxu0 0
        %2372 = vmatprep.subr.bf16.mxu0 0
        %2373 = vmatpush1.bf16.msra.mxu0 0
        %2374 = vmatprep.subr.bf16.mxu0 0
        %2375 = vmatpush1.bf16.msra.mxu0 0
        %2376 = vmatprep.subr.bf16.mxu0 0
        %2377 = vmatpush1.bf16.msra.mxu0 0
        %2378 = vmatprep.subr.bf16.mxu0 0
        %2379 = vmatpush1.bf16.msra.mxu0 0
        %2380 = vmatprep.subr.bf16.mxu0 0
        %2381 = vmatpush1.bf16.msra.mxu0 0
        %2382 = vmatprep.subr.bf16.mxu0 0
        %2383 = vmatpush1.bf16.msra.mxu0 0
        %2384 = vmatprep.subr.bf16.mxu0 0
        %2385 = vmatpush1.bf16.msra.mxu0 0
        %2386 = vmatprep.subr.bf16.mxu0 0
        %2387 = vmatpush1.bf16.msra.mxu0 0
        %2388 = vmatprep.subr.bf16.mxu0 0
        %2389 = vmatpush1.bf16.msra.mxu0 0
        %2390 = vmatprep.subr.bf16.mxu0 0
        %2391 = vmatpush1.bf16.msra.mxu0 0
        %2392 = vmatprep.subr.bf16.mxu0 0
        %2393 = vmatpush1.bf16.msra.mxu0 0
        %2394 = vmatprep.subr.bf16.mxu0 0
        %2395 = vmatpush1.bf16.msra.mxu0 0
        %2396 = vmatprep.mubr.bf16.mxu0 0
        %2397 = vmatmul.mubr.bf16.gmra.mrb[0].mxu0 %v2362
        %v2398 = vpop.f32.mrb[0].mxu0
        %v2399 = vadd.f32 %v2347, %v2398
        %v2400 = vpop.f32.mrb[0].mxu0
        %v2401 = vpop.f32.mrb[0].mxu0
        %v2402 = vadd.f32 %v2347, %v2401
        %v2403 = vpop.f32.mrb[0].mxu0
        %2404 = vdwg.mxu0
        %v2405 = vld [vmem:[%s1018] sm:$0x1]
        %v2406 = vld [vmem:[%s1026] sm:$0x1]
        %v2407 = vadd.f32 %v2399, %v1227
        %v2408 = vadd.f32 %v2402, %v1228
        %v2409 = vsel %vm1253, %v2407, 0.0
        %2410 = vadd.xlane.f32.xlu0 %v2409
        %v2411 = vpop.xlane.xlu0 %2410
        %v2412 = vsel %vm1253, %v2408, 0.0
        %2413 = vadd.xlane.f32.xlu0 %v2412
        %v2414 = vpop.xlane.xlu0 %2413
        %v2415 = vrcp.pop 32.0
        %v2416 = vmul.f32 %v2411, %v2415
        %v2417 = vmul.f32 %v2414, %v2415
        %v2418 = vsub.f32 %v2407, %v2416
        %v2419 = vsub.f32 %v2408, %v2417
        %v2420 = vmul.f32 %v2418, %v2418
        %v2421 = vmul.f32 %v2419, %v2419
        %v2422 = vsel %vm1253, %v2420, 0.0
        %2423 = vadd.xlane.f32.xlu0 %v2422
        %v2424 = vpop.xlane.xlu0 %2423
        %v2425 = vsel %vm1253, %v2421, 0.0
        %2426 = vadd.xlane.f32.xlu0 %v2425
        %v2427 = vpop.xlane.xlu0 %2426
        %v2428 = vmul.f32 %v2424, %v2415
        %v2429 = vmul.f32 %v2427, %v2415
        %v2430 = vadd.f32 %v2428, 1e-05
        %v2431 = vadd.f32 %v2429, 1e-05
        %v2432 = vrsqrt.pop %v2430
        %v2433 = vrsqrt.pop %v2431
        %v2434 = vmul.f32 %v2418, %v2432
        %v2435 = vmul.f32 %v2419, %v2433
        %v2437 = vlaneseq
        %v2438 = vshrl.u32 %v2437, 7
        %v2439 = vsub.s32 0, %v2438
        %v2440 = vrot.slane %v2405, %v2439
        %v2442 = vmul.f32 %v2434, %v2440
        %v2443 = vmul.f32 %v2435, %v2440
        %v2445 = vlaneseq
        %v2446 = vshrl.u32 %v2445, 7
        %v2447 = vsub.s32 0, %v2446
        %v2448 = vrot.slane %v2406, %v2447
        %v2450 = vadd.f32 %v2442, %v2448
        %v2451 = vadd.f32 %v2443, %v2448
        %v2452 = vld [vmem:[%s1035] sm:$0xf]
        %v2453 = vld [vmem:[%s1035 + $0x4] sm:$0xf]
        %v2454 = vld [vmem:[%s1035 + $0x8] sm:$0xf]
        %v2455 = vld [vmem:[%s1035 + $0xc] sm:$0xf]
        %v2456 = vpack.c.bf16 %v2451, %v2450
        %v2457 = vld [vmem:[%s1043] sm:$0x1]
        %v2459 = vlaneseq
        %v2460 = vshrl.u32 %v2459, 7
        %v2461 = vsub.s32 0, %v2460
        %v2462 = vrot.slane %v2457, %v2461
        %v2468 = vunpack.c.l.b16 %v2452
        %v2469 = vunpack.c.l.b16 %v2453
        %v2470 = vunpack.c.l.b16 %v2454
        %v2471 = vunpack.c.l.b16 %v2455
        %v2472 = vpack.c.b16 %v2469, %v2468
        %v2473 = vpack.c.b16 %v2471, %v2470
        %v2477 = vsel %vm1253, %v2456, 0
        %2479 = vmatprep.subr.bf16.mxu0 0
        %2480 = vmatpush1.bf16.msra.mxu0 %v2472
        %2481 = vmatprep.subr.bf16.mxu0 0
        %2482 = vmatpush1.bf16.msra.mxu0 %v2473
        %2483 = vmatprep.subr.bf16.mxu0 0
        %2484 = vmatpush1.bf16.msra.mxu0 0
        %2485 = vmatprep.subr.bf16.mxu0 0
        %2486 = vmatpush1.bf16.msra.mxu0 0
        %2487 = vmatprep.subr.bf16.mxu0 0
        %2488 = vmatpush1.bf16.msra.mxu0 0
        %2489 = vmatprep.subr.bf16.mxu0 0
        %2490 = vmatpush1.bf16.msra.mxu0 0
        %2491 = vmatprep.subr.bf16.mxu0 0
        %2492 = vmatpush1.bf16.msra.mxu0 0
        %2493 = vmatprep.subr.bf16.mxu0 0
        %2494 = vmatpush1.bf16.msra.mxu0 0
        %2495 = vmatprep.subr.bf16.mxu0 0
        %2496 = vmatpush1.bf16.msra.mxu0 0
        %2497 = vmatprep.subr.bf16.mxu0 0
        %2498 = vmatpush1.bf16.msra.mxu0 0
        %2499 = vmatprep.subr.bf16.mxu0 0
        %2500 = vmatpush1.bf16.msra.mxu0 0
        %2501 = vmatprep.subr.bf16.mxu0 0
        %2502 = vmatpush1.bf16.msra.mxu0 0
        %2503 = vmatprep.subr.bf16.mxu0 0
        %2504 = vmatpush1.bf16.msra.mxu0 0
        %2505 = vmatprep.subr.bf16.mxu0 0
        %2506 = vmatpush1.bf16.msra.mxu0 0
        %2507 = vmatprep.subr.bf16.mxu0 0
        %2508 = vmatpush1.bf16.msra.mxu0 0
        %2509 = vmatprep.subr.bf16.mxu0 0
        %2510 = vmatpush1.bf16.msra.mxu0 0
        %2511 = vmatprep.mubr.bf16.mxu0 0
        %2512 = vmatmul.mubr.bf16.gmra.mrb[0].mxu0 %v2477
        %v2513 = vpop.f32.mrb[0].mxu0
        %v2514 = vadd.f32 %v2462, %v2513
        %v2515 = vpop.f32.mrb[0].mxu0
        %v2516 = vpop.f32.mrb[0].mxu0
        %v2517 = vadd.f32 %v2462, %v2516
        %v2518 = vpop.f32.mrb[0].mxu0
        %2519 = vdwg.mxu0
        %v2520 = vmax.f32 %v2514, 0.0
        %v2521 = vmax.f32 %v2517, 0.0
        %v2522 = vld [vmem:[%s1052] sm:$0xf]
        %v2523 = vld [vmem:[%s1052 + $0x4] sm:$0xf]
        %v2524 = vld [vmem:[%s1052 + $0x8] sm:$0xf]
        %v2525 = vld [vmem:[%s1052 + $0xc] sm:$0xf]
        %v2526 = vld [vmem:[%s1052 + $0x10] sm:$0xf]
        %v2527 = vld [vmem:[%s1052 + $0x14] sm:$0xf]
        %v2528 = vld [vmem:[%s1052 + $0x18] sm:$0xf]
        %v2529 = vld [vmem:[%s1052 + $0x1c] sm:$0xf]
        %v2530 = vpack.c.bf16 %v2521, %v2520
        %v2531 = vld [vmem:[%s1060] sm:$0x1]
        %v2533 = vlaneseq
        %v2534 = vshrl.u32 %v2533, 7
        %v2535 = vsub.s32 0, %v2534
        %v2536 = vrot.slane %v2531, %v2535
        %v2546 = vunpack.c.l.b16 %v2522
        %v2547 = vunpack.c.l.b16 %v2523
        %v2548 = vunpack.c.l.b16 %v2524
        %v2549 = vunpack.c.l.b16 %v2525
        %v2550 = vunpack.c.l.b16 %v2526
        %v2551 = vunpack.c.l.b16 %v2527
        %v2552 = vunpack.c.l.b16 %v2528
        %v2553 = vunpack.c.l.b16 %v2529
        %v2554 = vpack.c.b16 %v2547, %v2546
        %v2555 = vpack.c.b16 %v2549, %v2548
        %v2556 = vpack.c.b16 %v2551, %v2550
        %v2557 = vpack.c.b16 %v2553, %v2552
        %vm2562 = vcmask 523264
        %v2564 = vsel %vm2562, %v2530, 0
        %2566 = vmatprep.subr.bf16.mxu0 0
        %2567 = vmatpush1.bf16.msra.mxu0 %v2554
        %2568 = vmatprep.subr.bf16.mxu0 0
        %2569 = vmatpush1.bf16.msra.mxu0 %v2555
        %2570 = vmatprep.subr.bf16.mxu0 0
        %2571 = vmatpush1.bf16.msra.mxu0 %v2556
        %2572 = vmatprep.subr.bf16.mxu0 0
        %2573 = vmatpush1.bf16.msra.mxu0 %v2557
        %2574 = vmatprep.subr.bf16.mxu0 0
        %2575 = vmatpush1.bf16.msra.mxu0 0
        %2576 = vmatprep.subr.bf16.mxu0 0
        %2577 = vmatpush1.bf16.msra.mxu0 0
        %2578 = vmatprep.subr.bf16.mxu0 0
        %2579 = vmatpush1.bf16.msra.mxu0 0
        %2580 = vmatprep.subr.bf16.mxu0 0
        %2581 = vmatpush1.bf16.msra.mxu0 0
        %2582 = vmatprep.subr.bf16.mxu0 0
        %2583 = vmatpush1.bf16.msra.mxu0 0
        %2584 = vmatprep.subr.bf16.mxu0 0
        %2585 = vmatpush1.bf16.msra.mxu0 0
        %2586 = vmatprep.subr.bf16.mxu0 0
        %2587 = vmatpush1.bf16.msra.mxu0 0
        %2588 = vmatprep.subr.bf16.mxu0 0
        %2589 = vmatpush1.bf16.msra.mxu0 0
        %2590 = vmatprep.subr.bf16.mxu0 0
        %2591 = vmatpush1.bf16.msra.mxu0 0
        %2592 = vmatprep.subr.bf16.mxu0 0
        %2593 = vmatpush1.bf16.msra.mxu0 0
        %2594 = vmatprep.subr.bf16.mxu0 0
        %2595 = vmatpush1.bf16.msra.mxu0 0
        %2596 = vmatprep.subr.bf16.mxu0 0
        %2597 = vmatpush1.bf16.msra.mxu0 0
        %2598 = vmatprep.mubr.bf16.mxu0 0
        %2599 = vmatmul.mubr.bf16.gmra.mrb[0].mxu0 %v2564
        %v2600 = vpop.f32.mrb[0].mxu0
        %v2601 = vadd.f32 %v2536, %v2600
        %v2602 = vpop.f32.mrb[0].mxu0
        %v2603 = vpop.f32.mrb[0].mxu0
        %v2604 = vadd.f32 %v2536, %v2603
        %v2605 = vpop.f32.mrb[0].mxu0
        %2606 = vdwg.mxu0
        %v2607 = vld [vmem:[%s1068] sm:$0x1]
        %v2608 = vld [vmem:[%s1076] sm:$0x1]
        %v2609 = vadd.f32 %v2601, %v2450
        %v2610 = vadd.f32 %v2604, %v2451
        %v2611 = vsel %vm1253, %v2609, 0.0
        %2612 = vadd.xlane.f32.xlu0 %v2611
        %v2613 = vpop.xlane.xlu0 %2612
        %v2614 = vsel %vm1253, %v2610, 0.0
        %2615 = vadd.xlane.f32.xlu0 %v2614
        %v2616 = vpop.xlane.xlu0 %2615
        %v2617 = vmul.f32 %v2613, %v2415
        %v2618 = vmul.f32 %v2616, %v2415
        %v2619 = vsub.f32 %v2609, %v2617
        %v2620 = vsub.f32 %v2610, %v2618
        %v2621 = vmul.f32 %v2619, %v2619
        %v2622 = vmul.f32 %v2620, %v2620
        %v2623 = vsel %vm1253, %v2621, 0.0
        %2624 = vadd.xlane.f32.xlu0 %v2623
        %v2625 = vpop.xlane.xlu0 %2624
        %v2626 = vsel %vm1253, %v2622, 0.0
        %2627 = vadd.xlane.f32.xlu0 %v2626
        %v2628 = vpop.xlane.xlu0 %2627
        %v2629 = vmul.f32 %v2625, %v2415
        %v2630 = vmul.f32 %v2628, %v2415
        %v2631 = vadd.f32 %v2629, 1e-05
        %v2632 = vadd.f32 %v2630, 1e-05
        %v2633 = vrsqrt.pop %v2631
        %v2634 = vrsqrt.pop %v2632
        %v2635 = vmul.f32 %v2619, %v2633
        %v2636 = vmul.f32 %v2620, %v2634
        %v2638 = vlaneseq
        %v2639 = vshrl.u32 %v2638, 7
        %v2640 = vsub.s32 0, %v2639
        %v2641 = vrot.slane %v2607, %v2640
        %v2643 = vmul.f32 %v2635, %v2641
        %v2644 = vmul.f32 %v2636, %v2641
        %v2646 = vlaneseq
        %v2647 = vshrl.u32 %v2646, 7
        %v2648 = vsub.s32 0, %v2647
        %v2649 = vrot.slane %v2608, %v2648
        %v2651 = vadd.f32 %v2643, %v2649
        %v2652 = vadd.f32 %v2644, %v2649
        %2653 = vst.msk [vmem:[#allocation33] sm:$0xff] %vm1253, %v2651
        %2654 = vst.msk [vmem:[#allocation33 + $0x8] sm:$0xff] %vm1253, %v2652
        // Predicated region
        $region181: #{dyt_transformer_forward.2} parent=99 // pred_check
          %p2655 = pneg %p572
        $region182: #{dyt_transformer_forward.2} parent=99 // pred_check_branch
          %2657 = sbr.rel (%p2655) target = $region184
        $region183: #{dyt_transformer_forward.2} parent=99 // pred_region
          %s2659 = ssub.s32 256, 256
          %2660 = vsyncadd [#allocation5], %s2659
          %s2661 = sshll.u32 [#allocation33], 4
          %s2662 = int_to_ptr.vmem [resolvable:$true] %s2661
          %2667 = dma.vmem_to_hbm [thread:$0]  %s2662, 256, %s20, [#allocation5], 128, 128, 8
        $region184: #{dyt_transformer_forward.2} parent=99 // pred_fallthru
          _
        // Predicated region
        $region185: #{dyt_transformer_forward.2} parent=99 // pred_check
          %p2668 = pneg %p572
        $region186: #{dyt_transformer_forward.2} parent=99 // pred_check_branch
          %2670 = sbr.rel (%p2668) target = $region188
        $region187: #{dyt_transformer_forward.2} parent=99 // pred_region
          %2671 = dma.done [#allocation5], 256
        $region188: #{dyt_transformer_forward.2} parent=99 // pred_fallthru
          _
      $region100: #{dyt_transformer_forward.2} parent=5 // pred_fallthru
        _
      %p2672 = scmp.le.s32.totalorder 2, %s54
      // Predicated region
      $region189: #{dyt_transformer_forward.2} parent=5 // pred_check
        %p2673 = pneg %p2672
      $region190: #{dyt_transformer_forward.2} parent=5 // pred_check_branch
        %2675 = sbr.rel (%p2673) target = $region192
      $region191: #{dyt_transformer_forward.2} parent=5 // pred_region
        %s2676 = ssub.s32 %s54, 2
      $region192: #{dyt_transformer_forward.2} parent=5 // pred_fallthru
        _
    $region6: #{dyt_transformer_forward.2} parent=1 // loop_footer
      %s58 = sadd.s32 1, %s54
    $region7: #{dyt_transformer_forward.2} parent=1 // loop_footer_branch
      %53 = sbr.rel target = $region3
    $region8: #{dyt_transformer_forward.2} parent=1 // loop_exit
      _
    %2677 = vsyncpa [#allocation4], 1
    %s2678 = scalar_lea.sflag [#allocation4], 1
    %2679 = vsyncpa %s2678, 1
    %2680 = vsyncpa [#allocation7], 1
    %2681 = vsyncpa [#allocation10], 1
    %s2682 = scalar_lea.sflag [#allocation10], 1
    %2683 = vsyncpa %s2682, 1
    %2684 = vsyncpa [#allocation13], 1
    %s2685 = scalar_lea.sflag [#allocation13], 1
    %2686 = vsyncpa %s2685, 1
    %2687 = vsyncpa [#allocation16], 1
    %s2688 = scalar_lea.sflag [#allocation16], 1
    %2689 = vsyncpa %s2688, 1
    %2690 = vsyncpa [#allocation19], 1
    %s2691 = scalar_lea.sflag [#allocation19], 1
    %2692 = vsyncpa %s2691, 1
    %2693 = vsyncpa [#allocation22], 1
    %s2694 = scalar_lea.sflag [#allocation22], 1
    %2695 = vsyncpa %s2694, 1
    %2696 = vsyncpa [#allocation25], 1
    %s2697 = scalar_lea.sflag [#allocation25], 1
    %2698 = vsyncpa %s2697, 1
    %2699 = vsyncpa [#allocation28], 1
    %s2700 = scalar_lea.sflag [#allocation28], 1
    %2701 = vsyncpa %s2700, 1
    %2702 = vsyncpa [#allocation31], 1
    %s2703 = scalar_lea.sflag [#allocation31], 1
    %2704 = vsyncpa %s2703, 1
    %2705 = vsyncpa [#allocation5], 1
    %s2706 = scalar_lea.sflag [#allocation5], 1
    %2707 = vsyncpa %s2706, 1

// kernel: dyt_transformer_forward.3
$region0: #{dyt_transformer_forward.3}
  #allocation0 [shape = 'u32[]', space=smem, size = 0x4, offset = 0x4, fixed_abs, tag = 'smem constant byte address 0x4 - core index']
  #allocation1 [shape = 'u32[144,128]{1,0:T(1,128)}', space=vmem, size = 0x12000, scoped, tag = 'internal scratch']
  #allocation2 [shape = 'f32[1,1]{1,0:T(1,128)S(6)}', space=smem, size = 0x200, scoped, tag = 'scoped memory for dyt_transformer_forward.3']
  %s0 = inlined_call_operand.smem [shape: u32[32], index: -1, kind: input, shape index: {}]
  %s1 = sld [smem:[%s0]]
  %s2 = scalar_lea.smem %s0, 1
  %s3 = sld [smem:[%s2]]
  %s4 = scalar_lea.smem %s0, 2
  %s5 = sld [smem:[%s4]]
  %s6 = scalar_lea.smem %s0, 3
  %s7 = sld [smem:[%s6]]
  %s8 = scalar_lea.smem %s0, 4
  %s9 = sld [smem:[%s8]]
  %s10 = scalar_lea.smem %s0, 5
  %s11 = sld [smem:[%s10]]
  %s12 = scalar_lea.smem %s0, 6
  %s13 = sld [smem:[%s12]]
  %s14 = scalar_lea.smem %s0, 7
  %s15 = sld [smem:[%s14]]
  %s16 = scalar_lea.smem %s0, 8
  %s17 = sld [smem:[%s16]]
  %s18 = scalar_lea.smem %s0, 9
  %s19 = sld [smem:[%s18]]
  %s20 = scalar_lea.smem %s0, 10
  %s21 = sld [smem:[%s20]]
  %s22 = scalar_lea.smem %s0, 11
  %s23 = sld [smem:[%s22]]
  %s24 = scalar_lea.smem %s0, 12
  %s25 = sld [smem:[%s24]]
  %s26 = scalar_lea.smem %s0, 13
  %s27 = sld [smem:[%s26]]
  %s28 = scalar_lea.smem %s0, 14
  %s29 = sld [smem:[%s28]]
  %s30 = scalar_lea.smem %s0, 15
  %s31 = sld [smem:[%s30]]
  %s32 = scalar_lea.smem %s0, 16
  %s33 = sld [smem:[%s32]]
  %s34 = scalar_lea.smem %s0, 17
  %s35 = sld [smem:[%s34]]
  %s36 = scalar_lea.smem %s0, 18
  %s37 = sld [smem:[%s36]]
  %s38 = scalar_lea.smem %s0, 19
  %s39 = sld [smem:[%s38]]
  %s40 = scalar_lea.smem %s0, 20
  %s41 = sld [smem:[%s40]]
  %s42 = scalar_lea.smem %s0, 21
  %s43 = sld [smem:[%s42]]
  %s44 = scalar_lea.smem %s0, 22
  %s45 = sld [smem:[%s44]]
  %s46 = scalar_lea.smem %s0, 23
  %s47 = sld [smem:[%s46]]
  %s48 = scalar_lea.smem %s0, 24
  %s49 = sld [smem:[%s48]]
  %s50 = scalar_lea.smem %s0, 25
  %s51 = sld [smem:[%s50]]
  %s52 = scalar_lea.smem %s0, 26
  %s53 = sld [smem:[%s52]]
  %s54 = scalar_lea.smem %s0, 27
  %s55 = sld [smem:[%s54]]
  %s56 = scalar_lea.smem %s0, 28
  %s57 = sld [smem:[%s56]]
  %s58 = scalar_lea.smem %s0, 29
  %s59 = sld [smem:[%s58]]
  %s60 = scalar_lea.smem %s0, 30
  %s61 = sld [smem:[%s60]]
  %s62 = scalar_lea.smem %s0, 31
  %s63 = sld [smem:[%s62]]
  %s64 = sld [smem:[#allocation0]]
  $region281: #{dyt_transformer_forward.3} parent=0
    _
  %s66 = ssub.s32 1, %s64
  %s67 = scalar_select 0, %s66, %s64
  %68 = sst [smem:[#allocation2]] %s1
  $region1: #{dyt_transformer_forward.3} parent=0
    #allocation3 [shape = 'u8[512]{0}', space=vmem, size = 0x400, scoped, tag = 'input window, operand 1, single buffered']
    #allocation4 [shape = 's32[2]{0}', space=sflag, size = 0x8, scoped, tag = 'scoped memory for dyt_transformer_forward.3']
    #allocation5 [shape = 's32[2]{0}', space=sflag, size = 0x8, scoped, tag = 'scoped memory for dyt_transformer_forward.3']
    #allocation6 [shape = 'u8[512]{0}', space=vmem, size = 0x400, scoped, tag = 'input window, operand 2, single buffered']
    #allocation7 [shape = 's32[1]{0}', space=sflag, size = 0x4, scoped, tag = 'scoped memory for dyt_transformer_forward.3']
    #allocation8 [shape = 'u8[8192]{0}', space=vmem, size = 0x2000, scoped, tag = 'input window, operand 3, single buffered']
    #allocation9 [shape = 'u8[8192]{0}', space=vmem, size = 0x2000, scoped, tag = 'input window, operand 4, single buffered']
    #allocation10 [shape = 's32[1]{0}', space=sflag, size = 0x4, scoped, tag = 'scoped memory for dyt_transformer_forward.3']
    #allocation11 [shape = 'u8[16384]{0}', space=vmem, size = 0x4000, scoped, tag = 'input window, operand 5']
    #allocation12 [shape = 'u8[1024]{0}', space=vmem, size = 0x400, scoped, tag = 'input window, operand 6']
    #allocation13 [shape = 'u8[16384]{0}', space=vmem, size = 0x4000, scoped, tag = 'input window, operand 7']
    #allocation14 [shape = 'u8[1024]{0}', space=vmem, size = 0x400, scoped, tag = 'input window, operand 8']
    #allocation15 [shape = 'u8[16384]{0}', space=vmem, size = 0x4000, scoped, tag = 'input window, operand 9']
    #allocation16 [shape = 'u8[1024]{0}', space=vmem, size = 0x400, scoped, tag = 'input window, operand 10']
    #allocation17 [shape = 'u8[16384]{0}', space=vmem, size = 0x4000, scoped, tag = 'input window, operand 11']
    #allocation18 [shape = 'u8[1024]{0}', space=vmem, size = 0x400, scoped, tag = 'input window, operand 12']
    #allocation19 [shape = 'u8[1024]{0}', space=vmem, size = 0x400, scoped, tag = 'input window, operand 13']
    #allocation20 [shape = 'u8[1024]{0}', space=vmem, size = 0x400, scoped, tag = 'input window, operand 14']
    #allocation21 [shape = 'u8[16384]{0}', space=vmem, size = 0x4000, scoped, tag = 'input window, operand 15']
    #allocation22 [shape = 'u8[1024]{0}', space=vmem, size = 0x400, scoped, tag = 'input window, operand 16']
    #allocation23 [shape = 'u8[16384]{0}', space=vmem, size = 0x4000, scoped, tag = 'input window, operand 17']
    #allocation24 [shape = 'u8[1024]{0}', space=vmem, size = 0x400, scoped, tag = 'input window, operand 18']
    #allocation25 [shape = 'u8[16384]{0}', space=vmem, size = 0x4000, scoped, tag = 'input window, operand 19']
    #allocation26 [shape = 'u8[1024]{0}', space=vmem, size = 0x400, scoped, tag = 'input window, operand 20']
    #allocation27 [shape = 'u8[16384]{0}', space=vmem, size = 0x4000, scoped, tag = 'input window, operand 21']
    #allocation28 [shape = 'u8[1024]{0}', space=vmem, size = 0x400, scoped, tag = 'input window, operand 22']
    #allocation29 [shape = 'u8[1024]{0}', space=vmem, size = 0x400, scoped, tag = 'input window, operand 23']
    #allocation30 [shape = 'u8[1024]{0}', space=vmem, size = 0x400, scoped, tag = 'input window, operand 24']
    #allocation31 [shape = 'u8[16384]{0}', space=vmem, size = 0x4000, scoped, tag = 'input window, operand 25']
    #allocation32 [shape = 'u8[1024]{0}', space=vmem, size = 0x400, scoped, tag = 'input window, operand 26']
    #allocation33 [shape = 'u8[32768]{0}', space=vmem, size = 0x8000, scoped, tag = 'input window, operand 27']
    #allocation34 [shape = 'u8[1024]{0}', space=vmem, size = 0x400, scoped, tag = 'input window, operand 28']
    #allocation35 [shape = 'u8[1024]{0}', space=vmem, size = 0x400, scoped, tag = 'input window, operand 29']
    #allocation36 [shape = 'u8[1024]{0}', space=vmem, size = 0x400, scoped, tag = 'input window, operand 30']
    #allocation37 [shape = 'u8[8192]{0}', space=vmem, size = 0x2000, scoped, tag = 'output window, operand 0, single buffered']
    %69 = vsyncpa [#allocation4], 0
    %70 = vsyncpa [#allocation7], 0
    %71 = vsyncpa [#allocation10], 0
    %72 = vsyncpa [#allocation5], 0
    loop: start=0, step=1, limit=4
    $region2: #{dyt_transformer_forward.3} parent=1 // loop_pre_header
      _
    $region3: #{dyt_transformer_forward.3} parent=1 // loop_header
      %s74 = sphi 0, %s78
      %p75 = scmp.ge.s32.totalorder %s74, 4
      %s82 = sphi 0, %s82
      %s84 = sphi 0, %s82
      %s85 = sphi 0, %s84
      %s99 = sphi 0, %s85
      %s103 = sphi 0, %s103
      %s105 = sphi 0, %s103
      %s106 = sphi 0, %s105
      %s120 = sphi 0, %s106
      %s124 = sphi 0, %s124
      %s126 = sphi 0, %s124
      %s127 = sphi 0, %s126
      %s141 = sphi 0, %s127
      %s145 = sphi 0, %s145
      %s147 = sphi 0, %s145
      %s148 = sphi 0, %s147
      %s162 = sphi 0, %s148
      %s166 = sphi 0, %s166
      %s168 = sphi 0, %s166
      %s169 = sphi 0, %s168
      %s183 = sphi 0, %s169
      %s189 = sphi 0, %s191
      %s192 = sphi 0, %s189
      %s193 = sphi 0, %s192
      %s209 = sphi 0, %s193
      %s215 = sphi 0, %s217
      %s218 = sphi 0, %s215
      %s219 = sphi 0, %s218
      %s235 = sphi 0, %s219
      %s241 = sphi 0, %s243
      %s244 = sphi 0, %s241
      %s245 = sphi 0, %s244
      %s261 = sphi 0, %s245
      %s267 = sphi 0, %s269
      %s270 = sphi 0, %s267
      %s271 = sphi 0, %s270
      %s287 = sphi 0, %s271
      %s293 = sphi 0, %s295
      %s296 = sphi 0, %s293
      %s297 = sphi 0, %s296
      %s313 = sphi 0, %s297
      %s319 = sphi 0, %s321
      %s322 = sphi 0, %s319
      %s323 = sphi 0, %s322
      %s339 = sphi 0, %s323
      %s345 = sphi 0, %s347
      %s348 = sphi 0, %s345
      %s349 = sphi 0, %s348
      %s365 = sphi 0, %s349
      %s371 = sphi 0, %s373
      %s374 = sphi 0, %s371
      %s375 = sphi 0, %s374
      %s391 = sphi 0, %s375
      %s397 = sphi 0, %s399
      %s400 = sphi 0, %s397
      %s401 = sphi 0, %s400
      %s417 = sphi 0, %s401
      %s423 = sphi 0, %s425
      %s426 = sphi 0, %s423
      %s427 = sphi 0, %s426
      %s443 = sphi 0, %s427
      %s449 = sphi 0, %s451
      %s452 = sphi 0, %s449
      %s453 = sphi 0, %s452
      %s469 = sphi 0, %s453
      %s475 = sphi 0, %s477
      %s478 = sphi 0, %s475
      %s479 = sphi 0, %s478
      %s495 = sphi 0, %s479
      %s501 = sphi 0, %s503
      %s504 = sphi 0, %s501
      %s505 = sphi 0, %s504
      %s521 = sphi 0, %s505
      %s527 = sphi 0, %s529
      %s530 = sphi 0, %s527
      %s531 = sphi 0, %s530
      %s547 = sphi 0, %s531
      %s553 = sphi 0, %s555
      %s556 = sphi 0, %s553
      %s557 = sphi 0, %s556
      %s573 = sphi 0, %s557
      %s579 = sphi 0, %s581
      %s582 = sphi 0, %s579
      %s583 = sphi 0, %s582
      %s599 = sphi 0, %s583
      %s605 = sphi 0, %s607
      %s608 = sphi 0, %s605
      %s609 = sphi 0, %s608
      %s625 = sphi 0, %s609
      %s631 = sphi 0, %s633
      %s634 = sphi 0, %s631
      %s635 = sphi 0, %s634
      %s651 = sphi 0, %s635
      %s657 = sphi 0, %s659
      %s660 = sphi 0, %s657
      %s661 = sphi 0, %s660
      %s677 = sphi 0, %s661
      %s683 = sphi 0, %s685
      %s686 = sphi 0, %s683
      %s687 = sphi 0, %s686
      %s703 = sphi 0, %s687
      %s709 = sphi 0, %s711
      %s712 = sphi 0, %s709
      %s713 = sphi 0, %s712
      %s729 = sphi 0, %s713
      %s735 = sphi 0, %s737
      %s738 = sphi 0, %s735
      %s739 = sphi 0, %s738
      %s755 = sphi 0, %s739
      %s761 = sphi 0, %s763
      %s764 = sphi 0, %s761
      %s765 = sphi 0, %s764
      %s781 = sphi 0, %s765
      %s787 = sphi 0, %s789
      %s790 = sphi 0, %s787
      %s791 = sphi 0, %s790
      %s807 = sphi 0, %s791
      %s813 = sphi 0, %s815
      %s816 = sphi 0, %s813
      %s817 = sphi 0, %s816
      %s833 = sphi 0, %s817
      %s839 = sphi 0, %s841
      %s842 = sphi 0, %s839
      %s843 = sphi 0, %s842
      %s859 = sphi 0, %s843
      %s863 = sphi 0, %s863
      %s865 = sphi 0, %s863
      %s866 = sphi 0, %s865
      %s880 = sphi 0, %s866
    $region4: #{dyt_transformer_forward.3} parent=1 // loop_header_branch
      %77 = sbr.rel (%p75) target = $region8
    $region5: #{dyt_transformer_forward.3} parent=1 // loop_body
      %s79 = ssub.s32 %s74, 1
      %s80 = ssub.s32 %s74, 2
      %s81 = sadd.s32 %s74, 1
      %s83 = sadd.s32 %s82, 1
      %p86 = scmp.eq.s32.totalorder %s74, 1
      %p87 = scmp.ne.s32.totalorder %s82, %s84
      %p88 = scmp.eq.s32.totalorder %s74, 0
      %p89 = por %p87, %p88
      %p90 = scmp.ne.s32.totalorder %s82, %s84
      %p91 = scmp.eq.s32.totalorder %s79, 1
      %p92 = por %p90, %p91
      %p93 = scmp.ne.s32.totalorder %s84, %s85
      %p94 = scmp.eq.s32.totalorder %s79, 0
      %p95 = por %p93, %p94
      %p96 = scmp.ne.s32.totalorder %s84, %s85
      %p97 = scmp.eq.s32.totalorder %s80, 1
      %p98 = por %p96, %p97
      %p100 = scmp.ne.s32.totalorder %s85, %s99
      %p101 = scmp.eq.s32.totalorder %s80, 0
      %p102 = por %p100, %p101
      %s104 = sadd.s32 %s103, 1
      %p107 = scmp.eq.s32.totalorder %s74, 1
      %p108 = scmp.ne.s32.totalorder %s103, %s105
      %p109 = scmp.eq.s32.totalorder %s74, 0
      %p110 = por %p108, %p109
      %p111 = scmp.ne.s32.totalorder %s103, %s105
      %p112 = scmp.eq.s32.totalorder %s79, 1
      %p113 = por %p111, %p112
      %p114 = scmp.ne.s32.totalorder %s105, %s106
      %p115 = scmp.eq.s32.totalorder %s79, 0
      %p116 = por %p114, %p115
      %p117 = scmp.ne.s32.totalorder %s105, %s106
      %p118 = scmp.eq.s32.totalorder %s80, 1
      %p119 = por %p117, %p118
      %p121 = scmp.ne.s32.totalorder %s106, %s120
      %p122 = scmp.eq.s32.totalorder %s80, 0
      %p123 = por %p121, %p122
      %s125 = sadd.s32 %s124, 1
      %p128 = scmp.eq.s32.totalorder %s74, 1
      %p129 = scmp.ne.s32.totalorder %s124, %s126
      %p130 = scmp.eq.s32.totalorder %s74, 0
      %p131 = por %p129, %p130
      %p132 = scmp.ne.s32.totalorder %s124, %s126
      %p133 = scmp.eq.s32.totalorder %s79, 1
      %p134 = por %p132, %p133
      %p135 = scmp.ne.s32.totalorder %s126, %s127
      %p136 = scmp.eq.s32.totalorder %s79, 0
      %p137 = por %p135, %p136
      %p138 = scmp.ne.s32.totalorder %s126, %s127
      %p139 = scmp.eq.s32.totalorder %s80, 1
      %p140 = por %p138, %p139
      %p142 = scmp.ne.s32.totalorder %s127, %s141
      %p143 = scmp.eq.s32.totalorder %s80, 0
      %p144 = por %p142, %p143
      %s146 = sadd.s32 %s145, 1
      %p149 = scmp.eq.s32.totalorder %s74, 1
      %p150 = scmp.ne.s32.totalorder %s145, %s147
      %p151 = scmp.eq.s32.totalorder %s74, 0
      %p152 = por %p150, %p151
      %p153 = scmp.ne.s32.totalorder %s145, %s147
      %p154 = scmp.eq.s32.totalorder %s79, 1
      %p155 = por %p153, %p154
      %p156 = scmp.ne.s32.totalorder %s147, %s148
      %p157 = scmp.eq.s32.totalorder %s79, 0
      %p158 = por %p156, %p157
      %p159 = scmp.ne.s32.totalorder %s147, %s148
      %p160 = scmp.eq.s32.totalorder %s80, 1
      %p161 = por %p159, %p160
      %p163 = scmp.ne.s32.totalorder %s148, %s162
      %p164 = scmp.eq.s32.totalorder %s80, 0
      %p165 = por %p163, %p164
      %s167 = sadd.s32 %s166, 1
      %p170 = scmp.eq.s32.totalorder %s74, 1
      %p171 = scmp.ne.s32.totalorder %s166, %s168
      %p172 = scmp.eq.s32.totalorder %s74, 0
      %p173 = por %p171, %p172
      %p174 = scmp.ne.s32.totalorder %s166, %s168
      %p175 = scmp.eq.s32.totalorder %s79, 1
      %p176 = por %p174, %p175
      %p177 = scmp.ne.s32.totalorder %s168, %s169
      %p178 = scmp.eq.s32.totalorder %s79, 0
      %p179 = por %p177, %p178
      %p180 = scmp.ne.s32.totalorder %s168, %s169
      %p181 = scmp.eq.s32.totalorder %s80, 1
      %p182 = por %p180, %p181
      %p184 = scmp.ne.s32.totalorder %s169, %s183
      %p185 = scmp.eq.s32.totalorder %s80, 0
      %p186 = por %p184, %p185
      %s187 = ssub.s32 %s74, %s81
      %p188 = scmp.eq.s32.totalorder %s187, 0
      %s190 = sadd.s32 %s189, 1
      %s191 = scalar_select %p188, %s189, %s190
      %p194 = pneg %p188
      %p195 = scmp.eq.s32.totalorder %s74, 1
      %p196 = por %p194, %p195
      %p197 = scmp.ne.s32.totalorder %s189, %s192
      %p198 = scmp.eq.s32.totalorder %s74, 0
      %p199 = por %p197, %p198
      %p200 = scmp.ne.s32.totalorder %s189, %s192
      %p201 = scmp.eq.s32.totalorder %s79, 1
      %p202 = por %p200, %p201
      %p203 = scmp.ne.s32.totalorder %s192, %s193
      %p204 = scmp.eq.s32.totalorder %s79, 0
      %p205 = por %p203, %p204
      %p206 = scmp.ne.s32.totalorder %s192, %s193
      %p207 = scmp.eq.s32.totalorder %s80, 1
      %p208 = por %p206, %p207
      %p210 = scmp.ne.s32.totalorder %s193, %s209
      %p211 = scmp.eq.s32.totalorder %s80, 0
      %p212 = por %p210, %p211
      %s213 = ssub.s32 %s74, %s81
      %p214 = scmp.eq.s32.totalorder %s213, 0
      %s216 = sadd.s32 %s215, 1
      %s217 = scalar_select %p214, %s215, %s216
      %p220 = pneg %p214
      %p221 = scmp.eq.s32.totalorder %s74, 1
      %p222 = por %p220, %p221
      %p223 = scmp.ne.s32.totalorder %s215, %s218
      %p224 = scmp.eq.s32.totalorder %s74, 0
      %p225 = por %p223, %p224
      %p226 = scmp.ne.s32.totalorder %s215, %s218
      %p227 = scmp.eq.s32.totalorder %s79, 1
      %p228 = por %p226, %p227
      %p229 = scmp.ne.s32.totalorder %s218, %s219
      %p230 = scmp.eq.s32.totalorder %s79, 0
      %p231 = por %p229, %p230
      %p232 = scmp.ne.s32.totalorder %s218, %s219
      %p233 = scmp.eq.s32.totalorder %s80, 1
      %p234 = por %p232, %p233
      %p236 = scmp.ne.s32.totalorder %s219, %s235
      %p237 = scmp.eq.s32.totalorder %s80, 0
      %p238 = por %p236, %p237
      %s239 = ssub.s32 %s74, %s81
      %p240 = scmp.eq.s32.totalorder %s239, 0
      %s242 = sadd.s32 %s241, 1
      %s243 = scalar_select %p240, %s241, %s242
      %p246 = pneg %p240
      %p247 = scmp.eq.s32.totalorder %s74, 1
      %p248 = por %p246, %p247
      %p249 = scmp.ne.s32.totalorder %s241, %s244
      %p250 = scmp.eq.s32.totalorder %s74, 0
      %p251 = por %p249, %p250
      %p252 = scmp.ne.s32.totalorder %s241, %s244
      %p253 = scmp.eq.s32.totalorder %s79, 1
      %p254 = por %p252, %p253
      %p255 = scmp.ne.s32.totalorder %s244, %s245
      %p256 = scmp.eq.s32.totalorder %s79, 0
      %p257 = por %p255, %p256
      %p258 = scmp.ne.s32.totalorder %s244, %s245
      %p259 = scmp.eq.s32.totalorder %s80, 1
      %p260 = por %p258, %p259
      %p262 = scmp.ne.s32.totalorder %s245, %s261
      %p263 = scmp.eq.s32.totalorder %s80, 0
      %p264 = por %p262, %p263
      %s265 = ssub.s32 %s74, %s81
      %p266 = scmp.eq.s32.totalorder %s265, 0
      %s268 = sadd.s32 %s267, 1
      %s269 = scalar_select %p266, %s267, %s268
      %p272 = pneg %p266
      %p273 = scmp.eq.s32.totalorder %s74, 1
      %p274 = por %p272, %p273
      %p275 = scmp.ne.s32.totalorder %s267, %s270
      %p276 = scmp.eq.s32.totalorder %s74, 0
      %p277 = por %p275, %p276
      %p278 = scmp.ne.s32.totalorder %s267, %s270
      %p279 = scmp.eq.s32.totalorder %s79, 1
      %p280 = por %p278, %p279
      %p281 = scmp.ne.s32.totalorder %s270, %s271
      %p282 = scmp.eq.s32.totalorder %s79, 0
      %p283 = por %p281, %p282
      %p284 = scmp.ne.s32.totalorder %s270, %s271
      %p285 = scmp.eq.s32.totalorder %s80, 1
      %p286 = por %p284, %p285
      %p288 = scmp.ne.s32.totalorder %s271, %s287
      %p289 = scmp.eq.s32.totalorder %s80, 0
      %p290 = por %p288, %p289
      %s291 = ssub.s32 %s74, %s81
      %p292 = scmp.eq.s32.totalorder %s291, 0
      %s294 = sadd.s32 %s293, 1
      %s295 = scalar_select %p292, %s293, %s294
      %p298 = pneg %p292
      %p299 = scmp.eq.s32.totalorder %s74, 1
      %p300 = por %p298, %p299
      %p301 = scmp.ne.s32.totalorder %s293, %s296
      %p302 = scmp.eq.s32.totalorder %s74, 0
      %p303 = por %p301, %p302
      %p304 = scmp.ne.s32.totalorder %s293, %s296
      %p305 = scmp.eq.s32.totalorder %s79, 1
      %p306 = por %p304, %p305
      %p307 = scmp.ne.s32.totalorder %s296, %s297
      %p308 = scmp.eq.s32.totalorder %s79, 0
      %p309 = por %p307, %p308
      %p310 = scmp.ne.s32.totalorder %s296, %s297
      %p311 = scmp.eq.s32.totalorder %s80, 1
      %p312 = por %p310, %p311
      %p314 = scmp.ne.s32.totalorder %s297, %s313
      %p315 = scmp.eq.s32.totalorder %s80, 0
      %p316 = por %p314, %p315
      %s317 = ssub.s32 %s74, %s81
      %p318 = scmp.eq.s32.totalorder %s317, 0
      %s320 = sadd.s32 %s319, 1
      %s321 = scalar_select %p318, %s319, %s320
      %p324 = pneg %p318
      %p325 = scmp.eq.s32.totalorder %s74, 1
      %p326 = por %p324, %p325
      %p327 = scmp.ne.s32.totalorder %s319, %s322
      %p328 = scmp.eq.s32.totalorder %s74, 0
      %p329 = por %p327, %p328
      %p330 = scmp.ne.s32.totalorder %s319, %s322
      %p331 = scmp.eq.s32.totalorder %s79, 1
      %p332 = por %p330, %p331
      %p333 = scmp.ne.s32.totalorder %s322, %s323
      %p334 = scmp.eq.s32.totalorder %s79, 0
      %p335 = por %p333, %p334
      %p336 = scmp.ne.s32.totalorder %s322, %s323
      %p337 = scmp.eq.s32.totalorder %s80, 1
      %p338 = por %p336, %p337
      %p340 = scmp.ne.s32.totalorder %s323, %s339
      %p341 = scmp.eq.s32.totalorder %s80, 0
      %p342 = por %p340, %p341
      %s343 = ssub.s32 %s74, %s81
      %p344 = scmp.eq.s32.totalorder %s343, 0
      %s346 = sadd.s32 %s345, 1
      %s347 = scalar_select %p344, %s345, %s346
      %p350 = pneg %p344
      %p351 = scmp.eq.s32.totalorder %s74, 1
      %p352 = por %p350, %p351
      %p353 = scmp.ne.s32.totalorder %s345, %s348
      %p354 = scmp.eq.s32.totalorder %s74, 0
      %p355 = por %p353, %p354
      %p356 = scmp.ne.s32.totalorder %s345, %s348
      %p357 = scmp.eq.s32.totalorder %s79, 1
      %p358 = por %p356, %p357
      %p359 = scmp.ne.s32.totalorder %s348, %s349
      %p360 = scmp.eq.s32.totalorder %s79, 0
      %p361 = por %p359, %p360
      %p362 = scmp.ne.s32.totalorder %s348, %s349
      %p363 = scmp.eq.s32.totalorder %s80, 1
      %p364 = por %p362, %p363
      %p366 = scmp.ne.s32.totalorder %s349, %s365
      %p367 = scmp.eq.s32.totalorder %s80, 0
      %p368 = por %p366, %p367
      %s369 = ssub.s32 %s74, %s81
      %p370 = scmp.eq.s32.totalorder %s369, 0
      %s372 = sadd.s32 %s371, 1
      %s373 = scalar_select %p370, %s371, %s372
      %p376 = pneg %p370
      %p377 = scmp.eq.s32.totalorder %s74, 1
      %p378 = por %p376, %p377
      %p379 = scmp.ne.s32.totalorder %s371, %s374
      %p380 = scmp.eq.s32.totalorder %s74, 0
      %p381 = por %p379, %p380
      %p382 = scmp.ne.s32.totalorder %s371, %s374
      %p383 = scmp.eq.s32.totalorder %s79, 1
      %p384 = por %p382, %p383
      %p385 = scmp.ne.s32.totalorder %s374, %s375
      %p386 = scmp.eq.s32.totalorder %s79, 0
      %p387 = por %p385, %p386
      %p388 = scmp.ne.s32.totalorder %s374, %s375
      %p389 = scmp.eq.s32.totalorder %s80, 1
      %p390 = por %p388, %p389
      %p392 = scmp.ne.s32.totalorder %s375, %s391
      %p393 = scmp.eq.s32.totalorder %s80, 0
      %p394 = por %p392, %p393
      %s395 = ssub.s32 %s74, %s81
      %p396 = scmp.eq.s32.totalorder %s395, 0
      %s398 = sadd.s32 %s397, 1
      %s399 = scalar_select %p396, %s397, %s398
      %p402 = pneg %p396
      %p403 = scmp.eq.s32.totalorder %s74, 1
      %p404 = por %p402, %p403
      %p405 = scmp.ne.s32.totalorder %s397, %s400
      %p406 = scmp.eq.s32.totalorder %s74, 0
      %p407 = por %p405, %p406
      %p408 = scmp.ne.s32.totalorder %s397, %s400
      %p409 = scmp.eq.s32.totalorder %s79, 1
      %p410 = por %p408, %p409
      %p411 = scmp.ne.s32.totalorder %s400, %s401
      %p412 = scmp.eq.s32.totalorder %s79, 0
      %p413 = por %p411, %p412
      %p414 = scmp.ne.s32.totalorder %s400, %s401
      %p415 = scmp.eq.s32.totalorder %s80, 1
      %p416 = por %p414, %p415
      %p418 = scmp.ne.s32.totalorder %s401, %s417
      %p419 = scmp.eq.s32.totalorder %s80, 0
      %p420 = por %p418, %p419
      %s421 = ssub.s32 %s74, %s81
      %p422 = scmp.eq.s32.totalorder %s421, 0
      %s424 = sadd.s32 %s423, 1
      %s425 = scalar_select %p422, %s423, %s424
      %p428 = pneg %p422
      %p429 = scmp.eq.s32.totalorder %s74, 1
      %p430 = por %p428, %p429
      %p431 = scmp.ne.s32.totalorder %s423, %s426
      %p432 = scmp.eq.s32.totalorder %s74, 0
      %p433 = por %p431, %p432
      %p434 = scmp.ne.s32.totalorder %s423, %s426
      %p435 = scmp.eq.s32.totalorder %s79, 1
      %p436 = por %p434, %p435
      %p437 = scmp.ne.s32.totalorder %s426, %s427
      %p438 = scmp.eq.s32.totalorder %s79, 0
      %p439 = por %p437, %p438
      %p440 = scmp.ne.s32.totalorder %s426, %s427
      %p441 = scmp.eq.s32.totalorder %s80, 1
      %p442 = por %p440, %p441
      %p444 = scmp.ne.s32.totalorder %s427, %s443
      %p445 = scmp.eq.s32.totalorder %s80, 0
      %p446 = por %p444, %p445
      %s447 = ssub.s32 %s74, %s81
      %p448 = scmp.eq.s32.totalorder %s447, 0
      %s450 = sadd.s32 %s449, 1
      %s451 = scalar_select %p448, %s449, %s450
      %p454 = pneg %p448
      %p455 = scmp.eq.s32.totalorder %s74, 1
      %p456 = por %p454, %p455
      %p457 = scmp.ne.s32.totalorder %s449, %s452
      %p458 = scmp.eq.s32.totalorder %s74, 0
      %p459 = por %p457, %p458
      %p460 = scmp.ne.s32.totalorder %s449, %s452
      %p461 = scmp.eq.s32.totalorder %s79, 1
      %p462 = por %p460, %p461
      %p463 = scmp.ne.s32.totalorder %s452, %s453
      %p464 = scmp.eq.s32.totalorder %s79, 0
      %p465 = por %p463, %p464
      %p466 = scmp.ne.s32.totalorder %s452, %s453
      %p467 = scmp.eq.s32.totalorder %s80, 1
      %p468 = por %p466, %p467
      %p470 = scmp.ne.s32.totalorder %s453, %s469
      %p471 = scmp.eq.s32.totalorder %s80, 0
      %p472 = por %p470, %p471
      %s473 = ssub.s32 %s74, %s81
      %p474 = scmp.eq.s32.totalorder %s473, 0
      %s476 = sadd.s32 %s475, 1
      %s477 = scalar_select %p474, %s475, %s476
      %p480 = pneg %p474
      %p481 = scmp.eq.s32.totalorder %s74, 1
      %p482 = por %p480, %p481
      %p483 = scmp.ne.s32.totalorder %s475, %s478
      %p484 = scmp.eq.s32.totalorder %s74, 0
      %p485 = por %p483, %p484
      %p486 = scmp.ne.s32.totalorder %s475, %s478
      %p487 = scmp.eq.s32.totalorder %s79, 1
      %p488 = por %p486, %p487
      %p489 = scmp.ne.s32.totalorder %s478, %s479
      %p490 = scmp.eq.s32.totalorder %s79, 0
      %p491 = por %p489, %p490
      %p492 = scmp.ne.s32.totalorder %s478, %s479
      %p493 = scmp.eq.s32.totalorder %s80, 1
      %p494 = por %p492, %p493
      %p496 = scmp.ne.s32.totalorder %s479, %s495
      %p497 = scmp.eq.s32.totalorder %s80, 0
      %p498 = por %p496, %p497
      %s499 = ssub.s32 %s74, %s81
      %p500 = scmp.eq.s32.totalorder %s499, 0
      %s502 = sadd.s32 %s501, 1
      %s503 = scalar_select %p500, %s501, %s502
      %p506 = pneg %p500
      %p507 = scmp.eq.s32.totalorder %s74, 1
      %p508 = por %p506, %p507
      %p509 = scmp.ne.s32.totalorder %s501, %s504
      %p510 = scmp.eq.s32.totalorder %s74, 0
      %p511 = por %p509, %p510
      %p512 = scmp.ne.s32.totalorder %s501, %s504
      %p513 = scmp.eq.s32.totalorder %s79, 1
      %p514 = por %p512, %p513
      %p515 = scmp.ne.s32.totalorder %s504, %s505
      %p516 = scmp.eq.s32.totalorder %s79, 0
      %p517 = por %p515, %p516
      %p518 = scmp.ne.s32.totalorder %s504, %s505
      %p519 = scmp.eq.s32.totalorder %s80, 1
      %p520 = por %p518, %p519
      %p522 = scmp.ne.s32.totalorder %s505, %s521
      %p523 = scmp.eq.s32.totalorder %s80, 0
      %p524 = por %p522, %p523
      %s525 = ssub.s32 %s74, %s81
      %p526 = scmp.eq.s32.totalorder %s525, 0
      %s528 = sadd.s32 %s527, 1
      %s529 = scalar_select %p526, %s527, %s528
      %p532 = pneg %p526
      %p533 = scmp.eq.s32.totalorder %s74, 1
      %p534 = por %p532, %p533
      %p535 = scmp.ne.s32.totalorder %s527, %s530
      %p536 = scmp.eq.s32.totalorder %s74, 0
      %p537 = por %p535, %p536
      %p538 = scmp.ne.s32.totalorder %s527, %s530
      %p539 = scmp.eq.s32.totalorder %s79, 1
      %p540 = por %p538, %p539
      %p541 = scmp.ne.s32.totalorder %s530, %s531
      %p542 = scmp.eq.s32.totalorder %s79, 0
      %p543 = por %p541, %p542
      %p544 = scmp.ne.s32.totalorder %s530, %s531
      %p545 = scmp.eq.s32.totalorder %s80, 1
      %p546 = por %p544, %p545
      %p548 = scmp.ne.s32.totalorder %s531, %s547
      %p549 = scmp.eq.s32.totalorder %s80, 0
      %p550 = por %p548, %p549
      %s551 = ssub.s32 %s74, %s81
      %p552 = scmp.eq.s32.totalorder %s551, 0
      %s554 = sadd.s32 %s553, 1
      %s555 = scalar_select %p552, %s553, %s554
      %p558 = pneg %p552
      %p559 = scmp.eq.s32.totalorder %s74, 1
      %p560 = por %p558, %p559
      %p561 = scmp.ne.s32.totalorder %s553, %s556
      %p562 = scmp.eq.s32.totalorder %s74, 0
      %p563 = por %p561, %p562
      %p564 = scmp.ne.s32.totalorder %s553, %s556
      %p565 = scmp.eq.s32.totalorder %s79, 1
      %p566 = por %p564, %p565
      %p567 = scmp.ne.s32.totalorder %s556, %s557
      %p568 = scmp.eq.s32.totalorder %s79, 0
      %p569 = por %p567, %p568
      %p570 = scmp.ne.s32.totalorder %s556, %s557
      %p571 = scmp.eq.s32.totalorder %s80, 1
      %p572 = por %p570, %p571
      %p574 = scmp.ne.s32.totalorder %s557, %s573
      %p575 = scmp.eq.s32.totalorder %s80, 0
      %p576 = por %p574, %p575
      %s577 = ssub.s32 %s74, %s81
      %p578 = scmp.eq.s32.totalorder %s577, 0
      %s580 = sadd.s32 %s579, 1
      %s581 = scalar_select %p578, %s579, %s580
      %p584 = pneg %p578
      %p585 = scmp.eq.s32.totalorder %s74, 1
      %p586 = por %p584, %p585
      %p587 = scmp.ne.s32.totalorder %s579, %s582
      %p588 = scmp.eq.s32.totalorder %s74, 0
      %p589 = por %p587, %p588
      %p590 = scmp.ne.s32.totalorder %s579, %s582
      %p591 = scmp.eq.s32.totalorder %s79, 1
      %p592 = por %p590, %p591
      %p593 = scmp.ne.s32.totalorder %s582, %s583
      %p594 = scmp.eq.s32.totalorder %s79, 0
      %p595 = por %p593, %p594
      %p596 = scmp.ne.s32.totalorder %s582, %s583
      %p597 = scmp.eq.s32.totalorder %s80, 1
      %p598 = por %p596, %p597
      %p600 = scmp.ne.s32.totalorder %s583, %s599
      %p601 = scmp.eq.s32.totalorder %s80, 0
      %p602 = por %p600, %p601
      %s603 = ssub.s32 %s74, %s81
      %p604 = scmp.eq.s32.totalorder %s603, 0
      %s606 = sadd.s32 %s605, 1
      %s607 = scalar_select %p604, %s605, %s606
      %p610 = pneg %p604
      %p611 = scmp.eq.s32.totalorder %s74, 1
      %p612 = por %p610, %p611
      %p613 = scmp.ne.s32.totalorder %s605, %s608
      %p614 = scmp.eq.s32.totalorder %s74, 0
      %p615 = por %p613, %p614
      %p616 = scmp.ne.s32.totalorder %s605, %s608
      %p617 = scmp.eq.s32.totalorder %s79, 1
      %p618 = por %p616, %p617
      %p619 = scmp.ne.s32.totalorder %s608, %s609
      %p620 = scmp.eq.s32.totalorder %s79, 0
      %p621 = por %p619, %p620
      %p622 = scmp.ne.s32.totalorder %s608, %s609
      %p623 = scmp.eq.s32.totalorder %s80, 1
      %p624 = por %p622, %p623
      %p626 = scmp.ne.s32.totalorder %s609, %s625
      %p627 = scmp.eq.s32.totalorder %s80, 0
      %p628 = por %p626, %p627
      %s629 = ssub.s32 %s74, %s81
      %p630 = scmp.eq.s32.totalorder %s629, 0
      %s632 = sadd.s32 %s631, 1
      %s633 = scalar_select %p630, %s631, %s632
      %p636 = pneg %p630
      %p637 = scmp.eq.s32.totalorder %s74, 1
      %p638 = por %p636, %p637
      %p639 = scmp.ne.s32.totalorder %s631, %s634
      %p640 = scmp.eq.s32.totalorder %s74, 0
      %p641 = por %p639, %p640
      %p642 = scmp.ne.s32.totalorder %s631, %s634
      %p643 = scmp.eq.s32.totalorder %s79, 1
      %p644 = por %p642, %p643
      %p645 = scmp.ne.s32.totalorder %s634, %s635
      %p646 = scmp.eq.s32.totalorder %s79, 0
      %p647 = por %p645, %p646
      %p648 = scmp.ne.s32.totalorder %s634, %s635
      %p649 = scmp.eq.s32.totalorder %s80, 1
      %p650 = por %p648, %p649
      %p652 = scmp.ne.s32.totalorder %s635, %s651
      %p653 = scmp.eq.s32.totalorder %s80, 0
      %p654 = por %p652, %p653
      %s655 = ssub.s32 %s74, %s81
      %p656 = scmp.eq.s32.totalorder %s655, 0
      %s658 = sadd.s32 %s657, 1
      %s659 = scalar_select %p656, %s657, %s658
      %p662 = pneg %p656
      %p663 = scmp.eq.s32.totalorder %s74, 1
      %p664 = por %p662, %p663
      %p665 = scmp.ne.s32.totalorder %s657, %s660
      %p666 = scmp.eq.s32.totalorder %s74, 0
      %p667 = por %p665, %p666
      %p668 = scmp.ne.s32.totalorder %s657, %s660
      %p669 = scmp.eq.s32.totalorder %s79, 1
      %p670 = por %p668, %p669
      %p671 = scmp.ne.s32.totalorder %s660, %s661
      %p672 = scmp.eq.s32.totalorder %s79, 0
      %p673 = por %p671, %p672
      %p674 = scmp.ne.s32.totalorder %s660, %s661
      %p675 = scmp.eq.s32.totalorder %s80, 1
      %p676 = por %p674, %p675
      %p678 = scmp.ne.s32.totalorder %s661, %s677
      %p679 = scmp.eq.s32.totalorder %s80, 0
      %p680 = por %p678, %p679
      %s681 = ssub.s32 %s74, %s81
      %p682 = scmp.eq.s32.totalorder %s681, 0
      %s684 = sadd.s32 %s683, 1
      %s685 = scalar_select %p682, %s683, %s684
      %p688 = pneg %p682
      %p689 = scmp.eq.s32.totalorder %s74, 1
      %p690 = por %p688, %p689
      %p691 = scmp.ne.s32.totalorder %s683, %s686
      %p692 = scmp.eq.s32.totalorder %s74, 0
      %p693 = por %p691, %p692
      %p694 = scmp.ne.s32.totalorder %s683, %s686
      %p695 = scmp.eq.s32.totalorder %s79, 1
      %p696 = por %p694, %p695
      %p697 = scmp.ne.s32.totalorder %s686, %s687
      %p698 = scmp.eq.s32.totalorder %s79, 0
      %p699 = por %p697, %p698
      %p700 = scmp.ne.s32.totalorder %s686, %s687
      %p701 = scmp.eq.s32.totalorder %s80, 1
      %p702 = por %p700, %p701
      %p704 = scmp.ne.s32.totalorder %s687, %s703
      %p705 = scmp.eq.s32.totalorder %s80, 0
      %p706 = por %p704, %p705
      %s707 = ssub.s32 %s74, %s81
      %p708 = scmp.eq.s32.totalorder %s707, 0
      %s710 = sadd.s32 %s709, 1
      %s711 = scalar_select %p708, %s709, %s710
      %p714 = pneg %p708
      %p715 = scmp.eq.s32.totalorder %s74, 1
      %p716 = por %p714, %p715
      %p717 = scmp.ne.s32.totalorder %s709, %s712
      %p718 = scmp.eq.s32.totalorder %s74, 0
      %p719 = por %p717, %p718
      %p720 = scmp.ne.s32.totalorder %s709, %s712
      %p721 = scmp.eq.s32.totalorder %s79, 1
      %p722 = por %p720, %p721
      %p723 = scmp.ne.s32.totalorder %s712, %s713
      %p724 = scmp.eq.s32.totalorder %s79, 0
      %p725 = por %p723, %p724
      %p726 = scmp.ne.s32.totalorder %s712, %s713
      %p727 = scmp.eq.s32.totalorder %s80, 1
      %p728 = por %p726, %p727
      %p730 = scmp.ne.s32.totalorder %s713, %s729
      %p731 = scmp.eq.s32.totalorder %s80, 0
      %p732 = por %p730, %p731
      %s733 = ssub.s32 %s74, %s81
      %p734 = scmp.eq.s32.totalorder %s733, 0
      %s736 = sadd.s32 %s735, 1
      %s737 = scalar_select %p734, %s735, %s736
      %p740 = pneg %p734
      %p741 = scmp.eq.s32.totalorder %s74, 1
      %p742 = por %p740, %p741
      %p743 = scmp.ne.s32.totalorder %s735, %s738
      %p744 = scmp.eq.s32.totalorder %s74, 0
      %p745 = por %p743, %p744
      %p746 = scmp.ne.s32.totalorder %s735, %s738
      %p747 = scmp.eq.s32.totalorder %s79, 1
      %p748 = por %p746, %p747
      %p749 = scmp.ne.s32.totalorder %s738, %s739
      %p750 = scmp.eq.s32.totalorder %s79, 0
      %p751 = por %p749, %p750
      %p752 = scmp.ne.s32.totalorder %s738, %s739
      %p753 = scmp.eq.s32.totalorder %s80, 1
      %p754 = por %p752, %p753
      %p756 = scmp.ne.s32.totalorder %s739, %s755
      %p757 = scmp.eq.s32.totalorder %s80, 0
      %p758 = por %p756, %p757
      %s759 = ssub.s32 %s74, %s81
      %p760 = scmp.eq.s32.totalorder %s759, 0
      %s762 = sadd.s32 %s761, 1
      %s763 = scalar_select %p760, %s761, %s762
      %p766 = pneg %p760
      %p767 = scmp.eq.s32.totalorder %s74, 1
      %p768 = por %p766, %p767
      %p769 = scmp.ne.s32.totalorder %s761, %s764
      %p770 = scmp.eq.s32.totalorder %s74, 0
      %p771 = por %p769, %p770
      %p772 = scmp.ne.s32.totalorder %s761, %s764
      %p773 = scmp.eq.s32.totalorder %s79, 1
      %p774 = por %p772, %p773
      %p775 = scmp.ne.s32.totalorder %s764, %s765
      %p776 = scmp.eq.s32.totalorder %s79, 0
      %p777 = por %p775, %p776
      %p778 = scmp.ne.s32.totalorder %s764, %s765
      %p779 = scmp.eq.s32.totalorder %s80, 1
      %p780 = por %p778, %p779
      %p782 = scmp.ne.s32.totalorder %s765, %s781
      %p783 = scmp.eq.s32.totalorder %s80, 0
      %p784 = por %p782, %p783
      %s785 = ssub.s32 %s74, %s81
      %p786 = scmp.eq.s32.totalorder %s785, 0
      %s788 = sadd.s32 %s787, 1
      %s789 = scalar_select %p786, %s787, %s788
      %p792 = pneg %p786
      %p793 = scmp.eq.s32.totalorder %s74, 1
      %p794 = por %p792, %p793
      %p795 = scmp.ne.s32.totalorder %s787, %s790
      %p796 = scmp.eq.s32.totalorder %s74, 0
      %p797 = por %p795, %p796
      %p798 = scmp.ne.s32.totalorder %s787, %s790
      %p799 = scmp.eq.s32.totalorder %s79, 1
      %p800 = por %p798, %p799
      %p801 = scmp.ne.s32.totalorder %s790, %s791
      %p802 = scmp.eq.s32.totalorder %s79, 0
      %p803 = por %p801, %p802
      %p804 = scmp.ne.s32.totalorder %s790, %s791
      %p805 = scmp.eq.s32.totalorder %s80, 1
      %p806 = por %p804, %p805
      %p808 = scmp.ne.s32.totalorder %s791, %s807
      %p809 = scmp.eq.s32.totalorder %s80, 0
      %p810 = por %p808, %p809
      %s811 = ssub.s32 %s74, %s81
      %p812 = scmp.eq.s32.totalorder %s811, 0
      %s814 = sadd.s32 %s813, 1
      %s815 = scalar_select %p812, %s813, %s814
      %p818 = pneg %p812
      %p819 = scmp.eq.s32.totalorder %s74, 1
      %p820 = por %p818, %p819
      %p821 = scmp.ne.s32.totalorder %s813, %s816
      %p822 = scmp.eq.s32.totalorder %s74, 0
      %p823 = por %p821, %p822
      %p824 = scmp.ne.s32.totalorder %s813, %s816
      %p825 = scmp.eq.s32.totalorder %s79, 1
      %p826 = por %p824, %p825
      %p827 = scmp.ne.s32.totalorder %s816, %s817
      %p828 = scmp.eq.s32.totalorder %s79, 0
      %p829 = por %p827, %p828
      %p830 = scmp.ne.s32.totalorder %s816, %s817
      %p831 = scmp.eq.s32.totalorder %s80, 1
      %p832 = por %p830, %p831
      %p834 = scmp.ne.s32.totalorder %s817, %s833
      %p835 = scmp.eq.s32.totalorder %s80, 0
      %p836 = por %p834, %p835
      %s837 = ssub.s32 %s74, %s81
      %p838 = scmp.eq.s32.totalorder %s837, 0
      %s840 = sadd.s32 %s839, 1
      %s841 = scalar_select %p838, %s839, %s840
      %p844 = pneg %p838
      %p845 = scmp.eq.s32.totalorder %s74, 1
      %p846 = por %p844, %p845
      %p847 = scmp.ne.s32.totalorder %s839, %s842
      %p848 = scmp.eq.s32.totalorder %s74, 0
      %p849 = por %p847, %p848
      %p850 = scmp.ne.s32.totalorder %s839, %s842
      %p851 = scmp.eq.s32.totalorder %s79, 1
      %p852 = por %p850, %p851
      %p853 = scmp.ne.s32.totalorder %s842, %s843
      %p854 = scmp.eq.s32.totalorder %s79, 0
      %p855 = por %p853, %p854
      %p856 = scmp.ne.s32.totalorder %s842, %s843
      %p857 = scmp.eq.s32.totalorder %s80, 1
      %p858 = por %p856, %p857
      %p860 = scmp.ne.s32.totalorder %s843, %s859
      %p861 = scmp.eq.s32.totalorder %s80, 0
      %p862 = por %p860, %p861
      %s864 = sadd.s32 %s863, 1
      %p867 = scmp.eq.s32.totalorder %s74, 1
      %p868 = scmp.ne.s32.totalorder %s863, %s865
      %p869 = scmp.eq.s32.totalorder %s74, 0
      %p870 = por %p868, %p869
      %p871 = scmp.ne.s32.totalorder %s863, %s865
      %p872 = scmp.eq.s32.totalorder %s79, 1
      %p873 = por %p871, %p872
      %p874 = scmp.ne.s32.totalorder %s865, %s866
      %p875 = scmp.eq.s32.totalorder %s79, 0
      %p876 = por %p874, %p875
      %p877 = scmp.ne.s32.totalorder %s865, %s866
      %p878 = scmp.eq.s32.totalorder %s80, 1
      %p879 = por %p877, %p878
      %p881 = scmp.ne.s32.totalorder %s866, %s880
      %p882 = scmp.eq.s32.totalorder %s80, 0
      %p883 = por %p881, %p882
      %p884 = scmp.le.s32.totalorder 1, %s74
      %p885 = scmp.lt.s32.totalorder %s74, 3
      %p886 = pnand %p884, %p885
      %p887 = pneg %p886
      // Predicated region
      $region9: #{dyt_transformer_forward.3} parent=5 // pred_check
        _
      $region10: #{dyt_transformer_forward.3} parent=5 // pred_check_branch
        %889 = sbr.rel (%p886) target = $region12
      $region11: #{dyt_transformer_forward.3} parent=5 // pred_region
        %s890 = ssub.s32 %s74, 1
        // Predicated region
        $region13: #{dyt_transformer_forward.3} parent=11 // pred_check
          %p891 = pneg %p95
        $region14: #{dyt_transformer_forward.3} parent=11 // pred_check_branch
          %893 = sbr.rel (%p891) target = $region16
        $region15: #{dyt_transformer_forward.3} parent=11 // pred_region
          _
        $region16: #{dyt_transformer_forward.3} parent=11 // pred_fallthru
          _
        // Predicated region
        $region17: #{dyt_transformer_forward.3} parent=11 // pred_check
          %p894 = pneg %p116
        $region18: #{dyt_transformer_forward.3} parent=11 // pred_check_branch
          %896 = sbr.rel (%p894) target = $region20
        $region19: #{dyt_transformer_forward.3} parent=11 // pred_region
          %s898 = ssub.s32 16, 16
          %899 = vsyncadd [#allocation4], %s898
          %s901 = sshll.u32 [#allocation3], 4
          %s902 = int_to_ptr.vmem [resolvable:$true] %s901
          %904 = dma.hbm_to_vmem [thread:$0]  %s3, 16, %s902, [#allocation4]
        $region20: #{dyt_transformer_forward.3} parent=11 // pred_fallthru
          _
        // Predicated region
        $region21: #{dyt_transformer_forward.3} parent=11 // pred_check
          %p905 = pneg %p137
        $region22: #{dyt_transformer_forward.3} parent=11 // pred_check_branch
          %907 = sbr.rel (%p905) target = $region24
        $region23: #{dyt_transformer_forward.3} parent=11 // pred_region
          %s909 = ssub.s32 16, 16
          %910 = vsyncadd [#allocation7], %s909
          %s912 = sshll.u32 [#allocation6], 4
          %s913 = int_to_ptr.vmem [resolvable:$true] %s912
          %915 = dma.hbm_to_vmem [thread:$0]  %s5, 16, %s913, [#allocation7]
        $region24: #{dyt_transformer_forward.3} parent=11 // pred_fallthru
          _
        // Predicated region
        $region25: #{dyt_transformer_forward.3} parent=11 // pred_check
          %p916 = pneg %p158
        $region26: #{dyt_transformer_forward.3} parent=11 // pred_check_branch
          %918 = sbr.rel (%p916) target = $region28
        $region27: #{dyt_transformer_forward.3} parent=11 // pred_region
          %s920 = ssub.s32 256, 256
          %921 = vsyncadd [#allocation7], %s920
          %s922 = sshll.u32 [#allocation8], 4
          %s923 = int_to_ptr.vmem [resolvable:$true] %s922
          %928 = dma.hbm_to_vmem [thread:$0]  %s7, 256, %s923, [#allocation7], 128, 128, 8
        $region28: #{dyt_transformer_forward.3} parent=11 // pred_fallthru
          _
        // Predicated region
        $region29: #{dyt_transformer_forward.3} parent=11 // pred_check
          %p929 = pneg %p179
        $region30: #{dyt_transformer_forward.3} parent=11 // pred_check_branch
          %931 = sbr.rel (%p929) target = $region32
        $region31: #{dyt_transformer_forward.3} parent=11 // pred_region
          %s933 = ssub.s32 256, 256
          %934 = vsyncadd [#allocation10], %s933
          %s935 = sshll.u32 [#allocation9], 4
          %s936 = int_to_ptr.vmem [resolvable:$true] %s935
          %941 = dma.hbm_to_vmem [thread:$0]  %s9, 256, %s936, [#allocation10], 128, 128, 8
        $region32: #{dyt_transformer_forward.3} parent=11 // pred_fallthru
          _
      $region12: #{dyt_transformer_forward.3} parent=5 // pred_fallthru
        _
      %p942 = scmp.lt.s32.totalorder %s74, 2
      // Predicated region
      $region33: #{dyt_transformer_forward.3} parent=5 // pred_check
        %p943 = pneg %p942
      $region34: #{dyt_transformer_forward.3} parent=5 // pred_check_branch
        %945 = sbr.rel (%p943) target = $region36
      $region35: #{dyt_transformer_forward.3} parent=5 // pred_region
        // Predicated region
        $region37: #{dyt_transformer_forward.3} parent=35 // pred_check
          %p946 = pneg %p199
        $region38: #{dyt_transformer_forward.3} parent=35 // pred_check_branch
          %948 = sbr.rel (%p946) target = $region40
        $region39: #{dyt_transformer_forward.3} parent=35 // pred_region
          %s949 = sand.u32 %s74, 1
          %s950 = scalar_lea.sflag [#allocation4], %s949
          %s951 = sand.u32 %s189, 1
          %s952 = smul.addr %s951, 16
          %s953 = scalar_lea.vmem [#allocation11], %s952
          %s955 = ssub.s32 256, 256
          %956 = vsyncadd %s950, %s955
          %s957 = smul.addr %s74, 4
          %s958 = smul.addr %s957, 64
          %s959 = scalar_lea.hbm %s11, %s958
          %s960 = sshll.u32 %s953, 4
          %s961 = int_to_ptr.vmem [resolvable:$true] %s960
          %966 = dma.hbm_to_vmem [thread:$0]  %s959, 256, %s961, %s950, 64, 64, 4
        $region40: #{dyt_transformer_forward.3} parent=35 // pred_fallthru
          _
        // Predicated region
        $region41: #{dyt_transformer_forward.3} parent=35 // pred_check
          %p967 = pneg %p225
        $region42: #{dyt_transformer_forward.3} parent=35 // pred_check_branch
          %969 = sbr.rel (%p967) target = $region44
        $region43: #{dyt_transformer_forward.3} parent=35 // pred_region
          %s970 = sand.u32 %s74, 1
          %s971 = scalar_lea.sflag [#allocation4], %s970
          %s972 = sand.u32 %s215, 1
          %s973 = scalar_lea.vmem [#allocation12], %s972
          %s975 = ssub.s32 16, 16
          %976 = vsyncadd %s971, %s975
          %s977 = smul.addr %s74, 16
          %s978 = scalar_lea.hbm %s13, %s977
          %s980 = sshll.u32 %s973, 4
          %s981 = int_to_ptr.vmem [resolvable:$true] %s980
          %983 = dma.hbm_to_vmem [thread:$0]  %s978, 16, %s981, %s971
        $region44: #{dyt_transformer_forward.3} parent=35 // pred_fallthru
          _
        // Predicated region
        $region45: #{dyt_transformer_forward.3} parent=35 // pred_check
          %p984 = pneg %p251
        $region46: #{dyt_transformer_forward.3} parent=35 // pred_check_branch
          %986 = sbr.rel (%p984) target = $region48
        $region47: #{dyt_transformer_forward.3} parent=35 // pred_region
          %s987 = sand.u32 %s74, 1
          %s988 = scalar_lea.sflag [#allocation4], %s987
          %s989 = sand.u32 %s241, 1
          %s990 = smul.addr %s989, 16
          %s991 = scalar_lea.vmem [#allocation13], %s990
          %s993 = ssub.s32 256, 256
          %994 = vsyncadd %s988, %s993
          %s995 = smul.addr %s74, 4
          %s996 = smul.addr %s995, 64
          %s997 = scalar_lea.hbm %s15, %s996
          %s998 = sshll.u32 %s991, 4
          %s999 = int_to_ptr.vmem [resolvable:$true] %s998
          %1004 = dma.hbm_to_vmem [thread:$0]  %s997, 256, %s999, %s988, 64, 64, 4
        $region48: #{dyt_transformer_forward.3} parent=35 // pred_fallthru
          _
        // Predicated region
        $region49: #{dyt_transformer_forward.3} parent=35 // pred_check
          %p1005 = pneg %p277
        $region50: #{dyt_transformer_forward.3} parent=35 // pred_check_branch
          %1007 = sbr.rel (%p1005) target = $region52
        $region51: #{dyt_transformer_forward.3} parent=35 // pred_region
          %s1008 = sand.u32 %s74, 1
          %s1009 = scalar_lea.sflag [#allocation4], %s1008
          %s1010 = sand.u32 %s267, 1
          %s1011 = scalar_lea.vmem [#allocation14], %s1010
          %s1013 = ssub.s32 16, 16
          %1014 = vsyncadd %s1009, %s1013
          %s1015 = smul.addr %s74, 16
          %s1016 = scalar_lea.hbm %s17, %s1015
          %s1018 = sshll.u32 %s1011, 4
          %s1019 = int_to_ptr.vmem [resolvable:$true] %s1018
          %1021 = dma.hbm_to_vmem [thread:$0]  %s1016, 16, %s1019, %s1009
        $region52: #{dyt_transformer_forward.3} parent=35 // pred_fallthru
          _
        // Predicated region
        $region53: #{dyt_transformer_forward.3} parent=35 // pred_check
          %p1022 = pneg %p303
        $region54: #{dyt_transformer_forward.3} parent=35 // pred_check_branch
          %1024 = sbr.rel (%p1022) target = $region56
        $region55: #{dyt_transformer_forward.3} parent=35 // pred_region
          %s1025 = sand.u32 %s74, 1
          %s1026 = scalar_lea.sflag [#allocation4], %s1025
          %s1027 = sand.u32 %s293, 1
          %s1028 = smul.addr %s1027, 16
          %s1029 = scalar_lea.vmem [#allocation15], %s1028
          %s1031 = ssub.s32 256, 256
          %1032 = vsyncadd %s1026, %s1031
          %s1033 = smul.addr %s74, 4
          %s1034 = smul.addr %s1033, 64
          %s1035 = scalar_lea.hbm %s19, %s1034
          %s1036 = sshll.u32 %s1029, 4
          %s1037 = int_to_ptr.vmem [resolvable:$true] %s1036
          %1042 = dma.hbm_to_vmem [thread:$0]  %s1035, 256, %s1037, %s1026, 64, 64, 4
        $region56: #{dyt_transformer_forward.3} parent=35 // pred_fallthru
          _
        // Predicated region
        $region57: #{dyt_transformer_forward.3} parent=35 // pred_check
          %p1043 = pneg %p329
        $region58: #{dyt_transformer_forward.3} parent=35 // pred_check_branch
          %1045 = sbr.rel (%p1043) target = $region60
        $region59: #{dyt_transformer_forward.3} parent=35 // pred_region
          %s1046 = sand.u32 %s74, 1
          %s1047 = scalar_lea.sflag [#allocation4], %s1046
          %s1048 = sand.u32 %s319, 1
          %s1049 = scalar_lea.vmem [#allocation16], %s1048
          %s1051 = ssub.s32 16, 16
          %1052 = vsyncadd %s1047, %s1051
          %s1053 = smul.addr %s74, 16
          %s1054 = scalar_lea.hbm %s21, %s1053
          %s1056 = sshll.u32 %s1049, 4
          %s1057 = int_to_ptr.vmem [resolvable:$true] %s1056
          %1059 = dma.hbm_to_vmem [thread:$0]  %s1054, 16, %s1057, %s1047
        $region60: #{dyt_transformer_forward.3} parent=35 // pred_fallthru
          _
        // Predicated region
        $region61: #{dyt_transformer_forward.3} parent=35 // pred_check
          %p1060 = pneg %p355
        $region62: #{dyt_transformer_forward.3} parent=35 // pred_check_branch
          %1062 = sbr.rel (%p1060) target = $region64
        $region63: #{dyt_transformer_forward.3} parent=35 // pred_region
          %s1063 = sand.u32 %s74, 1
          %s1064 = scalar_lea.sflag [#allocation4], %s1063
          %s1065 = sand.u32 %s345, 1
          %s1066 = smul.addr %s1065, 16
          %s1067 = scalar_lea.vmem [#allocation17], %s1066
          %s1069 = ssub.s32 256, 256
          %1070 = vsyncadd %s1064, %s1069
          %s1071 = smul.addr %s74, 4
          %s1072 = smul.addr %s1071, 64
          %s1073 = scalar_lea.hbm %s23, %s1072
          %s1074 = sshll.u32 %s1067, 4
          %s1075 = int_to_ptr.vmem [resolvable:$true] %s1074
          %1080 = dma.hbm_to_vmem [thread:$0]  %s1073, 256, %s1075, %s1064, 64, 64, 4
        $region64: #{dyt_transformer_forward.3} parent=35 // pred_fallthru
          _
        // Predicated region
        $region65: #{dyt_transformer_forward.3} parent=35 // pred_check
          %p1081 = pneg %p381
        $region66: #{dyt_transformer_forward.3} parent=35 // pred_check_branch
          %1083 = sbr.rel (%p1081) target = $region68
        $region67: #{dyt_transformer_forward.3} parent=35 // pred_region
          %s1084 = sand.u32 %s74, 1
          %s1085 = scalar_lea.sflag [#allocation4], %s1084
          %s1086 = sand.u32 %s371, 1
          %s1087 = scalar_lea.vmem [#allocation18], %s1086
          %s1089 = ssub.s32 16, 16
          %1090 = vsyncadd %s1085, %s1089
          %s1091 = smul.addr %s74, 16
          %s1092 = scalar_lea.hbm %s25, %s1091
          %s1094 = sshll.u32 %s1087, 4
          %s1095 = int_to_ptr.vmem [resolvable:$true] %s1094
          %1097 = dma.hbm_to_vmem [thread:$0]  %s1092, 16, %s1095, %s1085
        $region68: #{dyt_transformer_forward.3} parent=35 // pred_fallthru
          _
        // Predicated region
        $region69: #{dyt_transformer_forward.3} parent=35 // pred_check
          %p1098 = pneg %p407
        $region70: #{dyt_transformer_forward.3} parent=35 // pred_check_branch
          %1100 = sbr.rel (%p1098) target = $region72
        $region71: #{dyt_transformer_forward.3} parent=35 // pred_region
          %s1101 = sand.u32 %s74, 1
          %s1102 = scalar_lea.sflag [#allocation4], %s1101
          %s1103 = sand.u32 %s397, 1
          %s1104 = scalar_lea.vmem [#allocation19], %s1103
          %s1106 = ssub.s32 16, 16
          %1107 = vsyncadd %s1102, %s1106
          %s1108 = smul.addr %s74, 16
          %s1109 = scalar_lea.hbm %s27, %s1108
          %s1111 = sshll.u32 %s1104, 4
          %s1112 = int_to_ptr.vmem [resolvable:$true] %s1111
          %1114 = dma.hbm_to_vmem [thread:$0]  %s1109, 16, %s1112, %s1102
        $region72: #{dyt_transformer_forward.3} parent=35 // pred_fallthru
          _
        // Predicated region
        $region73: #{dyt_transformer_forward.3} parent=35 // pred_check
          %p1115 = pneg %p433
        $region74: #{dyt_transformer_forward.3} parent=35 // pred_check_branch
          %1117 = sbr.rel (%p1115) target = $region76
        $region75: #{dyt_transformer_forward.3} parent=35 // pred_region
          %s1118 = sand.u32 %s74, 1
          %s1119 = scalar_lea.sflag [#allocation4], %s1118
          %s1120 = sand.u32 %s423, 1
          %s1121 = scalar_lea.vmem [#allocation20], %s1120
          %s1123 = ssub.s32 16, 16
          %1124 = vsyncadd %s1119, %s1123
          %s1125 = smul.addr %s74, 16
          %s1126 = scalar_lea.hbm %s29, %s1125
          %s1128 = sshll.u32 %s1121, 4
          %s1129 = int_to_ptr.vmem [resolvable:$true] %s1128
          %1131 = dma.hbm_to_vmem [thread:$0]  %s1126, 16, %s1129, %s1119
        $region76: #{dyt_transformer_forward.3} parent=35 // pred_fallthru
          _
        // Predicated region
        $region77: #{dyt_transformer_forward.3} parent=35 // pred_check
          %p1132 = pneg %p459
        $region78: #{dyt_transformer_forward.3} parent=35 // pred_check_branch
          %1134 = sbr.rel (%p1132) target = $region80
        $region79: #{dyt_transformer_forward.3} parent=35 // pred_region
          %s1135 = sand.u32 %s74, 1
          %s1136 = scalar_lea.sflag [#allocation4], %s1135
          %s1137 = sand.u32 %s449, 1
          %s1138 = smul.addr %s1137, 16
          %s1139 = scalar_lea.vmem [#allocation21], %s1138
          %s1141 = ssub.s32 256, 256
          %1142 = vsyncadd %s1136, %s1141
          %s1143 = smul.addr %s74, 4
          %s1144 = smul.addr %s1143, 64
          %s1145 = scalar_lea.hbm %s31, %s1144
          %s1146 = sshll.u32 %s1139, 4
          %s1147 = int_to_ptr.vmem [resolvable:$true] %s1146
          %1152 = dma.hbm_to_vmem [thread:$0]  %s1145, 256, %s1147, %s1136, 64, 64, 4
        $region80: #{dyt_transformer_forward.3} parent=35 // pred_fallthru
          _
        // Predicated region
        $region81: #{dyt_transformer_forward.3} parent=35 // pred_check
          %p1153 = pneg %p485
        $region82: #{dyt_transformer_forward.3} parent=35 // pred_check_branch
          %1155 = sbr.rel (%p1153) target = $region84
        $region83: #{dyt_transformer_forward.3} parent=35 // pred_region
          %s1156 = sand.u32 %s74, 1
          %s1157 = scalar_lea.sflag [#allocation4], %s1156
          %s1158 = sand.u32 %s475, 1
          %s1159 = scalar_lea.vmem [#allocation22], %s1158
          %s1161 = ssub.s32 16, 16
          %1162 = vsyncadd %s1157, %s1161
          %s1163 = smul.addr %s74, 16
          %s1164 = scalar_lea.hbm %s33, %s1163
          %s1166 = sshll.u32 %s1159, 4
          %s1167 = int_to_ptr.vmem [resolvable:$true] %s1166
          %1169 = dma.hbm_to_vmem [thread:$0]  %s1164, 16, %s1167, %s1157
        $region84: #{dyt_transformer_forward.3} parent=35 // pred_fallthru
          _
        // Predicated region
        $region85: #{dyt_transformer_forward.3} parent=35 // pred_check
          %p1170 = pneg %p511
        $region86: #{dyt_transformer_forward.3} parent=35 // pred_check_branch
          %1172 = sbr.rel (%p1170) target = $region88
        $region87: #{dyt_transformer_forward.3} parent=35 // pred_region
          %s1173 = sand.u32 %s74, 1
          %s1174 = scalar_lea.sflag [#allocation4], %s1173
          %s1175 = sand.u32 %s501, 1
          %s1176 = smul.addr %s1175, 16
          %s1177 = scalar_lea.vmem [#allocation23], %s1176
          %s1179 = ssub.s32 256, 256
          %1180 = vsyncadd %s1174, %s1179
          %s1181 = smul.addr %s74, 4
          %s1182 = smul.addr %s1181, 64
          %s1183 = scalar_lea.hbm %s35, %s1182
          %s1184 = sshll.u32 %s1177, 4
          %s1185 = int_to_ptr.vmem [resolvable:$true] %s1184
          %1190 = dma.hbm_to_vmem [thread:$0]  %s1183, 256, %s1185, %s1174, 64, 64, 4
        $region88: #{dyt_transformer_forward.3} parent=35 // pred_fallthru
          _
        // Predicated region
        $region89: #{dyt_transformer_forward.3} parent=35 // pred_check
          %p1191 = pneg %p537
        $region90: #{dyt_transformer_forward.3} parent=35 // pred_check_branch
          %1193 = sbr.rel (%p1191) target = $region92
        $region91: #{dyt_transformer_forward.3} parent=35 // pred_region
          %s1194 = sand.u32 %s74, 1
          %s1195 = scalar_lea.sflag [#allocation4], %s1194
          %s1196 = sand.u32 %s527, 1
          %s1197 = scalar_lea.vmem [#allocation24], %s1196
          %s1199 = ssub.s32 16, 16
          %1200 = vsyncadd %s1195, %s1199
          %s1201 = smul.addr %s74, 16
          %s1202 = scalar_lea.hbm %s37, %s1201
          %s1204 = sshll.u32 %s1197, 4
          %s1205 = int_to_ptr.vmem [resolvable:$true] %s1204
          %1207 = dma.hbm_to_vmem [thread:$0]  %s1202, 16, %s1205, %s1195
        $region92: #{dyt_transformer_forward.3} parent=35 // pred_fallthru
          _
        // Predicated region
        $region93: #{dyt_transformer_forward.3} parent=35 // pred_check
          %p1208 = pneg %p563
        $region94: #{dyt_transformer_forward.3} parent=35 // pred_check_branch
          %1210 = sbr.rel (%p1208) target = $region96
        $region95: #{dyt_transformer_forward.3} parent=35 // pred_region
          %s1211 = sand.u32 %s74, 1
          %s1212 = scalar_lea.sflag [#allocation4], %s1211
          %s1213 = sand.u32 %s553, 1
          %s1214 = smul.addr %s1213, 16
          %s1215 = scalar_lea.vmem [#allocation25], %s1214
          %s1217 = ssub.s32 256, 256
          %1218 = vsyncadd %s1212, %s1217
          %s1219 = smul.addr %s74, 4
          %s1220 = smul.addr %s1219, 64
          %s1221 = scalar_lea.hbm %s39, %s1220
          %s1222 = sshll.u32 %s1215, 4
          %s1223 = int_to_ptr.vmem [resolvable:$true] %s1222
          %1228 = dma.hbm_to_vmem [thread:$0]  %s1221, 256, %s1223, %s1212, 64, 64, 4
        $region96: #{dyt_transformer_forward.3} parent=35 // pred_fallthru
          _
        // Predicated region
        $region97: #{dyt_transformer_forward.3} parent=35 // pred_check
          %p1229 = pneg %p589
        $region98: #{dyt_transformer_forward.3} parent=35 // pred_check_branch
          %1231 = sbr.rel (%p1229) target = $region100
        $region99: #{dyt_transformer_forward.3} parent=35 // pred_region
          %s1232 = sand.u32 %s74, 1
          %s1233 = scalar_lea.sflag [#allocation4], %s1232
          %s1234 = sand.u32 %s579, 1
          %s1235 = scalar_lea.vmem [#allocation26], %s1234
          %s1237 = ssub.s32 16, 16
          %1238 = vsyncadd %s1233, %s1237
          %s1239 = smul.addr %s74, 16
          %s1240 = scalar_lea.hbm %s41, %s1239
          %s1242 = sshll.u32 %s1235, 4
          %s1243 = int_to_ptr.vmem [resolvable:$true] %s1242
          %1245 = dma.hbm_to_vmem [thread:$0]  %s1240, 16, %s1243, %s1233
        $region100: #{dyt_transformer_forward.3} parent=35 // pred_fallthru
          _
        // Predicated region
        $region101: #{dyt_transformer_forward.3} parent=35 // pred_check
          %p1246 = pneg %p615
        $region102: #{dyt_transformer_forward.3} parent=35 // pred_check_branch
          %1248 = sbr.rel (%p1246) target = $region104
        $region103: #{dyt_transformer_forward.3} parent=35 // pred_region
          %s1249 = sand.u32 %s74, 1
          %s1250 = scalar_lea.sflag [#allocation4], %s1249
          %s1251 = sand.u32 %s605, 1
          %s1252 = smul.addr %s1251, 16
          %s1253 = scalar_lea.vmem [#allocation27], %s1252
          %s1255 = ssub.s32 256, 256
          %1256 = vsyncadd %s1250, %s1255
          %s1257 = smul.addr %s74, 4
          %s1258 = smul.addr %s1257, 64
          %s1259 = scalar_lea.hbm %s43, %s1258
          %s1260 = sshll.u32 %s1253, 4
          %s1261 = int_to_ptr.vmem [resolvable:$true] %s1260
          %1266 = dma.hbm_to_vmem [thread:$0]  %s1259, 256, %s1261, %s1250, 64, 64, 4
        $region104: #{dyt_transformer_forward.3} parent=35 // pred_fallthru
          _
        // Predicated region
        $region105: #{dyt_transformer_forward.3} parent=35 // pred_check
          %p1267 = pneg %p641
        $region106: #{dyt_transformer_forward.3} parent=35 // pred_check_branch
          %1269 = sbr.rel (%p1267) target = $region108
        $region107: #{dyt_transformer_forward.3} parent=35 // pred_region
          %s1270 = sand.u32 %s74, 1
          %s1271 = scalar_lea.sflag [#allocation4], %s1270
          %s1272 = sand.u32 %s631, 1
          %s1273 = scalar_lea.vmem [#allocation28], %s1272
          %s1275 = ssub.s32 16, 16
          %1276 = vsyncadd %s1271, %s1275
          %s1277 = smul.addr %s74, 16
          %s1278 = scalar_lea.hbm %s45, %s1277
          %s1280 = sshll.u32 %s1273, 4
          %s1281 = int_to_ptr.vmem [resolvable:$true] %s1280
          %1283 = dma.hbm_to_vmem [thread:$0]  %s1278, 16, %s1281, %s1271
        $region108: #{dyt_transformer_forward.3} parent=35 // pred_fallthru
          _
        // Predicated region
        $region109: #{dyt_transformer_forward.3} parent=35 // pred_check
          %p1284 = pneg %p667
        $region110: #{dyt_transformer_forward.3} parent=35 // pred_check_branch
          %1286 = sbr.rel (%p1284) target = $region112
        $region111: #{dyt_transformer_forward.3} parent=35 // pred_region
          %s1287 = sand.u32 %s74, 1
          %s1288 = scalar_lea.sflag [#allocation4], %s1287
          %s1289 = sand.u32 %s657, 1
          %s1290 = scalar_lea.vmem [#allocation29], %s1289
          %s1292 = ssub.s32 16, 16
          %1293 = vsyncadd %s1288, %s1292
          %s1294 = smul.addr %s74, 16
          %s1295 = scalar_lea.hbm %s47, %s1294
          %s1297 = sshll.u32 %s1290, 4
          %s1298 = int_to_ptr.vmem [resolvable:$true] %s1297
          %1300 = dma.hbm_to_vmem [thread:$0]  %s1295, 16, %s1298, %s1288
        $region112: #{dyt_transformer_forward.3} parent=35 // pred_fallthru
          _
        // Predicated region
        $region113: #{dyt_transformer_forward.3} parent=35 // pred_check
          %p1301 = pneg %p693
        $region114: #{dyt_transformer_forward.3} parent=35 // pred_check_branch
          %1303 = sbr.rel (%p1301) target = $region116
        $region115: #{dyt_transformer_forward.3} parent=35 // pred_region
          %s1304 = sand.u32 %s74, 1
          %s1305 = scalar_lea.sflag [#allocation4], %s1304
          %s1306 = sand.u32 %s683, 1
          %s1307 = scalar_lea.vmem [#allocation30], %s1306
          %s1309 = ssub.s32 16, 16
          %1310 = vsyncadd %s1305, %s1309
          %s1311 = smul.addr %s74, 16
          %s1312 = scalar_lea.hbm %s49, %s1311
          %s1314 = sshll.u32 %s1307, 4
          %s1315 = int_to_ptr.vmem [resolvable:$true] %s1314
          %1317 = dma.hbm_to_vmem [thread:$0]  %s1312, 16, %s1315, %s1305
        $region116: #{dyt_transformer_forward.3} parent=35 // pred_fallthru
          _
        // Predicated region
        $region117: #{dyt_transformer_forward.3} parent=35 // pred_check
          %p1318 = pneg %p719
        $region118: #{dyt_transformer_forward.3} parent=35 // pred_check_branch
          %1320 = sbr.rel (%p1318) target = $region120
        $region119: #{dyt_transformer_forward.3} parent=35 // pred_region
          %s1321 = sand.u32 %s74, 1
          %s1322 = scalar_lea.sflag [#allocation4], %s1321
          %s1323 = sand.u32 %s709, 1
          %s1324 = smul.addr %s1323, 16
          %s1325 = scalar_lea.vmem [#allocation31], %s1324
          %s1327 = ssub.s32 256, 256
          %1328 = vsyncadd %s1322, %s1327
          %s1329 = smul.addr %s74, 4
          %s1330 = smul.addr %s1329, 64
          %s1331 = scalar_lea.hbm %s51, %s1330
          %s1332 = sshll.u32 %s1325, 4
          %s1333 = int_to_ptr.vmem [resolvable:$true] %s1332
          %1338 = dma.hbm_to_vmem [thread:$0]  %s1331, 256, %s1333, %s1322, 64, 64, 4
        $region120: #{dyt_transformer_forward.3} parent=35 // pred_fallthru
          _
        // Predicated region
        $region121: #{dyt_transformer_forward.3} parent=35 // pred_check
          %p1339 = pneg %p745
        $region122: #{dyt_transformer_forward.3} parent=35 // pred_check_branch
          %1341 = sbr.rel (%p1339) target = $region124
        $region123: #{dyt_transformer_forward.3} parent=35 // pred_region
          %s1342 = sand.u32 %s74, 1
          %s1343 = scalar_lea.sflag [#allocation4], %s1342
          %s1344 = sand.u32 %s735, 1
          %s1345 = scalar_lea.vmem [#allocation32], %s1344
          %s1347 = ssub.s32 16, 16
          %1348 = vsyncadd %s1343, %s1347
          %s1349 = smul.addr %s74, 16
          %s1350 = scalar_lea.hbm %s53, %s1349
          %s1352 = sshll.u32 %s1345, 4
          %s1353 = int_to_ptr.vmem [resolvable:$true] %s1352
          %1355 = dma.hbm_to_vmem [thread:$0]  %s1350, 16, %s1353, %s1343
        $region124: #{dyt_transformer_forward.3} parent=35 // pred_fallthru
          _
        // Predicated region
        $region125: #{dyt_transformer_forward.3} parent=35 // pred_check
          %p1356 = pneg %p771
        $region126: #{dyt_transformer_forward.3} parent=35 // pred_check_branch
          %1358 = sbr.rel (%p1356) target = $region128
        $region127: #{dyt_transformer_forward.3} parent=35 // pred_region
          %s1359 = sand.u32 %s74, 1
          %s1360 = scalar_lea.sflag [#allocation4], %s1359
          %s1361 = sand.u32 %s761, 1
          %s1362 = smul.addr %s1361, 32
          %s1363 = scalar_lea.vmem [#allocation33], %s1362
          %s1365 = ssub.s32 512, 512
          %1366 = vsyncadd %s1360, %s1365
          %s1367 = smul.addr %s74, 8
          %s1368 = smul.addr %s1367, 64
          %s1369 = scalar_lea.hbm %s55, %s1368
          %s1370 = sshll.u32 %s1363, 4
          %s1371 = int_to_ptr.vmem [resolvable:$true] %s1370
          %1376 = dma.hbm_to_vmem [thread:$0]  %s1369, 512, %s1371, %s1360, 64, 64, 4
        $region128: #{dyt_transformer_forward.3} parent=35 // pred_fallthru
          _
        // Predicated region
        $region129: #{dyt_transformer_forward.3} parent=35 // pred_check
          %p1377 = pneg %p797
        $region130: #{dyt_transformer_forward.3} parent=35 // pred_check_branch
          %1379 = sbr.rel (%p1377) target = $region132
        $region131: #{dyt_transformer_forward.3} parent=35 // pred_region
          %s1380 = sand.u32 %s74, 1
          %s1381 = scalar_lea.sflag [#allocation4], %s1380
          %s1382 = sand.u32 %s787, 1
          %s1383 = scalar_lea.vmem [#allocation34], %s1382
          %s1385 = ssub.s32 16, 16
          %1386 = vsyncadd %s1381, %s1385
          %s1387 = smul.addr %s74, 16
          %s1388 = scalar_lea.hbm %s57, %s1387
          %s1390 = sshll.u32 %s1383, 4
          %s1391 = int_to_ptr.vmem [resolvable:$true] %s1390
          %1393 = dma.hbm_to_vmem [thread:$0]  %s1388, 16, %s1391, %s1381
        $region132: #{dyt_transformer_forward.3} parent=35 // pred_fallthru
          _
        // Predicated region
        $region133: #{dyt_transformer_forward.3} parent=35 // pred_check
          %p1394 = pneg %p823
        $region134: #{dyt_transformer_forward.3} parent=35 // pred_check_branch
          %1396 = sbr.rel (%p1394) target = $region136
        $region135: #{dyt_transformer_forward.3} parent=35 // pred_region
          %s1397 = sand.u32 %s74, 1
          %s1398 = scalar_lea.sflag [#allocation4], %s1397
          %s1399 = sand.u32 %s813, 1
          %s1400 = scalar_lea.vmem [#allocation35], %s1399
          %s1402 = ssub.s32 16, 16
          %1403 = vsyncadd %s1398, %s1402
          %s1404 = smul.addr %s74, 16
          %s1405 = scalar_lea.hbm %s59, %s1404
          %s1407 = sshll.u32 %s1400, 4
          %s1408 = int_to_ptr.vmem [resolvable:$true] %s1407
          %1410 = dma.hbm_to_vmem [thread:$0]  %s1405, 16, %s1408, %s1398
        $region136: #{dyt_transformer_forward.3} parent=35 // pred_fallthru
          _
        // Predicated region
        $region137: #{dyt_transformer_forward.3} parent=35 // pred_check
          %p1411 = pneg %p849
        $region138: #{dyt_transformer_forward.3} parent=35 // pred_check_branch
          %1413 = sbr.rel (%p1411) target = $region140
        $region139: #{dyt_transformer_forward.3} parent=35 // pred_region
          %s1414 = sand.u32 %s74, 1
          %s1415 = scalar_lea.sflag [#allocation4], %s1414
          %s1416 = sand.u32 %s839, 1
          %s1417 = scalar_lea.vmem [#allocation36], %s1416
          %s1419 = ssub.s32 16, 16
          %1420 = vsyncadd %s1415, %s1419
          %s1421 = smul.addr %s74, 16
          %s1422 = scalar_lea.hbm %s61, %s1421
          %s1424 = sshll.u32 %s1417, 4
          %s1425 = int_to_ptr.vmem [resolvable:$true] %s1424
          %1427 = dma.hbm_to_vmem [thread:$0]  %s1422, 16, %s1425, %s1415
        $region140: #{dyt_transformer_forward.3} parent=35 // pred_fallthru
          _
      $region36: #{dyt_transformer_forward.3} parent=5 // pred_fallthru
        _
      %p1428 = scmp.le.s32.totalorder 1, %s74
      %p1429 = scmp.lt.s32.totalorder %s74, 3
      %p1430 = pnand %p1428, %p1429
      %p1431 = pneg %p1430
      // Predicated region
      $region141: #{dyt_transformer_forward.3} parent=5 // pred_check
        _
      $region142: #{dyt_transformer_forward.3} parent=5 // pred_check_branch
        %1433 = sbr.rel (%p1430) target = $region144
      $region143: #{dyt_transformer_forward.3} parent=5 // pred_region
        %s1434 = ssub.s32 %s74, 1
        // Predicated region
        $region145: #{dyt_transformer_forward.3} parent=143 // pred_check
          %p1435 = pneg %p116
        $region146: #{dyt_transformer_forward.3} parent=143 // pred_check_branch
          %1437 = sbr.rel (%p1435) target = $region148
        $region147: #{dyt_transformer_forward.3} parent=143 // pred_region
          %1438 = dma.done [#allocation4], 16
        $region148: #{dyt_transformer_forward.3} parent=143 // pred_fallthru
          _
        // Predicated region
        $region149: #{dyt_transformer_forward.3} parent=143 // pred_check
          %p1439 = pneg %p137
        $region150: #{dyt_transformer_forward.3} parent=143 // pred_check_branch
          %1441 = sbr.rel (%p1439) target = $region152
        $region151: #{dyt_transformer_forward.3} parent=143 // pred_region
          %1442 = dma.done [#allocation7], 16
        $region152: #{dyt_transformer_forward.3} parent=143 // pred_fallthru
          _
        // Predicated region
        $region153: #{dyt_transformer_forward.3} parent=143 // pred_check
          %p1443 = pneg %p158
        $region154: #{dyt_transformer_forward.3} parent=143 // pred_check_branch
          %1445 = sbr.rel (%p1443) target = $region156
        $region155: #{dyt_transformer_forward.3} parent=143 // pred_region
          %1446 = dma.done [#allocation7], 256
        $region156: #{dyt_transformer_forward.3} parent=143 // pred_fallthru
          _
        // Predicated region
        $region157: #{dyt_transformer_forward.3} parent=143 // pred_check
          %p1447 = pneg %p179
        $region158: #{dyt_transformer_forward.3} parent=143 // pred_check_branch
          %1449 = sbr.rel (%p1447) target = $region160
        $region159: #{dyt_transformer_forward.3} parent=143 // pred_region
          %1450 = dma.done [#allocation10], 256
        $region160: #{dyt_transformer_forward.3} parent=143 // pred_fallthru
          _
        %s1451 = sand.u32 %s79, 1
        %s1452 = scalar_lea.sflag [#allocation4], %s1451
        %s1453 = sand.u32 %s192, 1
        %s1454 = smul.addr %s1453, 16
        %s1455 = scalar_lea.vmem [#allocation11], %s1454
        // Predicated region
        $region161: #{dyt_transformer_forward.3} parent=143 // pred_check
          %p1456 = pneg %p205
        $region162: #{dyt_transformer_forward.3} parent=143 // pred_check_branch
          %1458 = sbr.rel (%p1456) target = $region164
        $region163: #{dyt_transformer_forward.3} parent=143 // pred_region
          %1459 = dma.done %s1452, 256
        $region164: #{dyt_transformer_forward.3} parent=143 // pred_fallthru
          _
        %s1460 = sand.u32 %s79, 1
        %s1461 = scalar_lea.sflag [#allocation4], %s1460
        %s1462 = sand.u32 %s218, 1
        %s1463 = scalar_lea.vmem [#allocation12], %s1462
        // Predicated region
        $region165: #{dyt_transformer_forward.3} parent=143 // pred_check
          %p1464 = pneg %p231
        $region166: #{dyt_transformer_forward.3} parent=143 // pred_check_branch
          %1466 = sbr.rel (%p1464) target = $region168
        $region167: #{dyt_transformer_forward.3} parent=143 // pred_region
          %1467 = dma.done %s1461, 16
        $region168: #{dyt_transformer_forward.3} parent=143 // pred_fallthru
          _
        %s1468 = sand.u32 %s79, 1
        %s1469 = scalar_lea.sflag [#allocation4], %s1468
        %s1470 = sand.u32 %s244, 1
        %s1471 = smul.addr %s1470, 16
        %s1472 = scalar_lea.vmem [#allocation13], %s1471
        // Predicated region
        $region169: #{dyt_transformer_forward.3} parent=143 // pred_check
          %p1473 = pneg %p257
        $region170: #{dyt_transformer_forward.3} parent=143 // pred_check_branch
          %1475 = sbr.rel (%p1473) target = $region172
        $region171: #{dyt_transformer_forward.3} parent=143 // pred_region
          %1476 = dma.done %s1469, 256
        $region172: #{dyt_transformer_forward.3} parent=143 // pred_fallthru
          _
        %s1477 = sand.u32 %s79, 1
        %s1478 = scalar_lea.sflag [#allocation4], %s1477
        %s1479 = sand.u32 %s270, 1
        %s1480 = scalar_lea.vmem [#allocation14], %s1479
        // Predicated region
        $region173: #{dyt_transformer_forward.3} parent=143 // pred_check
          %p1481 = pneg %p283
        $region174: #{dyt_transformer_forward.3} parent=143 // pred_check_branch
          %1483 = sbr.rel (%p1481) target = $region176
        $region175: #{dyt_transformer_forward.3} parent=143 // pred_region
          %1484 = dma.done %s1478, 16
        $region176: #{dyt_transformer_forward.3} parent=143 // pred_fallthru
          _
        %s1485 = sand.u32 %s79, 1
        %s1486 = scalar_lea.sflag [#allocation4], %s1485
        %s1487 = sand.u32 %s296, 1
        %s1488 = smul.addr %s1487, 16
        %s1489 = scalar_lea.vmem [#allocation15], %s1488
        // Predicated region
        $region177: #{dyt_transformer_forward.3} parent=143 // pred_check
          %p1490 = pneg %p309
        $region178: #{dyt_transformer_forward.3} parent=143 // pred_check_branch
          %1492 = sbr.rel (%p1490) target = $region180
        $region179: #{dyt_transformer_forward.3} parent=143 // pred_region
          %1493 = dma.done %s1486, 256
        $region180: #{dyt_transformer_forward.3} parent=143 // pred_fallthru
          _
        %s1494 = sand.u32 %s79, 1
        %s1495 = scalar_lea.sflag [#allocation4], %s1494
        %s1496 = sand.u32 %s322, 1
        %s1497 = scalar_lea.vmem [#allocation16], %s1496
        // Predicated region
        $region181: #{dyt_transformer_forward.3} parent=143 // pred_check
          %p1498 = pneg %p335
        $region182: #{dyt_transformer_forward.3} parent=143 // pred_check_branch
          %1500 = sbr.rel (%p1498) target = $region184
        $region183: #{dyt_transformer_forward.3} parent=143 // pred_region
          %1501 = dma.done %s1495, 16
        $region184: #{dyt_transformer_forward.3} parent=143 // pred_fallthru
          _
        %s1502 = sand.u32 %s79, 1
        %s1503 = scalar_lea.sflag [#allocation4], %s1502
        %s1504 = sand.u32 %s348, 1
        %s1505 = smul.addr %s1504, 16
        %s1506 = scalar_lea.vmem [#allocation17], %s1505
        // Predicated region
        $region185: #{dyt_transformer_forward.3} parent=143 // pred_check
          %p1507 = pneg %p361
        $region186: #{dyt_transformer_forward.3} parent=143 // pred_check_branch
          %1509 = sbr.rel (%p1507) target = $region188
        $region187: #{dyt_transformer_forward.3} parent=143 // pred_region
          %1510 = dma.done %s1503, 256
        $region188: #{dyt_transformer_forward.3} parent=143 // pred_fallthru
          _
        %s1511 = sand.u32 %s79, 1
        %s1512 = scalar_lea.sflag [#allocation4], %s1511
        %s1513 = sand.u32 %s374, 1
        %s1514 = scalar_lea.vmem [#allocation18], %s1513
        // Predicated region
        $region189: #{dyt_transformer_forward.3} parent=143 // pred_check
          %p1515 = pneg %p387
        $region190: #{dyt_transformer_forward.3} parent=143 // pred_check_branch
          %1517 = sbr.rel (%p1515) target = $region192
        $region191: #{dyt_transformer_forward.3} parent=143 // pred_region
          %1518 = dma.done %s1512, 16
        $region192: #{dyt_transformer_forward.3} parent=143 // pred_fallthru
          _
        %s1519 = sand.u32 %s79, 1
        %s1520 = scalar_lea.sflag [#allocation4], %s1519
        %s1521 = sand.u32 %s400, 1
        %s1522 = scalar_lea.vmem [#allocation19], %s1521
        // Predicated region
        $region193: #{dyt_transformer_forward.3} parent=143 // pred_check
          %p1523 = pneg %p413
        $region194: #{dyt_transformer_forward.3} parent=143 // pred_check_branch
          %1525 = sbr.rel (%p1523) target = $region196
        $region195: #{dyt_transformer_forward.3} parent=143 // pred_region
          %1526 = dma.done %s1520, 16
        $region196: #{dyt_transformer_forward.3} parent=143 // pred_fallthru
          _
        %s1527 = sand.u32 %s79, 1
        %s1528 = scalar_lea.sflag [#allocation4], %s1527
        %s1529 = sand.u32 %s426, 1
        %s1530 = scalar_lea.vmem [#allocation20], %s1529
        // Predicated region
        $region197: #{dyt_transformer_forward.3} parent=143 // pred_check
          %p1531 = pneg %p439
        $region198: #{dyt_transformer_forward.3} parent=143 // pred_check_branch
          %1533 = sbr.rel (%p1531) target = $region200
        $region199: #{dyt_transformer_forward.3} parent=143 // pred_region
          %1534 = dma.done %s1528, 16
        $region200: #{dyt_transformer_forward.3} parent=143 // pred_fallthru
          _
        %s1535 = sand.u32 %s79, 1
        %s1536 = scalar_lea.sflag [#allocation4], %s1535
        %s1537 = sand.u32 %s452, 1
        %s1538 = smul.addr %s1537, 16
        %s1539 = scalar_lea.vmem [#allocation21], %s1538
        // Predicated region
        $region201: #{dyt_transformer_forward.3} parent=143 // pred_check
          %p1540 = pneg %p465
        $region202: #{dyt_transformer_forward.3} parent=143 // pred_check_branch
          %1542 = sbr.rel (%p1540) target = $region204
        $region203: #{dyt_transformer_forward.3} parent=143 // pred_region
          %1543 = dma.done %s1536, 256
        $region204: #{dyt_transformer_forward.3} parent=143 // pred_fallthru
          _
        %s1544 = sand.u32 %s79, 1
        %s1545 = scalar_lea.sflag [#allocation4], %s1544
        %s1546 = sand.u32 %s478, 1
        %s1547 = scalar_lea.vmem [#allocation22], %s1546
        // Predicated region
        $region205: #{dyt_transformer_forward.3} parent=143 // pred_check
          %p1548 = pneg %p491
        $region206: #{dyt_transformer_forward.3} parent=143 // pred_check_branch
          %1550 = sbr.rel (%p1548) target = $region208
        $region207: #{dyt_transformer_forward.3} parent=143 // pred_region
          %1551 = dma.done %s1545, 16
        $region208: #{dyt_transformer_forward.3} parent=143 // pred_fallthru
          _
        %s1552 = sand.u32 %s79, 1
        %s1553 = scalar_lea.sflag [#allocation4], %s1552
        %s1554 = sand.u32 %s504, 1
        %s1555 = smul.addr %s1554, 16
        %s1556 = scalar_lea.vmem [#allocation23], %s1555
        // Predicated region
        $region209: #{dyt_transformer_forward.3} parent=143 // pred_check
          %p1557 = pneg %p517
        $region210: #{dyt_transformer_forward.3} parent=143 // pred_check_branch
          %1559 = sbr.rel (%p1557) target = $region212
        $region211: #{dyt_transformer_forward.3} parent=143 // pred_region
          %1560 = dma.done %s1553, 256
        $region212: #{dyt_transformer_forward.3} parent=143 // pred_fallthru
          _
        %s1561 = sand.u32 %s79, 1
        %s1562 = scalar_lea.sflag [#allocation4], %s1561
        %s1563 = sand.u32 %s530, 1
        %s1564 = scalar_lea.vmem [#allocation24], %s1563
        // Predicated region
        $region213: #{dyt_transformer_forward.3} parent=143 // pred_check
          %p1565 = pneg %p543
        $region214: #{dyt_transformer_forward.3} parent=143 // pred_check_branch
          %1567 = sbr.rel (%p1565) target = $region216
        $region215: #{dyt_transformer_forward.3} parent=143 // pred_region
          %1568 = dma.done %s1562, 16
        $region216: #{dyt_transformer_forward.3} parent=143 // pred_fallthru
          _
        %s1569 = sand.u32 %s79, 1
        %s1570 = scalar_lea.sflag [#allocation4], %s1569
        %s1571 = sand.u32 %s556, 1
        %s1572 = smul.addr %s1571, 16
        %s1573 = scalar_lea.vmem [#allocation25], %s1572
        // Predicated region
        $region217: #{dyt_transformer_forward.3} parent=143 // pred_check
          %p1574 = pneg %p569
        $region218: #{dyt_transformer_forward.3} parent=143 // pred_check_branch
          %1576 = sbr.rel (%p1574) target = $region220
        $region219: #{dyt_transformer_forward.3} parent=143 // pred_region
          %1577 = dma.done %s1570, 256
        $region220: #{dyt_transformer_forward.3} parent=143 // pred_fallthru
          _
        %s1578 = sand.u32 %s79, 1
        %s1579 = scalar_lea.sflag [#allocation4], %s1578
        %s1580 = sand.u32 %s582, 1
        %s1581 = scalar_lea.vmem [#allocation26], %s1580
        // Predicated region
        $region221: #{dyt_transformer_forward.3} parent=143 // pred_check
          %p1582 = pneg %p595
        $region222: #{dyt_transformer_forward.3} parent=143 // pred_check_branch
          %1584 = sbr.rel (%p1582) target = $region224
        $region223: #{dyt_transformer_forward.3} parent=143 // pred_region
          %1585 = dma.done %s1579, 16
        $region224: #{dyt_transformer_forward.3} parent=143 // pred_fallthru
          _
        %s1586 = sand.u32 %s79, 1
        %s1587 = scalar_lea.sflag [#allocation4], %s1586
        %s1588 = sand.u32 %s608, 1
        %s1589 = smul.addr %s1588, 16
        %s1590 = scalar_lea.vmem [#allocation27], %s1589
        // Predicated region
        $region225: #{dyt_transformer_forward.3} parent=143 // pred_check
          %p1591 = pneg %p621
        $region226: #{dyt_transformer_forward.3} parent=143 // pred_check_branch
          %1593 = sbr.rel (%p1591) target = $region228
        $region227: #{dyt_transformer_forward.3} parent=143 // pred_region
          %1594 = dma.done %s1587, 256
        $region228: #{dyt_transformer_forward.3} parent=143 // pred_fallthru
          _
        %s1595 = sand.u32 %s79, 1
        %s1596 = scalar_lea.sflag [#allocation4], %s1595
        %s1597 = sand.u32 %s634, 1
        %s1598 = scalar_lea.vmem [#allocation28], %s1597
        // Predicated region
        $region229: #{dyt_transformer_forward.3} parent=143 // pred_check
          %p1599 = pneg %p647
        $region230: #{dyt_transformer_forward.3} parent=143 // pred_check_branch
          %1601 = sbr.rel (%p1599) target = $region232
        $region231: #{dyt_transformer_forward.3} parent=143 // pred_region
          %1602 = dma.done %s1596, 16
        $region232: #{dyt_transformer_forward.3} parent=143 // pred_fallthru
          _
        %s1603 = sand.u32 %s79, 1
        %s1604 = scalar_lea.sflag [#allocation4], %s1603
        %s1605 = sand.u32 %s660, 1
        %s1606 = scalar_lea.vmem [#allocation29], %s1605
        // Predicated region
        $region233: #{dyt_transformer_forward.3} parent=143 // pred_check
          %p1607 = pneg %p673
        $region234: #{dyt_transformer_forward.3} parent=143 // pred_check_branch
          %1609 = sbr.rel (%p1607) target = $region236
        $region235: #{dyt_transformer_forward.3} parent=143 // pred_region
          %1610 = dma.done %s1604, 16
        $region236: #{dyt_transformer_forward.3} parent=143 // pred_fallthru
          _
        %s1611 = sand.u32 %s79, 1
        %s1612 = scalar_lea.sflag [#allocation4], %s1611
        %s1613 = sand.u32 %s686, 1
        %s1614 = scalar_lea.vmem [#allocation30], %s1613
        // Predicated region
        $region237: #{dyt_transformer_forward.3} parent=143 // pred_check
          %p1615 = pneg %p699
        $region238: #{dyt_transformer_forward.3} parent=143 // pred_check_branch
          %1617 = sbr.rel (%p1615) target = $region240
        $region239: #{dyt_transformer_forward.3} parent=143 // pred_region
          %1618 = dma.done %s1612, 16
        $region240: #{dyt_transformer_forward.3} parent=143 // pred_fallthru
          _
        %s1619 = sand.u32 %s79, 1
        %s1620 = scalar_lea.sflag [#allocation4], %s1619
        %s1621 = sand.u32 %s712, 1
        %s1622 = smul.addr %s1621, 16
        %s1623 = scalar_lea.vmem [#allocation31], %s1622
        // Predicated region
        $region241: #{dyt_transformer_forward.3} parent=143 // pred_check
          %p1624 = pneg %p725
        $region242: #{dyt_transformer_forward.3} parent=143 // pred_check_branch
          %1626 = sbr.rel (%p1624) target = $region244
        $region243: #{dyt_transformer_forward.3} parent=143 // pred_region
          %1627 = dma.done %s1620, 256
        $region244: #{dyt_transformer_forward.3} parent=143 // pred_fallthru
          _
        %s1628 = sand.u32 %s79, 1
        %s1629 = scalar_lea.sflag [#allocation4], %s1628
        %s1630 = sand.u32 %s738, 1
        %s1631 = scalar_lea.vmem [#allocation32], %s1630
        // Predicated region
        $region245: #{dyt_transformer_forward.3} parent=143 // pred_check
          %p1632 = pneg %p751
        $region246: #{dyt_transformer_forward.3} parent=143 // pred_check_branch
          %1634 = sbr.rel (%p1632) target = $region248
        $region247: #{dyt_transformer_forward.3} parent=143 // pred_region
          %1635 = dma.done %s1629, 16
        $region248: #{dyt_transformer_forward.3} parent=143 // pred_fallthru
          _
        %s1636 = sand.u32 %s79, 1
        %s1637 = scalar_lea.sflag [#allocation4], %s1636
        %s1638 = sand.u32 %s764, 1
        %s1639 = smul.addr %s1638, 32
        %s1640 = scalar_lea.vmem [#allocation33], %s1639
        // Predicated region
        $region249: #{dyt_transformer_forward.3} parent=143 // pred_check
          %p1641 = pneg %p777
        $region250: #{dyt_transformer_forward.3} parent=143 // pred_check_branch
          %1643 = sbr.rel (%p1641) target = $region252
        $region251: #{dyt_transformer_forward.3} parent=143 // pred_region
          %1644 = dma.done %s1637, 512
        $region252: #{dyt_transformer_forward.3} parent=143 // pred_fallthru
          _
        %s1645 = sand.u32 %s79, 1
        %s1646 = scalar_lea.sflag [#allocation4], %s1645
        %s1647 = sand.u32 %s790, 1
        %s1648 = scalar_lea.vmem [#allocation34], %s1647
        // Predicated region
        $region253: #{dyt_transformer_forward.3} parent=143 // pred_check
          %p1649 = pneg %p803
        $region254: #{dyt_transformer_forward.3} parent=143 // pred_check_branch
          %1651 = sbr.rel (%p1649) target = $region256
        $region255: #{dyt_transformer_forward.3} parent=143 // pred_region
          %1652 = dma.done %s1646, 16
        $region256: #{dyt_transformer_forward.3} parent=143 // pred_fallthru
          _
        %s1653 = sand.u32 %s79, 1
        %s1654 = scalar_lea.sflag [#allocation4], %s1653
        %s1655 = sand.u32 %s816, 1
        %s1656 = scalar_lea.vmem [#allocation35], %s1655
        // Predicated region
        $region257: #{dyt_transformer_forward.3} parent=143 // pred_check
          %p1657 = pneg %p829
        $region258: #{dyt_transformer_forward.3} parent=143 // pred_check_branch
          %1659 = sbr.rel (%p1657) target = $region260
        $region259: #{dyt_transformer_forward.3} parent=143 // pred_region
          %1660 = dma.done %s1654, 16
        $region260: #{dyt_transformer_forward.3} parent=143 // pred_fallthru
          _
        %s1661 = sand.u32 %s79, 1
        %s1662 = scalar_lea.sflag [#allocation4], %s1661
        %s1663 = sand.u32 %s842, 1
        %s1664 = scalar_lea.vmem [#allocation36], %s1663
        // Predicated region
        $region261: #{dyt_transformer_forward.3} parent=143 // pred_check
          %p1665 = pneg %p855
        $region262: #{dyt_transformer_forward.3} parent=143 // pred_check_branch
          %1667 = sbr.rel (%p1665) target = $region264
        $region263: #{dyt_transformer_forward.3} parent=143 // pred_region
          %1668 = dma.done %s1662, 16
        $region264: #{dyt_transformer_forward.3} parent=143 // pred_fallthru
          _
        %p1669 = pneg %p95
        %p1670 = pneg %p92
        %p1671 = pneg %p116
        %p1672 = pneg %p113
        %p1673 = pneg %p137
        %p1674 = pneg %p134
        %p1675 = pneg %p158
        %p1676 = pneg %p155
        %p1677 = pneg %p179
        %p1678 = pneg %p176
        %s1679 = sand.u32 %s79, 1
        %s1680 = scalar_lea.sflag [#allocation4], %s1679
        %s1681 = sand.u32 %s192, 1
        %s1682 = smul.addr %s1681, 16
        %s1683 = scalar_lea.vmem [#allocation11], %s1682
        %p1684 = pneg %p205
        %p1685 = pneg %p202
        %s1686 = sand.u32 %s79, 1
        %s1687 = scalar_lea.sflag [#allocation4], %s1686
        %s1688 = sand.u32 %s218, 1
        %s1689 = scalar_lea.vmem [#allocation12], %s1688
        %p1690 = pneg %p231
        %p1691 = pneg %p228
        %s1692 = sand.u32 %s79, 1
        %s1693 = scalar_lea.sflag [#allocation4], %s1692
        %s1694 = sand.u32 %s244, 1
        %s1695 = smul.addr %s1694, 16
        %s1696 = scalar_lea.vmem [#allocation13], %s1695
        %p1697 = pneg %p257
        %p1698 = pneg %p254
        %s1699 = sand.u32 %s79, 1
        %s1700 = scalar_lea.sflag [#allocation4], %s1699
        %s1701 = sand.u32 %s270, 1
        %s1702 = scalar_lea.vmem [#allocation14], %s1701
        %p1703 = pneg %p283
        %p1704 = pneg %p280
        %s1705 = sand.u32 %s79, 1
        %s1706 = scalar_lea.sflag [#allocation4], %s1705
        %s1707 = sand.u32 %s296, 1
        %s1708 = smul.addr %s1707, 16
        %s1709 = scalar_lea.vmem [#allocation15], %s1708
        %p1710 = pneg %p309
        %p1711 = pneg %p306
        %s1712 = sand.u32 %s79, 1
        %s1713 = scalar_lea.sflag [#allocation4], %s1712
        %s1714 = sand.u32 %s322, 1
        %s1715 = scalar_lea.vmem [#allocation16], %s1714
        %p1716 = pneg %p335
        %p1717 = pneg %p332
        %s1718 = sand.u32 %s79, 1
        %s1719 = scalar_lea.sflag [#allocation4], %s1718
        %s1720 = sand.u32 %s348, 1
        %s1721 = smul.addr %s1720, 16
        %s1722 = scalar_lea.vmem [#allocation17], %s1721
        %p1723 = pneg %p361
        %p1724 = pneg %p358
        %s1725 = sand.u32 %s79, 1
        %s1726 = scalar_lea.sflag [#allocation4], %s1725
        %s1727 = sand.u32 %s374, 1
        %s1728 = scalar_lea.vmem [#allocation18], %s1727
        %p1729 = pneg %p387
        %p1730 = pneg %p384
        %s1731 = sand.u32 %s79, 1
        %s1732 = scalar_lea.sflag [#allocation4], %s1731
        %s1733 = sand.u32 %s400, 1
        %s1734 = scalar_lea.vmem [#allocation19], %s1733
        %p1735 = pneg %p413
        %p1736 = pneg %p410
        %s1737 = sand.u32 %s79, 1
        %s1738 = scalar_lea.sflag [#allocation4], %s1737
        %s1739 = sand.u32 %s426, 1
        %s1740 = scalar_lea.vmem [#allocation20], %s1739
        %p1741 = pneg %p439
        %p1742 = pneg %p436
        %s1743 = sand.u32 %s79, 1
        %s1744 = scalar_lea.sflag [#allocation4], %s1743
        %s1745 = sand.u32 %s452, 1
        %s1746 = smul.addr %s1745, 16
        %s1747 = scalar_lea.vmem [#allocation21], %s1746
        %p1748 = pneg %p465
        %p1749 = pneg %p462
        %s1750 = sand.u32 %s79, 1
        %s1751 = scalar_lea.sflag [#allocation4], %s1750
        %s1752 = sand.u32 %s478, 1
        %s1753 = scalar_lea.vmem [#allocation22], %s1752
        %p1754 = pneg %p491
        %p1755 = pneg %p488
        %s1756 = sand.u32 %s79, 1
        %s1757 = scalar_lea.sflag [#allocation4], %s1756
        %s1758 = sand.u32 %s504, 1
        %s1759 = smul.addr %s1758, 16
        %s1760 = scalar_lea.vmem [#allocation23], %s1759
        %p1761 = pneg %p517
        %p1762 = pneg %p514
        %s1763 = sand.u32 %s79, 1
        %s1764 = scalar_lea.sflag [#allocation4], %s1763
        %s1765 = sand.u32 %s530, 1
        %s1766 = scalar_lea.vmem [#allocation24], %s1765
        %p1767 = pneg %p543
        %p1768 = pneg %p540
        %s1769 = sand.u32 %s79, 1
        %s1770 = scalar_lea.sflag [#allocation4], %s1769
        %s1771 = sand.u32 %s556, 1
        %s1772 = smul.addr %s1771, 16
        %s1773 = scalar_lea.vmem [#allocation25], %s1772
        %p1774 = pneg %p569
        %p1775 = pneg %p566
        %s1776 = sand.u32 %s79, 1
        %s1777 = scalar_lea.sflag [#allocation4], %s1776
        %s1778 = sand.u32 %s582, 1
        %s1779 = scalar_lea.vmem [#allocation26], %s1778
        %p1780 = pneg %p595
        %p1781 = pneg %p592
        %s1782 = sand.u32 %s79, 1
        %s1783 = scalar_lea.sflag [#allocation4], %s1782
        %s1784 = sand.u32 %s608, 1
        %s1785 = smul.addr %s1784, 16
        %s1786 = scalar_lea.vmem [#allocation27], %s1785
        %p1787 = pneg %p621
        %p1788 = pneg %p618
        %s1789 = sand.u32 %s79, 1
        %s1790 = scalar_lea.sflag [#allocation4], %s1789
        %s1791 = sand.u32 %s634, 1
        %s1792 = scalar_lea.vmem [#allocation28], %s1791
        %p1793 = pneg %p647
        %p1794 = pneg %p644
        %s1795 = sand.u32 %s79, 1
        %s1796 = scalar_lea.sflag [#allocation4], %s1795
        %s1797 = sand.u32 %s660, 1
        %s1798 = scalar_lea.vmem [#allocation29], %s1797
        %p1799 = pneg %p673
        %p1800 = pneg %p670
        %s1801 = sand.u32 %s79, 1
        %s1802 = scalar_lea.sflag [#allocation4], %s1801
        %s1803 = sand.u32 %s686, 1
        %s1804 = scalar_lea.vmem [#allocation30], %s1803
        %p1805 = pneg %p699
        %p1806 = pneg %p696
        %s1807 = sand.u32 %s79, 1
        %s1808 = scalar_lea.sflag [#allocation4], %s1807
        %s1809 = sand.u32 %s712, 1
        %s1810 = smul.addr %s1809, 16
        %s1811 = scalar_lea.vmem [#allocation31], %s1810
        %p1812 = pneg %p725
        %p1813 = pneg %p722
        %s1814 = sand.u32 %s79, 1
        %s1815 = scalar_lea.sflag [#allocation4], %s1814
        %s1816 = sand.u32 %s738, 1
        %s1817 = scalar_lea.vmem [#allocation32], %s1816
        %p1818 = pneg %p751
        %p1819 = pneg %p748
        %s1820 = sand.u32 %s79, 1
        %s1821 = scalar_lea.sflag [#allocation4], %s1820
        %s1822 = sand.u32 %s764, 1
        %s1823 = smul.addr %s1822, 32
        %s1824 = scalar_lea.vmem [#allocation33], %s1823
        %p1825 = pneg %p777
        %p1826 = pneg %p774
        %s1827 = sand.u32 %s79, 1
        %s1828 = scalar_lea.sflag [#allocation4], %s1827
        %s1829 = sand.u32 %s790, 1
        %s1830 = scalar_lea.vmem [#allocation34], %s1829
        %p1831 = pneg %p803
        %p1832 = pneg %p800
        %s1833 = sand.u32 %s79, 1
        %s1834 = scalar_lea.sflag [#allocation4], %s1833
        %s1835 = sand.u32 %s816, 1
        %s1836 = scalar_lea.vmem [#allocation35], %s1835
        %p1837 = pneg %p829
        %p1838 = pneg %p826
        %s1839 = sand.u32 %s79, 1
        %s1840 = scalar_lea.sflag [#allocation4], %s1839
        %s1841 = sand.u32 %s842, 1
        %s1842 = scalar_lea.vmem [#allocation36], %s1841
        %p1843 = pneg %p855
        %p1844 = pneg %p852
        %p1845 = pneg %p876
        %p1846 = pneg %p873
        %p1848 = scmp.eq.s32.totalorder %s79, 0
        // Predicated region
        $region265: #{dyt_transformer_forward.3} parent=143 // pred_check
          %p1849 = pneg %p1848
        $region266: #{dyt_transformer_forward.3} parent=143 // pred_check_branch
          %1851 = sbr.rel (%p1849) target = $region268
        $region267: #{dyt_transformer_forward.3} parent=143 // pred_region
          %v1852 = vld [vmem:[#allocation8] sm:$0xff]
          %v1853 = vld [vmem:[#allocation8 + $0x8] sm:$0xff]
          %s1854 = sld [smem:[#allocation2]]
          %v1855 = vstv %s1854
          %v1856 = vmul.f32 %v1855, %v1852
          %v1857 = vmul.f32 %v1855, %v1853
          %v1858 = vtanh.pop %v1856
          %v1859 = vtanh.pop %v1857
          %v1860 = vld [vmem:[#allocation3] sm:$0x1]
          %v1862 = vlaneseq
          %v1863 = vshrl.u32 %v1862, 7
          %v1864 = vsub.s32 0, %v1863
          %v1865 = vrot.slane %v1860, %v1864
          %v1867 = vmul.f32 %v1858, %v1865
          %v1868 = vmul.f32 %v1859, %v1865
          %v1869 = vld [vmem:[#allocation6] sm:$0x1]
          %v1871 = vlaneseq
          %v1872 = vshrl.u32 %v1871, 7
          %v1873 = vsub.s32 0, %v1872
          %v1874 = vrot.slane %v1869, %v1873
          %v1876 = vadd.f32 %v1867, %v1874
          %v1877 = vadd.f32 %v1868, %v1874
          %vm1878 = vcmask 261120
          %1879 = vst.msk [vmem:[#allocation37] sm:$0xff] %vm1878, %v1876
          %1880 = vst.msk [vmem:[#allocation37 + $0x8] sm:$0xff] %vm1878, %v1877
        $region268: #{dyt_transformer_forward.3} parent=143 // pred_fallthru
          _
        %v1881 = vld [vmem:[#allocation37] sm:$0xff]
        %v1882 = vld [vmem:[#allocation37 + $0x8] sm:$0xff]
        %v1883 = vld [vmem:[#allocation9] sm:$0xff]
        %v1884 = vld [vmem:[#allocation9 + $0x8] sm:$0xff]
        %v1885 = vld [vmem:[%s1455] sm:$0xf]
        %v1886 = vld [vmem:[%s1455 + $0x4] sm:$0xf]
        %v1887 = vld [vmem:[%s1455 + $0x8] sm:$0xf]
        %v1888 = vld [vmem:[%s1455 + $0xc] sm:$0xf]
        %v1889 = vpack.c.bf16 %v1882, %v1881
        %v1890 = vld [vmem:[%s1463] sm:$0x1]
        %v1892 = vlaneseq
        %v1893 = vshrl.u32 %v1892, 7
        %v1894 = vsub.s32 0, %v1893
        %v1895 = vrot.slane %v1890, %v1894
        %v1901 = vunpack.c.l.b16 %v1885
        %v1902 = vunpack.c.l.b16 %v1886
        %v1903 = vunpack.c.l.b16 %v1887
        %v1904 = vunpack.c.l.b16 %v1888
        %v1905 = vpack.c.b16 %v1902, %v1901
        %v1906 = vpack.c.b16 %v1904, %v1903
        %vm1909 = vcmask 261120
        %v1911 = vsel %vm1909, %v1889, 0
        %1913 = vmatprep.subr.bf16.mxu0 0
        %1914 = vmatpush1.bf16.msra.mxu0 %v1905
        %1915 = vmatprep.subr.bf16.mxu0 0
        %1916 = vmatpush1.bf16.msra.mxu0 %v1906
        %1917 = vmatprep.subr.bf16.mxu0 0
        %1918 = vmatpush1.bf16.msra.mxu0 0
        %1919 = vmatprep.subr.bf16.mxu0 0
        %1920 = vmatpush1.bf16.msra.mxu0 0
        %1921 = vmatprep.subr.bf16.mxu0 0
        %1922 = vmatpush1.bf16.msra.mxu0 0
        %1923 = vmatprep.subr.bf16.mxu0 0
        %1924 = vmatpush1.bf16.msra.mxu0 0
        %1925 = vmatprep.subr.bf16.mxu0 0
        %1926 = vmatpush1.bf16.msra.mxu0 0
        %1927 = vmatprep.subr.bf16.mxu0 0
        %1928 = vmatpush1.bf16.msra.mxu0 0
        %1929 = vmatprep.subr.bf16.mxu0 0
        %1930 = vmatpush1.bf16.msra.mxu0 0
        %1931 = vmatprep.subr.bf16.mxu0 0
        %1932 = vmatpush1.bf16.msra.mxu0 0
        %1933 = vmatprep.subr.bf16.mxu0 0
        %1934 = vmatpush1.bf16.msra.mxu0 0
        %1935 = vmatprep.subr.bf16.mxu0 0
        %1936 = vmatpush1.bf16.msra.mxu0 0
        %1937 = vmatprep.subr.bf16.mxu0 0
        %1938 = vmatpush1.bf16.msra.mxu0 0
        %1939 = vmatprep.subr.bf16.mxu0 0
        %1940 = vmatpush1.bf16.msra.mxu0 0
        %1941 = vmatprep.subr.bf16.mxu0 0
        %1942 = vmatpush1.bf16.msra.mxu0 0
        %1943 = vmatprep.subr.bf16.mxu0 0
        %1944 = vmatpush1.bf16.msra.mxu0 0
        %1945 = vmatprep.mubr.bf16.mxu0 0
        %1946 = vmatmul.mubr.bf16.gmra.mrb[0].mxu0 %v1911
        %v1947 = vpop.f32.mrb[0].mxu0
        %v1948 = vadd.f32 %v1895, %v1947
        %v1949 = vpop.f32.mrb[0].mxu0
        %v1950 = vpop.f32.mrb[0].mxu0
        %v1951 = vadd.f32 %v1895, %v1950
        %v1952 = vpop.f32.mrb[0].mxu0
        %1953 = vdwg.mxu0
        %v1954 = vld [vmem:[%s1472] sm:$0xf]
        %v1955 = vld [vmem:[%s1472 + $0x4] sm:$0xf]
        %v1956 = vld [vmem:[%s1472 + $0x8] sm:$0xf]
        %v1957 = vld [vmem:[%s1472 + $0xc] sm:$0xf]
        %v1958 = vld [vmem:[%s1480] sm:$0x1]
        %v1960 = vlaneseq
        %v1961 = vshrl.u32 %v1960, 7
        %v1962 = vsub.s32 0, %v1961
        %v1963 = vrot.slane %v1958, %v1962
        %v1969 = vunpack.c.l.b16 %v1954
        %v1970 = vunpack.c.l.b16 %v1955
        %v1971 = vunpack.c.l.b16 %v1956
        %v1972 = vunpack.c.l.b16 %v1957
        %v1973 = vpack.c.b16 %v1970, %v1969
        %v1974 = vpack.c.b16 %v1972, %v1971
        %1977 = vmatprep.subr.bf16.mxu0 0
        %1978 = vmatpush1.bf16.msra.mxu0 %v1973
        %1979 = vmatprep.subr.bf16.mxu0 0
        %1980 = vmatpush1.bf16.msra.mxu0 %v1974
        %1981 = vmatprep.subr.bf16.mxu0 0
        %1982 = vmatpush1.bf16.msra.mxu0 0
        %1983 = vmatprep.subr.bf16.mxu0 0
        %1984 = vmatpush1.bf16.msra.mxu0 0
        %1985 = vmatprep.subr.bf16.mxu0 0
        %1986 = vmatpush1.bf16.msra.mxu0 0
        %1987 = vmatprep.subr.bf16.mxu0 0
        %1988 = vmatpush1.bf16.msra.mxu0 0
        %1989 = vmatprep.subr.bf16.mxu0 0
        %1990 = vmatpush1.bf16.msra.mxu0 0
        %1991 = vmatprep.subr.bf16.mxu0 0
        %1992 = vmatpush1.bf16.msra.mxu0 0
        %1993 = vmatprep.subr.bf16.mxu0 0
        %1994 = vmatpush1.bf16.msra.mxu0 0
        %1995 = vmatprep.subr.bf16.mxu0 0
        %1996 = vmatpush1.bf16.msra.mxu0 0
        %1997 = vmatprep.subr.bf16.mxu0 0
        %1998 = vmatpush1.bf16.msra.mxu0 0
        %1999 = vmatprep.subr.bf16.mxu0 0
        %2000 = vmatpush1.bf16.msra.mxu0 0
        %2001 = vmatprep.subr.bf16.mxu0 0
        %2002 = vmatpush1.bf16.msra.mxu0 0
        %2003 = vmatprep.subr.bf16.mxu0 0
        %2004 = vmatpush1.bf16.msra.mxu0 0
        %2005 = vmatprep.subr.bf16.mxu0 0
        %2006 = vmatpush1.bf16.msra.mxu0 0
        %2007 = vmatprep.subr.bf16.mxu0 0
        %2008 = vmatpush1.bf16.msra.mxu0 0
        %2009 = vmatprep.mubr.bf16.mxu0 0
        %2010 = vmatmul.mubr.bf16.gmra.mrb[0].mxu0 %v1911
        %v2011 = vpop.f32.mrb[0].mxu0
        %v2012 = vadd.f32 %v1963, %v2011
        %v2013 = vpop.f32.mrb[0].mxu0
        %v2014 = vpop.f32.mrb[0].mxu0
        %v2015 = vadd.f32 %v1963, %v2014
        %v2016 = vpop.f32.mrb[0].mxu0
        %2017 = vdwg.mxu0
        %v2018 = vld [vmem:[%s1489] sm:$0xf]
        %v2019 = vld [vmem:[%s1489 + $0x4] sm:$0xf]
        %v2020 = vld [vmem:[%s1489 + $0x8] sm:$0xf]
        %v2021 = vld [vmem:[%s1489 + $0xc] sm:$0xf]
        %v2022 = vld [vmem:[%s1497] sm:$0x1]
        %v2024 = vlaneseq
        %v2025 = vshrl.u32 %v2024, 7
        %v2026 = vsub.s32 0, %v2025
        %v2027 = vrot.slane %v2022, %v2026
        %v2033 = vunpack.c.l.b16 %v2018
        %v2034 = vunpack.c.l.b16 %v2019
        %v2035 = vunpack.c.l.b16 %v2020
        %v2036 = vunpack.c.l.b16 %v2021
        %v2037 = vpack.c.b16 %v2034, %v2033
        %v2038 = vpack.c.b16 %v2036, %v2035
        %2041 = vmatprep.subr.bf16.mxu0 0
        %2042 = vmatpush1.bf16.msra.mxu0 %v2037
        %2043 = vmatprep.subr.bf16.mxu0 0
        %2044 = vmatpush1.bf16.msra.mxu0 %v2038
        %2045 = vmatprep.subr.bf16.mxu0 0
        %2046 = vmatpush1.bf16.msra.mxu0 0
        %2047 = vmatprep.subr.bf16.mxu0 0
        %2048 = vmatpush1.bf16.msra.mxu0 0
        %2049 = vmatprep.subr.bf16.mxu0 0
        %2050 = vmatpush1.bf16.msra.mxu0 0
        %2051 = vmatprep.subr.bf16.mxu0 0
        %2052 = vmatpush1.bf16.msra.mxu0 0
        %2053 = vmatprep.subr.bf16.mxu0 0
        %2054 = vmatpush1.bf16.msra.mxu0 0
        %2055 = vmatprep.subr.bf16.mxu0 0
        %2056 = vmatpush1.bf16.msra.mxu0 0
        %2057 = vmatprep.subr.bf16.mxu0 0
        %2058 = vmatpush1.bf16.msra.mxu0 0
        %2059 = vmatprep.subr.bf16.mxu0 0
        %2060 = vmatpush1.bf16.msra.mxu0 0
        %2061 = vmatprep.subr.bf16.mxu0 0
        %2062 = vmatpush1.bf16.msra.mxu0 0
        %2063 = vmatprep.subr.bf16.mxu0 0
        %2064 = vmatpush1.bf16.msra.mxu0 0
        %2065 = vmatprep.subr.bf16.mxu0 0
        %2066 = vmatpush1.bf16.msra.mxu0 0
        %2067 = vmatprep.subr.bf16.mxu0 0
        %2068 = vmatpush1.bf16.msra.mxu0 0
        %2069 = vmatprep.subr.bf16.mxu0 0
        %2070 = vmatpush1.bf16.msra.mxu0 0
        %2071 = vmatprep.subr.bf16.mxu0 0
        %2072 = vmatpush1.bf16.msra.mxu0 0
        %2073 = vmatprep.mubr.bf16.mxu0 0
        %2074 = vmatmul.mubr.bf16.gmra.mrb[0].mxu0 %v1911
        %v2075 = vpop.f32.mrb[0].mxu0
        %v2076 = vadd.f32 %v2027, %v2075
        %v2077 = vpop.f32.mrb[0].mxu0
        %v2078 = vpop.f32.mrb[0].mxu0
        %v2079 = vadd.f32 %v2027, %v2078
        %v2080 = vpop.f32.mrb[0].mxu0
        %2081 = vdwg.mxu0
        %v2082 = vpack.c.bf16 %v1951, %v1948
        %v2083 = vpack.c.bf16 %v2015, %v2012
        %v2084 = vpack.c.bf16 %v2079, %v2076
        %vm2085 = vcmask 64512
        %v2087 = vsel %vm2085, %v2082, 0
        %v2090 = vsel %vm2085, %v2083, 0
        %2092 = vmatprep.subr.bf16.mxu0 0
        %2093 = vmatpush1.bf16.xpose.msra.mxu0 %v2090
        %2094 = vmatprep.subr.bf16.mxu0 0
        %2095 = vmatpush1.bf16.xpose.msra.mxu0 0
        %2096 = vmatprep.subr.bf16.mxu0 0
        %2097 = vmatpush1.bf16.xpose.msra.mxu0 0
        %2098 = vmatprep.subr.bf16.mxu0 0
        %2099 = vmatpush1.bf16.xpose.msra.mxu0 0
        %2100 = vmatprep.subr.bf16.mxu0 0
        %2101 = vmatpush1.bf16.xpose.msra.mxu0 0
        %2102 = vmatprep.subr.bf16.mxu0 0
        %2103 = vmatpush1.bf16.xpose.msra.mxu0 0
        %2104 = vmatprep.subr.bf16.mxu0 0
        %2105 = vmatpush1.bf16.xpose.msra.mxu0 0
        %2106 = vmatprep.subr.bf16.mxu0 0
        %2107 = vmatpush1.bf16.xpose.msra.mxu0 0
        %2108 = vmatprep.subr.bf16.mxu0 0
        %2109 = vmatpush1.bf16.xpose.msra.mxu0 0
        %2110 = vmatprep.subr.bf16.mxu0 0
        %2111 = vmatpush1.bf16.xpose.msra.mxu0 0
        %2112 = vmatprep.subr.bf16.mxu0 0
        %2113 = vmatpush1.bf16.xpose.msra.mxu0 0
        %2114 = vmatprep.subr.bf16.mxu0 0
        %2115 = vmatpush1.bf16.xpose.msra.mxu0 0
        %2116 = vmatprep.subr.bf16.mxu0 0
        %2117 = vmatpush1.bf16.xpose.msra.mxu0 0
        %2118 = vmatprep.subr.bf16.mxu0 0
        %2119 = vmatpush1.bf16.xpose.msra.mxu0 0
        %2120 = vmatprep.subr.bf16.mxu0 0
        %2121 = vmatpush1.bf16.xpose.msra.mxu0 0
        %2122 = vmatprep.subr.bf16.mxu0 0
        %2123 = vmatpush1.bf16.xpose.msra.mxu0 0
        %2124 = vmatprep.mubr.bf16.mxu0 0
        %2125 = vmatmul.mubr.bf16.gmra.mrb[0].mxu0 %v2087
        %v2126 = vpop.f32.mrb[0].mxu0
        %v2127 = vadd.f32 0.0, %v2126
        %v2128 = vpop.f32.mrb[0].mxu0
        %v2129 = vpop.f32.mrb[0].mxu0
        %v2130 = vpop.f32.mrb[0].mxu0
        %2131 = vdwg.mxu0
        %v2132 = vsel %vm2085, %v2127, -inf
        %2133 = vmax.xlane.f32.xlu0 %v2132
        %v2134 = vpop.xlane.xlu0 %2133
        %v2135 = vsub.f32 %v2127, %v2134
        %v2136 = vmul.f32 %v2135, 1.442695
        %v2137 = vpow.pop %v2136
        %v2138 = vsel %vm2085, %v2137, 0.0
        %2139 = vadd.xlane.f32.xlu0 %v2138
        %v2140 = vpop.xlane.xlu0 %2139
        %v2141 = vrcp.pop %v2140
        %v2142 = vmul.f32 %v2137, %v2141
        %v2143 = vpack.c.bf16 %v2142, %v2142
        %v2145 = vsel %vm2085, %v2143, 0
        %vm2147 = vcmask 1043456
        %v2149 = vsel %vm2147, %v2084, 0
        %2151 = vmatprep.subr.bf16.mxu0 0
        %2152 = vmatpush1.bf16.msra.mxu0 %v2149
        %2153 = vmatprep.subr.bf16.mxu0 0
        %2154 = vmatpush1.bf16.msra.mxu0 0
        %2155 = vmatprep.subr.bf16.mxu0 0
        %2156 = vmatpush1.bf16.msra.mxu0 0
        %2157 = vmatprep.subr.bf16.mxu0 0
        %2158 = vmatpush1.bf16.msra.mxu0 0
        %2159 = vmatprep.subr.bf16.mxu0 0
        %2160 = vmatpush1.bf16.msra.mxu0 0
        %2161 = vmatprep.subr.bf16.mxu0 0
        %2162 = vmatpush1.bf16.msra.mxu0 0
        %2163 = vmatprep.subr.bf16.mxu0 0
        %2164 = vmatpush1.bf16.msra.mxu0 0
        %2165 = vmatprep.subr.bf16.mxu0 0
        %2166 = vmatpush1.bf16.msra.mxu0 0
        %2167 = vmatprep.subr.bf16.mxu0 0
        %2168 = vmatpush1.bf16.msra.mxu0 0
        %2169 = vmatprep.subr.bf16.mxu0 0
        %2170 = vmatpush1.bf16.msra.mxu0 0
        %2171 = vmatprep.subr.bf16.mxu0 0
        %2172 = vmatpush1.bf16.msra.mxu0 0
        %2173 = vmatprep.subr.bf16.mxu0 0
        %2174 = vmatpush1.bf16.msra.mxu0 0
        %2175 = vmatprep.subr.bf16.mxu0 0
        %2176 = vmatpush1.bf16.msra.mxu0 0
        %2177 = vmatprep.subr.bf16.mxu0 0
        %2178 = vmatpush1.bf16.msra.mxu0 0
        %2179 = vmatprep.subr.bf16.mxu0 0
        %2180 = vmatpush1.bf16.msra.mxu0 0
        %2181 = vmatprep.subr.bf16.mxu0 0
        %2182 = vmatpush1.bf16.msra.mxu0 0
        %2183 = vmatprep.mubr.bf16.mxu0 0
        %2184 = vmatmul.mubr.bf16.gmra.mrb[0].mxu0 %v2145
        %v2185 = vpop.f32.mrb[0].mxu0
        %v2186 = vadd.f32 0.0, %v2185
        %v2187 = vpop.f32.mrb[0].mxu0
        %v2188 = vpop.f32.mrb[0].mxu0
        %v2189 = vpop.f32.mrb[0].mxu0
        %2190 = vdwg.mxu0
        %2192 = vrot.lane.b32.xlu0 %v2082, 120
        %v2193 = vpop.permute.xlu0 %2192
        %2195 = vrot.lane.b32.xlu0 %v2083, 120
        %v2196 = vpop.permute.xlu0 %2195
        %v2198 = vsel %vm2085, %v2193, 0
        %v2201 = vsel %vm2085, %v2196, 0
        %2203 = vmatprep.subr.bf16.mxu0 0
        %2204 = vmatpush1.bf16.xpose.msra.mxu0 %v2201
        %2205 = vmatprep.subr.bf16.mxu0 0
        %2206 = vmatpush1.bf16.xpose.msra.mxu0 0
        %2207 = vmatprep.subr.bf16.mxu0 0
        %2208 = vmatpush1.bf16.xpose.msra.mxu0 0
        %2209 = vmatprep.subr.bf16.mxu0 0
        %2210 = vmatpush1.bf16.xpose.msra.mxu0 0
        %2211 = vmatprep.subr.bf16.mxu0 0
        %2212 = vmatpush1.bf16.xpose.msra.mxu0 0
        %2213 = vmatprep.subr.bf16.mxu0 0
        %2214 = vmatpush1.bf16.xpose.msra.mxu0 0
        %2215 = vmatprep.subr.bf16.mxu0 0
        %2216 = vmatpush1.bf16.xpose.msra.mxu0 0
        %2217 = vmatprep.subr.bf16.mxu0 0
        %2218 = vmatpush1.bf16.xpose.msra.mxu0 0
        %2219 = vmatprep.subr.bf16.mxu0 0
        %2220 = vmatpush1.bf16.xpose.msra.mxu0 0
        %2221 = vmatprep.subr.bf16.mxu0 0
        %2222 = vmatpush1.bf16.xpose.msra.mxu0 0
        %2223 = vmatprep.subr.bf16.mxu0 0
        %2224 = vmatpush1.bf16.xpose.msra.mxu0 0
        %2225 = vmatprep.subr.bf16.mxu0 0
        %2226 = vmatpush1.bf16.xpose.msra.mxu0 0
        %2227 = vmatprep.subr.bf16.mxu0 0
        %2228 = vmatpush1.bf16.xpose.msra.mxu0 0
        %2229 = vmatprep.subr.bf16.mxu0 0
        %2230 = vmatpush1.bf16.xpose.msra.mxu0 0
        %2231 = vmatprep.subr.bf16.mxu0 0
        %2232 = vmatpush1.bf16.xpose.msra.mxu0 0
        %2233 = vmatprep.subr.bf16.mxu0 0
        %2234 = vmatpush1.bf16.xpose.msra.mxu0 0
        %2235 = vmatprep.mubr.bf16.mxu0 0
        %2236 = vmatmul.mubr.bf16.gmra.mrb[0].mxu0 %v2198
        %v2237 = vpop.f32.mrb[0].mxu0
        %v2238 = vadd.f32 0.0, %v2237
        %v2239 = vpop.f32.mrb[0].mxu0
        %v2240 = vpop.f32.mrb[0].mxu0
        %v2241 = vpop.f32.mrb[0].mxu0
        %2242 = vdwg.mxu0
        %v2243 = vsel %vm2085, %v2238, -inf
        %2244 = vmax.xlane.f32.xlu0 %v2243
        %v2245 = vpop.xlane.xlu0 %2244
        %v2246 = vsub.f32 %v2238, %v2245
        %v2247 = vmul.f32 %v2246, 1.442695
        %v2248 = vpow.pop %v2247
        %v2249 = vsel %vm2085, %v2248, 0.0
        %2250 = vadd.xlane.f32.xlu0 %v2249
        %v2251 = vpop.xlane.xlu0 %2250
        %v2252 = vrcp.pop %v2251
        %v2253 = vmul.f32 %v2248, %v2252
        %v2254 = vpack.c.bf16 %v2253, %v2253
        %2256 = vrot.lane.b32.xlu0 %v2084, 120
        %v2257 = vpop.permute.xlu0 %2256
        %v2259 = vsel %vm2085, %v2254, 0
        %v2262 = vsel %vm2147, %v2257, 0
        %2264 = vmatprep.subr.bf16.mxu0 0
        %2265 = vmatpush1.bf16.msra.mxu0 %v2262
        %2266 = vmatprep.subr.bf16.mxu0 0
        %2267 = vmatpush1.bf16.msra.mxu0 0
        %2268 = vmatprep.subr.bf16.mxu0 0
        %2269 = vmatpush1.bf16.msra.mxu0 0
        %2270 = vmatprep.subr.bf16.mxu0 0
        %2271 = vmatpush1.bf16.msra.mxu0 0
        %2272 = vmatprep.subr.bf16.mxu0 0
        %2273 = vmatpush1.bf16.msra.mxu0 0
        %2274 = vmatprep.subr.bf16.mxu0 0
        %2275 = vmatpush1.bf16.msra.mxu0 0
        %2276 = vmatprep.subr.bf16.mxu0 0
        %2277 = vmatpush1.bf16.msra.mxu0 0
        %2278 = vmatprep.subr.bf16.mxu0 0
        %2279 = vmatpush1.bf16.msra.mxu0 0
        %2280 = vmatprep.subr.bf16.mxu0 0
        %2281 = vmatpush1.bf16.msra.mxu0 0
        %2282 = vmatprep.subr.bf16.mxu0 0
        %2283 = vmatpush1.bf16.msra.mxu0 0
        %2284 = vmatprep.subr.bf16.mxu0 0
        %2285 = vmatpush1.bf16.msra.mxu0 0
        %2286 = vmatprep.subr.bf16.mxu0 0
        %2287 = vmatpush1.bf16.msra.mxu0 0
        %2288 = vmatprep.subr.bf16.mxu0 0
        %2289 = vmatpush1.bf16.msra.mxu0 0
        %2290 = vmatprep.subr.bf16.mxu0 0
        %2291 = vmatpush1.bf16.msra.mxu0 0
        %2292 = vmatprep.subr.bf16.mxu0 0
        %2293 = vmatpush1.bf16.msra.mxu0 0
        %2294 = vmatprep.subr.bf16.mxu0 0
        %2295 = vmatpush1.bf16.msra.mxu0 0
        %2296 = vmatprep.mubr.bf16.mxu0 0
        %2297 = vmatmul.mubr.bf16.gmra.mrb[0].mxu0 %v2259
        %v2298 = vpop.f32.mrb[0].mxu0
        %v2299 = vadd.f32 0.0, %v2298
        %v2300 = vpop.f32.mrb[0].mxu0
        %v2301 = vpop.f32.mrb[0].mxu0
        %v2302 = vpop.f32.mrb[0].mxu0
        %2303 = vdwg.mxu0
        %2304 = vrot.lane.b32.xlu0 %v2082, 112
        %v2305 = vpop.permute.xlu0 %2304
        %2306 = vrot.lane.b32.xlu0 %v2083, 112
        %v2307 = vpop.permute.xlu0 %2306
        %v2309 = vsel %vm2085, %v2305, 0
        %v2312 = vsel %vm2085, %v2307, 0
        %2314 = vmatprep.subr.bf16.mxu0 0
        %2315 = vmatpush1.bf16.xpose.msra.mxu0 %v2312
        %2316 = vmatprep.subr.bf16.mxu0 0
        %2317 = vmatpush1.bf16.xpose.msra.mxu0 0
        %2318 = vmatprep.subr.bf16.mxu0 0
        %2319 = vmatpush1.bf16.xpose.msra.mxu0 0
        %2320 = vmatprep.subr.bf16.mxu0 0
        %2321 = vmatpush1.bf16.xpose.msra.mxu0 0
        %2322 = vmatprep.subr.bf16.mxu0 0
        %2323 = vmatpush1.bf16.xpose.msra.mxu0 0
        %2324 = vmatprep.subr.bf16.mxu0 0
        %2325 = vmatpush1.bf16.xpose.msra.mxu0 0
        %2326 = vmatprep.subr.bf16.mxu0 0
        %2327 = vmatpush1.bf16.xpose.msra.mxu0 0
        %2328 = vmatprep.subr.bf16.mxu0 0
        %2329 = vmatpush1.bf16.xpose.msra.mxu0 0
        %2330 = vmatprep.subr.bf16.mxu0 0
        %2331 = vmatpush1.bf16.xpose.msra.mxu0 0
        %2332 = vmatprep.subr.bf16.mxu0 0
        %2333 = vmatpush1.bf16.xpose.msra.mxu0 0
        %2334 = vmatprep.subr.bf16.mxu0 0
        %2335 = vmatpush1.bf16.xpose.msra.mxu0 0
        %2336 = vmatprep.subr.bf16.mxu0 0
        %2337 = vmatpush1.bf16.xpose.msra.mxu0 0
        %2338 = vmatprep.subr.bf16.mxu0 0
        %2339 = vmatpush1.bf16.xpose.msra.mxu0 0
        %2340 = vmatprep.subr.bf16.mxu0 0
        %2341 = vmatpush1.bf16.xpose.msra.mxu0 0
        %2342 = vmatprep.subr.bf16.mxu0 0
        %2343 = vmatpush1.bf16.xpose.msra.mxu0 0
        %2344 = vmatprep.subr.bf16.mxu0 0
        %2345 = vmatpush1.bf16.xpose.msra.mxu0 0
        %2346 = vmatprep.mubr.bf16.mxu0 0
        %2347 = vmatmul.mubr.bf16.gmra.mrb[0].mxu0 %v2309
        %v2348 = vpop.f32.mrb[0].mxu0
        %v2349 = vadd.f32 0.0, %v2348
        %v2350 = vpop.f32.mrb[0].mxu0
        %v2351 = vpop.f32.mrb[0].mxu0
        %v2352 = vpop.f32.mrb[0].mxu0
        %2353 = vdwg.mxu0
        %v2354 = vsel %vm2085, %v2349, -inf
        %2355 = vmax.xlane.f32.xlu0 %v2354
        %v2356 = vpop.xlane.xlu0 %2355
        %v2357 = vsub.f32 %v2349, %v2356
        %v2358 = vmul.f32 %v2357, 1.442695
        %v2359 = vpow.pop %v2358
        %v2360 = vsel %vm2085, %v2359, 0.0
        %2361 = vadd.xlane.f32.xlu0 %v2360
        %v2362 = vpop.xlane.xlu0 %2361
        %v2363 = vrcp.pop %v2362
        %v2364 = vmul.f32 %v2359, %v2363
        %v2365 = vpack.c.bf16 %v2364, %v2364
        %2366 = vrot.lane.b32.xlu0 %v2084, 112
        %v2367 = vpop.permute.xlu0 %2366
        %v2369 = vsel %vm2085, %v2365, 0
        %v2372 = vsel %vm2147, %v2367, 0
        %2374 = vmatprep.subr.bf16.mxu0 0
        %2375 = vmatpush1.bf16.msra.mxu0 %v2372
        %2376 = vmatprep.subr.bf16.mxu0 0
        %2377 = vmatpush1.bf16.msra.mxu0 0
        %2378 = vmatprep.subr.bf16.mxu0 0
        %2379 = vmatpush1.bf16.msra.mxu0 0
        %2380 = vmatprep.subr.bf16.mxu0 0
        %2381 = vmatpush1.bf16.msra.mxu0 0
        %2382 = vmatprep.subr.bf16.mxu0 0
        %2383 = vmatpush1.bf16.msra.mxu0 0
        %2384 = vmatprep.subr.bf16.mxu0 0
        %2385 = vmatpush1.bf16.msra.mxu0 0
        %2386 = vmatprep.subr.bf16.mxu0 0
        %2387 = vmatpush1.bf16.msra.mxu0 0
        %2388 = vmatprep.subr.bf16.mxu0 0
        %2389 = vmatpush1.bf16.msra.mxu0 0
        %2390 = vmatprep.subr.bf16.mxu0 0
        %2391 = vmatpush1.bf16.msra.mxu0 0
        %2392 = vmatprep.subr.bf16.mxu0 0
        %2393 = vmatpush1.bf16.msra.mxu0 0
        %2394 = vmatprep.subr.bf16.mxu0 0
        %2395 = vmatpush1.bf16.msra.mxu0 0
        %2396 = vmatprep.subr.bf16.mxu0 0
        %2397 = vmatpush1.bf16.msra.mxu0 0
        %2398 = vmatprep.subr.bf16.mxu0 0
        %2399 = vmatpush1.bf16.msra.mxu0 0
        %2400 = vmatprep.subr.bf16.mxu0 0
        %2401 = vmatpush1.bf16.msra.mxu0 0
        %2402 = vmatprep.subr.bf16.mxu0 0
        %2403 = vmatpush1.bf16.msra.mxu0 0
        %2404 = vmatprep.subr.bf16.mxu0 0
        %2405 = vmatpush1.bf16.msra.mxu0 0
        %2406 = vmatprep.mubr.bf16.mxu0 0
        %2407 = vmatmul.mubr.bf16.gmra.mrb[0].mxu0 %v2369
        %v2408 = vpop.f32.mrb[0].mxu0
        %v2409 = vadd.f32 0.0, %v2408
        %v2410 = vpop.f32.mrb[0].mxu0
        %v2411 = vpop.f32.mrb[0].mxu0
        %v2412 = vpop.f32.mrb[0].mxu0
        %2413 = vdwg.mxu0
        %2414 = vrot.lane.b32.xlu0 %v2082, 104
        %v2415 = vpop.permute.xlu0 %2414
        %2416 = vrot.lane.b32.xlu0 %v2083, 104
        %v2417 = vpop.permute.xlu0 %2416
        %v2419 = vsel %vm2085, %v2415, 0
        %v2422 = vsel %vm2085, %v2417, 0
        %2424 = vmatprep.subr.bf16.mxu0 0
        %2425 = vmatpush1.bf16.xpose.msra.mxu0 %v2422
        %2426 = vmatprep.subr.bf16.mxu0 0
        %2427 = vmatpush1.bf16.xpose.msra.mxu0 0
        %2428 = vmatprep.subr.bf16.mxu0 0
        %2429 = vmatpush1.bf16.xpose.msra.mxu0 0
        %2430 = vmatprep.subr.bf16.mxu0 0
        %2431 = vmatpush1.bf16.xpose.msra.mxu0 0
        %2432 = vmatprep.subr.bf16.mxu0 0
        %2433 = vmatpush1.bf16.xpose.msra.mxu0 0
        %2434 = vmatprep.subr.bf16.mxu0 0
        %2435 = vmatpush1.bf16.xpose.msra.mxu0 0
        %2436 = vmatprep.subr.bf16.mxu0 0
        %2437 = vmatpush1.bf16.xpose.msra.mxu0 0
        %2438 = vmatprep.subr.bf16.mxu0 0
        %2439 = vmatpush1.bf16.xpose.msra.mxu0 0
        %2440 = vmatprep.subr.bf16.mxu0 0
        %2441 = vmatpush1.bf16.xpose.msra.mxu0 0
        %2442 = vmatprep.subr.bf16.mxu0 0
        %2443 = vmatpush1.bf16.xpose.msra.mxu0 0
        %2444 = vmatprep.subr.bf16.mxu0 0
        %2445 = vmatpush1.bf16.xpose.msra.mxu0 0
        %2446 = vmatprep.subr.bf16.mxu0 0
        %2447 = vmatpush1.bf16.xpose.msra.mxu0 0
        %2448 = vmatprep.subr.bf16.mxu0 0
        %2449 = vmatpush1.bf16.xpose.msra.mxu0 0
        %2450 = vmatprep.subr.bf16.mxu0 0
        %2451 = vmatpush1.bf16.xpose.msra.mxu0 0
        %2452 = vmatprep.subr.bf16.mxu0 0
        %2453 = vmatpush1.bf16.xpose.msra.mxu0 0
        %2454 = vmatprep.subr.bf16.mxu0 0
        %2455 = vmatpush1.bf16.xpose.msra.mxu0 0
        %2456 = vmatprep.mubr.bf16.mxu0 0
        %2457 = vmatmul.mubr.bf16.gmra.mrb[0].mxu0 %v2419
        %v2458 = vpop.f32.mrb[0].mxu0
        %v2459 = vadd.f32 0.0, %v2458
        %v2460 = vpop.f32.mrb[0].mxu0
        %v2461 = vpop.f32.mrb[0].mxu0
        %v2462 = vpop.f32.mrb[0].mxu0
        %2463 = vdwg.mxu0
        %v2464 = vsel %vm2085, %v2459, -inf
        %2465 = vmax.xlane.f32.xlu0 %v2464
        %v2466 = vpop.xlane.xlu0 %2465
        %v2467 = vsub.f32 %v2459, %v2466
        %v2468 = vmul.f32 %v2467, 1.442695
        %v2469 = vpow.pop %v2468
        %v2470 = vsel %vm2085, %v2469, 0.0
        %2471 = vadd.xlane.f32.xlu0 %v2470
        %v2472 = vpop.xlane.xlu0 %2471
        %v2473 = vrcp.pop %v2472
        %v2474 = vmul.f32 %v2469, %v2473
        %v2475 = vpack.c.bf16 %v2474, %v2474
        %2476 = vrot.lane.b32.xlu0 %v2084, 104
        %v2477 = vpop.permute.xlu0 %2476
        %v2479 = vsel %vm2085, %v2475, 0
        %v2482 = vsel %vm2147, %v2477, 0
        %2484 = vmatprep.subr.bf16.mxu0 0
        %2485 = vmatpush1.bf16.msra.mxu0 %v2482
        %2486 = vmatprep.subr.bf16.mxu0 0
        %2487 = vmatpush1.bf16.msra.mxu0 0
        %2488 = vmatprep.subr.bf16.mxu0 0
        %2489 = vmatpush1.bf16.msra.mxu0 0
        %2490 = vmatprep.subr.bf16.mxu0 0
        %2491 = vmatpush1.bf16.msra.mxu0 0
        %2492 = vmatprep.subr.bf16.mxu0 0
        %2493 = vmatpush1.bf16.msra.mxu0 0
        %2494 = vmatprep.subr.bf16.mxu0 0
        %2495 = vmatpush1.bf16.msra.mxu0 0
        %2496 = vmatprep.subr.bf16.mxu0 0
        %2497 = vmatpush1.bf16.msra.mxu0 0
        %2498 = vmatprep.subr.bf16.mxu0 0
        %2499 = vmatpush1.bf16.msra.mxu0 0
        %2500 = vmatprep.subr.bf16.mxu0 0
        %2501 = vmatpush1.bf16.msra.mxu0 0
        %2502 = vmatprep.subr.bf16.mxu0 0
        %2503 = vmatpush1.bf16.msra.mxu0 0
        %2504 = vmatprep.subr.bf16.mxu0 0
        %2505 = vmatpush1.bf16.msra.mxu0 0
        %2506 = vmatprep.subr.bf16.mxu0 0
        %2507 = vmatpush1.bf16.msra.mxu0 0
        %2508 = vmatprep.subr.bf16.mxu0 0
        %2509 = vmatpush1.bf16.msra.mxu0 0
        %2510 = vmatprep.subr.bf16.mxu0 0
        %2511 = vmatpush1.bf16.msra.mxu0 0
        %2512 = vmatprep.subr.bf16.mxu0 0
        %2513 = vmatpush1.bf16.msra.mxu0 0
        %2514 = vmatprep.subr.bf16.mxu0 0
        %2515 = vmatpush1.bf16.msra.mxu0 0
        %2516 = vmatprep.mubr.bf16.mxu0 0
        %2517 = vmatmul.mubr.bf16.gmra.mrb[0].mxu0 %v2479
        %v2518 = vpop.f32.mrb[0].mxu0
        %v2519 = vadd.f32 0.0, %v2518
        %v2520 = vpop.f32.mrb[0].mxu0
        %v2521 = vpop.f32.mrb[0].mxu0
        %v2522 = vpop.f32.mrb[0].mxu0
        %2523 = vdwg.mxu0
        %2525 = vrot.lane.b32.xlu0 %v2299, 8
        %v2526 = vpop.permute.xlu0 %2525
        %2529 = vrot.lane.b32.xlu0 %v2409, 16
        %v2530 = vpop.permute.xlu0 %2529
        %2533 = vrot.lane.b32.xlu0 %v2519, 24
        %v2534 = vpop.permute.xlu0 %2533
        %v2536 = vsel %vm2085, %v2186, %v2526
        %vm2537 = vcmask 130048
        %v2538 = vsel %vm2537, %v2536, %v2530
        %vm2539 = vcmask 195584
        %v2540 = vsel %vm2539, %v2538, %v2534
        %v2541 = vrot.slane %v2082, 4
        %v2542 = vrot.slane %v2083, 4
        %v2544 = vsel %vm2085, %v2541, 0
        %v2547 = vsel %vm2085, %v2542, 0
        %2549 = vmatprep.subr.bf16.mxu0 0
        %2550 = vmatpush1.bf16.xpose.msra.mxu0 %v2547
        %2551 = vmatprep.subr.bf16.mxu0 0
        %2552 = vmatpush1.bf16.xpose.msra.mxu0 0
        %2553 = vmatprep.subr.bf16.mxu0 0
        %2554 = vmatpush1.bf16.xpose.msra.mxu0 0
        %2555 = vmatprep.subr.bf16.mxu0 0
        %2556 = vmatpush1.bf16.xpose.msra.mxu0 0
        %2557 = vmatprep.subr.bf16.mxu0 0
        %2558 = vmatpush1.bf16.xpose.msra.mxu0 0
        %2559 = vmatprep.subr.bf16.mxu0 0
        %2560 = vmatpush1.bf16.xpose.msra.mxu0 0
        %2561 = vmatprep.subr.bf16.mxu0 0
        %2562 = vmatpush1.bf16.xpose.msra.mxu0 0
        %2563 = vmatprep.subr.bf16.mxu0 0
        %2564 = vmatpush1.bf16.xpose.msra.mxu0 0
        %2565 = vmatprep.subr.bf16.mxu0 0
        %2566 = vmatpush1.bf16.xpose.msra.mxu0 0
        %2567 = vmatprep.subr.bf16.mxu0 0
        %2568 = vmatpush1.bf16.xpose.msra.mxu0 0
        %2569 = vmatprep.subr.bf16.mxu0 0
        %2570 = vmatpush1.bf16.xpose.msra.mxu0 0
        %2571 = vmatprep.subr.bf16.mxu0 0
        %2572 = vmatpush1.bf16.xpose.msra.mxu0 0
        %2573 = vmatprep.subr.bf16.mxu0 0
        %2574 = vmatpush1.bf16.xpose.msra.mxu0 0
        %2575 = vmatprep.subr.bf16.mxu0 0
        %2576 = vmatpush1.bf16.xpose.msra.mxu0 0
        %2577 = vmatprep.subr.bf16.mxu0 0
        %2578 = vmatpush1.bf16.xpose.msra.mxu0 0
        %2579 = vmatprep.subr.bf16.mxu0 0
        %2580 = vmatpush1.bf16.xpose.msra.mxu0 0
        %2581 = vmatprep.mubr.bf16.mxu0 0
        %2582 = vmatmul.mubr.bf16.gmra.mrb[0].mxu0 %v2544
        %v2583 = vpop.f32.mrb[0].mxu0
        %v2584 = vadd.f32 0.0, %v2583
        %v2585 = vpop.f32.mrb[0].mxu0
        %v2586 = vpop.f32.mrb[0].mxu0
        %v2587 = vpop.f32.mrb[0].mxu0
        %2588 = vdwg.mxu0
        %v2589 = vsel %vm2085, %v2584, -inf
        %2590 = vmax.xlane.f32.xlu0 %v2589
        %v2591 = vpop.xlane.xlu0 %2590
        %v2592 = vsub.f32 %v2584, %v2591
        %v2593 = vmul.f32 %v2592, 1.442695
        %v2594 = vpow.pop %v2593
        %v2595 = vsel %vm2085, %v2594, 0.0
        %2596 = vadd.xlane.f32.xlu0 %v2595
        %v2597 = vpop.xlane.xlu0 %2596
        %v2598 = vrcp.pop %v2597
        %v2599 = vmul.f32 %v2594, %v2598
        %v2600 = vpack.c.bf16 %v2599, %v2599
        %v2601 = vrot.slane %v2084, 4
        %v2603 = vsel %vm2085, %v2600, 0
        %v2606 = vsel %vm2147, %v2601, 0
        %2608 = vmatprep.subr.bf16.mxu0 0
        %2609 = vmatpush1.bf16.msra.mxu0 %v2606
        %2610 = vmatprep.subr.bf16.mxu0 0
        %2611 = vmatpush1.bf16.msra.mxu0 0
        %2612 = vmatprep.subr.bf16.mxu0 0
        %2613 = vmatpush1.bf16.msra.mxu0 0
        %2614 = vmatprep.subr.bf16.mxu0 0
        %2615 = vmatpush1.bf16.msra.mxu0 0
        %2616 = vmatprep.subr.bf16.mxu0 0
        %2617 = vmatpush1.bf16.msra.mxu0 0
        %2618 = vmatprep.subr.bf16.mxu0 0
        %2619 = vmatpush1.bf16.msra.mxu0 0
        %2620 = vmatprep.subr.bf16.mxu0 0
        %2621 = vmatpush1.bf16.msra.mxu0 0
        %2622 = vmatprep.subr.bf16.mxu0 0
        %2623 = vmatpush1.bf16.msra.mxu0 0
        %2624 = vmatprep.subr.bf16.mxu0 0
        %2625 = vmatpush1.bf16.msra.mxu0 0
        %2626 = vmatprep.subr.bf16.mxu0 0
        %2627 = vmatpush1.bf16.msra.mxu0 0
        %2628 = vmatprep.subr.bf16.mxu0 0
        %2629 = vmatpush1.bf16.msra.mxu0 0
        %2630 = vmatprep.subr.bf16.mxu0 0
        %2631 = vmatpush1.bf16.msra.mxu0 0
        %2632 = vmatprep.subr.bf16.mxu0 0
        %2633 = vmatpush1.bf16.msra.mxu0 0
        %2634 = vmatprep.subr.bf16.mxu0 0
        %2635 = vmatpush1.bf16.msra.mxu0 0
        %2636 = vmatprep.subr.bf16.mxu0 0
        %2637 = vmatpush1.bf16.msra.mxu0 0
        %2638 = vmatprep.subr.bf16.mxu0 0
        %2639 = vmatpush1.bf16.msra.mxu0 0
        %2640 = vmatprep.mubr.bf16.mxu0 0
        %2641 = vmatmul.mubr.bf16.gmra.mrb[0].mxu0 %v2603
        %v2642 = vpop.f32.mrb[0].mxu0
        %v2643 = vadd.f32 0.0, %v2642
        %v2644 = vpop.f32.mrb[0].mxu0
        %v2645 = vpop.f32.mrb[0].mxu0
        %v2646 = vpop.f32.mrb[0].mxu0
        %2647 = vdwg.mxu0
        %2648 = vrot.lane.b32.xlu0 %v2541, 120
        %v2649 = vpop.permute.xlu0 %2648
        %2650 = vrot.lane.b32.xlu0 %v2542, 120
        %v2651 = vpop.permute.xlu0 %2650
        %v2653 = vsel %vm2085, %v2649, 0
        %v2656 = vsel %vm2085, %v2651, 0
        %2658 = vmatprep.subr.bf16.mxu0 0
        %2659 = vmatpush1.bf16.xpose.msra.mxu0 %v2656
        %2660 = vmatprep.subr.bf16.mxu0 0
        %2661 = vmatpush1.bf16.xpose.msra.mxu0 0
        %2662 = vmatprep.subr.bf16.mxu0 0
        %2663 = vmatpush1.bf16.xpose.msra.mxu0 0
        %2664 = vmatprep.subr.bf16.mxu0 0
        %2665 = vmatpush1.bf16.xpose.msra.mxu0 0
        %2666 = vmatprep.subr.bf16.mxu0 0
        %2667 = vmatpush1.bf16.xpose.msra.mxu0 0
        %2668 = vmatprep.subr.bf16.mxu0 0
        %2669 = vmatpush1.bf16.xpose.msra.mxu0 0
        %2670 = vmatprep.subr.bf16.mxu0 0
        %2671 = vmatpush1.bf16.xpose.msra.mxu0 0
        %2672 = vmatprep.subr.bf16.mxu0 0
        %2673 = vmatpush1.bf16.xpose.msra.mxu0 0
        %2674 = vmatprep.subr.bf16.mxu0 0
        %2675 = vmatpush1.bf16.xpose.msra.mxu0 0
        %2676 = vmatprep.subr.bf16.mxu0 0
        %2677 = vmatpush1.bf16.xpose.msra.mxu0 0
        %2678 = vmatprep.subr.bf16.mxu0 0
        %2679 = vmatpush1.bf16.xpose.msra.mxu0 0
        %2680 = vmatprep.subr.bf16.mxu0 0
        %2681 = vmatpush1.bf16.xpose.msra.mxu0 0
        %2682 = vmatprep.subr.bf16.mxu0 0
        %2683 = vmatpush1.bf16.xpose.msra.mxu0 0
        %2684 = vmatprep.subr.bf16.mxu0 0
        %2685 = vmatpush1.bf16.xpose.msra.mxu0 0
        %2686 = vmatprep.subr.bf16.mxu0 0
        %2687 = vmatpush1.bf16.xpose.msra.mxu0 0
        %2688 = vmatprep.subr.bf16.mxu0 0
        %2689 = vmatpush1.bf16.xpose.msra.mxu0 0
        %2690 = vmatprep.mubr.bf16.mxu0 0
        %2691 = vmatmul.mubr.bf16.gmra.mrb[0].mxu0 %v2653
        %v2692 = vpop.f32.mrb[0].mxu0
        %v2693 = vadd.f32 0.0, %v2692
        %v2694 = vpop.f32.mrb[0].mxu0
        %v2695 = vpop.f32.mrb[0].mxu0
        %v2696 = vpop.f32.mrb[0].mxu0
        %2697 = vdwg.mxu0
        %v2698 = vsel %vm2085, %v2693, -inf
        %2699 = vmax.xlane.f32.xlu0 %v2698
        %v2700 = vpop.xlane.xlu0 %2699
        %v2701 = vsub.f32 %v2693, %v2700
        %v2702 = vmul.f32 %v2701, 1.442695
        %v2703 = vpow.pop %v2702
        %v2704 = vsel %vm2085, %v2703, 0.0
        %2705 = vadd.xlane.f32.xlu0 %v2704
        %v2706 = vpop.xlane.xlu0 %2705
        %v2707 = vrcp.pop %v2706
        %v2708 = vmul.f32 %v2703, %v2707
        %v2709 = vpack.c.bf16 %v2708, %v2708
        %2710 = vrot.lane.b32.xlu0 %v2601, 120
        %v2711 = vpop.permute.xlu0 %2710
        %v2713 = vsel %vm2085, %v2709, 0
        %v2716 = vsel %vm2147, %v2711, 0
        %2718 = vmatprep.subr.bf16.mxu0 0
        %2719 = vmatpush1.bf16.msra.mxu0 %v2716
        %2720 = vmatprep.subr.bf16.mxu0 0
        %2721 = vmatpush1.bf16.msra.mxu0 0
        %2722 = vmatprep.subr.bf16.mxu0 0
        %2723 = vmatpush1.bf16.msra.mxu0 0
        %2724 = vmatprep.subr.bf16.mxu0 0
        %2725 = vmatpush1.bf16.msra.mxu0 0
        %2726 = vmatprep.subr.bf16.mxu0 0
        %2727 = vmatpush1.bf16.msra.mxu0 0
        %2728 = vmatprep.subr.bf16.mxu0 0
        %2729 = vmatpush1.bf16.msra.mxu0 0
        %2730 = vmatprep.subr.bf16.mxu0 0
        %2731 = vmatpush1.bf16.msra.mxu0 0
        %2732 = vmatprep.subr.bf16.mxu0 0
        %2733 = vmatpush1.bf16.msra.mxu0 0
        %2734 = vmatprep.subr.bf16.mxu0 0
        %2735 = vmatpush1.bf16.msra.mxu0 0
        %2736 = vmatprep.subr.bf16.mxu0 0
        %2737 = vmatpush1.bf16.msra.mxu0 0
        %2738 = vmatprep.subr.bf16.mxu0 0
        %2739 = vmatpush1.bf16.msra.mxu0 0
        %2740 = vmatprep.subr.bf16.mxu0 0
        %2741 = vmatpush1.bf16.msra.mxu0 0
        %2742 = vmatprep.subr.bf16.mxu0 0
        %2743 = vmatpush1.bf16.msra.mxu0 0
        %2744 = vmatprep.subr.bf16.mxu0 0
        %2745 = vmatpush1.bf16.msra.mxu0 0
        %2746 = vmatprep.subr.bf16.mxu0 0
        %2747 = vmatpush1.bf16.msra.mxu0 0
        %2748 = vmatprep.subr.bf16.mxu0 0
        %2749 = vmatpush1.bf16.msra.mxu0 0
        %2750 = vmatprep.mubr.bf16.mxu0 0
        %2751 = vmatmul.mubr.bf16.gmra.mrb[0].mxu0 %v2713
        %v2752 = vpop.f32.mrb[0].mxu0
        %v2753 = vadd.f32 0.0, %v2752
        %v2754 = vpop.f32.mrb[0].mxu0
        %v2755 = vpop.f32.mrb[0].mxu0
        %v2756 = vpop.f32.mrb[0].mxu0
        %2757 = vdwg.mxu0
        %2758 = vrot.lane.b32.xlu0 %v2541, 112
        %v2759 = vpop.permute.xlu0 %2758
        %2760 = vrot.lane.b32.xlu0 %v2542, 112
        %v2761 = vpop.permute.xlu0 %2760
        %v2763 = vsel %vm2085, %v2759, 0
        %v2766 = vsel %vm2085, %v2761, 0
        %2768 = vmatprep.subr.bf16.mxu0 0
        %2769 = vmatpush1.bf16.xpose.msra.mxu0 %v2766
        %2770 = vmatprep.subr.bf16.mxu0 0
        %2771 = vmatpush1.bf16.xpose.msra.mxu0 0
        %2772 = vmatprep.subr.bf16.mxu0 0
        %2773 = vmatpush1.bf16.xpose.msra.mxu0 0
        %2774 = vmatprep.subr.bf16.mxu0 0
        %2775 = vmatpush1.bf16.xpose.msra.mxu0 0
        %2776 = vmatprep.subr.bf16.mxu0 0
        %2777 = vmatpush1.bf16.xpose.msra.mxu0 0
        %2778 = vmatprep.subr.bf16.mxu0 0
        %2779 = vmatpush1.bf16.xpose.msra.mxu0 0
        %2780 = vmatprep.subr.bf16.mxu0 0
        %2781 = vmatpush1.bf16.xpose.msra.mxu0 0
        %2782 = vmatprep.subr.bf16.mxu0 0
        %2783 = vmatpush1.bf16.xpose.msra.mxu0 0
        %2784 = vmatprep.subr.bf16.mxu0 0
        %2785 = vmatpush1.bf16.xpose.msra.mxu0 0
        %2786 = vmatprep.subr.bf16.mxu0 0
        %2787 = vmatpush1.bf16.xpose.msra.mxu0 0
        %2788 = vmatprep.subr.bf16.mxu0 0
        %2789 = vmatpush1.bf16.xpose.msra.mxu0 0
        %2790 = vmatprep.subr.bf16.mxu0 0
        %2791 = vmatpush1.bf16.xpose.msra.mxu0 0
        %2792 = vmatprep.subr.bf16.mxu0 0
        %2793 = vmatpush1.bf16.xpose.msra.mxu0 0
        %2794 = vmatprep.subr.bf16.mxu0 0
        %2795 = vmatpush1.bf16.xpose.msra.mxu0 0
        %2796 = vmatprep.subr.bf16.mxu0 0
        %2797 = vmatpush1.bf16.xpose.msra.mxu0 0
        %2798 = vmatprep.subr.bf16.mxu0 0
        %2799 = vmatpush1.bf16.xpose.msra.mxu0 0
        %2800 = vmatprep.mubr.bf16.mxu0 0
        %2801 = vmatmul.mubr.bf16.gmra.mrb[0].mxu0 %v2763
        %v2802 = vpop.f32.mrb[0].mxu0
        %v2803 = vadd.f32 0.0, %v2802
        %v2804 = vpop.f32.mrb[0].mxu0
        %v2805 = vpop.f32.mrb[0].mxu0
        %v2806 = vpop.f32.mrb[0].mxu0
        %2807 = vdwg.mxu0
        %v2808 = vsel %vm2085, %v2803, -inf
        %2809 = vmax.xlane.f32.xlu0 %v2808
        %v2810 = vpop.xlane.xlu0 %2809
        %v2811 = vsub.f32 %v2803, %v2810
        %v2812 = vmul.f32 %v2811, 1.442695
        %v2813 = vpow.pop %v2812
        %v2814 = vsel %vm2085, %v2813, 0.0
        %2815 = vadd.xlane.f32.xlu0 %v2814
        %v2816 = vpop.xlane.xlu0 %2815
        %v2817 = vrcp.pop %v2816
        %v2818 = vmul.f32 %v2813, %v2817
        %v2819 = vpack.c.bf16 %v2818, %v2818
        %2820 = vrot.lane.b32.xlu0 %v2601, 112
        %v2821 = vpop.permute.xlu0 %2820
        %v2823 = vsel %vm2085, %v2819, 0
        %v2826 = vsel %vm2147, %v2821, 0
        %2828 = vmatprep.subr.bf16.mxu0 0
        %2829 = vmatpush1.bf16.msra.mxu0 %v2826
        %2830 = vmatprep.subr.bf16.mxu0 0
        %2831 = vmatpush1.bf16.msra.mxu0 0
        %2832 = vmatprep.subr.bf16.mxu0 0
        %2833 = vmatpush1.bf16.msra.mxu0 0
        %2834 = vmatprep.subr.bf16.mxu0 0
        %2835 = vmatpush1.bf16.msra.mxu0 0
        %2836 = vmatprep.subr.bf16.mxu0 0
        %2837 = vmatpush1.bf16.msra.mxu0 0
        %2838 = vmatprep.subr.bf16.mxu0 0
        %2839 = vmatpush1.bf16.msra.mxu0 0
        %2840 = vmatprep.subr.bf16.mxu0 0
        %2841 = vmatpush1.bf16.msra.mxu0 0
        %2842 = vmatprep.subr.bf16.mxu0 0
        %2843 = vmatpush1.bf16.msra.mxu0 0
        %2844 = vmatprep.subr.bf16.mxu0 0
        %2845 = vmatpush1.bf16.msra.mxu0 0
        %2846 = vmatprep.subr.bf16.mxu0 0
        %2847 = vmatpush1.bf16.msra.mxu0 0
        %2848 = vmatprep.subr.bf16.mxu0 0
        %2849 = vmatpush1.bf16.msra.mxu0 0
        %2850 = vmatprep.subr.bf16.mxu0 0
        %2851 = vmatpush1.bf16.msra.mxu0 0
        %2852 = vmatprep.subr.bf16.mxu0 0
        %2853 = vmatpush1.bf16.msra.mxu0 0
        %2854 = vmatprep.subr.bf16.mxu0 0
        %2855 = vmatpush1.bf16.msra.mxu0 0
        %2856 = vmatprep.subr.bf16.mxu0 0
        %2857 = vmatpush1.bf16.msra.mxu0 0
        %2858 = vmatprep.subr.bf16.mxu0 0
        %2859 = vmatpush1.bf16.msra.mxu0 0
        %2860 = vmatprep.mubr.bf16.mxu0 0
        %2861 = vmatmul.mubr.bf16.gmra.mrb[0].mxu0 %v2823
        %v2862 = vpop.f32.mrb[0].mxu0
        %v2863 = vadd.f32 0.0, %v2862
        %v2864 = vpop.f32.mrb[0].mxu0
        %v2865 = vpop.f32.mrb[0].mxu0
        %v2866 = vpop.f32.mrb[0].mxu0
        %2867 = vdwg.mxu0
        %2868 = vrot.lane.b32.xlu0 %v2541, 104
        %v2869 = vpop.permute.xlu0 %2868
        %2870 = vrot.lane.b32.xlu0 %v2542, 104
        %v2871 = vpop.permute.xlu0 %2870
        %v2873 = vsel %vm2085, %v2869, 0
        %v2876 = vsel %vm2085, %v2871, 0
        %2878 = vmatprep.subr.bf16.mxu0 0
        %2879 = vmatpush1.bf16.xpose.msra.mxu0 %v2876
        %2880 = vmatprep.subr.bf16.mxu0 0
        %2881 = vmatpush1.bf16.xpose.msra.mxu0 0
        %2882 = vmatprep.subr.bf16.mxu0 0
        %2883 = vmatpush1.bf16.xpose.msra.mxu0 0
        %2884 = vmatprep.subr.bf16.mxu0 0
        %2885 = vmatpush1.bf16.xpose.msra.mxu0 0
        %2886 = vmatprep.subr.bf16.mxu0 0
        %2887 = vmatpush1.bf16.xpose.msra.mxu0 0
        %2888 = vmatprep.subr.bf16.mxu0 0
        %2889 = vmatpush1.bf16.xpose.msra.mxu0 0
        %2890 = vmatprep.subr.bf16.mxu0 0
        %2891 = vmatpush1.bf16.xpose.msra.mxu0 0
        %2892 = vmatprep.subr.bf16.mxu0 0
        %2893 = vmatpush1.bf16.xpose.msra.mxu0 0
        %2894 = vmatprep.subr.bf16.mxu0 0
        %2895 = vmatpush1.bf16.xpose.msra.mxu0 0
        %2896 = vmatprep.subr.bf16.mxu0 0
        %2897 = vmatpush1.bf16.xpose.msra.mxu0 0
        %2898 = vmatprep.subr.bf16.mxu0 0
        %2899 = vmatpush1.bf16.xpose.msra.mxu0 0
        %2900 = vmatprep.subr.bf16.mxu0 0
        %2901 = vmatpush1.bf16.xpose.msra.mxu0 0
        %2902 = vmatprep.subr.bf16.mxu0 0
        %2903 = vmatpush1.bf16.xpose.msra.mxu0 0
        %2904 = vmatprep.subr.bf16.mxu0 0
        %2905 = vmatpush1.bf16.xpose.msra.mxu0 0
        %2906 = vmatprep.subr.bf16.mxu0 0
        %2907 = vmatpush1.bf16.xpose.msra.mxu0 0
        %2908 = vmatprep.subr.bf16.mxu0 0
        %2909 = vmatpush1.bf16.xpose.msra.mxu0 0
        %2910 = vmatprep.mubr.bf16.mxu0 0
        %2911 = vmatmul.mubr.bf16.gmra.mrb[0].mxu0 %v2873
        %v2912 = vpop.f32.mrb[0].mxu0
        %v2913 = vadd.f32 0.0, %v2912
        %v2914 = vpop.f32.mrb[0].mxu0
        %v2915 = vpop.f32.mrb[0].mxu0
        %v2916 = vpop.f32.mrb[0].mxu0
        %2917 = vdwg.mxu0
        %v2918 = vsel %vm2085, %v2913, -inf
        %2919 = vmax.xlane.f32.xlu0 %v2918
        %v2920 = vpop.xlane.xlu0 %2919
        %v2921 = vsub.f32 %v2913, %v2920
        %v2922 = vmul.f32 %v2921, 1.442695
        %v2923 = vpow.pop %v2922
        %v2924 = vsel %vm2085, %v2923, 0.0
        %2925 = vadd.xlane.f32.xlu0 %v2924
        %v2926 = vpop.xlane.xlu0 %2925
        %v2927 = vrcp.pop %v2926
        %v2928 = vmul.f32 %v2923, %v2927
        %v2929 = vpack.c.bf16 %v2928, %v2928
        %2930 = vrot.lane.b32.xlu0 %v2601, 104
        %v2931 = vpop.permute.xlu0 %2930
        %v2933 = vsel %vm2085, %v2929, 0
        %v2936 = vsel %vm2147, %v2931, 0
        %2938 = vmatprep.subr.bf16.mxu0 0
        %2939 = vmatpush1.bf16.msra.mxu0 %v2936
        %2940 = vmatprep.subr.bf16.mxu0 0
        %2941 = vmatpush1.bf16.msra.mxu0 0
        %2942 = vmatprep.subr.bf16.mxu0 0
        %2943 = vmatpush1.bf16.msra.mxu0 0
        %2944 = vmatprep.subr.bf16.mxu0 0
        %2945 = vmatpush1.bf16.msra.mxu0 0
        %2946 = vmatprep.subr.bf16.mxu0 0
        %2947 = vmatpush1.bf16.msra.mxu0 0
        %2948 = vmatprep.subr.bf16.mxu0 0
        %2949 = vmatpush1.bf16.msra.mxu0 0
        %2950 = vmatprep.subr.bf16.mxu0 0
        %2951 = vmatpush1.bf16.msra.mxu0 0
        %2952 = vmatprep.subr.bf16.mxu0 0
        %2953 = vmatpush1.bf16.msra.mxu0 0
        %2954 = vmatprep.subr.bf16.mxu0 0
        %2955 = vmatpush1.bf16.msra.mxu0 0
        %2956 = vmatprep.subr.bf16.mxu0 0
        %2957 = vmatpush1.bf16.msra.mxu0 0
        %2958 = vmatprep.subr.bf16.mxu0 0
        %2959 = vmatpush1.bf16.msra.mxu0 0
        %2960 = vmatprep.subr.bf16.mxu0 0
        %2961 = vmatpush1.bf16.msra.mxu0 0
        %2962 = vmatprep.subr.bf16.mxu0 0
        %2963 = vmatpush1.bf16.msra.mxu0 0
        %2964 = vmatprep.subr.bf16.mxu0 0
        %2965 = vmatpush1.bf16.msra.mxu0 0
        %2966 = vmatprep.subr.bf16.mxu0 0
        %2967 = vmatpush1.bf16.msra.mxu0 0
        %2968 = vmatprep.subr.bf16.mxu0 0
        %2969 = vmatpush1.bf16.msra.mxu0 0
        %2970 = vmatprep.mubr.bf16.mxu0 0
        %2971 = vmatmul.mubr.bf16.gmra.mrb[0].mxu0 %v2933
        %v2972 = vpop.f32.mrb[0].mxu0
        %v2973 = vadd.f32 0.0, %v2972
        %v2974 = vpop.f32.mrb[0].mxu0
        %v2975 = vpop.f32.mrb[0].mxu0
        %v2976 = vpop.f32.mrb[0].mxu0
        %2977 = vdwg.mxu0
        %2979 = vrot.lane.b32.xlu0 %v2753, 8
        %v2980 = vpop.permute.xlu0 %2979
        %2983 = vrot.lane.b32.xlu0 %v2863, 16
        %v2984 = vpop.permute.xlu0 %2983
        %2987 = vrot.lane.b32.xlu0 %v2973, 24
        %v2988 = vpop.permute.xlu0 %2987
        %v2990 = vsel %vm2085, %v2643, %v2980
        %v2991 = vsel %vm2537, %v2990, %v2984
        %v2992 = vsel %vm2539, %v2991, %v2988
        %v2993 = vld [vmem:[%s1506] sm:$0xf]
        %v2994 = vld [vmem:[%s1506 + $0x4] sm:$0xf]
        %v2995 = vld [vmem:[%s1506 + $0x8] sm:$0xf]
        %v2996 = vld [vmem:[%s1506 + $0xc] sm:$0xf]
        %v2997 = vpack.c.bf16 %v2992, %v2540
        %v2998 = vld [vmem:[%s1514] sm:$0x1]
        %v3000 = vlaneseq
        %v3001 = vshrl.u32 %v3000, 7
        %v3002 = vsub.s32 0, %v3001
        %v3003 = vrot.slane %v2998, %v3002
        %v3009 = vunpack.c.l.b16 %v2993
        %v3010 = vunpack.c.l.b16 %v2994
        %v3011 = vunpack.c.l.b16 %v2995
        %v3012 = vunpack.c.l.b16 %v2996
        %v3013 = vpack.c.b16 %v3010, %v3009
        %v3014 = vpack.c.b16 %v3012, %v3011
        %v3018 = vsel %vm1909, %v2997, 0
        %3020 = vmatprep.subr.bf16.mxu0 0
        %3021 = vmatpush1.bf16.msra.mxu0 %v3013
        %3022 = vmatprep.subr.bf16.mxu0 0
        %3023 = vmatpush1.bf16.msra.mxu0 %v3014
        %3024 = vmatprep.subr.bf16.mxu0 0
        %3025 = vmatpush1.bf16.msra.mxu0 0
        %3026 = vmatprep.subr.bf16.mxu0 0
        %3027 = vmatpush1.bf16.msra.mxu0 0
        %3028 = vmatprep.subr.bf16.mxu0 0
        %3029 = vmatpush1.bf16.msra.mxu0 0
        %3030 = vmatprep.subr.bf16.mxu0 0
        %3031 = vmatpush1.bf16.msra.mxu0 0
        %3032 = vmatprep.subr.bf16.mxu0 0
        %3033 = vmatpush1.bf16.msra.mxu0 0
        %3034 = vmatprep.subr.bf16.mxu0 0
        %3035 = vmatpush1.bf16.msra.mxu0 0
        %3036 = vmatprep.subr.bf16.mxu0 0
        %3037 = vmatpush1.bf16.msra.mxu0 0
        %3038 = vmatprep.subr.bf16.mxu0 0
        %3039 = vmatpush1.bf16.msra.mxu0 0
        %3040 = vmatprep.subr.bf16.mxu0 0
        %3041 = vmatpush1.bf16.msra.mxu0 0
        %3042 = vmatprep.subr.bf16.mxu0 0
        %3043 = vmatpush1.bf16.msra.mxu0 0
        %3044 = vmatprep.subr.bf16.mxu0 0
        %3045 = vmatpush1.bf16.msra.mxu0 0
        %3046 = vmatprep.subr.bf16.mxu0 0
        %3047 = vmatpush1.bf16.msra.mxu0 0
        %3048 = vmatprep.subr.bf16.mxu0 0
        %3049 = vmatpush1.bf16.msra.mxu0 0
        %3050 = vmatprep.subr.bf16.mxu0 0
        %3051 = vmatpush1.bf16.msra.mxu0 0
        %3052 = vmatprep.mubr.bf16.mxu0 0
        %3053 = vmatmul.mubr.bf16.gmra.mrb[0].mxu0 %v3018
        %v3054 = vpop.f32.mrb[0].mxu0
        %v3055 = vadd.f32 %v3003, %v3054
        %v3056 = vpop.f32.mrb[0].mxu0
        %v3057 = vpop.f32.mrb[0].mxu0
        %v3058 = vadd.f32 %v3003, %v3057
        %v3059 = vpop.f32.mrb[0].mxu0
        %3060 = vdwg.mxu0
        %v3061 = vld [vmem:[%s1522] sm:$0x1]
        %v3062 = vld [vmem:[%s1530] sm:$0x1]
        %v3063 = vadd.f32 %v3055, %v1881
        %v3064 = vadd.f32 %v3058, %v1882
        %v3065 = vsel %vm1909, %v3063, 0.0
        %3066 = vadd.xlane.f32.xlu0 %v3065
        %v3067 = vpop.xlane.xlu0 %3066
        %v3068 = vsel %vm1909, %v3064, 0.0
        %3069 = vadd.xlane.f32.xlu0 %v3068
        %v3070 = vpop.xlane.xlu0 %3069
        %v3071 = vrcp.pop 32.0
        %v3072 = vmul.f32 %v3067, %v3071
        %v3073 = vmul.f32 %v3070, %v3071
        %v3074 = vsub.f32 %v3063, %v3072
        %v3075 = vsub.f32 %v3064, %v3073
        %v3076 = vmul.f32 %v3074, %v3074
        %v3077 = vmul.f32 %v3075, %v3075
        %v3078 = vsel %vm1909, %v3076, 0.0
        %3079 = vadd.xlane.f32.xlu0 %v3078
        %v3080 = vpop.xlane.xlu0 %3079
        %v3081 = vsel %vm1909, %v3077, 0.0
        %3082 = vadd.xlane.f32.xlu0 %v3081
        %v3083 = vpop.xlane.xlu0 %3082
        %v3084 = vmul.f32 %v3080, %v3071
        %v3085 = vmul.f32 %v3083, %v3071
        %v3086 = vadd.f32 %v3084, 1e-05
        %v3087 = vadd.f32 %v3085, 1e-05
        %v3088 = vrsqrt.pop %v3086
        %v3089 = vrsqrt.pop %v3087
        %v3090 = vmul.f32 %v3074, %v3088
        %v3091 = vmul.f32 %v3075, %v3089
        %v3093 = vlaneseq
        %v3094 = vshrl.u32 %v3093, 7
        %v3095 = vsub.s32 0, %v3094
        %v3096 = vrot.slane %v3061, %v3095
        %v3098 = vmul.f32 %v3090, %v3096
        %v3099 = vmul.f32 %v3091, %v3096
        %v3101 = vlaneseq
        %v3102 = vshrl.u32 %v3101, 7
        %v3103 = vsub.s32 0, %v3102
        %v3104 = vrot.slane %v3062, %v3103
        %v3106 = vadd.f32 %v3098, %v3104
        %v3107 = vadd.f32 %v3099, %v3104
        %v3108 = vld [vmem:[%s1539] sm:$0xf]
        %v3109 = vld [vmem:[%s1539 + $0x4] sm:$0xf]
        %v3110 = vld [vmem:[%s1539 + $0x8] sm:$0xf]
        %v3111 = vld [vmem:[%s1539 + $0xc] sm:$0xf]
        %v3112 = vpack.c.bf16 %v3107, %v3106
        %v3113 = vld [vmem:[%s1547] sm:$0x1]
        %v3115 = vlaneseq
        %v3116 = vshrl.u32 %v3115, 7
        %v3117 = vsub.s32 0, %v3116
        %v3118 = vrot.slane %v3113, %v3117
        %v3124 = vunpack.c.l.b16 %v3108
        %v3125 = vunpack.c.l.b16 %v3109
        %v3126 = vunpack.c.l.b16 %v3110
        %v3127 = vunpack.c.l.b16 %v3111
        %v3128 = vpack.c.b16 %v3125, %v3124
        %v3129 = vpack.c.b16 %v3127, %v3126
        %v3133 = vsel %vm1909, %v3112, 0
        %3135 = vmatprep.subr.bf16.mxu0 0
        %3136 = vmatpush1.bf16.msra.mxu0 %v3128
        %3137 = vmatprep.subr.bf16.mxu0 0
        %3138 = vmatpush1.bf16.msra.mxu0 %v3129
        %3139 = vmatprep.subr.bf16.mxu0 0
        %3140 = vmatpush1.bf16.msra.mxu0 0
        %3141 = vmatprep.subr.bf16.mxu0 0
        %3142 = vmatpush1.bf16.msra.mxu0 0
        %3143 = vmatprep.subr.bf16.mxu0 0
        %3144 = vmatpush1.bf16.msra.mxu0 0
        %3145 = vmatprep.subr.bf16.mxu0 0
        %3146 = vmatpush1.bf16.msra.mxu0 0
        %3147 = vmatprep.subr.bf16.mxu0 0
        %3148 = vmatpush1.bf16.msra.mxu0 0
        %3149 = vmatprep.subr.bf16.mxu0 0
        %3150 = vmatpush1.bf16.msra.mxu0 0
        %3151 = vmatprep.subr.bf16.mxu0 0
        %3152 = vmatpush1.bf16.msra.mxu0 0
        %3153 = vmatprep.subr.bf16.mxu0 0
        %3154 = vmatpush1.bf16.msra.mxu0 0
        %3155 = vmatprep.subr.bf16.mxu0 0
        %3156 = vmatpush1.bf16.msra.mxu0 0
        %3157 = vmatprep.subr.bf16.mxu0 0
        %3158 = vmatpush1.bf16.msra.mxu0 0
        %3159 = vmatprep.subr.bf16.mxu0 0
        %3160 = vmatpush1.bf16.msra.mxu0 0
        %3161 = vmatprep.subr.bf16.mxu0 0
        %3162 = vmatpush1.bf16.msra.mxu0 0
        %3163 = vmatprep.subr.bf16.mxu0 0
        %3164 = vmatpush1.bf16.msra.mxu0 0
        %3165 = vmatprep.subr.bf16.mxu0 0
        %3166 = vmatpush1.bf16.msra.mxu0 0
        %3167 = vmatprep.mubr.bf16.mxu0 0
        %3168 = vmatmul.mubr.bf16.gmra.mrb[0].mxu0 %v3133
        %v3169 = vpop.f32.mrb[0].mxu0
        %v3170 = vadd.f32 %v3118, %v3169
        %v3171 = vpop.f32.mrb[0].mxu0
        %v3172 = vpop.f32.mrb[0].mxu0
        %v3173 = vadd.f32 %v3118, %v3172
        %v3174 = vpop.f32.mrb[0].mxu0
        %3175 = vdwg.mxu0
        %v3176 = vld [vmem:[%s1556] sm:$0xf]
        %v3177 = vld [vmem:[%s1556 + $0x4] sm:$0xf]
        %v3178 = vld [vmem:[%s1556 + $0x8] sm:$0xf]
        %v3179 = vld [vmem:[%s1556 + $0xc] sm:$0xf]
        %v3180 = vpack.c.bf16 %v1884, %v1883
        %v3181 = vld [vmem:[%s1564] sm:$0x1]
        %v3183 = vlaneseq
        %v3184 = vshrl.u32 %v3183, 7
        %v3185 = vsub.s32 0, %v3184
        %v3186 = vrot.slane %v3181, %v3185
        %v3192 = vunpack.c.l.b16 %v3176
        %v3193 = vunpack.c.l.b16 %v3177
        %v3194 = vunpack.c.l.b16 %v3178
        %v3195 = vunpack.c.l.b16 %v3179
        %v3196 = vpack.c.b16 %v3193, %v3192
        %v3197 = vpack.c.b16 %v3195, %v3194
        %v3201 = vsel %vm1909, %v3180, 0
        %3203 = vmatprep.subr.bf16.mxu0 0
        %3204 = vmatpush1.bf16.msra.mxu0 %v3196
        %3205 = vmatprep.subr.bf16.mxu0 0
        %3206 = vmatpush1.bf16.msra.mxu0 %v3197
        %3207 = vmatprep.subr.bf16.mxu0 0
        %3208 = vmatpush1.bf16.msra.mxu0 0
        %3209 = vmatprep.subr.bf16.mxu0 0
        %3210 = vmatpush1.bf16.msra.mxu0 0
        %3211 = vmatprep.subr.bf16.mxu0 0
        %3212 = vmatpush1.bf16.msra.mxu0 0
        %3213 = vmatprep.subr.bf16.mxu0 0
        %3214 = vmatpush1.bf16.msra.mxu0 0
        %3215 = vmatprep.subr.bf16.mxu0 0
        %3216 = vmatpush1.bf16.msra.mxu0 0
        %3217 = vmatprep.subr.bf16.mxu0 0
        %3218 = vmatpush1.bf16.msra.mxu0 0
        %3219 = vmatprep.subr.bf16.mxu0 0
        %3220 = vmatpush1.bf16.msra.mxu0 0
        %3221 = vmatprep.subr.bf16.mxu0 0
        %3222 = vmatpush1.bf16.msra.mxu0 0
        %3223 = vmatprep.subr.bf16.mxu0 0
        %3224 = vmatpush1.bf16.msra.mxu0 0
        %3225 = vmatprep.subr.bf16.mxu0 0
        %3226 = vmatpush1.bf16.msra.mxu0 0
        %3227 = vmatprep.subr.bf16.mxu0 0
        %3228 = vmatpush1.bf16.msra.mxu0 0
        %3229 = vmatprep.subr.bf16.mxu0 0
        %3230 = vmatpush1.bf16.msra.mxu0 0
        %3231 = vmatprep.subr.bf16.mxu0 0
        %3232 = vmatpush1.bf16.msra.mxu0 0
        %3233 = vmatprep.subr.bf16.mxu0 0
        %3234 = vmatpush1.bf16.msra.mxu0 0
        %3235 = vmatprep.mubr.bf16.mxu0 0
        %3236 = vmatmul.mubr.bf16.gmra.mrb[0].mxu0 %v3201
        %v3237 = vpop.f32.mrb[0].mxu0
        %v3238 = vadd.f32 %v3186, %v3237
        %v3239 = vpop.f32.mrb[0].mxu0
        %v3240 = vpop.f32.mrb[0].mxu0
        %v3241 = vadd.f32 %v3186, %v3240
        %v3242 = vpop.f32.mrb[0].mxu0
        %3243 = vdwg.mxu0
        %v3244 = vld [vmem:[%s1573] sm:$0xf]
        %v3245 = vld [vmem:[%s1573 + $0x4] sm:$0xf]
        %v3246 = vld [vmem:[%s1573 + $0x8] sm:$0xf]
        %v3247 = vld [vmem:[%s1573 + $0xc] sm:$0xf]
        %v3248 = vld [vmem:[%s1581] sm:$0x1]
        %v3250 = vlaneseq
        %v3251 = vshrl.u32 %v3250, 7
        %v3252 = vsub.s32 0, %v3251
        %v3253 = vrot.slane %v3248, %v3252
        %v3259 = vunpack.c.l.b16 %v3244
        %v3260 = vunpack.c.l.b16 %v3245
        %v3261 = vunpack.c.l.b16 %v3246
        %v3262 = vunpack.c.l.b16 %v3247
        %v3263 = vpack.c.b16 %v3260, %v3259
        %v3264 = vpack.c.b16 %v3262, %v3261
        %3267 = vmatprep.subr.bf16.mxu0 0
        %3268 = vmatpush1.bf16.msra.mxu0 %v3263
        %3269 = vmatprep.subr.bf16.mxu0 0
        %3270 = vmatpush1.bf16.msra.mxu0 %v3264
        %3271 = vmatprep.subr.bf16.mxu0 0
        %3272 = vmatpush1.bf16.msra.mxu0 0
        %3273 = vmatprep.subr.bf16.mxu0 0
        %3274 = vmatpush1.bf16.msra.mxu0 0
        %3275 = vmatprep.subr.bf16.mxu0 0
        %3276 = vmatpush1.bf16.msra.mxu0 0
        %3277 = vmatprep.subr.bf16.mxu0 0
        %3278 = vmatpush1.bf16.msra.mxu0 0
        %3279 = vmatprep.subr.bf16.mxu0 0
        %3280 = vmatpush1.bf16.msra.mxu0 0
        %3281 = vmatprep.subr.bf16.mxu0 0
        %3282 = vmatpush1.bf16.msra.mxu0 0
        %3283 = vmatprep.subr.bf16.mxu0 0
        %3284 = vmatpush1.bf16.msra.mxu0 0
        %3285 = vmatprep.subr.bf16.mxu0 0
        %3286 = vmatpush1.bf16.msra.mxu0 0
        %3287 = vmatprep.subr.bf16.mxu0 0
        %3288 = vmatpush1.bf16.msra.mxu0 0
        %3289 = vmatprep.subr.bf16.mxu0 0
        %3290 = vmatpush1.bf16.msra.mxu0 0
        %3291 = vmatprep.subr.bf16.mxu0 0
        %3292 = vmatpush1.bf16.msra.mxu0 0
        %3293 = vmatprep.subr.bf16.mxu0 0
        %3294 = vmatpush1.bf16.msra.mxu0 0
        %3295 = vmatprep.subr.bf16.mxu0 0
        %3296 = vmatpush1.bf16.msra.mxu0 0
        %3297 = vmatprep.subr.bf16.mxu0 0
        %3298 = vmatpush1.bf16.msra.mxu0 0
        %3299 = vmatprep.mubr.bf16.mxu0 0
        %3300 = vmatmul.mubr.bf16.gmra.mrb[0].mxu0 %v3201
        %v3301 = vpop.f32.mrb[0].mxu0
        %v3302 = vadd.f32 %v3253, %v3301
        %v3303 = vpop.f32.mrb[0].mxu0
        %v3304 = vpop.f32.mrb[0].mxu0
        %v3305 = vadd.f32 %v3253, %v3304
        %v3306 = vpop.f32.mrb[0].mxu0
        %3307 = vdwg.mxu0
        %v3308 = vpack.c.bf16 %v3173, %v3170
        %v3309 = vpack.c.bf16 %v3241, %v3238
        %v3310 = vpack.c.bf16 %v3305, %v3302
        %v3312 = vsel %vm2085, %v3308, 0
        %v3315 = vsel %vm2085, %v3309, 0
        %3317 = vmatprep.subr.bf16.mxu0 0
        %3318 = vmatpush1.bf16.xpose.msra.mxu0 %v3315
        %3319 = vmatprep.subr.bf16.mxu0 0
        %3320 = vmatpush1.bf16.xpose.msra.mxu0 0
        %3321 = vmatprep.subr.bf16.mxu0 0
        %3322 = vmatpush1.bf16.xpose.msra.mxu0 0
        %3323 = vmatprep.subr.bf16.mxu0 0
        %3324 = vmatpush1.bf16.xpose.msra.mxu0 0
        %3325 = vmatprep.subr.bf16.mxu0 0
        %3326 = vmatpush1.bf16.xpose.msra.mxu0 0
        %3327 = vmatprep.subr.bf16.mxu0 0
        %3328 = vmatpush1.bf16.xpose.msra.mxu0 0
        %3329 = vmatprep.subr.bf16.mxu0 0
        %3330 = vmatpush1.bf16.xpose.msra.mxu0 0
        %3331 = vmatprep.subr.bf16.mxu0 0
        %3332 = vmatpush1.bf16.xpose.msra.mxu0 0
        %3333 = vmatprep.subr.bf16.mxu0 0
        %3334 = vmatpush1.bf16.xpose.msra.mxu0 0
        %3335 = vmatprep.subr.bf16.mxu0 0
        %3336 = vmatpush1.bf16.xpose.msra.mxu0 0
        %3337 = vmatprep.subr.bf16.mxu0 0
        %3338 = vmatpush1.bf16.xpose.msra.mxu0 0
        %3339 = vmatprep.subr.bf16.mxu0 0
        %3340 = vmatpush1.bf16.xpose.msra.mxu0 0
        %3341 = vmatprep.subr.bf16.mxu0 0
        %3342 = vmatpush1.bf16.xpose.msra.mxu0 0
        %3343 = vmatprep.subr.bf16.mxu0 0
        %3344 = vmatpush1.bf16.xpose.msra.mxu0 0
        %3345 = vmatprep.subr.bf16.mxu0 0
        %3346 = vmatpush1.bf16.xpose.msra.mxu0 0
        %3347 = vmatprep.subr.bf16.mxu0 0
        %3348 = vmatpush1.bf16.xpose.msra.mxu0 0
        %3349 = vmatprep.mubr.bf16.mxu0 0
        %3350 = vmatmul.mubr.bf16.gmra.mrb[0].mxu0 %v3312
        %v3351 = vpop.f32.mrb[0].mxu0
        %v3352 = vadd.f32 0.0, %v3351
        %v3353 = vpop.f32.mrb[0].mxu0
        %v3354 = vpop.f32.mrb[0].mxu0
        %v3355 = vpop.f32.mrb[0].mxu0
        %3356 = vdwg.mxu0
        %v3357 = vsel %vm2085, %v3352, -inf
        %3358 = vmax.xlane.f32.xlu0 %v3357
        %v3359 = vpop.xlane.xlu0 %3358
        %v3360 = vsub.f32 %v3352, %v3359
        %v3361 = vmul.f32 %v3360, 1.442695
        %v3362 = vpow.pop %v3361
        %v3363 = vsel %vm2085, %v3362, 0.0
        %3364 = vadd.xlane.f32.xlu0 %v3363
        %v3365 = vpop.xlane.xlu0 %3364
        %v3366 = vrcp.pop %v3365
        %v3367 = vmul.f32 %v3362, %v3366
        %v3368 = vpack.c.bf16 %v3367, %v3367
        %v3370 = vsel %vm2085, %v3368, 0
        %v3373 = vsel %vm2147, %v3310, 0
        %3375 = vmatprep.subr.bf16.mxu0 0
        %3376 = vmatpush1.bf16.msra.mxu0 %v3373
        %3377 = vmatprep.subr.bf16.mxu0 0
        %3378 = vmatpush1.bf16.msra.mxu0 0
        %3379 = vmatprep.subr.bf16.mxu0 0
        %3380 = vmatpush1.bf16.msra.mxu0 0
        %3381 = vmatprep.subr.bf16.mxu0 0
        %3382 = vmatpush1.bf16.msra.mxu0 0
        %3383 = vmatprep.subr.bf16.mxu0 0
        %3384 = vmatpush1.bf16.msra.mxu0 0
        %3385 = vmatprep.subr.bf16.mxu0 0
        %3386 = vmatpush1.bf16.msra.mxu0 0
        %3387 = vmatprep.subr.bf16.mxu0 0
        %3388 = vmatpush1.bf16.msra.mxu0 0
        %3389 = vmatprep.subr.bf16.mxu0 0
        %3390 = vmatpush1.bf16.msra.mxu0 0
        %3391 = vmatprep.subr.bf16.mxu0 0
        %3392 = vmatpush1.bf16.msra.mxu0 0
        %3393 = vmatprep.subr.bf16.mxu0 0
        %3394 = vmatpush1.bf16.msra.mxu0 0
        %3395 = vmatprep.subr.bf16.mxu0 0
        %3396 = vmatpush1.bf16.msra.mxu0 0
        %3397 = vmatprep.subr.bf16.mxu0 0
        %3398 = vmatpush1.bf16.msra.mxu0 0
        %3399 = vmatprep.subr.bf16.mxu0 0
        %3400 = vmatpush1.bf16.msra.mxu0 0
        %3401 = vmatprep.subr.bf16.mxu0 0
        %3402 = vmatpush1.bf16.msra.mxu0 0
        %3403 = vmatprep.subr.bf16.mxu0 0
        %3404 = vmatpush1.bf16.msra.mxu0 0
        %3405 = vmatprep.subr.bf16.mxu0 0
        %3406 = vmatpush1.bf16.msra.mxu0 0
        %3407 = vmatprep.mubr.bf16.mxu0 0
        %3408 = vmatmul.mubr.bf16.gmra.mrb[0].mxu0 %v3370
        %v3409 = vpop.f32.mrb[0].mxu0
        %v3410 = vadd.f32 0.0, %v3409
        %v3411 = vpop.f32.mrb[0].mxu0
        %v3412 = vpop.f32.mrb[0].mxu0
        %v3413 = vpop.f32.mrb[0].mxu0
        %3414 = vdwg.mxu0
        %3416 = vrot.lane.b32.xlu0 %v3308, 120
        %v3417 = vpop.permute.xlu0 %3416
        %3419 = vrot.lane.b32.xlu0 %v3309, 120
        %v3420 = vpop.permute.xlu0 %3419
        %v3422 = vsel %vm2085, %v3417, 0
        %v3425 = vsel %vm2085, %v3420, 0
        %3427 = vmatprep.subr.bf16.mxu0 0
        %3428 = vmatpush1.bf16.xpose.msra.mxu0 %v3425
        %3429 = vmatprep.subr.bf16.mxu0 0
        %3430 = vmatpush1.bf16.xpose.msra.mxu0 0
        %3431 = vmatprep.subr.bf16.mxu0 0
        %3432 = vmatpush1.bf16.xpose.msra.mxu0 0
        %3433 = vmatprep.subr.bf16.mxu0 0
        %3434 = vmatpush1.bf16.xpose.msra.mxu0 0
        %3435 = vmatprep.subr.bf16.mxu0 0
        %3436 = vmatpush1.bf16.xpose.msra.mxu0 0
        %3437 = vmatprep.subr.bf16.mxu0 0
        %3438 = vmatpush1.bf16.xpose.msra.mxu0 0
        %3439 = vmatprep.subr.bf16.mxu0 0
        %3440 = vmatpush1.bf16.xpose.msra.mxu0 0
        %3441 = vmatprep.subr.bf16.mxu0 0
        %3442 = vmatpush1.bf16.xpose.msra.mxu0 0
        %3443 = vmatprep.subr.bf16.mxu0 0
        %3444 = vmatpush1.bf16.xpose.msra.mxu0 0
        %3445 = vmatprep.subr.bf16.mxu0 0
        %3446 = vmatpush1.bf16.xpose.msra.mxu0 0
        %3447 = vmatprep.subr.bf16.mxu0 0
        %3448 = vmatpush1.bf16.xpose.msra.mxu0 0
        %3449 = vmatprep.subr.bf16.mxu0 0
        %3450 = vmatpush1.bf16.xpose.msra.mxu0 0
        %3451 = vmatprep.subr.bf16.mxu0 0
        %3452 = vmatpush1.bf16.xpose.msra.mxu0 0
        %3453 = vmatprep.subr.bf16.mxu0 0
        %3454 = vmatpush1.bf16.xpose.msra.mxu0 0
        %3455 = vmatprep.subr.bf16.mxu0 0
        %3456 = vmatpush1.bf16.xpose.msra.mxu0 0
        %3457 = vmatprep.subr.bf16.mxu0 0
        %3458 = vmatpush1.bf16.xpose.msra.mxu0 0
        %3459 = vmatprep.mubr.bf16.mxu0 0
        %3460 = vmatmul.mubr.bf16.gmra.mrb[0].mxu0 %v3422
        %v3461 = vpop.f32.mrb[0].mxu0
        %v3462 = vadd.f32 0.0, %v3461
        %v3463 = vpop.f32.mrb[0].mxu0
        %v3464 = vpop.f32.mrb[0].mxu0
        %v3465 = vpop.f32.mrb[0].mxu0
        %3466 = vdwg.mxu0
        %v3467 = vsel %vm2085, %v3462, -inf
        %3468 = vmax.xlane.f32.xlu0 %v3467
        %v3469 = vpop.xlane.xlu0 %3468
        %v3470 = vsub.f32 %v3462, %v3469
        %v3471 = vmul.f32 %v3470, 1.442695
        %v3472 = vpow.pop %v3471
        %v3473 = vsel %vm2085, %v3472, 0.0
        %3474 = vadd.xlane.f32.xlu0 %v3473
        %v3475 = vpop.xlane.xlu0 %3474
        %v3476 = vrcp.pop %v3475
        %v3477 = vmul.f32 %v3472, %v3476
        %v3478 = vpack.c.bf16 %v3477, %v3477
        %3480 = vrot.lane.b32.xlu0 %v3310, 120
        %v3481 = vpop.permute.xlu0 %3480
        %v3483 = vsel %vm2085, %v3478, 0
        %v3486 = vsel %vm2147, %v3481, 0
        %3488 = vmatprep.subr.bf16.mxu0 0
        %3489 = vmatpush1.bf16.msra.mxu0 %v3486
        %3490 = vmatprep.subr.bf16.mxu0 0
        %3491 = vmatpush1.bf16.msra.mxu0 0
        %3492 = vmatprep.subr.bf16.mxu0 0
        %3493 = vmatpush1.bf16.msra.mxu0 0
        %3494 = vmatprep.subr.bf16.mxu0 0
        %3495 = vmatpush1.bf16.msra.mxu0 0
        %3496 = vmatprep.subr.bf16.mxu0 0
        %3497 = vmatpush1.bf16.msra.mxu0 0
        %3498 = vmatprep.subr.bf16.mxu0 0
        %3499 = vmatpush1.bf16.msra.mxu0 0
        %3500 = vmatprep.subr.bf16.mxu0 0
        %3501 = vmatpush1.bf16.msra.mxu0 0
        %3502 = vmatprep.subr.bf16.mxu0 0
        %3503 = vmatpush1.bf16.msra.mxu0 0
        %3504 = vmatprep.subr.bf16.mxu0 0
        %3505 = vmatpush1.bf16.msra.mxu0 0
        %3506 = vmatprep.subr.bf16.mxu0 0
        %3507 = vmatpush1.bf16.msra.mxu0 0
        %3508 = vmatprep.subr.bf16.mxu0 0
        %3509 = vmatpush1.bf16.msra.mxu0 0
        %3510 = vmatprep.subr.bf16.mxu0 0
        %3511 = vmatpush1.bf16.msra.mxu0 0
        %3512 = vmatprep.subr.bf16.mxu0 0
        %3513 = vmatpush1.bf16.msra.mxu0 0
        %3514 = vmatprep.subr.bf16.mxu0 0
        %3515 = vmatpush1.bf16.msra.mxu0 0
        %3516 = vmatprep.subr.bf16.mxu0 0
        %3517 = vmatpush1.bf16.msra.mxu0 0
        %3518 = vmatprep.subr.bf16.mxu0 0
        %3519 = vmatpush1.bf16.msra.mxu0 0
        %3520 = vmatprep.mubr.bf16.mxu0 0
        %3521 = vmatmul.mubr.bf16.gmra.mrb[0].mxu0 %v3483
        %v3522 = vpop.f32.mrb[0].mxu0
        %v3523 = vadd.f32 0.0, %v3522
        %v3524 = vpop.f32.mrb[0].mxu0
        %v3525 = vpop.f32.mrb[0].mxu0
        %v3526 = vpop.f32.mrb[0].mxu0
        %3527 = vdwg.mxu0
        %3528 = vrot.lane.b32.xlu0 %v3308, 112
        %v3529 = vpop.permute.xlu0 %3528
        %3530 = vrot.lane.b32.xlu0 %v3309, 112
        %v3531 = vpop.permute.xlu0 %3530
        %v3533 = vsel %vm2085, %v3529, 0
        %v3536 = vsel %vm2085, %v3531, 0
        %3538 = vmatprep.subr.bf16.mxu0 0
        %3539 = vmatpush1.bf16.xpose.msra.mxu0 %v3536
        %3540 = vmatprep.subr.bf16.mxu0 0
        %3541 = vmatpush1.bf16.xpose.msra.mxu0 0
        %3542 = vmatprep.subr.bf16.mxu0 0
        %3543 = vmatpush1.bf16.xpose.msra.mxu0 0
        %3544 = vmatprep.subr.bf16.mxu0 0
        %3545 = vmatpush1.bf16.xpose.msra.mxu0 0
        %3546 = vmatprep.subr.bf16.mxu0 0
        %3547 = vmatpush1.bf16.xpose.msra.mxu0 0
        %3548 = vmatprep.subr.bf16.mxu0 0
        %3549 = vmatpush1.bf16.xpose.msra.mxu0 0
        %3550 = vmatprep.subr.bf16.mxu0 0
        %3551 = vmatpush1.bf16.xpose.msra.mxu0 0
        %3552 = vmatprep.subr.bf16.mxu0 0
        %3553 = vmatpush1.bf16.xpose.msra.mxu0 0
        %3554 = vmatprep.subr.bf16.mxu0 0
        %3555 = vmatpush1.bf16.xpose.msra.mxu0 0
        %3556 = vmatprep.subr.bf16.mxu0 0
        %3557 = vmatpush1.bf16.xpose.msra.mxu0 0
        %3558 = vmatprep.subr.bf16.mxu0 0
        %3559 = vmatpush1.bf16.xpose.msra.mxu0 0
        %3560 = vmatprep.subr.bf16.mxu0 0
        %3561 = vmatpush1.bf16.xpose.msra.mxu0 0
        %3562 = vmatprep.subr.bf16.mxu0 0
        %3563 = vmatpush1.bf16.xpose.msra.mxu0 0
        %3564 = vmatprep.subr.bf16.mxu0 0
        %3565 = vmatpush1.bf16.xpose.msra.mxu0 0
        %3566 = vmatprep.subr.bf16.mxu0 0
        %3567 = vmatpush1.bf16.xpose.msra.mxu0 0
        %3568 = vmatprep.subr.bf16.mxu0 0
        %3569 = vmatpush1.bf16.xpose.msra.mxu0 0
        %3570 = vmatprep.mubr.bf16.mxu0 0
        %3571 = vmatmul.mubr.bf16.gmra.mrb[0].mxu0 %v3533
        %v3572 = vpop.f32.mrb[0].mxu0
        %v3573 = vadd.f32 0.0, %v3572
        %v3574 = vpop.f32.mrb[0].mxu0
        %v3575 = vpop.f32.mrb[0].mxu0
        %v3576 = vpop.f32.mrb[0].mxu0
        %3577 = vdwg.mxu0
        %v3578 = vsel %vm2085, %v3573, -inf
        %3579 = vmax.xlane.f32.xlu0 %v3578
        %v3580 = vpop.xlane.xlu0 %3579
        %v3581 = vsub.f32 %v3573, %v3580
        %v3582 = vmul.f32 %v3581, 1.442695
        %v3583 = vpow.pop %v3582
        %v3584 = vsel %vm2085, %v3583, 0.0
        %3585 = vadd.xlane.f32.xlu0 %v3584
        %v3586 = vpop.xlane.xlu0 %3585
        %v3587 = vrcp.pop %v3586
        %v3588 = vmul.f32 %v3583, %v3587
        %v3589 = vpack.c.bf16 %v3588, %v3588
        %3590 = vrot.lane.b32.xlu0 %v3310, 112
        %v3591 = vpop.permute.xlu0 %3590
        %v3593 = vsel %vm2085, %v3589, 0
        %v3596 = vsel %vm2147, %v3591, 0
        %3598 = vmatprep.subr.bf16.mxu0 0
        %3599 = vmatpush1.bf16.msra.mxu0 %v3596
        %3600 = vmatprep.subr.bf16.mxu0 0
        %3601 = vmatpush1.bf16.msra.mxu0 0
        %3602 = vmatprep.subr.bf16.mxu0 0
        %3603 = vmatpush1.bf16.msra.mxu0 0
        %3604 = vmatprep.subr.bf16.mxu0 0
        %3605 = vmatpush1.bf16.msra.mxu0 0
        %3606 = vmatprep.subr.bf16.mxu0 0
        %3607 = vmatpush1.bf16.msra.mxu0 0
        %3608 = vmatprep.subr.bf16.mxu0 0
        %3609 = vmatpush1.bf16.msra.mxu0 0
        %3610 = vmatprep.subr.bf16.mxu0 0
        %3611 = vmatpush1.bf16.msra.mxu0 0
        %3612 = vmatprep.subr.bf16.mxu0 0
        %3613 = vmatpush1.bf16.msra.mxu0 0
        %3614 = vmatprep.subr.bf16.mxu0 0
        %3615 = vmatpush1.bf16.msra.mxu0 0
        %3616 = vmatprep.subr.bf16.mxu0 0
        %3617 = vmatpush1.bf16.msra.mxu0 0
        %3618 = vmatprep.subr.bf16.mxu0 0
        %3619 = vmatpush1.bf16.msra.mxu0 0
        %3620 = vmatprep.subr.bf16.mxu0 0
        %3621 = vmatpush1.bf16.msra.mxu0 0
        %3622 = vmatprep.subr.bf16.mxu0 0
        %3623 = vmatpush1.bf16.msra.mxu0 0
        %3624 = vmatprep.subr.bf16.mxu0 0
        %3625 = vmatpush1.bf16.msra.mxu0 0
        %3626 = vmatprep.subr.bf16.mxu0 0
        %3627 = vmatpush1.bf16.msra.mxu0 0
        %3628 = vmatprep.subr.bf16.mxu0 0
        %3629 = vmatpush1.bf16.msra.mxu0 0
        %3630 = vmatprep.mubr.bf16.mxu0 0
        %3631 = vmatmul.mubr.bf16.gmra.mrb[0].mxu0 %v3593
        %v3632 = vpop.f32.mrb[0].mxu0
        %v3633 = vadd.f32 0.0, %v3632
        %v3634 = vpop.f32.mrb[0].mxu0
        %v3635 = vpop.f32.mrb[0].mxu0
        %v3636 = vpop.f32.mrb[0].mxu0
        %3637 = vdwg.mxu0
        %3638 = vrot.lane.b32.xlu0 %v3308, 104
        %v3639 = vpop.permute.xlu0 %3638
        %3640 = vrot.lane.b32.xlu0 %v3309, 104
        %v3641 = vpop.permute.xlu0 %3640
        %v3643 = vsel %vm2085, %v3639, 0
        %v3646 = vsel %vm2085, %v3641, 0
        %3648 = vmatprep.subr.bf16.mxu0 0
        %3649 = vmatpush1.bf16.xpose.msra.mxu0 %v3646
        %3650 = vmatprep.subr.bf16.mxu0 0
        %3651 = vmatpush1.bf16.xpose.msra.mxu0 0
        %3652 = vmatprep.subr.bf16.mxu0 0
        %3653 = vmatpush1.bf16.xpose.msra.mxu0 0
        %3654 = vmatprep.subr.bf16.mxu0 0
        %3655 = vmatpush1.bf16.xpose.msra.mxu0 0
        %3656 = vmatprep.subr.bf16.mxu0 0
        %3657 = vmatpush1.bf16.xpose.msra.mxu0 0
        %3658 = vmatprep.subr.bf16.mxu0 0
        %3659 = vmatpush1.bf16.xpose.msra.mxu0 0
        %3660 = vmatprep.subr.bf16.mxu0 0
        %3661 = vmatpush1.bf16.xpose.msra.mxu0 0
        %3662 = vmatprep.subr.bf16.mxu0 0
        %3663 = vmatpush1.bf16.xpose.msra.mxu0 0
        %3664 = vmatprep.subr.bf16.mxu0 0
        %3665 = vmatpush1.bf16.xpose.msra.mxu0 0
        %3666 = vmatprep.subr.bf16.mxu0 0
        %3667 = vmatpush1.bf16.xpose.msra.mxu0 0
        %3668 = vmatprep.subr.bf16.mxu0 0
        %3669 = vmatpush1.bf16.xpose.msra.mxu0 0
        %3670 = vmatprep.subr.bf16.mxu0 0
        %3671 = vmatpush1.bf16.xpose.msra.mxu0 0
        %3672 = vmatprep.subr.bf16.mxu0 0
        %3673 = vmatpush1.bf16.xpose.msra.mxu0 0
        %3674 = vmatprep.subr.bf16.mxu0 0
        %3675 = vmatpush1.bf16.xpose.msra.mxu0 0
        %3676 = vmatprep.subr.bf16.mxu0 0
        %3677 = vmatpush1.bf16.xpose.msra.mxu0 0
        %3678 = vmatprep.subr.bf16.mxu0 0
        %3679 = vmatpush1.bf16.xpose.msra.mxu0 0
        %3680 = vmatprep.mubr.bf16.mxu0 0
        %3681 = vmatmul.mubr.bf16.gmra.mrb[0].mxu0 %v3643
        %v3682 = vpop.f32.mrb[0].mxu0
        %v3683 = vadd.f32 0.0, %v3682
        %v3684 = vpop.f32.mrb[0].mxu0
        %v3685 = vpop.f32.mrb[0].mxu0
        %v3686 = vpop.f32.mrb[0].mxu0
        %3687 = vdwg.mxu0
        %v3688 = vsel %vm2085, %v3683, -inf
        %3689 = vmax.xlane.f32.xlu0 %v3688
        %v3690 = vpop.xlane.xlu0 %3689
        %v3691 = vsub.f32 %v3683, %v3690
        %v3692 = vmul.f32 %v3691, 1.442695
        %v3693 = vpow.pop %v3692
        %v3694 = vsel %vm2085, %v3693, 0.0
        %3695 = vadd.xlane.f32.xlu0 %v3694
        %v3696 = vpop.xlane.xlu0 %3695
        %v3697 = vrcp.pop %v3696
        %v3698 = vmul.f32 %v3693, %v3697
        %v3699 = vpack.c.bf16 %v3698, %v3698
        %3700 = vrot.lane.b32.xlu0 %v3310, 104
        %v3701 = vpop.permute.xlu0 %3700
        %v3703 = vsel %vm2085, %v3699, 0
        %v3706 = vsel %vm2147, %v3701, 0
        %3708 = vmatprep.subr.bf16.mxu0 0
        %3709 = vmatpush1.bf16.msra.mxu0 %v3706
        %3710 = vmatprep.subr.bf16.mxu0 0
        %3711 = vmatpush1.bf16.msra.mxu0 0
        %3712 = vmatprep.subr.bf16.mxu0 0
        %3713 = vmatpush1.bf16.msra.mxu0 0
        %3714 = vmatprep.subr.bf16.mxu0 0
        %3715 = vmatpush1.bf16.msra.mxu0 0
        %3716 = vmatprep.subr.bf16.mxu0 0
        %3717 = vmatpush1.bf16.msra.mxu0 0
        %3718 = vmatprep.subr.bf16.mxu0 0
        %3719 = vmatpush1.bf16.msra.mxu0 0
        %3720 = vmatprep.subr.bf16.mxu0 0
        %3721 = vmatpush1.bf16.msra.mxu0 0
        %3722 = vmatprep.subr.bf16.mxu0 0
        %3723 = vmatpush1.bf16.msra.mxu0 0
        %3724 = vmatprep.subr.bf16.mxu0 0
        %3725 = vmatpush1.bf16.msra.mxu0 0
        %3726 = vmatprep.subr.bf16.mxu0 0
        %3727 = vmatpush1.bf16.msra.mxu0 0
        %3728 = vmatprep.subr.bf16.mxu0 0
        %3729 = vmatpush1.bf16.msra.mxu0 0
        %3730 = vmatprep.subr.bf16.mxu0 0
        %3731 = vmatpush1.bf16.msra.mxu0 0
        %3732 = vmatprep.subr.bf16.mxu0 0
        %3733 = vmatpush1.bf16.msra.mxu0 0
        %3734 = vmatprep.subr.bf16.mxu0 0
        %3735 = vmatpush1.bf16.msra.mxu0 0
        %3736 = vmatprep.subr.bf16.mxu0 0
        %3737 = vmatpush1.bf16.msra.mxu0 0
        %3738 = vmatprep.subr.bf16.mxu0 0
        %3739 = vmatpush1.bf16.msra.mxu0 0
        %3740 = vmatprep.mubr.bf16.mxu0 0
        %3741 = vmatmul.mubr.bf16.gmra.mrb[0].mxu0 %v3703
        %v3742 = vpop.f32.mrb[0].mxu0
        %v3743 = vadd.f32 0.0, %v3742
        %v3744 = vpop.f32.mrb[0].mxu0
        %v3745 = vpop.f32.mrb[0].mxu0
        %v3746 = vpop.f32.mrb[0].mxu0
        %3747 = vdwg.mxu0
        %3749 = vrot.lane.b32.xlu0 %v3523, 8
        %v3750 = vpop.permute.xlu0 %3749
        %3753 = vrot.lane.b32.xlu0 %v3633, 16
        %v3754 = vpop.permute.xlu0 %3753
        %3757 = vrot.lane.b32.xlu0 %v3743, 24
        %v3758 = vpop.permute.xlu0 %3757
        %v3760 = vsel %vm2085, %v3410, %v3750
        %v3761 = vsel %vm2537, %v3760, %v3754
        %v3762 = vsel %vm2539, %v3761, %v3758
        %v3763 = vrot.slane %v3308, 4
        %v3764 = vrot.slane %v3309, 4
        %v3766 = vsel %vm2085, %v3763, 0
        %v3769 = vsel %vm2085, %v3764, 0
        %3771 = vmatprep.subr.bf16.mxu0 0
        %3772 = vmatpush1.bf16.xpose.msra.mxu0 %v3769
        %3773 = vmatprep.subr.bf16.mxu0 0
        %3774 = vmatpush1.bf16.xpose.msra.mxu0 0
        %3775 = vmatprep.subr.bf16.mxu0 0
        %3776 = vmatpush1.bf16.xpose.msra.mxu0 0
        %3777 = vmatprep.subr.bf16.mxu0 0
        %3778 = vmatpush1.bf16.xpose.msra.mxu0 0
        %3779 = vmatprep.subr.bf16.mxu0 0
        %3780 = vmatpush1.bf16.xpose.msra.mxu0 0
        %3781 = vmatprep.subr.bf16.mxu0 0
        %3782 = vmatpush1.bf16.xpose.msra.mxu0 0
        %3783 = vmatprep.subr.bf16.mxu0 0
        %3784 = vmatpush1.bf16.xpose.msra.mxu0 0
        %3785 = vmatprep.subr.bf16.mxu0 0
        %3786 = vmatpush1.bf16.xpose.msra.mxu0 0
        %3787 = vmatprep.subr.bf16.mxu0 0
        %3788 = vmatpush1.bf16.xpose.msra.mxu0 0
        %3789 = vmatprep.subr.bf16.mxu0 0
        %3790 = vmatpush1.bf16.xpose.msra.mxu0 0
        %3791 = vmatprep.subr.bf16.mxu0 0
        %3792 = vmatpush1.bf16.xpose.msra.mxu0 0
        %3793 = vmatprep.subr.bf16.mxu0 0
        %3794 = vmatpush1.bf16.xpose.msra.mxu0 0
        %3795 = vmatprep.subr.bf16.mxu0 0
        %3796 = vmatpush1.bf16.xpose.msra.mxu0 0
        %3797 = vmatprep.subr.bf16.mxu0 0
        %3798 = vmatpush1.bf16.xpose.msra.mxu0 0
        %3799 = vmatprep.subr.bf16.mxu0 0
        %3800 = vmatpush1.bf16.xpose.msra.mxu0 0
        %3801 = vmatprep.subr.bf16.mxu0 0
        %3802 = vmatpush1.bf16.xpose.msra.mxu0 0
        %3803 = vmatprep.mubr.bf16.mxu0 0
        %3804 = vmatmul.mubr.bf16.gmra.mrb[0].mxu0 %v3766
        %v3805 = vpop.f32.mrb[0].mxu0
        %v3806 = vadd.f32 0.0, %v3805
        %v3807 = vpop.f32.mrb[0].mxu0
        %v3808 = vpop.f32.mrb[0].mxu0
        %v3809 = vpop.f32.mrb[0].mxu0
        %3810 = vdwg.mxu0
        %v3811 = vsel %vm2085, %v3806, -inf
        %3812 = vmax.xlane.f32.xlu0 %v3811
        %v3813 = vpop.xlane.xlu0 %3812
        %v3814 = vsub.f32 %v3806, %v3813
        %v3815 = vmul.f32 %v3814, 1.442695
        %v3816 = vpow.pop %v3815
        %v3817 = vsel %vm2085, %v3816, 0.0
        %3818 = vadd.xlane.f32.xlu0 %v3817
        %v3819 = vpop.xlane.xlu0 %3818
        %v3820 = vrcp.pop %v3819
        %v3821 = vmul.f32 %v3816, %v3820
        %v3822 = vpack.c.bf16 %v3821, %v3821
        %v3823 = vrot.slane %v3310, 4
        %v3825 = vsel %vm2085, %v3822, 0
        %v3828 = vsel %vm2147, %v3823, 0
        %3830 = vmatprep.subr.bf16.mxu0 0
        %3831 = vmatpush1.bf16.msra.mxu0 %v3828
        %3832 = vmatprep.subr.bf16.mxu0 0
        %3833 = vmatpush1.bf16.msra.mxu0 0
        %3834 = vmatprep.subr.bf16.mxu0 0
        %3835 = vmatpush1.bf16.msra.mxu0 0
        %3836 = vmatprep.subr.bf16.mxu0 0
        %3837 = vmatpush1.bf16.msra.mxu0 0
        %3838 = vmatprep.subr.bf16.mxu0 0
        %3839 = vmatpush1.bf16.msra.mxu0 0
        %3840 = vmatprep.subr.bf16.mxu0 0
        %3841 = vmatpush1.bf16.msra.mxu0 0
        %3842 = vmatprep.subr.bf16.mxu0 0
        %3843 = vmatpush1.bf16.msra.mxu0 0
        %3844 = vmatprep.subr.bf16.mxu0 0
        %3845 = vmatpush1.bf16.msra.mxu0 0
        %3846 = vmatprep.subr.bf16.mxu0 0
        %3847 = vmatpush1.bf16.msra.mxu0 0
        %3848 = vmatprep.subr.bf16.mxu0 0
        %3849 = vmatpush1.bf16.msra.mxu0 0
        %3850 = vmatprep.subr.bf16.mxu0 0
        %3851 = vmatpush1.bf16.msra.mxu0 0
        %3852 = vmatprep.subr.bf16.mxu0 0
        %3853 = vmatpush1.bf16.msra.mxu0 0
        %3854 = vmatprep.subr.bf16.mxu0 0
        %3855 = vmatpush1.bf16.msra.mxu0 0
        %3856 = vmatprep.subr.bf16.mxu0 0
        %3857 = vmatpush1.bf16.msra.mxu0 0
        %3858 = vmatprep.subr.bf16.mxu0 0
        %3859 = vmatpush1.bf16.msra.mxu0 0
        %3860 = vmatprep.subr.bf16.mxu0 0
        %3861 = vmatpush1.bf16.msra.mxu0 0
        %3862 = vmatprep.mubr.bf16.mxu0 0
        %3863 = vmatmul.mubr.bf16.gmra.mrb[0].mxu0 %v3825
        %v3864 = vpop.f32.mrb[0].mxu0
        %v3865 = vadd.f32 0.0, %v3864
        %v3866 = vpop.f32.mrb[0].mxu0
        %v3867 = vpop.f32.mrb[0].mxu0
        %v3868 = vpop.f32.mrb[0].mxu0
        %3869 = vdwg.mxu0
        %3870 = vrot.lane.b32.xlu0 %v3763, 120
        %v3871 = vpop.permute.xlu0 %3870
        %3872 = vrot.lane.b32.xlu0 %v3764, 120
        %v3873 = vpop.permute.xlu0 %3872
        %v3875 = vsel %vm2085, %v3871, 0
        %v3878 = vsel %vm2085, %v3873, 0
        %3880 = vmatprep.subr.bf16.mxu0 0
        %3881 = vmatpush1.bf16.xpose.msra.mxu0 %v3878
        %3882 = vmatprep.subr.bf16.mxu0 0
        %3883 = vmatpush1.bf16.xpose.msra.mxu0 0
        %3884 = vmatprep.subr.bf16.mxu0 0
        %3885 = vmatpush1.bf16.xpose.msra.mxu0 0
        %3886 = vmatprep.subr.bf16.mxu0 0
        %3887 = vmatpush1.bf16.xpose.msra.mxu0 0
        %3888 = vmatprep.subr.bf16.mxu0 0
        %3889 = vmatpush1.bf16.xpose.msra.mxu0 0
        %3890 = vmatprep.subr.bf16.mxu0 0
        %3891 = vmatpush1.bf16.xpose.msra.mxu0 0
        %3892 = vmatprep.subr.bf16.mxu0 0
        %3893 = vmatpush1.bf16.xpose.msra.mxu0 0
        %3894 = vmatprep.subr.bf16.mxu0 0
        %3895 = vmatpush1.bf16.xpose.msra.mxu0 0
        %3896 = vmatprep.subr.bf16.mxu0 0
        %3897 = vmatpush1.bf16.xpose.msra.mxu0 0
        %3898 = vmatprep.subr.bf16.mxu0 0
        %3899 = vmatpush1.bf16.xpose.msra.mxu0 0
        %3900 = vmatprep.subr.bf16.mxu0 0
        %3901 = vmatpush1.bf16.xpose.msra.mxu0 0
        %3902 = vmatprep.subr.bf16.mxu0 0
        %3903 = vmatpush1.bf16.xpose.msra.mxu0 0
        %3904 = vmatprep.subr.bf16.mxu0 0
        %3905 = vmatpush1.bf16.xpose.msra.mxu0 0
        %3906 = vmatprep.subr.bf16.mxu0 0
        %3907 = vmatpush1.bf16.xpose.msra.mxu0 0
        %3908 = vmatprep.subr.bf16.mxu0 0
        %3909 = vmatpush1.bf16.xpose.msra.mxu0 0
        %3910 = vmatprep.subr.bf16.mxu0 0
        %3911 = vmatpush1.bf16.xpose.msra.mxu0 0
        %3912 = vmatprep.mubr.bf16.mxu0 0
        %3913 = vmatmul.mubr.bf16.gmra.mrb[0].mxu0 %v3875
        %v3914 = vpop.f32.mrb[0].mxu0
        %v3915 = vadd.f32 0.0, %v3914
        %v3916 = vpop.f32.mrb[0].mxu0
        %v3917 = vpop.f32.mrb[0].mxu0
        %v3918 = vpop.f32.mrb[0].mxu0
        %3919 = vdwg.mxu0
        %v3920 = vsel %vm2085, %v3915, -inf
        %3921 = vmax.xlane.f32.xlu0 %v3920
        %v3922 = vpop.xlane.xlu0 %3921
        %v3923 = vsub.f32 %v3915, %v3922
        %v3924 = vmul.f32 %v3923, 1.442695
        %v3925 = vpow.pop %v3924
        %v3926 = vsel %vm2085, %v3925, 0.0
        %3927 = vadd.xlane.f32.xlu0 %v3926
        %v3928 = vpop.xlane.xlu0 %3927
        %v3929 = vrcp.pop %v3928
        %v3930 = vmul.f32 %v3925, %v3929
        %v3931 = vpack.c.bf16 %v3930, %v3930
        %3932 = vrot.lane.b32.xlu0 %v3823, 120
        %v3933 = vpop.permute.xlu0 %3932
        %v3935 = vsel %vm2085, %v3931, 0
        %v3938 = vsel %vm2147, %v3933, 0
        %3940 = vmatprep.subr.bf16.mxu0 0
        %3941 = vmatpush1.bf16.msra.mxu0 %v3938
        %3942 = vmatprep.subr.bf16.mxu0 0
        %3943 = vmatpush1.bf16.msra.mxu0 0
        %3944 = vmatprep.subr.bf16.mxu0 0
        %3945 = vmatpush1.bf16.msra.mxu0 0
        %3946 = vmatprep.subr.bf16.mxu0 0
        %3947 = vmatpush1.bf16.msra.mxu0 0
        %3948 = vmatprep.subr.bf16.mxu0 0
        %3949 = vmatpush1.bf16.msra.mxu0 0
        %3950 = vmatprep.subr.bf16.mxu0 0
        %3951 = vmatpush1.bf16.msra.mxu0 0
        %3952 = vmatprep.subr.bf16.mxu0 0
        %3953 = vmatpush1.bf16.msra.mxu0 0
        %3954 = vmatprep.subr.bf16.mxu0 0
        %3955 = vmatpush1.bf16.msra.mxu0 0
        %3956 = vmatprep.subr.bf16.mxu0 0
        %3957 = vmatpush1.bf16.msra.mxu0 0
        %3958 = vmatprep.subr.bf16.mxu0 0
        %3959 = vmatpush1.bf16.msra.mxu0 0
        %3960 = vmatprep.subr.bf16.mxu0 0
        %3961 = vmatpush1.bf16.msra.mxu0 0
        %3962 = vmatprep.subr.bf16.mxu0 0
        %3963 = vmatpush1.bf16.msra.mxu0 0
        %3964 = vmatprep.subr.bf16.mxu0 0
        %3965 = vmatpush1.bf16.msra.mxu0 0
        %3966 = vmatprep.subr.bf16.mxu0 0
        %3967 = vmatpush1.bf16.msra.mxu0 0
        %3968 = vmatprep.subr.bf16.mxu0 0
        %3969 = vmatpush1.bf16.msra.mxu0 0
        %3970 = vmatprep.subr.bf16.mxu0 0
        %3971 = vmatpush1.bf16.msra.mxu0 0
        %3972 = vmatprep.mubr.bf16.mxu0 0
        %3973 = vmatmul.mubr.bf16.gmra.mrb[0].mxu0 %v3935
        %v3974 = vpop.f32.mrb[0].mxu0
        %v3975 = vadd.f32 0.0, %v3974
        %v3976 = vpop.f32.mrb[0].mxu0
        %v3977 = vpop.f32.mrb[0].mxu0
        %v3978 = vpop.f32.mrb[0].mxu0
        %3979 = vdwg.mxu0
        %3980 = vrot.lane.b32.xlu0 %v3763, 112
        %v3981 = vpop.permute.xlu0 %3980
        %3982 = vrot.lane.b32.xlu0 %v3764, 112
        %v3983 = vpop.permute.xlu0 %3982
        %v3985 = vsel %vm2085, %v3981, 0
        %v3988 = vsel %vm2085, %v3983, 0
        %3990 = vmatprep.subr.bf16.mxu0 0
        %3991 = vmatpush1.bf16.xpose.msra.mxu0 %v3988
        %3992 = vmatprep.subr.bf16.mxu0 0
        %3993 = vmatpush1.bf16.xpose.msra.mxu0 0
        %3994 = vmatprep.subr.bf16.mxu0 0
        %3995 = vmatpush1.bf16.xpose.msra.mxu0 0
        %3996 = vmatprep.subr.bf16.mxu0 0
        %3997 = vmatpush1.bf16.xpose.msra.mxu0 0
        %3998 = vmatprep.subr.bf16.mxu0 0
        %3999 = vmatpush1.bf16.xpose.msra.mxu0 0
        %4000 = vmatprep.subr.bf16.mxu0 0
        %4001 = vmatpush1.bf16.xpose.msra.mxu0 0
        %4002 = vmatprep.subr.bf16.mxu0 0
        %4003 = vmatpush1.bf16.xpose.msra.mxu0 0
        %4004 = vmatprep.subr.bf16.mxu0 0
        %4005 = vmatpush1.bf16.xpose.msra.mxu0 0
        %4006 = vmatprep.subr.bf16.mxu0 0
        %4007 = vmatpush1.bf16.xpose.msra.mxu0 0
        %4008 = vmatprep.subr.bf16.mxu0 0
        %4009 = vmatpush1.bf16.xpose.msra.mxu0 0
        %4010 = vmatprep.subr.bf16.mxu0 0
        %4011 = vmatpush1.bf16.xpose.msra.mxu0 0
        %4012 = vmatprep.subr.bf16.mxu0 0
        %4013 = vmatpush1.bf16.xpose.msra.mxu0 0
        %4014 = vmatprep.subr.bf16.mxu0 0
        %4015 = vmatpush1.bf16.xpose.msra.mxu0 0
        %4016 = vmatprep.subr.bf16.mxu0 0
        %4017 = vmatpush1.bf16.xpose.msra.mxu0 0
        %4018 = vmatprep.subr.bf16.mxu0 0
        %4019 = vmatpush1.bf16.xpose.msra.mxu0 0
        %4020 = vmatprep.subr.bf16.mxu0 0
        %4021 = vmatpush1.bf16.xpose.msra.mxu0 0
        %4022 = vmatprep.mubr.bf16.mxu0 0
        %4023 = vmatmul.mubr.bf16.gmra.mrb[0].mxu0 %v3985
        %v4024 = vpop.f32.mrb[0].mxu0
        %v4025 = vadd.f32 0.0, %v4024
        %v4026 = vpop.f32.mrb[0].mxu0
        %v4027 = vpop.f32.mrb[0].mxu0
        %v4028 = vpop.f32.mrb[0].mxu0
        %4029 = vdwg.mxu0
        %v4030 = vsel %vm2085, %v4025, -inf
        %4031 = vmax.xlane.f32.xlu0 %v4030
        %v4032 = vpop.xlane.xlu0 %4031
        %v4033 = vsub.f32 %v4025, %v4032
        %v4034 = vmul.f32 %v4033, 1.442695
        %v4035 = vpow.pop %v4034
        %v4036 = vsel %vm2085, %v4035, 0.0
        %4037 = vadd.xlane.f32.xlu0 %v4036
        %v4038 = vpop.xlane.xlu0 %4037
        %v4039 = vrcp.pop %v4038
        %v4040 = vmul.f32 %v4035, %v4039
        %v4041 = vpack.c.bf16 %v4040, %v4040
        %4042 = vrot.lane.b32.xlu0 %v3823, 112
        %v4043 = vpop.permute.xlu0 %4042
        %v4045 = vsel %vm2085, %v4041, 0
        %v4048 = vsel %vm2147, %v4043, 0
        %4050 = vmatprep.subr.bf16.mxu0 0
        %4051 = vmatpush1.bf16.msra.mxu0 %v4048
        %4052 = vmatprep.subr.bf16.mxu0 0
        %4053 = vmatpush1.bf16.msra.mxu0 0
        %4054 = vmatprep.subr.bf16.mxu0 0
        %4055 = vmatpush1.bf16.msra.mxu0 0
        %4056 = vmatprep.subr.bf16.mxu0 0
        %4057 = vmatpush1.bf16.msra.mxu0 0
        %4058 = vmatprep.subr.bf16.mxu0 0
        %4059 = vmatpush1.bf16.msra.mxu0 0
        %4060 = vmatprep.subr.bf16.mxu0 0
        %4061 = vmatpush1.bf16.msra.mxu0 0
        %4062 = vmatprep.subr.bf16.mxu0 0
        %4063 = vmatpush1.bf16.msra.mxu0 0
        %4064 = vmatprep.subr.bf16.mxu0 0
        %4065 = vmatpush1.bf16.msra.mxu0 0
        %4066 = vmatprep.subr.bf16.mxu0 0
        %4067 = vmatpush1.bf16.msra.mxu0 0
        %4068 = vmatprep.subr.bf16.mxu0 0
        %4069 = vmatpush1.bf16.msra.mxu0 0
        %4070 = vmatprep.subr.bf16.mxu0 0
        %4071 = vmatpush1.bf16.msra.mxu0 0
        %4072 = vmatprep.subr.bf16.mxu0 0
        %4073 = vmatpush1.bf16.msra.mxu0 0
        %4074 = vmatprep.subr.bf16.mxu0 0
        %4075 = vmatpush1.bf16.msra.mxu0 0
        %4076 = vmatprep.subr.bf16.mxu0 0
        %4077 = vmatpush1.bf16.msra.mxu0 0
        %4078 = vmatprep.subr.bf16.mxu0 0
        %4079 = vmatpush1.bf16.msra.mxu0 0
        %4080 = vmatprep.subr.bf16.mxu0 0
        %4081 = vmatpush1.bf16.msra.mxu0 0
        %4082 = vmatprep.mubr.bf16.mxu0 0
        %4083 = vmatmul.mubr.bf16.gmra.mrb[0].mxu0 %v4045
        %v4084 = vpop.f32.mrb[0].mxu0
        %v4085 = vadd.f32 0.0, %v4084
        %v4086 = vpop.f32.mrb[0].mxu0
        %v4087 = vpop.f32.mrb[0].mxu0
        %v4088 = vpop.f32.mrb[0].mxu0
        %4089 = vdwg.mxu0
        %4090 = vrot.lane.b32.xlu0 %v3763, 104
        %v4091 = vpop.permute.xlu0 %4090
        %4092 = vrot.lane.b32.xlu0 %v3764, 104
        %v4093 = vpop.permute.xlu0 %4092
        %v4095 = vsel %vm2085, %v4091, 0
        %v4098 = vsel %vm2085, %v4093, 0
        %4100 = vmatprep.subr.bf16.mxu0 0
        %4101 = vmatpush1.bf16.xpose.msra.mxu0 %v4098
        %4102 = vmatprep.subr.bf16.mxu0 0
        %4103 = vmatpush1.bf16.xpose.msra.mxu0 0
        %4104 = vmatprep.subr.bf16.mxu0 0
        %4105 = vmatpush1.bf16.xpose.msra.mxu0 0
        %4106 = vmatprep.subr.bf16.mxu0 0
        %4107 = vmatpush1.bf16.xpose.msra.mxu0 0
        %4108 = vmatprep.subr.bf16.mxu0 0
        %4109 = vmatpush1.bf16.xpose.msra.mxu0 0
        %4110 = vmatprep.subr.bf16.mxu0 0
        %4111 = vmatpush1.bf16.xpose.msra.mxu0 0
        %4112 = vmatprep.subr.bf16.mxu0 0
        %4113 = vmatpush1.bf16.xpose.msra.mxu0 0
        %4114 = vmatprep.subr.bf16.mxu0 0
        %4115 = vmatpush1.bf16.xpose.msra.mxu0 0
        %4116 = vmatprep.subr.bf16.mxu0 0
        %4117 = vmatpush1.bf16.xpose.msra.mxu0 0
        %4118 = vmatprep.subr.bf16.mxu0 0
        %4119 = vmatpush1.bf16.xpose.msra.mxu0 0
        %4120 = vmatprep.subr.bf16.mxu0 0
        %4121 = vmatpush1.bf16.xpose.msra.mxu0 0
        %4122 = vmatprep.subr.bf16.mxu0 0
        %4123 = vmatpush1.bf16.xpose.msra.mxu0 0
        %4124 = vmatprep.subr.bf16.mxu0 0
        %4125 = vmatpush1.bf16.xpose.msra.mxu0 0
        %4126 = vmatprep.subr.bf16.mxu0 0
        %4127 = vmatpush1.bf16.xpose.msra.mxu0 0
        %4128 = vmatprep.subr.bf16.mxu0 0
        %4129 = vmatpush1.bf16.xpose.msra.mxu0 0
        %4130 = vmatprep.subr.bf16.mxu0 0
        %4131 = vmatpush1.bf16.xpose.msra.mxu0 0
        %4132 = vmatprep.mubr.bf16.mxu0 0
        %4133 = vmatmul.mubr.bf16.gmra.mrb[0].mxu0 %v4095
        %v4134 = vpop.f32.mrb[0].mxu0
        %v4135 = vadd.f32 0.0, %v4134
        %v4136 = vpop.f32.mrb[0].mxu0
        %v4137 = vpop.f32.mrb[0].mxu0
        %v4138 = vpop.f32.mrb[0].mxu0
        %4139 = vdwg.mxu0
        %v4140 = vsel %vm2085, %v4135, -inf
        %4141 = vmax.xlane.f32.xlu0 %v4140
        %v4142 = vpop.xlane.xlu0 %4141
        %v4143 = vsub.f32 %v4135, %v4142
        %v4144 = vmul.f32 %v4143, 1.442695
        %v4145 = vpow.pop %v4144
        %v4146 = vsel %vm2085, %v4145, 0.0
        %4147 = vadd.xlane.f32.xlu0 %v4146
        %v4148 = vpop.xlane.xlu0 %4147
        %v4149 = vrcp.pop %v4148
        %v4150 = vmul.f32 %v4145, %v4149
        %v4151 = vpack.c.bf16 %v4150, %v4150
        %4152 = vrot.lane.b32.xlu0 %v3823, 104
        %v4153 = vpop.permute.xlu0 %4152
        %v4155 = vsel %vm2085, %v4151, 0
        %v4158 = vsel %vm2147, %v4153, 0
        %4160 = vmatprep.subr.bf16.mxu0 0
        %4161 = vmatpush1.bf16.msra.mxu0 %v4158
        %4162 = vmatprep.subr.bf16.mxu0 0
        %4163 = vmatpush1.bf16.msra.mxu0 0
        %4164 = vmatprep.subr.bf16.mxu0 0
        %4165 = vmatpush1.bf16.msra.mxu0 0
        %4166 = vmatprep.subr.bf16.mxu0 0
        %4167 = vmatpush1.bf16.msra.mxu0 0
        %4168 = vmatprep.subr.bf16.mxu0 0
        %4169 = vmatpush1.bf16.msra.mxu0 0
        %4170 = vmatprep.subr.bf16.mxu0 0
        %4171 = vmatpush1.bf16.msra.mxu0 0
        %4172 = vmatprep.subr.bf16.mxu0 0
        %4173 = vmatpush1.bf16.msra.mxu0 0
        %4174 = vmatprep.subr.bf16.mxu0 0
        %4175 = vmatpush1.bf16.msra.mxu0 0
        %4176 = vmatprep.subr.bf16.mxu0 0
        %4177 = vmatpush1.bf16.msra.mxu0 0
        %4178 = vmatprep.subr.bf16.mxu0 0
        %4179 = vmatpush1.bf16.msra.mxu0 0
        %4180 = vmatprep.subr.bf16.mxu0 0
        %4181 = vmatpush1.bf16.msra.mxu0 0
        %4182 = vmatprep.subr.bf16.mxu0 0
        %4183 = vmatpush1.bf16.msra.mxu0 0
        %4184 = vmatprep.subr.bf16.mxu0 0
        %4185 = vmatpush1.bf16.msra.mxu0 0
        %4186 = vmatprep.subr.bf16.mxu0 0
        %4187 = vmatpush1.bf16.msra.mxu0 0
        %4188 = vmatprep.subr.bf16.mxu0 0
        %4189 = vmatpush1.bf16.msra.mxu0 0
        %4190 = vmatprep.subr.bf16.mxu0 0
        %4191 = vmatpush1.bf16.msra.mxu0 0
        %4192 = vmatprep.mubr.bf16.mxu0 0
        %4193 = vmatmul.mubr.bf16.gmra.mrb[0].mxu0 %v4155
        %v4194 = vpop.f32.mrb[0].mxu0
        %v4195 = vadd.f32 0.0, %v4194
        %v4196 = vpop.f32.mrb[0].mxu0
        %v4197 = vpop.f32.mrb[0].mxu0
        %v4198 = vpop.f32.mrb[0].mxu0
        %4199 = vdwg.mxu0
        %4201 = vrot.lane.b32.xlu0 %v3975, 8
        %v4202 = vpop.permute.xlu0 %4201
        %4205 = vrot.lane.b32.xlu0 %v4085, 16
        %v4206 = vpop.permute.xlu0 %4205
        %4209 = vrot.lane.b32.xlu0 %v4195, 24
        %v4210 = vpop.permute.xlu0 %4209
        %v4212 = vsel %vm2085, %v3865, %v4202
        %v4213 = vsel %vm2537, %v4212, %v4206
        %v4214 = vsel %vm2539, %v4213, %v4210
        %v4215 = vld [vmem:[%s1590] sm:$0xf]
        %v4216 = vld [vmem:[%s1590 + $0x4] sm:$0xf]
        %v4217 = vld [vmem:[%s1590 + $0x8] sm:$0xf]
        %v4218 = vld [vmem:[%s1590 + $0xc] sm:$0xf]
        %v4219 = vpack.c.bf16 %v4214, %v3762
        %v4220 = vld [vmem:[%s1598] sm:$0x1]
        %v4222 = vlaneseq
        %v4223 = vshrl.u32 %v4222, 7
        %v4224 = vsub.s32 0, %v4223
        %v4225 = vrot.slane %v4220, %v4224
        %v4231 = vunpack.c.l.b16 %v4215
        %v4232 = vunpack.c.l.b16 %v4216
        %v4233 = vunpack.c.l.b16 %v4217
        %v4234 = vunpack.c.l.b16 %v4218
        %v4235 = vpack.c.b16 %v4232, %v4231
        %v4236 = vpack.c.b16 %v4234, %v4233
        %v4240 = vsel %vm1909, %v4219, 0
        %4242 = vmatprep.subr.bf16.mxu0 0
        %4243 = vmatpush1.bf16.msra.mxu0 %v4235
        %4244 = vmatprep.subr.bf16.mxu0 0
        %4245 = vmatpush1.bf16.msra.mxu0 %v4236
        %4246 = vmatprep.subr.bf16.mxu0 0
        %4247 = vmatpush1.bf16.msra.mxu0 0
        %4248 = vmatprep.subr.bf16.mxu0 0
        %4249 = vmatpush1.bf16.msra.mxu0 0
        %4250 = vmatprep.subr.bf16.mxu0 0
        %4251 = vmatpush1.bf16.msra.mxu0 0
        %4252 = vmatprep.subr.bf16.mxu0 0
        %4253 = vmatpush1.bf16.msra.mxu0 0
        %4254 = vmatprep.subr.bf16.mxu0 0
        %4255 = vmatpush1.bf16.msra.mxu0 0
        %4256 = vmatprep.subr.bf16.mxu0 0
        %4257 = vmatpush1.bf16.msra.mxu0 0
        %4258 = vmatprep.subr.bf16.mxu0 0
        %4259 = vmatpush1.bf16.msra.mxu0 0
        %4260 = vmatprep.subr.bf16.mxu0 0
        %4261 = vmatpush1.bf16.msra.mxu0 0
        %4262 = vmatprep.subr.bf16.mxu0 0
        %4263 = vmatpush1.bf16.msra.mxu0 0
        %4264 = vmatprep.subr.bf16.mxu0 0
        %4265 = vmatpush1.bf16.msra.mxu0 0
        %4266 = vmatprep.subr.bf16.mxu0 0
        %4267 = vmatpush1.bf16.msra.mxu0 0
        %4268 = vmatprep.subr.bf16.mxu0 0
        %4269 = vmatpush1.bf16.msra.mxu0 0
        %4270 = vmatprep.subr.bf16.mxu0 0
        %4271 = vmatpush1.bf16.msra.mxu0 0
        %4272 = vmatprep.subr.bf16.mxu0 0
        %4273 = vmatpush1.bf16.msra.mxu0 0
        %4274 = vmatprep.mubr.bf16.mxu0 0
        %4275 = vmatmul.mubr.bf16.gmra.mrb[0].mxu0 %v4240
        %v4276 = vpop.f32.mrb[0].mxu0
        %v4277 = vadd.f32 %v4225, %v4276
        %v4278 = vpop.f32.mrb[0].mxu0
        %v4279 = vpop.f32.mrb[0].mxu0
        %v4280 = vadd.f32 %v4225, %v4279
        %v4281 = vpop.f32.mrb[0].mxu0
        %4282 = vdwg.mxu0
        %v4283 = vld [vmem:[%s1606] sm:$0x1]
        %v4284 = vld [vmem:[%s1614] sm:$0x1]
        %v4285 = vadd.f32 %v4277, %v3106
        %v4286 = vadd.f32 %v4280, %v3107
        %v4287 = vsel %vm1909, %v4285, 0.0
        %4288 = vadd.xlane.f32.xlu0 %v4287
        %v4289 = vpop.xlane.xlu0 %4288
        %v4290 = vsel %vm1909, %v4286, 0.0
        %4291 = vadd.xlane.f32.xlu0 %v4290
        %v4292 = vpop.xlane.xlu0 %4291
        %v4293 = vmul.f32 %v4289, %v3071
        %v4294 = vmul.f32 %v4292, %v3071
        %v4295 = vsub.f32 %v4285, %v4293
        %v4296 = vsub.f32 %v4286, %v4294
        %v4297 = vmul.f32 %v4295, %v4295
        %v4298 = vmul.f32 %v4296, %v4296
        %v4299 = vsel %vm1909, %v4297, 0.0
        %4300 = vadd.xlane.f32.xlu0 %v4299
        %v4301 = vpop.xlane.xlu0 %4300
        %v4302 = vsel %vm1909, %v4298, 0.0
        %4303 = vadd.xlane.f32.xlu0 %v4302
        %v4304 = vpop.xlane.xlu0 %4303
        %v4305 = vmul.f32 %v4301, %v3071
        %v4306 = vmul.f32 %v4304, %v3071
        %v4307 = vadd.f32 %v4305, 1e-05
        %v4308 = vadd.f32 %v4306, 1e-05
        %v4309 = vrsqrt.pop %v4307
        %v4310 = vrsqrt.pop %v4308
        %v4311 = vmul.f32 %v4295, %v4309
        %v4312 = vmul.f32 %v4296, %v4310
        %v4314 = vlaneseq
        %v4315 = vshrl.u32 %v4314, 7
        %v4316 = vsub.s32 0, %v4315
        %v4317 = vrot.slane %v4283, %v4316
        %v4319 = vmul.f32 %v4311, %v4317
        %v4320 = vmul.f32 %v4312, %v4317
        %v4322 = vlaneseq
        %v4323 = vshrl.u32 %v4322, 7
        %v4324 = vsub.s32 0, %v4323
        %v4325 = vrot.slane %v4284, %v4324
        %v4327 = vadd.f32 %v4319, %v4325
        %v4328 = vadd.f32 %v4320, %v4325
        %v4329 = vld [vmem:[%s1623] sm:$0xf]
        %v4330 = vld [vmem:[%s1623 + $0x4] sm:$0xf]
        %v4331 = vld [vmem:[%s1623 + $0x8] sm:$0xf]
        %v4332 = vld [vmem:[%s1623 + $0xc] sm:$0xf]
        %v4333 = vpack.c.bf16 %v4328, %v4327
        %v4334 = vld [vmem:[%s1631] sm:$0x1]
        %v4336 = vlaneseq
        %v4337 = vshrl.u32 %v4336, 7
        %v4338 = vsub.s32 0, %v4337
        %v4339 = vrot.slane %v4334, %v4338
        %v4345 = vunpack.c.l.b16 %v4329
        %v4346 = vunpack.c.l.b16 %v4330
        %v4347 = vunpack.c.l.b16 %v4331
        %v4348 = vunpack.c.l.b16 %v4332
        %v4349 = vpack.c.b16 %v4346, %v4345
        %v4350 = vpack.c.b16 %v4348, %v4347
        %v4354 = vsel %vm1909, %v4333, 0
        %4356 = vmatprep.subr.bf16.mxu0 0
        %4357 = vmatpush1.bf16.msra.mxu0 %v4349
        %4358 = vmatprep.subr.bf16.mxu0 0
        %4359 = vmatpush1.bf16.msra.mxu0 %v4350
        %4360 = vmatprep.subr.bf16.mxu0 0
        %4361 = vmatpush1.bf16.msra.mxu0 0
        %4362 = vmatprep.subr.bf16.mxu0 0
        %4363 = vmatpush1.bf16.msra.mxu0 0
        %4364 = vmatprep.subr.bf16.mxu0 0
        %4365 = vmatpush1.bf16.msra.mxu0 0
        %4366 = vmatprep.subr.bf16.mxu0 0
        %4367 = vmatpush1.bf16.msra.mxu0 0
        %4368 = vmatprep.subr.bf16.mxu0 0
        %4369 = vmatpush1.bf16.msra.mxu0 0
        %4370 = vmatprep.subr.bf16.mxu0 0
        %4371 = vmatpush1.bf16.msra.mxu0 0
        %4372 = vmatprep.subr.bf16.mxu0 0
        %4373 = vmatpush1.bf16.msra.mxu0 0
        %4374 = vmatprep.subr.bf16.mxu0 0
        %4375 = vmatpush1.bf16.msra.mxu0 0
        %4376 = vmatprep.subr.bf16.mxu0 0
        %4377 = vmatpush1.bf16.msra.mxu0 0
        %4378 = vmatprep.subr.bf16.mxu0 0
        %4379 = vmatpush1.bf16.msra.mxu0 0
        %4380 = vmatprep.subr.bf16.mxu0 0
        %4381 = vmatpush1.bf16.msra.mxu0 0
        %4382 = vmatprep.subr.bf16.mxu0 0
        %4383 = vmatpush1.bf16.msra.mxu0 0
        %4384 = vmatprep.subr.bf16.mxu0 0
        %4385 = vmatpush1.bf16.msra.mxu0 0
        %4386 = vmatprep.subr.bf16.mxu0 0
        %4387 = vmatpush1.bf16.msra.mxu0 0
        %4388 = vmatprep.mubr.bf16.mxu0 0
        %4389 = vmatmul.mubr.bf16.gmra.mrb[0].mxu0 %v4354
        %v4390 = vpop.f32.mrb[0].mxu0
        %v4391 = vadd.f32 %v4339, %v4390
        %v4392 = vpop.f32.mrb[0].mxu0
        %v4393 = vpop.f32.mrb[0].mxu0
        %v4394 = vadd.f32 %v4339, %v4393
        %v4395 = vpop.f32.mrb[0].mxu0
        %4396 = vdwg.mxu0
        %v4397 = vmax.f32 %v4391, 0.0
        %v4398 = vmax.f32 %v4394, 0.0
        %v4399 = vld [vmem:[%s1640] sm:$0xf]
        %v4400 = vld [vmem:[%s1640 + $0x4] sm:$0xf]
        %v4401 = vld [vmem:[%s1640 + $0x8] sm:$0xf]
        %v4402 = vld [vmem:[%s1640 + $0xc] sm:$0xf]
        %v4403 = vld [vmem:[%s1640 + $0x10] sm:$0xf]
        %v4404 = vld [vmem:[%s1640 + $0x14] sm:$0xf]
        %v4405 = vld [vmem:[%s1640 + $0x18] sm:$0xf]
        %v4406 = vld [vmem:[%s1640 + $0x1c] sm:$0xf]
        %v4407 = vpack.c.bf16 %v4398, %v4397
        %v4408 = vld [vmem:[%s1648] sm:$0x1]
        %v4410 = vlaneseq
        %v4411 = vshrl.u32 %v4410, 7
        %v4412 = vsub.s32 0, %v4411
        %v4413 = vrot.slane %v4408, %v4412
        %v4423 = vunpack.c.l.b16 %v4399
        %v4424 = vunpack.c.l.b16 %v4400
        %v4425 = vunpack.c.l.b16 %v4401
        %v4426 = vunpack.c.l.b16 %v4402
        %v4427 = vunpack.c.l.b16 %v4403
        %v4428 = vunpack.c.l.b16 %v4404
        %v4429 = vunpack.c.l.b16 %v4405
        %v4430 = vunpack.c.l.b16 %v4406
        %v4431 = vpack.c.b16 %v4424, %v4423
        %v4432 = vpack.c.b16 %v4426, %v4425
        %v4433 = vpack.c.b16 %v4428, %v4427
        %v4434 = vpack.c.b16 %v4430, %v4429
        %vm4439 = vcmask 523264
        %v4441 = vsel %vm4439, %v4407, 0
        %4443 = vmatprep.subr.bf16.mxu0 0
        %4444 = vmatpush1.bf16.msra.mxu0 %v4431
        %4445 = vmatprep.subr.bf16.mxu0 0
        %4446 = vmatpush1.bf16.msra.mxu0 %v4432
        %4447 = vmatprep.subr.bf16.mxu0 0
        %4448 = vmatpush1.bf16.msra.mxu0 %v4433
        %4449 = vmatprep.subr.bf16.mxu0 0
        %4450 = vmatpush1.bf16.msra.mxu0 %v4434
        %4451 = vmatprep.subr.bf16.mxu0 0
        %4452 = vmatpush1.bf16.msra.mxu0 0
        %4453 = vmatprep.subr.bf16.mxu0 0
        %4454 = vmatpush1.bf16.msra.mxu0 0
        %4455 = vmatprep.subr.bf16.mxu0 0
        %4456 = vmatpush1.bf16.msra.mxu0 0
        %4457 = vmatprep.subr.bf16.mxu0 0
        %4458 = vmatpush1.bf16.msra.mxu0 0
        %4459 = vmatprep.subr.bf16.mxu0 0
        %4460 = vmatpush1.bf16.msra.mxu0 0
        %4461 = vmatprep.subr.bf16.mxu0 0
        %4462 = vmatpush1.bf16.msra.mxu0 0
        %4463 = vmatprep.subr.bf16.mxu0 0
        %4464 = vmatpush1.bf16.msra.mxu0 0
        %4465 = vmatprep.subr.bf16.mxu0 0
        %4466 = vmatpush1.bf16.msra.mxu0 0
        %4467 = vmatprep.subr.bf16.mxu0 0
        %4468 = vmatpush1.bf16.msra.mxu0 0
        %4469 = vmatprep.subr.bf16.mxu0 0
        %4470 = vmatpush1.bf16.msra.mxu0 0
        %4471 = vmatprep.subr.bf16.mxu0 0
        %4472 = vmatpush1.bf16.msra.mxu0 0
        %4473 = vmatprep.subr.bf16.mxu0 0
        %4474 = vmatpush1.bf16.msra.mxu0 0
        %4475 = vmatprep.mubr.bf16.mxu0 0
        %4476 = vmatmul.mubr.bf16.gmra.mrb[0].mxu0 %v4441
        %v4477 = vpop.f32.mrb[0].mxu0
        %v4478 = vadd.f32 %v4413, %v4477
        %v4479 = vpop.f32.mrb[0].mxu0
        %v4480 = vpop.f32.mrb[0].mxu0
        %v4481 = vadd.f32 %v4413, %v4480
        %v4482 = vpop.f32.mrb[0].mxu0
        %4483 = vdwg.mxu0
        %v4484 = vld [vmem:[%s1656] sm:$0x1]
        %v4485 = vld [vmem:[%s1664] sm:$0x1]
        %v4486 = vadd.f32 %v4478, %v4327
        %v4487 = vadd.f32 %v4481, %v4328
        %v4488 = vsel %vm1909, %v4486, 0.0
        %4489 = vadd.xlane.f32.xlu0 %v4488
        %v4490 = vpop.xlane.xlu0 %4489
        %v4491 = vsel %vm1909, %v4487, 0.0
        %4492 = vadd.xlane.f32.xlu0 %v4491
        %v4493 = vpop.xlane.xlu0 %4492
        %v4494 = vmul.f32 %v4490, %v3071
        %v4495 = vmul.f32 %v4493, %v3071
        %v4496 = vsub.f32 %v4486, %v4494
        %v4497 = vsub.f32 %v4487, %v4495
        %v4498 = vmul.f32 %v4496, %v4496
        %v4499 = vmul.f32 %v4497, %v4497
        %v4500 = vsel %vm1909, %v4498, 0.0
        %4501 = vadd.xlane.f32.xlu0 %v4500
        %v4502 = vpop.xlane.xlu0 %4501
        %v4503 = vsel %vm1909, %v4499, 0.0
        %4504 = vadd.xlane.f32.xlu0 %v4503
        %v4505 = vpop.xlane.xlu0 %4504
        %v4506 = vmul.f32 %v4502, %v3071
        %v4507 = vmul.f32 %v4505, %v3071
        %v4508 = vadd.f32 %v4506, 1e-05
        %v4509 = vadd.f32 %v4507, 1e-05
        %v4510 = vrsqrt.pop %v4508
        %v4511 = vrsqrt.pop %v4509
        %v4512 = vmul.f32 %v4496, %v4510
        %v4513 = vmul.f32 %v4497, %v4511
        %v4515 = vlaneseq
        %v4516 = vshrl.u32 %v4515, 7
        %v4517 = vsub.s32 0, %v4516
        %v4518 = vrot.slane %v4484, %v4517
        %v4520 = vmul.f32 %v4512, %v4518
        %v4521 = vmul.f32 %v4513, %v4518
        %v4523 = vlaneseq
        %v4524 = vshrl.u32 %v4523, 7
        %v4525 = vsub.s32 0, %v4524
        %v4526 = vrot.slane %v4485, %v4525
        %v4528 = vadd.f32 %v4520, %v4526
        %v4529 = vadd.f32 %v4521, %v4526
        %4530 = vst.msk [vmem:[#allocation37] sm:$0xff] %vm1909, %v4528
        %4531 = vst.msk [vmem:[#allocation37 + $0x8] sm:$0xff] %vm1909, %v4529
        // Predicated region
        $region269: #{dyt_transformer_forward.3} parent=143 // pred_check
          %p4532 = pneg %p873
        $region270: #{dyt_transformer_forward.3} parent=143 // pred_check_branch
          %4534 = sbr.rel (%p4532) target = $region272
        $region271: #{dyt_transformer_forward.3} parent=143 // pred_region
          %s4536 = ssub.s32 256, 256
          %4537 = vsyncadd [#allocation5], %s4536
          %s4538 = sshll.u32 [#allocation37], 4
          %s4539 = int_to_ptr.vmem [resolvable:$true] %s4538
          %4544 = dma.vmem_to_hbm [thread:$0]  %s4539, 256, %s63, [#allocation5], 128, 128, 8
        $region272: #{dyt_transformer_forward.3} parent=143 // pred_fallthru
          _
        // Predicated region
        $region273: #{dyt_transformer_forward.3} parent=143 // pred_check
          %p4545 = pneg %p873
        $region274: #{dyt_transformer_forward.3} parent=143 // pred_check_branch
          %4547 = sbr.rel (%p4545) target = $region276
        $region275: #{dyt_transformer_forward.3} parent=143 // pred_region
          %4548 = dma.done [#allocation5], 256
        $region276: #{dyt_transformer_forward.3} parent=143 // pred_fallthru
          _
      $region144: #{dyt_transformer_forward.3} parent=5 // pred_fallthru
        _
      %p4549 = scmp.le.s32.totalorder 2, %s74
      // Predicated region
      $region277: #{dyt_transformer_forward.3} parent=5 // pred_check
        %p4550 = pneg %p4549
      $region278: #{dyt_transformer_forward.3} parent=5 // pred_check_branch
        %4552 = sbr.rel (%p4550) target = $region280
      $region279: #{dyt_transformer_forward.3} parent=5 // pred_region
        %s4553 = ssub.s32 %s74, 2
      $region280: #{dyt_transformer_forward.3} parent=5 // pred_fallthru
        _
    $region6: #{dyt_transformer_forward.3} parent=1 // loop_footer
      %s78 = sadd.s32 1, %s74
    $region7: #{dyt_transformer_forward.3} parent=1 // loop_footer_branch
      %73 = sbr.rel target = $region3
    $region8: #{dyt_transformer_forward.3} parent=1 // loop_exit
      _
    %4554 = vsyncpa [#allocation4], 1
    %s4555 = scalar_lea.sflag [#allocation4], 1
    %4556 = vsyncpa %s4555, 1
    %4557 = vsyncpa [#allocation7], 1
    %4558 = vsyncpa [#allocation10], 1
    %4559 = vsyncpa [#allocation5], 1
    %s4560 = scalar_lea.sflag [#allocation5], 1
    %4561 = vsyncpa %s4560, 1

</llo_original>
